<compile_context>
chip_gen: v6e
topology: v6e:2x2x1
jax: 0.10.0
libtpu: 0.0.40
codegen_flags: <defaults>
</compile_context>

<pallas_src>
import jax
import jax.numpy as jnp
from jax.experimental import pallas as pl
from jax.experimental.pallas import tpu as pltpu

H_N_OMEGA = 40     # hidden width
INPUT_N = 2        # (x, y) coordinates
N_MID = 8          # number of 40->40 hidden layers after the first one
TILE_B = 1024      # batch tile (lane axis); multiple of LANE_CHUNK
LANE_CHUNK = 256   # in-kernel lane chunk: bounds live vregs, one 256-lane MXU tile


def _swish(x):
    # Swish(x) = x * sigmoid(x) = u + u*tanh(u), u = x/2  (exact identity;
    # 3 VALU ops + 1 EUP op per element).
    u = 0.5 * x
    return u + u * jnp.tanh(u)


def pinn_omega_kernel(x_ref, w_in_ref, b_in_ref, w_mid_ref, b_mid_ref,
                      w_out_t_ref, b_out_ref, o_ref):
    # x_ref:       (INPUT_N, TILE_B) f32      -- batch on lanes
    # w_in_ref:    (H, INPUT_N) f32, b_in_ref: (H, 1) f32
    # w_mid_ref:   (N_MID, H, H) bf16, b_mid_ref: (N_MID, H, 1) f32
    # w_out_t_ref: (H, 1) f32,  b_out_ref: (1, 1) f32
    # o_ref:       (1, TILE_B) f32            -- lane-dense output block
    tile_b = x_ref.shape[1]
    n_chunks = tile_b // LANE_CHUNK

    # Hoisted once per grid step (JAX does not CSE broadcasts/loads in loops).
    w_in = w_in_ref[...]                  # (H, 2)
    w0 = w_in[:, 0:1]                     # (H, 1)
    w1 = w_in[:, 1:2]                     # (H, 1)
    b_in = b_in_ref[...]                  # (H, 1)
    w_out_col = w_out_t_ref[...]          # (H, 1)
    b_out = b_out_ref[...]                # (1, 1)

    # Fully-unrolled chunk loop with static 256-aligned lane offsets; each
    # chunk's (H, LANE_CHUNK) activations are dead before the next chunk starts.
    for c in range(n_chunks):
        off = c * LANE_CHUNK
        xb = x_ref[:, off:off + LANE_CHUNK]                       # (2, LC) f32

        # K=2 input layer as two rank-1 VPU updates (no MXU round trip), f32.
        h = _swish(w0 * xb[0:1, :] + w1 * xb[1:2, :] + b_in)      # (H, LC) f32

        # 8 hidden 40->40 layers: bf16 MXU operands, f32 accumulation.
        for i in range(N_MID):
            z = jnp.dot(w_mid_ref[i], h.astype(jnp.bfloat16),
                        preferred_element_type=jnp.float32) + b_mid_ref[i]
            h = _swish(z)                                         # (H, LC) f32

        # M=1 output layer: VPU mul + XLU sublane reduction (no MXU), f32.
        out = jnp.sum(w_out_col * h, axis=0, keepdims=True) + b_out   # (1, LC)
        o_ref[:, off:off + LANE_CHUNK] = out.astype(o_ref.dtype)


def pinn_omega_forward_lane_major(xT, params, tile_b=TILE_B):
    """Lane-major entry point. xT: (INPUT_N, N) f32. Returns (1, N) f32."""
    w_in, b_in, w_mid, b_mid, w_out, b_out = params
    assert tile_b % LANE_CHUNK == 0, "tile_b must be a multiple of LANE_CHUNK"
    N = xT.shape[1]

    n_pad = pl.cdiv(N, tile_b) * tile_b
    if n_pad != N:
        xT = jnp.pad(xT, ((0, 0), (0, n_pad - N)))
    grid = (n_pad // tile_b,)

    # MXU operands in bf16 (f32 master weights kept outside); edge layers stay f32.
    w_mid_bf = w_mid.astype(jnp.bfloat16)          # (N_MID, H, H)
    w_out_col = w_out.T                            # (H, 1) for the VPU/XLU path

    # Constant block index => weights/biases fetched once, resident in VMEM.
    def full(shape):
        return pl.BlockSpec(shape, lambda i: tuple(0 for _ in shape))

    out = pl.pallas_call(
        pinn_omega_kernel,
        out_shape=jax.ShapeDtypeStruct((1, n_pad), jnp.float32),
        grid_spec=pltpu.PrefetchScalarGridSpec(
            num_scalar_prefetch=0,
            grid=grid,
            in_specs=[
                pl.BlockSpec((INPUT_N, tile_b), lambda i: (0, i)),   # x tile (lane-dense)
                full((H_N_OMEGA, INPUT_N)),                          # w_in     f32
                full((H_N_OMEGA, 1)),                                # b_in     f32
                full((N_MID, H_N_OMEGA, H_N_OMEGA)),                 # w_mid    bf16
                full((N_MID, H_N_OMEGA, 1)),                         # b_mid    f32
                full((H_N_OMEGA, 1)),                                # w_out^T  f32
                full((1, 1)),                                        # b_out    f32
            ],
            out_specs=pl.BlockSpec((1, tile_b), lambda i: (0, i)),   # lane-dense output
        ),
        compiler_params=pltpu.CompilerParams(
            dimension_semantics=("parallel",)),                      # shards across TCs
    )(xT, w_in, b_in, w_mid_bf, b_mid, w_out_col, b_out)

    return out[:, :N]


def pinn_omega_forward(x, params, tile_b=TILE_B):
    """PyTorch-style interface. x: (N, INPUT_N) f32. Returns (N, 1) f32."""
    out = pinn_omega_forward_lane_major(x.T, params, tile_b=tile_b)
    return out[0].reshape(-1, 1)


def init_params(key):
    """nn.Linear-style U(-1/sqrt(fan_in), 1/sqrt(fan_in)) init.

    Weights stored in PyTorch (out_features, in_features) form; biases as
    (out_features, 1) columns so they broadcast along the lane (batch) axis.
    """
    keys = jax.random.split(key, 6)

    def unif(k, shape, fan_in):
        bound = 1.0 / jnp.sqrt(float(fan_in))
        return jax.random.uniform(k, shape, jnp.float32, -bound, bound)

    w_in = unif(keys[0], (H_N_OMEGA, INPUT_N), INPUT_N)
    b_in = unif(keys[1], (H_N_OMEGA, 1), INPUT_N)
    w_mid = unif(keys[2], (N_MID, H_N_OMEGA, H_N_OMEGA), H_N_OMEGA)
    b_mid = unif(keys[3], (N_MID, H_N_OMEGA, 1), H_N_OMEGA)
    w_out = unif(keys[4], (1, H_N_OMEGA), H_N_OMEGA)
    b_out = unif(keys[5], (1, 1), H_N_OMEGA)
    return (w_in, b_in, w_mid, b_mid, w_out, b_out)


def reference_forward(x, params):
    """Pure-JAX reference with the kernel's numerics (exp-based sigmoid; f32 edge
    layers; bf16-operand / f32-accumulation mid-layer matmuls)."""
    w_in, b_in, w_mid, b_mid, w_out, b_out = params

    def swish_ref(v):
        return v * (1.0 / (1.0 + jnp.exp(-v)))

    h = swish_ref(x @ w_in.T + b_in[:, 0][None, :])                  # f32 edge layer
    for i in range(N_MID):
        z = jnp.dot(h.astype(jnp.bfloat16),
                    w_mid[i].T.astype(jnp.bfloat16),
                    preferred_element_type=jnp.float32) + b_mid[i, :, 0][None, :]
        h = swish_ref(z)
    return h @ w_out.T + b_out[0][None, :]                           # f32 edge layer


if __name__ == "__main__":
    key = jax.random.PRNGKey(0)
    k_param, k_x = jax.random.split(key)

    params = init_params(k_param)

    # 2-D collocation points: grid = N / TILE_B = 4 parallel steps
    # (multiple of 2 for dual-TC v7x, still amortizes step overhead on v5e/v6e).
    N = 4096
    x = jax.random.uniform(k_x, (N, INPUT_N), jnp.float32)  # (x, y) in [0, 1)

    out = pinn_omega_forward(x, params)
    out = jax.block_until_ready(out)

    ref = reference_forward(x, params)
    assert out.shape == (N, 1)
    # Tolerance loosened vs the all-f32 version because mid layers use bf16 MXU
    # operands (the reference applies the same casts, so this stays tight).
    assert jnp.allclose(out, ref, atol=2e-3, rtol=2e-3), "mismatch vs reference"

    print("KERNEL_OK")
</pallas_src>

<mosaic_0001>
module attributes {stable_mosaic.version = 11 : i64} {
  func.func @pinn_omega_kernel(%arg0: i32, %arg1: memref<2x1024xf32, #tpu.memory_space<vmem>>, %arg2: memref<40x2xf32, #tpu.memory_space<vmem>>, %arg3: memref<40x1xf32, #tpu.memory_space<vmem>>, %arg4: memref<8x40x40xbf16, #tpu.memory_space<vmem>>, %arg5: memref<8x40x1xf32, #tpu.memory_space<vmem>>, %arg6: memref<40x1xf32, #tpu.memory_space<vmem>>, %arg7: memref<1x1xf32, #tpu.memory_space<vmem>>, %arg8: memref<1x1024xf32, #tpu.memory_space<vmem>>) attributes {dimension_semantics = [#tpu.dimension_semantics<parallel>], iteration_bounds = array<i64: 4>, scalar_prefetch = 0 : i64, scratch_operands = 0 : i64, tpu.core_type = #tpu.core_type<tc>, window_params = [{transform_indices = @transform_0, window_bounds = array<i64: 2, 1024>}, {pipeline_mode = #tpu.pipeline_mode<synchronous>, transform_indices = @transform_1, window_bounds = array<i64: 40, 2>}, {pipeline_mode = #tpu.pipeline_mode<synchronous>, transform_indices = @transform_2, window_bounds = array<i64: 40, 1>}, {pipeline_mode = #tpu.pipeline_mode<synchronous>, transform_indices = @transform_3, window_bounds = array<i64: 8, 40, 40>}, {pipeline_mode = #tpu.pipeline_mode<synchronous>, transform_indices = @transform_4, window_bounds = array<i64: 8, 40, 1>}, {pipeline_mode = #tpu.pipeline_mode<synchronous>, transform_indices = @transform_5, window_bounds = array<i64: 40, 1>}, {pipeline_mode = #tpu.pipeline_mode<synchronous>, transform_indices = @transform_6, window_bounds = array<i64: 1, 1>}, {transform_indices = @transform_7, window_bounds = array<i64: 1, 1024>}]} {
    %c0 = arith.constant 0 : index
    %c0_0 = arith.constant 0 : index
    %0 = vector.load %arg2[%c0, %c0_0] : memref<40x2xf32, #tpu.memory_space<vmem>>, vector<40x2xf32>
    %1 = vector.extract_strided_slice %0 {offsets = [0, 0], sizes = [40, 1], strides = [1, 1]} : vector<40x2xf32> to vector<40x1xf32>
    %2 = vector.extract_strided_slice %0 {offsets = [0, 1], sizes = [40, 1], strides = [1, 1]} : vector<40x2xf32> to vector<40x1xf32>
    %c0_1 = arith.constant 0 : index
    %c0_2 = arith.constant 0 : index
    %3 = vector.load %arg3[%c0_1, %c0_2] : memref<40x1xf32, #tpu.memory_space<vmem>>, vector<40x1xf32>
    %c0_3 = arith.constant 0 : index
    %c0_4 = arith.constant 0 : index
    %4 = vector.load %arg6[%c0_3, %c0_4] : memref<40x1xf32, #tpu.memory_space<vmem>>, vector<40x1xf32>
    %c0_5 = arith.constant 0 : index
    %c0_6 = arith.constant 0 : index
    %5 = vector.load %arg7[%c0_5, %c0_6] : memref<1x1xf32, #tpu.memory_space<vmem>>, vector<1x1xf32>
    %c0_7 = arith.constant 0 : index
    %c0_8 = arith.constant 0 : index
    %6 = vector.load %arg1[%c0_7, %c0_8] : memref<2x1024xf32, #tpu.memory_space<vmem>>, vector<2x256xf32>
    %7 = vector.extract_strided_slice %6 {offsets = [0, 0], sizes = [1, 256], strides = [1, 1]} : vector<2x256xf32> to vector<1x256xf32>
    %8 = vector.broadcast %1 : vector<40x1xf32> to vector<40x256xf32>
    %9 = vector.broadcast %7 : vector<1x256xf32> to vector<40x256xf32>
    %10 = arith.mulf %8, %9 : vector<40x256xf32>
    %11 = vector.extract_strided_slice %6 {offsets = [1, 0], sizes = [1, 256], strides = [1, 1]} : vector<2x256xf32> to vector<1x256xf32>
    %12 = vector.broadcast %2 : vector<40x1xf32> to vector<40x256xf32>
    %13 = vector.broadcast %11 : vector<1x256xf32> to vector<40x256xf32>
    %14 = arith.mulf %12, %13 : vector<40x256xf32>
    %15 = arith.addf %10, %14 : vector<40x256xf32>
    %16 = vector.broadcast %3 : vector<40x1xf32> to vector<40x256xf32>
    %17 = arith.addf %15, %16 : vector<40x256xf32>
    %cst = arith.constant 5.000000e-01 : f32
    %18 = vector.broadcast %cst : f32 to vector<40x256xf32>
    %19 = arith.mulf %18, %17 : vector<40x256xf32>
    %20 = math.tanh %19 : vector<40x256xf32>
    %21 = arith.mulf %19, %20 : vector<40x256xf32>
    %22 = arith.addf %19, %21 : vector<40x256xf32>
    %c0_9 = arith.constant 0 : index
    %c0_10 = arith.constant 0 : index
    %c0_11 = arith.constant 0 : index
    %23 = vector.load %arg4[%c0_9, %c0_10, %c0_11] : memref<8x40x40xbf16, #tpu.memory_space<vmem>>, vector<1x40x40xbf16>
    %24 = vector.shape_cast %23 : vector<1x40x40xbf16> to vector<40x40xbf16>
    %25 = arith.truncf %22 : vector<40x256xf32> to vector<40x256xbf16>
    %cst_12 = arith.constant dense<0.000000e+00> : vector<40x256xf32>
    %26 = tpu.matmul %24, %25, %cst_12 {dimension_numbers = #tpu.dot_dimension_numbers<[1], [0], [0], [1], [0, 0, 1, 1], [], []>} : vector<40x40xbf16>, vector<40x256xbf16>, vector<40x256xf32> -> vector<40x256xf32>
    %c0_13 = arith.constant 0 : index
    %c0_14 = arith.constant 0 : index
    %c0_15 = arith.constant 0 : index
    %27 = vector.load %arg5[%c0_13, %c0_14, %c0_15] : memref<8x40x1xf32, #tpu.memory_space<vmem>>, vector<1x40x1xf32>
    %28 = vector.shape_cast %27 : vector<1x40x1xf32> to vector<40x1xf32>
    %29 = vector.broadcast %28 : vector<40x1xf32> to vector<40x256xf32>
    %30 = arith.addf %26, %29 : vector<40x256xf32>
    %cst_16 = arith.constant 5.000000e-01 : f32
    %31 = vector.broadcast %cst_16 : f32 to vector<40x256xf32>
    %32 = arith.mulf %31, %30 : vector<40x256xf32>
    %33 = math.tanh %32 : vector<40x256xf32>
    %34 = arith.mulf %32, %33 : vector<40x256xf32>
    %35 = arith.addf %32, %34 : vector<40x256xf32>
    %c1 = arith.constant 1 : index
    %c0_17 = arith.constant 0 : index
    %c0_18 = arith.constant 0 : index
    %36 = vector.load %arg4[%c1, %c0_17, %c0_18] : memref<8x40x40xbf16, #tpu.memory_space<vmem>>, vector<1x40x40xbf16>
    %37 = vector.shape_cast %36 : vector<1x40x40xbf16> to vector<40x40xbf16>
    %38 = arith.truncf %35 : vector<40x256xf32> to vector<40x256xbf16>
    %cst_19 = arith.constant dense<0.000000e+00> : vector<40x256xf32>
    %39 = tpu.matmul %37, %38, %cst_19 {dimension_numbers = #tpu.dot_dimension_numbers<[1], [0], [0], [1], [0, 0, 1, 1], [], []>} : vector<40x40xbf16>, vector<40x256xbf16>, vector<40x256xf32> -> vector<40x256xf32>
    %c1_20 = arith.constant 1 : index
    %c0_21 = arith.constant 0 : index
    %c0_22 = arith.constant 0 : index
    %40 = vector.load %arg5[%c1_20, %c0_21, %c0_22] : memref<8x40x1xf32, #tpu.memory_space<vmem>>, vector<1x40x1xf32>
    %41 = vector.shape_cast %40 : vector<1x40x1xf32> to vector<40x1xf32>
    %42 = vector.broadcast %41 : vector<40x1xf32> to vector<40x256xf32>
    %43 = arith.addf %39, %42 : vector<40x256xf32>
    %cst_23 = arith.constant 5.000000e-01 : f32
    %44 = vector.broadcast %cst_23 : f32 to vector<40x256xf32>
    %45 = arith.mulf %44, %43 : vector<40x256xf32>
    %46 = math.tanh %45 : vector<40x256xf32>
    %47 = arith.mulf %45, %46 : vector<40x256xf32>
    %48 = arith.addf %45, %47 : vector<40x256xf32>
    %c2 = arith.constant 2 : index
    %c0_24 = arith.constant 0 : index
    %c0_25 = arith.constant 0 : index
    %49 = vector.load %arg4[%c2, %c0_24, %c0_25] : memref<8x40x40xbf16, #tpu.memory_space<vmem>>, vector<1x40x40xbf16>
    %50 = vector.shape_cast %49 : vector<1x40x40xbf16> to vector<40x40xbf16>
    %51 = arith.truncf %48 : vector<40x256xf32> to vector<40x256xbf16>
    %cst_26 = arith.constant dense<0.000000e+00> : vector<40x256xf32>
    %52 = tpu.matmul %50, %51, %cst_26 {dimension_numbers = #tpu.dot_dimension_numbers<[1], [0], [0], [1], [0, 0, 1, 1], [], []>} : vector<40x40xbf16>, vector<40x256xbf16>, vector<40x256xf32> -> vector<40x256xf32>
    %c2_27 = arith.constant 2 : index
    %c0_28 = arith.constant 0 : index
    %c0_29 = arith.constant 0 : index
    %53 = vector.load %arg5[%c2_27, %c0_28, %c0_29] : memref<8x40x1xf32, #tpu.memory_space<vmem>>, vector<1x40x1xf32>
    %54 = vector.shape_cast %53 : vector<1x40x1xf32> to vector<40x1xf32>
    %55 = vector.broadcast %54 : vector<40x1xf32> to vector<40x256xf32>
    %56 = arith.addf %52, %55 : vector<40x256xf32>
    %cst_30 = arith.constant 5.000000e-01 : f32
    %57 = vector.broadcast %cst_30 : f32 to vector<40x256xf32>
    %58 = arith.mulf %57, %56 : vector<40x256xf32>
    %59 = math.tanh %58 : vector<40x256xf32>
    %60 = arith.mulf %58, %59 : vector<40x256xf32>
    %61 = arith.addf %58, %60 : vector<40x256xf32>
    %c3 = arith.constant 3 : index
    %c0_31 = arith.constant 0 : index
    %c0_32 = arith.constant 0 : index
    %62 = vector.load %arg4[%c3, %c0_31, %c0_32] : memref<8x40x40xbf16, #tpu.memory_space<vmem>>, vector<1x40x40xbf16>
    %63 = vector.shape_cast %62 : vector<1x40x40xbf16> to vector<40x40xbf16>
    %64 = arith.truncf %61 : vector<40x256xf32> to vector<40x256xbf16>
    %cst_33 = arith.constant dense<0.000000e+00> : vector<40x256xf32>
    %65 = tpu.matmul %63, %64, %cst_33 {dimension_numbers = #tpu.dot_dimension_numbers<[1], [0], [0], [1], [0, 0, 1, 1], [], []>} : vector<40x40xbf16>, vector<40x256xbf16>, vector<40x256xf32> -> vector<40x256xf32>
    %c3_34 = arith.constant 3 : index
    %c0_35 = arith.constant 0 : index
    %c0_36 = arith.constant 0 : index
    %66 = vector.load %arg5[%c3_34, %c0_35, %c0_36] : memref<8x40x1xf32, #tpu.memory_space<vmem>>, vector<1x40x1xf32>
    %67 = vector.shape_cast %66 : vector<1x40x1xf32> to vector<40x1xf32>
    %68 = vector.broadcast %67 : vector<40x1xf32> to vector<40x256xf32>
    %69 = arith.addf %65, %68 : vector<40x256xf32>
    %cst_37 = arith.constant 5.000000e-01 : f32
    %70 = vector.broadcast %cst_37 : f32 to vector<40x256xf32>
    %71 = arith.mulf %70, %69 : vector<40x256xf32>
    %72 = math.tanh %71 : vector<40x256xf32>
    %73 = arith.mulf %71, %72 : vector<40x256xf32>
    %74 = arith.addf %71, %73 : vector<40x256xf32>
    %c4 = arith.constant 4 : index
    %c0_38 = arith.constant 0 : index
    %c0_39 = arith.constant 0 : index
    %75 = vector.load %arg4[%c4, %c0_38, %c0_39] : memref<8x40x40xbf16, #tpu.memory_space<vmem>>, vector<1x40x40xbf16>
    %76 = vector.shape_cast %75 : vector<1x40x40xbf16> to vector<40x40xbf16>
    %77 = arith.truncf %74 : vector<40x256xf32> to vector<40x256xbf16>
    %cst_40 = arith.constant dense<0.000000e+00> : vector<40x256xf32>
    %78 = tpu.matmul %76, %77, %cst_40 {dimension_numbers = #tpu.dot_dimension_numbers<[1], [0], [0], [1], [0, 0, 1, 1], [], []>} : vector<40x40xbf16>, vector<40x256xbf16>, vector<40x256xf32> -> vector<40x256xf32>
    %c4_41 = arith.constant 4 : index
    %c0_42 = arith.constant 0 : index
    %c0_43 = arith.constant 0 : index
    %79 = vector.load %arg5[%c4_41, %c0_42, %c0_43] : memref<8x40x1xf32, #tpu.memory_space<vmem>>, vector<1x40x1xf32>
    %80 = vector.shape_cast %79 : vector<1x40x1xf32> to vector<40x1xf32>
    %81 = vector.broadcast %80 : vector<40x1xf32> to vector<40x256xf32>
    %82 = arith.addf %78, %81 : vector<40x256xf32>
    %cst_44 = arith.constant 5.000000e-01 : f32
    %83 = vector.broadcast %cst_44 : f32 to vector<40x256xf32>
    %84 = arith.mulf %83, %82 : vector<40x256xf32>
    %85 = math.tanh %84 : vector<40x256xf32>
    %86 = arith.mulf %84, %85 : vector<40x256xf32>
    %87 = arith.addf %84, %86 : vector<40x256xf32>
    %c5 = arith.constant 5 : index
    %c0_45 = arith.constant 0 : index
    %c0_46 = arith.constant 0 : index
    %88 = vector.load %arg4[%c5, %c0_45, %c0_46] : memref<8x40x40xbf16, #tpu.memory_space<vmem>>, vector<1x40x40xbf16>
    %89 = vector.shape_cast %88 : vector<1x40x40xbf16> to vector<40x40xbf16>
    %90 = arith.truncf %87 : vector<40x256xf32> to vector<40x256xbf16>
    %cst_47 = arith.constant dense<0.000000e+00> : vector<40x256xf32>
    %91 = tpu.matmul %89, %90, %cst_47 {dimension_numbers = #tpu.dot_dimension_numbers<[1], [0], [0], [1], [0, 0, 1, 1], [], []>} : vector<40x40xbf16>, vector<40x256xbf16>, vector<40x256xf32> -> vector<40x256xf32>
    %c5_48 = arith.constant 5 : index
    %c0_49 = arith.constant 0 : index
    %c0_50 = arith.constant 0 : index
    %92 = vector.load %arg5[%c5_48, %c0_49, %c0_50] : memref<8x40x1xf32, #tpu.memory_space<vmem>>, vector<1x40x1xf32>
    %93 = vector.shape_cast %92 : vector<1x40x1xf32> to vector<40x1xf32>
    %94 = vector.broadcast %93 : vector<40x1xf32> to vector<40x256xf32>
    %95 = arith.addf %91, %94 : vector<40x256xf32>
    %cst_51 = arith.constant 5.000000e-01 : f32
    %96 = vector.broadcast %cst_51 : f32 to vector<40x256xf32>
    %97 = arith.mulf %96, %95 : vector<40x256xf32>
    %98 = math.tanh %97 : vector<40x256xf32>
    %99 = arith.mulf %97, %98 : vector<40x256xf32>
    %100 = arith.addf %97, %99 : vector<40x256xf32>
    %c6 = arith.constant 6 : index
    %c0_52 = arith.constant 0 : index
    %c0_53 = arith.constant 0 : index
    %101 = vector.load %arg4[%c6, %c0_52, %c0_53] : memref<8x40x40xbf16, #tpu.memory_space<vmem>>, vector<1x40x40xbf16>
    %102 = vector.shape_cast %101 : vector<1x40x40xbf16> to vector<40x40xbf16>
    %103 = arith.truncf %100 : vector<40x256xf32> to vector<40x256xbf16>
    %cst_54 = arith.constant dense<0.000000e+00> : vector<40x256xf32>
    %104 = tpu.matmul %102, %103, %cst_54 {dimension_numbers = #tpu.dot_dimension_numbers<[1], [0], [0], [1], [0, 0, 1, 1], [], []>} : vector<40x40xbf16>, vector<40x256xbf16>, vector<40x256xf32> -> vector<40x256xf32>
    %c6_55 = arith.constant 6 : index
    %c0_56 = arith.constant 0 : index
    %c0_57 = arith.constant 0 : index
    %105 = vector.load %arg5[%c6_55, %c0_56, %c0_57] : memref<8x40x1xf32, #tpu.memory_space<vmem>>, vector<1x40x1xf32>
    %106 = vector.shape_cast %105 : vector<1x40x1xf32> to vector<40x1xf32>
    %107 = vector.broadcast %106 : vector<40x1xf32> to vector<40x256xf32>
    %108 = arith.addf %104, %107 : vector<40x256xf32>
    %cst_58 = arith.constant 5.000000e-01 : f32
    %109 = vector.broadcast %cst_58 : f32 to vector<40x256xf32>
    %110 = arith.mulf %109, %108 : vector<40x256xf32>
    %111 = math.tanh %110 : vector<40x256xf32>
    %112 = arith.mulf %110, %111 : vector<40x256xf32>
    %113 = arith.addf %110, %112 : vector<40x256xf32>
    %c7 = arith.constant 7 : index
    %c0_59 = arith.constant 0 : index
    %c0_60 = arith.constant 0 : index
    %114 = vector.load %arg4[%c7, %c0_59, %c0_60] : memref<8x40x40xbf16, #tpu.memory_space<vmem>>, vector<1x40x40xbf16>
    %115 = vector.shape_cast %114 : vector<1x40x40xbf16> to vector<40x40xbf16>
    %116 = arith.truncf %113 : vector<40x256xf32> to vector<40x256xbf16>
    %cst_61 = arith.constant dense<0.000000e+00> : vector<40x256xf32>
    %117 = tpu.matmul %115, %116, %cst_61 {dimension_numbers = #tpu.dot_dimension_numbers<[1], [0], [0], [1], [0, 0, 1, 1], [], []>} : vector<40x40xbf16>, vector<40x256xbf16>, vector<40x256xf32> -> vector<40x256xf32>
    %c7_62 = arith.constant 7 : index
    %c0_63 = arith.constant 0 : index
    %c0_64 = arith.constant 0 : index
    %118 = vector.load %arg5[%c7_62, %c0_63, %c0_64] : memref<8x40x1xf32, #tpu.memory_space<vmem>>, vector<1x40x1xf32>
    %119 = vector.shape_cast %118 : vector<1x40x1xf32> to vector<40x1xf32>
    %120 = vector.broadcast %119 : vector<40x1xf32> to vector<40x256xf32>
    %121 = arith.addf %117, %120 : vector<40x256xf32>
    %cst_65 = arith.constant 5.000000e-01 : f32
    %122 = vector.broadcast %cst_65 : f32 to vector<40x256xf32>
    %123 = arith.mulf %122, %121 : vector<40x256xf32>
    %124 = math.tanh %123 : vector<40x256xf32>
    %125 = arith.mulf %123, %124 : vector<40x256xf32>
    %126 = arith.addf %123, %125 : vector<40x256xf32>
    %127 = vector.broadcast %4 : vector<40x1xf32> to vector<40x256xf32>
    %128 = arith.mulf %127, %126 : vector<40x256xf32>
    %cst_66 = arith.constant dense<0.000000e+00> : vector<256xf32>
    %129 = vector.multi_reduction <add>, %128, %cst_66 [0] : vector<40x256xf32> to vector<256xf32>
    %130 = vector.shape_cast %129 : vector<256xf32> to vector<1x256xf32>
    %131 = vector.broadcast %5 : vector<1x1xf32> to vector<1x256xf32>
    %132 = arith.addf %130, %131 : vector<1x256xf32>
    %c0_67 = arith.constant 0 : index
    %c0_68 = arith.constant 0 : index
    %133 = vector.load %arg8[%c0_67, %c0_68] : memref<1x1024xf32, #tpu.memory_space<vmem>>, vector<1x256xf32>
    tpu.vector_store %arg8[%c0_67, %c0_68], %132 {strides = array<i32>} : memref<1x1024xf32, #tpu.memory_space<vmem>>, vector<1x256xf32>,
    %c0_69 = arith.constant 0 : index
    %c256 = arith.constant 256 : index
    %134 = vector.load %arg1[%c0_69, %c256] : memref<2x1024xf32, #tpu.memory_space<vmem>>, vector<2x256xf32>
    %135 = vector.extract_strided_slice %134 {offsets = [0, 0], sizes = [1, 256], strides = [1, 1]} : vector<2x256xf32> to vector<1x256xf32>
    %136 = vector.broadcast %1 : vector<40x1xf32> to vector<40x256xf32>
    %137 = vector.broadcast %135 : vector<1x256xf32> to vector<40x256xf32>
    %138 = arith.mulf %136, %137 : vector<40x256xf32>
    %139 = vector.extract_strided_slice %134 {offsets = [1, 0], sizes = [1, 256], strides = [1, 1]} : vector<2x256xf32> to vector<1x256xf32>
    %140 = vector.broadcast %2 : vector<40x1xf32> to vector<40x256xf32>
    %141 = vector.broadcast %139 : vector<1x256xf32> to vector<40x256xf32>
    %142 = arith.mulf %140, %141 : vector<40x256xf32>
    %143 = arith.addf %138, %142 : vector<40x256xf32>
    %144 = vector.broadcast %3 : vector<40x1xf32> to vector<40x256xf32>
    %145 = arith.addf %143, %144 : vector<40x256xf32>
    %cst_70 = arith.constant 5.000000e-01 : f32
    %146 = vector.broadcast %cst_70 : f32 to vector<40x256xf32>
    %147 = arith.mulf %146, %145 : vector<40x256xf32>
    %148 = math.tanh %147 : vector<40x256xf32>
    %149 = arith.mulf %147, %148 : vector<40x256xf32>
    %150 = arith.addf %147, %149 : vector<40x256xf32>
    %c0_71 = arith.constant 0 : index
    %c0_72 = arith.constant 0 : index
    %c0_73 = arith.constant 0 : index
    %151 = vector.load %arg4[%c0_71, %c0_72, %c0_73] : memref<8x40x40xbf16, #tpu.memory_space<vmem>>, vector<1x40x40xbf16>
    %152 = vector.shape_cast %151 : vector<1x40x40xbf16> to vector<40x40xbf16>
    %153 = arith.truncf %150 : vector<40x256xf32> to vector<40x256xbf16>
    %cst_74 = arith.constant dense<0.000000e+00> : vector<40x256xf32>
    %154 = tpu.matmul %152, %153, %cst_74 {dimension_numbers = #tpu.dot_dimension_numbers<[1], [0], [0], [1], [0, 0, 1, 1], [], []>} : vector<40x40xbf16>, vector<40x256xbf16>, vector<40x256xf32> -> vector<40x256xf32>
    %c0_75 = arith.constant 0 : index
    %c0_76 = arith.constant 0 : index
    %c0_77 = arith.constant 0 : index
    %155 = vector.load %arg5[%c0_75, %c0_76, %c0_77] : memref<8x40x1xf32, #tpu.memory_space<vmem>>, vector<1x40x1xf32>
    %156 = vector.shape_cast %155 : vector<1x40x1xf32> to vector<40x1xf32>
    %157 = vector.broadcast %156 : vector<40x1xf32> to vector<40x256xf32>
    %158 = arith.addf %154, %157 : vector<40x256xf32>
    %cst_78 = arith.constant 5.000000e-01 : f32
    %159 = vector.broadcast %cst_78 : f32 to vector<40x256xf32>
    %160 = arith.mulf %159, %158 : vector<40x256xf32>
    %161 = math.tanh %160 : vector<40x256xf32>
    %162 = arith.mulf %160, %161 : vector<40x256xf32>
    %163 = arith.addf %160, %162 : vector<40x256xf32>
    %c1_79 = arith.constant 1 : index
    %c0_80 = arith.constant 0 : index
    %c0_81 = arith.constant 0 : index
    %164 = vector.load %arg4[%c1_79, %c0_80, %c0_81] : memref<8x40x40xbf16, #tpu.memory_space<vmem>>, vector<1x40x40xbf16>
    %165 = vector.shape_cast %164 : vector<1x40x40xbf16> to vector<40x40xbf16>
    %166 = arith.truncf %163 : vector<40x256xf32> to vector<40x256xbf16>
    %cst_82 = arith.constant dense<0.000000e+00> : vector<40x256xf32>
    %167 = tpu.matmul %165, %166, %cst_82 {dimension_numbers = #tpu.dot_dimension_numbers<[1], [0], [0], [1], [0, 0, 1, 1], [], []>} : vector<40x40xbf16>, vector<40x256xbf16>, vector<40x256xf32> -> vector<40x256xf32>
    %c1_83 = arith.constant 1 : index
    %c0_84 = arith.constant 0 : index
    %c0_85 = arith.constant 0 : index
    %168 = vector.load %arg5[%c1_83, %c0_84, %c0_85] : memref<8x40x1xf32, #tpu.memory_space<vmem>>, vector<1x40x1xf32>
    %169 = vector.shape_cast %168 : vector<1x40x1xf32> to vector<40x1xf32>
    %170 = vector.broadcast %169 : vector<40x1xf32> to vector<40x256xf32>
    %171 = arith.addf %167, %170 : vector<40x256xf32>
    %cst_86 = arith.constant 5.000000e-01 : f32
    %172 = vector.broadcast %cst_86 : f32 to vector<40x256xf32>
    %173 = arith.mulf %172, %171 : vector<40x256xf32>
    %174 = math.tanh %173 : vector<40x256xf32>
    %175 = arith.mulf %173, %174 : vector<40x256xf32>
    %176 = arith.addf %173, %175 : vector<40x256xf32>
    %c2_87 = arith.constant 2 : index
    %c0_88 = arith.constant 0 : index
    %c0_89 = arith.constant 0 : index
    %177 = vector.load %arg4[%c2_87, %c0_88, %c0_89] : memref<8x40x40xbf16, #tpu.memory_space<vmem>>, vector<1x40x40xbf16>
    %178 = vector.shape_cast %177 : vector<1x40x40xbf16> to vector<40x40xbf16>
    %179 = arith.truncf %176 : vector<40x256xf32> to vector<40x256xbf16>
    %cst_90 = arith.constant dense<0.000000e+00> : vector<40x256xf32>
    %180 = tpu.matmul %178, %179, %cst_90 {dimension_numbers = #tpu.dot_dimension_numbers<[1], [0], [0], [1], [0, 0, 1, 1], [], []>} : vector<40x40xbf16>, vector<40x256xbf16>, vector<40x256xf32> -> vector<40x256xf32>
    %c2_91 = arith.constant 2 : index
    %c0_92 = arith.constant 0 : index
    %c0_93 = arith.constant 0 : index
    %181 = vector.load %arg5[%c2_91, %c0_92, %c0_93] : memref<8x40x1xf32, #tpu.memory_space<vmem>>, vector<1x40x1xf32>
    %182 = vector.shape_cast %181 : vector<1x40x1xf32> to vector<40x1xf32>
    %183 = vector.broadcast %182 : vector<40x1xf32> to vector<40x256xf32>
    %184 = arith.addf %180, %183 : vector<40x256xf32>
    %cst_94 = arith.constant 5.000000e-01 : f32
    %185 = vector.broadcast %cst_94 : f32 to vector<40x256xf32>
    %186 = arith.mulf %185, %184 : vector<40x256xf32>
    %187 = math.tanh %186 : vector<40x256xf32>
    %188 = arith.mulf %186, %187 : vector<40x256xf32>
    %189 = arith.addf %186, %188 : vector<40x256xf32>
    %c3_95 = arith.constant 3 : index
    %c0_96 = arith.constant 0 : index
    %c0_97 = arith.constant 0 : index
    %190 = vector.load %arg4[%c3_95, %c0_96, %c0_97] : memref<8x40x40xbf16, #tpu.memory_space<vmem>>, vector<1x40x40xbf16>
    %191 = vector.shape_cast %190 : vector<1x40x40xbf16> to vector<40x40xbf16>
    %192 = arith.truncf %189 : vector<40x256xf32> to vector<40x256xbf16>
    %cst_98 = arith.constant dense<0.000000e+00> : vector<40x256xf32>
    %193 = tpu.matmul %191, %192, %cst_98 {dimension_numbers = #tpu.dot_dimension_numbers<[1], [0], [0], [1], [0, 0, 1, 1], [], []>} : vector<40x40xbf16>, vector<40x256xbf16>, vector<40x256xf32> -> vector<40x256xf32>
    %c3_99 = arith.constant 3 : index
    %c0_100 = arith.constant 0 : index
    %c0_101 = arith.constant 0 : index
    %194 = vector.load %arg5[%c3_99, %c0_100, %c0_101] : memref<8x40x1xf32, #tpu.memory_space<vmem>>, vector<1x40x1xf32>
    %195 = vector.shape_cast %194 : vector<1x40x1xf32> to vector<40x1xf32>
    %196 = vector.broadcast %195 : vector<40x1xf32> to vector<40x256xf32>
    %197 = arith.addf %193, %196 : vector<40x256xf32>
    %cst_102 = arith.constant 5.000000e-01 : f32
    %198 = vector.broadcast %cst_102 : f32 to vector<40x256xf32>
    %199 = arith.mulf %198, %197 : vector<40x256xf32>
    %200 = math.tanh %199 : vector<40x256xf32>
    %201 = arith.mulf %199, %200 : vector<40x256xf32>
    %202 = arith.addf %199, %201 : vector<40x256xf32>
    %c4_103 = arith.constant 4 : index
    %c0_104 = arith.constant 0 : index
    %c0_105 = arith.constant 0 : index
    %203 = vector.load %arg4[%c4_103, %c0_104, %c0_105] : memref<8x40x40xbf16, #tpu.memory_space<vmem>>, vector<1x40x40xbf16>
    %204 = vector.shape_cast %203 : vector<1x40x40xbf16> to vector<40x40xbf16>
    %205 = arith.truncf %202 : vector<40x256xf32> to vector<40x256xbf16>
    %cst_106 = arith.constant dense<0.000000e+00> : vector<40x256xf32>
    %206 = tpu.matmul %204, %205, %cst_106 {dimension_numbers = #tpu.dot_dimension_numbers<[1], [0], [0], [1], [0, 0, 1, 1], [], []>} : vector<40x40xbf16>, vector<40x256xbf16>, vector<40x256xf32> -> vector<40x256xf32>
    %c4_107 = arith.constant 4 : index
    %c0_108 = arith.constant 0 : index
    %c0_109 = arith.constant 0 : index
    %207 = vector.load %arg5[%c4_107, %c0_108, %c0_109] : memref<8x40x1xf32, #tpu.memory_space<vmem>>, vector<1x40x1xf32>
    %208 = vector.shape_cast %207 : vector<1x40x1xf32> to vector<40x1xf32>
    %209 = vector.broadcast %208 : vector<40x1xf32> to vector<40x256xf32>
    %210 = arith.addf %206, %209 : vector<40x256xf32>
    %cst_110 = arith.constant 5.000000e-01 : f32
    %211 = vector.broadcast %cst_110 : f32 to vector<40x256xf32>
    %212 = arith.mulf %211, %210 : vector<40x256xf32>
    %213 = math.tanh %212 : vector<40x256xf32>
    %214 = arith.mulf %212, %213 : vector<40x256xf32>
    %215 = arith.addf %212, %214 : vector<40x256xf32>
    %c5_111 = arith.constant 5 : index
    %c0_112 = arith.constant 0 : index
    %c0_113 = arith.constant 0 : index
    %216 = vector.load %arg4[%c5_111, %c0_112, %c0_113] : memref<8x40x40xbf16, #tpu.memory_space<vmem>>, vector<1x40x40xbf16>
    %217 = vector.shape_cast %216 : vector<1x40x40xbf16> to vector<40x40xbf16>
    %218 = arith.truncf %215 : vector<40x256xf32> to vector<40x256xbf16>
    %cst_114 = arith.constant dense<0.000000e+00> : vector<40x256xf32>
    %219 = tpu.matmul %217, %218, %cst_114 {dimension_numbers = #tpu.dot_dimension_numbers<[1], [0], [0], [1], [0, 0, 1, 1], [], []>} : vector<40x40xbf16>, vector<40x256xbf16>, vector<40x256xf32> -> vector<40x256xf32>
    %c5_115 = arith.constant 5 : index
    %c0_116 = arith.constant 0 : index
    %c0_117 = arith.constant 0 : index
    %220 = vector.load %arg5[%c5_115, %c0_116, %c0_117] : memref<8x40x1xf32, #tpu.memory_space<vmem>>, vector<1x40x1xf32>
    %221 = vector.shape_cast %220 : vector<1x40x1xf32> to vector<40x1xf32>
    %222 = vector.broadcast %221 : vector<40x1xf32> to vector<40x256xf32>
    %223 = arith.addf %219, %222 : vector<40x256xf32>
    %cst_118 = arith.constant 5.000000e-01 : f32
    %224 = vector.broadcast %cst_118 : f32 to vector<40x256xf32>
    %225 = arith.mulf %224, %223 : vector<40x256xf32>
    %226 = math.tanh %225 : vector<40x256xf32>
    %227 = arith.mulf %225, %226 : vector<40x256xf32>
    %228 = arith.addf %225, %227 : vector<40x256xf32>
    %c6_119 = arith.constant 6 : index
    %c0_120 = arith.constant 0 : index
    %c0_121 = arith.constant 0 : index
    %229 = vector.load %arg4[%c6_119, %c0_120, %c0_121] : memref<8x40x40xbf16, #tpu.memory_space<vmem>>, vector<1x40x40xbf16>
    %230 = vector.shape_cast %229 : vector<1x40x40xbf16> to vector<40x40xbf16>
    %231 = arith.truncf %228 : vector<40x256xf32> to vector<40x256xbf16>
    %cst_122 = arith.constant dense<0.000000e+00> : vector<40x256xf32>
    %232 = tpu.matmul %230, %231, %cst_122 {dimension_numbers = #tpu.dot_dimension_numbers<[1], [0], [0], [1], [0, 0, 1, 1], [], []>} : vector<40x40xbf16>, vector<40x256xbf16>, vector<40x256xf32> -> vector<40x256xf32>
    %c6_123 = arith.constant 6 : index
    %c0_124 = arith.constant 0 : index
    %c0_125 = arith.constant 0 : index
    %233 = vector.load %arg5[%c6_123, %c0_124, %c0_125] : memref<8x40x1xf32, #tpu.memory_space<vmem>>, vector<1x40x1xf32>
    %234 = vector.shape_cast %233 : vector<1x40x1xf32> to vector<40x1xf32>
    %235 = vector.broadcast %234 : vector<40x1xf32> to vector<40x256xf32>
    %236 = arith.addf %232, %235 : vector<40x256xf32>
    %cst_126 = arith.constant 5.000000e-01 : f32
    %237 = vector.broadcast %cst_126 : f32 to vector<40x256xf32>
    %238 = arith.mulf %237, %236 : vector<40x256xf32>
    %239 = math.tanh %238 : vector<40x256xf32>
    %240 = arith.mulf %238, %239 : vector<40x256xf32>
    %241 = arith.addf %238, %240 : vector<40x256xf32>
    %c7_127 = arith.constant 7 : index
    %c0_128 = arith.constant 0 : index
    %c0_129 = arith.constant 0 : index
    %242 = vector.load %arg4[%c7_127, %c0_128, %c0_129] : memref<8x40x40xbf16, #tpu.memory_space<vmem>>, vector<1x40x40xbf16>
    %243 = vector.shape_cast %242 : vector<1x40x40xbf16> to vector<40x40xbf16>
    %244 = arith.truncf %241 : vector<40x256xf32> to vector<40x256xbf16>
    %cst_130 = arith.constant dense<0.000000e+00> : vector<40x256xf32>
    %245 = tpu.matmul %243, %244, %cst_130 {dimension_numbers = #tpu.dot_dimension_numbers<[1], [0], [0], [1], [0, 0, 1, 1], [], []>} : vector<40x40xbf16>, vector<40x256xbf16>, vector<40x256xf32> -> vector<40x256xf32>
    %c7_131 = arith.constant 7 : index
    %c0_132 = arith.constant 0 : index
    %c0_133 = arith.constant 0 : index
    %246 = vector.load %arg5[%c7_131, %c0_132, %c0_133] : memref<8x40x1xf32, #tpu.memory_space<vmem>>, vector<1x40x1xf32>
    %247 = vector.shape_cast %246 : vector<1x40x1xf32> to vector<40x1xf32>
    %248 = vector.broadcast %247 : vector<40x1xf32> to vector<40x256xf32>
    %249 = arith.addf %245, %248 : vector<40x256xf32>
    %cst_134 = arith.constant 5.000000e-01 : f32
    %250 = vector.broadcast %cst_134 : f32 to vector<40x256xf32>
    %251 = arith.mulf %250, %249 : vector<40x256xf32>
    %252 = math.tanh %251 : vector<40x256xf32>
    %253 = arith.mulf %251, %252 : vector<40x256xf32>
    %254 = arith.addf %251, %253 : vector<40x256xf32>
    %255 = vector.broadcast %4 : vector<40x1xf32> to vector<40x256xf32>
    %256 = arith.mulf %255, %254 : vector<40x256xf32>
    %cst_135 = arith.constant dense<0.000000e+00> : vector<256xf32>
    %257 = vector.multi_reduction <add>, %256, %cst_135 [0] : vector<40x256xf32> to vector<256xf32>
    %258 = vector.shape_cast %257 : vector<256xf32> to vector<1x256xf32>
    %259 = vector.broadcast %5 : vector<1x1xf32> to vector<1x256xf32>
    %260 = arith.addf %258, %259 : vector<1x256xf32>
    %c0_136 = arith.constant 0 : index
    %c256_137 = arith.constant 256 : index
    %261 = vector.load %arg8[%c0_136, %c256_137] : memref<1x1024xf32, #tpu.memory_space<vmem>>, vector<1x256xf32>
    tpu.vector_store %arg8[%c0_136, %c256_137], %260 {strides = array<i32>} : memref<1x1024xf32, #tpu.memory_space<vmem>>, vector<1x256xf32>,
    %c0_138 = arith.constant 0 : index
    %c512 = arith.constant 512 : index
    %262 = vector.load %arg1[%c0_138, %c512] : memref<2x1024xf32, #tpu.memory_space<vmem>>, vector<2x256xf32>
    %263 = vector.extract_strided_slice %262 {offsets = [0, 0], sizes = [1, 256], strides = [1, 1]} : vector<2x256xf32> to vector<1x256xf32>
    %264 = vector.broadcast %1 : vector<40x1xf32> to vector<40x256xf32>
    %265 = vector.broadcast %263 : vector<1x256xf32> to vector<40x256xf32>
    %266 = arith.mulf %264, %265 : vector<40x256xf32>
    %267 = vector.extract_strided_slice %262 {offsets = [1, 0], sizes = [1, 256], strides = [1, 1]} : vector<2x256xf32> to vector<1x256xf32>
    %268 = vector.broadcast %2 : vector<40x1xf32> to vector<40x256xf32>
    %269 = vector.broadcast %267 : vector<1x256xf32> to vector<40x256xf32>
    %270 = arith.mulf %268, %269 : vector<40x256xf32>
    %271 = arith.addf %266, %270 : vector<40x256xf32>
    %272 = vector.broadcast %3 : vector<40x1xf32> to vector<40x256xf32>
    %273 = arith.addf %271, %272 : vector<40x256xf32>
    %cst_139 = arith.constant 5.000000e-01 : f32
    %274 = vector.broadcast %cst_139 : f32 to vector<40x256xf32>
    %275 = arith.mulf %274, %273 : vector<40x256xf32>
    %276 = math.tanh %275 : vector<40x256xf32>
    %277 = arith.mulf %275, %276 : vector<40x256xf32>
    %278 = arith.addf %275, %277 : vector<40x256xf32>
    %c0_140 = arith.constant 0 : index
    %c0_141 = arith.constant 0 : index
    %c0_142 = arith.constant 0 : index
    %279 = vector.load %arg4[%c0_140, %c0_141, %c0_142] : memref<8x40x40xbf16, #tpu.memory_space<vmem>>, vector<1x40x40xbf16>
    %280 = vector.shape_cast %279 : vector<1x40x40xbf16> to vector<40x40xbf16>
    %281 = arith.truncf %278 : vector<40x256xf32> to vector<40x256xbf16>
    %cst_143 = arith.constant dense<0.000000e+00> : vector<40x256xf32>
    %282 = tpu.matmul %280, %281, %cst_143 {dimension_numbers = #tpu.dot_dimension_numbers<[1], [0], [0], [1], [0, 0, 1, 1], [], []>} : vector<40x40xbf16>, vector<40x256xbf16>, vector<40x256xf32> -> vector<40x256xf32>
    %c0_144 = arith.constant 0 : index
    %c0_145 = arith.constant 0 : index
    %c0_146 = arith.constant 0 : index
    %283 = vector.load %arg5[%c0_144, %c0_145, %c0_146] : memref<8x40x1xf32, #tpu.memory_space<vmem>>, vector<1x40x1xf32>
    %284 = vector.shape_cast %283 : vector<1x40x1xf32> to vector<40x1xf32>
    %285 = vector.broadcast %284 : vector<40x1xf32> to vector<40x256xf32>
    %286 = arith.addf %282, %285 : vector<40x256xf32>
    %cst_147 = arith.constant 5.000000e-01 : f32
    %287 = vector.broadcast %cst_147 : f32 to vector<40x256xf32>
    %288 = arith.mulf %287, %286 : vector<40x256xf32>
    %289 = math.tanh %288 : vector<40x256xf32>
    %290 = arith.mulf %288, %289 : vector<40x256xf32>
    %291 = arith.addf %288, %290 : vector<40x256xf32>
    %c1_148 = arith.constant 1 : index
    %c0_149 = arith.constant 0 : index
    %c0_150 = arith.constant 0 : index
    %292 = vector.load %arg4[%c1_148, %c0_149, %c0_150] : memref<8x40x40xbf16, #tpu.memory_space<vmem>>, vector<1x40x40xbf16>
    %293 = vector.shape_cast %292 : vector<1x40x40xbf16> to vector<40x40xbf16>
    %294 = arith.truncf %291 : vector<40x256xf32> to vector<40x256xbf16>
    %cst_151 = arith.constant dense<0.000000e+00> : vector<40x256xf32>
    %295 = tpu.matmul %293, %294, %cst_151 {dimension_numbers = #tpu.dot_dimension_numbers<[1], [0], [0], [1], [0, 0, 1, 1], [], []>} : vector<40x40xbf16>, vector<40x256xbf16>, vector<40x256xf32> -> vector<40x256xf32>
    %c1_152 = arith.constant 1 : index
    %c0_153 = arith.constant 0 : index
    %c0_154 = arith.constant 0 : index
    %296 = vector.load %arg5[%c1_152, %c0_153, %c0_154] : memref<8x40x1xf32, #tpu.memory_space<vmem>>, vector<1x40x1xf32>
    %297 = vector.shape_cast %296 : vector<1x40x1xf32> to vector<40x1xf32>
    %298 = vector.broadcast %297 : vector<40x1xf32> to vector<40x256xf32>
    %299 = arith.addf %295, %298 : vector<40x256xf32>
    %cst_155 = arith.constant 5.000000e-01 : f32
    %300 = vector.broadcast %cst_155 : f32 to vector<40x256xf32>
    %301 = arith.mulf %300, %299 : vector<40x256xf32>
    %302 = math.tanh %301 : vector<40x256xf32>
    %303 = arith.mulf %301, %302 : vector<40x256xf32>
    %304 = arith.addf %301, %303 : vector<40x256xf32>
    %c2_156 = arith.constant 2 : index
    %c0_157 = arith.constant 0 : index
    %c0_158 = arith.constant 0 : index
    %305 = vector.load %arg4[%c2_156, %c0_157, %c0_158] : memref<8x40x40xbf16, #tpu.memory_space<vmem>>, vector<1x40x40xbf16>
    %306 = vector.shape_cast %305 : vector<1x40x40xbf16> to vector<40x40xbf16>
    %307 = arith.truncf %304 : vector<40x256xf32> to vector<40x256xbf16>
    %cst_159 = arith.constant dense<0.000000e+00> : vector<40x256xf32>
    %308 = tpu.matmul %306, %307, %cst_159 {dimension_numbers = #tpu.dot_dimension_numbers<[1], [0], [0], [1], [0, 0, 1, 1], [], []>} : vector<40x40xbf16>, vector<40x256xbf16>, vector<40x256xf32> -> vector<40x256xf32>
    %c2_160 = arith.constant 2 : index
    %c0_161 = arith.constant 0 : index
    %c0_162 = arith.constant 0 : index
    %309 = vector.load %arg5[%c2_160, %c0_161, %c0_162] : memref<8x40x1xf32, #tpu.memory_space<vmem>>, vector<1x40x1xf32>
    %310 = vector.shape_cast %309 : vector<1x40x1xf32> to vector<40x1xf32>
    %311 = vector.broadcast %310 : vector<40x1xf32> to vector<40x256xf32>
    %312 = arith.addf %308, %311 : vector<40x256xf32>
    %cst_163 = arith.constant 5.000000e-01 : f32
    %313 = vector.broadcast %cst_163 : f32 to vector<40x256xf32>
    %314 = arith.mulf %313, %312 : vector<40x256xf32>
    %315 = math.tanh %314 : vector<40x256xf32>
    %316 = arith.mulf %314, %315 : vector<40x256xf32>
    %317 = arith.addf %314, %316 : vector<40x256xf32>
    %c3_164 = arith.constant 3 : index
    %c0_165 = arith.constant 0 : index
    %c0_166 = arith.constant 0 : index
    %318 = vector.load %arg4[%c3_164, %c0_165, %c0_166] : memref<8x40x40xbf16, #tpu.memory_space<vmem>>, vector<1x40x40xbf16>
    %319 = vector.shape_cast %318 : vector<1x40x40xbf16> to vector<40x40xbf16>
    %320 = arith.truncf %317 : vector<40x256xf32> to vector<40x256xbf16>
    %cst_167 = arith.constant dense<0.000000e+00> : vector<40x256xf32>
    %321 = tpu.matmul %319, %320, %cst_167 {dimension_numbers = #tpu.dot_dimension_numbers<[1], [0], [0], [1], [0, 0, 1, 1], [], []>} : vector<40x40xbf16>, vector<40x256xbf16>, vector<40x256xf32> -> vector<40x256xf32>
    %c3_168 = arith.constant 3 : index
    %c0_169 = arith.constant 0 : index
    %c0_170 = arith.constant 0 : index
    %322 = vector.load %arg5[%c3_168, %c0_169, %c0_170] : memref<8x40x1xf32, #tpu.memory_space<vmem>>, vector<1x40x1xf32>
    %323 = vector.shape_cast %322 : vector<1x40x1xf32> to vector<40x1xf32>
    %324 = vector.broadcast %323 : vector<40x1xf32> to vector<40x256xf32>
    %325 = arith.addf %321, %324 : vector<40x256xf32>
    %cst_171 = arith.constant 5.000000e-01 : f32
    %326 = vector.broadcast %cst_171 : f32 to vector<40x256xf32>
    %327 = arith.mulf %326, %325 : vector<40x256xf32>
    %328 = math.tanh %327 : vector<40x256xf32>
    %329 = arith.mulf %327, %328 : vector<40x256xf32>
    %330 = arith.addf %327, %329 : vector<40x256xf32>
    %c4_172 = arith.constant 4 : index
    %c0_173 = arith.constant 0 : index
    %c0_174 = arith.constant 0 : index
    %331 = vector.load %arg4[%c4_172, %c0_173, %c0_174] : memref<8x40x40xbf16, #tpu.memory_space<vmem>>, vector<1x40x40xbf16>
    %332 = vector.shape_cast %331 : vector<1x40x40xbf16> to vector<40x40xbf16>
    %333 = arith.truncf %330 : vector<40x256xf32> to vector<40x256xbf16>
    %cst_175 = arith.constant dense<0.000000e+00> : vector<40x256xf32>
    %334 = tpu.matmul %332, %333, %cst_175 {dimension_numbers = #tpu.dot_dimension_numbers<[1], [0], [0], [1], [0, 0, 1, 1], [], []>} : vector<40x40xbf16>, vector<40x256xbf16>, vector<40x256xf32> -> vector<40x256xf32>
    %c4_176 = arith.constant 4 : index
    %c0_177 = arith.constant 0 : index
    %c0_178 = arith.constant 0 : index
    %335 = vector.load %arg5[%c4_176, %c0_177, %c0_178] : memref<8x40x1xf32, #tpu.memory_space<vmem>>, vector<1x40x1xf32>
    %336 = vector.shape_cast %335 : vector<1x40x1xf32> to vector<40x1xf32>
    %337 = vector.broadcast %336 : vector<40x1xf32> to vector<40x256xf32>
    %338 = arith.addf %334, %337 : vector<40x256xf32>
    %cst_179 = arith.constant 5.000000e-01 : f32
    %339 = vector.broadcast %cst_179 : f32 to vector<40x256xf32>
    %340 = arith.mulf %339, %338 : vector<40x256xf32>
    %341 = math.tanh %340 : vector<40x256xf32>
    %342 = arith.mulf %340, %341 : vector<40x256xf32>
    %343 = arith.addf %340, %342 : vector<40x256xf32>
    %c5_180 = arith.constant 5 : index
    %c0_181 = arith.constant 0 : index
    %c0_182 = arith.constant 0 : index
    %344 = vector.load %arg4[%c5_180, %c0_181, %c0_182] : memref<8x40x40xbf16, #tpu.memory_space<vmem>>, vector<1x40x40xbf16>
    %345 = vector.shape_cast %344 : vector<1x40x40xbf16> to vector<40x40xbf16>
    %346 = arith.truncf %343 : vector<40x256xf32> to vector<40x256xbf16>
    %cst_183 = arith.constant dense<0.000000e+00> : vector<40x256xf32>
    %347 = tpu.matmul %345, %346, %cst_183 {dimension_numbers = #tpu.dot_dimension_numbers<[1], [0], [0], [1], [0, 0, 1, 1], [], []>} : vector<40x40xbf16>, vector<40x256xbf16>, vector<40x256xf32> -> vector<40x256xf32>
    %c5_184 = arith.constant 5 : index
    %c0_185 = arith.constant 0 : index
    %c0_186 = arith.constant 0 : index
    %348 = vector.load %arg5[%c5_184, %c0_185, %c0_186] : memref<8x40x1xf32, #tpu.memory_space<vmem>>, vector<1x40x1xf32>
    %349 = vector.shape_cast %348 : vector<1x40x1xf32> to vector<40x1xf32>
    %350 = vector.broadcast %349 : vector<40x1xf32> to vector<40x256xf32>
    %351 = arith.addf %347, %350 : vector<40x256xf32>
    %cst_187 = arith.constant 5.000000e-01 : f32
    %352 = vector.broadcast %cst_187 : f32 to vector<40x256xf32>
    %353 = arith.mulf %352, %351 : vector<40x256xf32>
    %354 = math.tanh %353 : vector<40x256xf32>
    %355 = arith.mulf %353, %354 : vector<40x256xf32>
    %356 = arith.addf %353, %355 : vector<40x256xf32>
    %c6_188 = arith.constant 6 : index
    %c0_189 = arith.constant 0 : index
    %c0_190 = arith.constant 0 : index
    %357 = vector.load %arg4[%c6_188, %c0_189, %c0_190] : memref<8x40x40xbf16, #tpu.memory_space<vmem>>, vector<1x40x40xbf16>
    %358 = vector.shape_cast %357 : vector<1x40x40xbf16> to vector<40x40xbf16>
    %359 = arith.truncf %356 : vector<40x256xf32> to vector<40x256xbf16>
    %cst_191 = arith.constant dense<0.000000e+00> : vector<40x256xf32>
    %360 = tpu.matmul %358, %359, %cst_191 {dimension_numbers = #tpu.dot_dimension_numbers<[1], [0], [0], [1], [0, 0, 1, 1], [], []>} : vector<40x40xbf16>, vector<40x256xbf16>, vector<40x256xf32> -> vector<40x256xf32>
    %c6_192 = arith.constant 6 : index
    %c0_193 = arith.constant 0 : index
    %c0_194 = arith.constant 0 : index
    %361 = vector.load %arg5[%c6_192, %c0_193, %c0_194] : memref<8x40x1xf32, #tpu.memory_space<vmem>>, vector<1x40x1xf32>
    %362 = vector.shape_cast %361 : vector<1x40x1xf32> to vector<40x1xf32>
    %363 = vector.broadcast %362 : vector<40x1xf32> to vector<40x256xf32>
    %364 = arith.addf %360, %363 : vector<40x256xf32>
    %cst_195 = arith.constant 5.000000e-01 : f32
    %365 = vector.broadcast %cst_195 : f32 to vector<40x256xf32>
    %366 = arith.mulf %365, %364 : vector<40x256xf32>
    %367 = math.tanh %366 : vector<40x256xf32>
    %368 = arith.mulf %366, %367 : vector<40x256xf32>
    %369 = arith.addf %366, %368 : vector<40x256xf32>
    %c7_196 = arith.constant 7 : index
    %c0_197 = arith.constant 0 : index
    %c0_198 = arith.constant 0 : index
    %370 = vector.load %arg4[%c7_196, %c0_197, %c0_198] : memref<8x40x40xbf16, #tpu.memory_space<vmem>>, vector<1x40x40xbf16>
    %371 = vector.shape_cast %370 : vector<1x40x40xbf16> to vector<40x40xbf16>
    %372 = arith.truncf %369 : vector<40x256xf32> to vector<40x256xbf16>
    %cst_199 = arith.constant dense<0.000000e+00> : vector<40x256xf32>
    %373 = tpu.matmul %371, %372, %cst_199 {dimension_numbers = #tpu.dot_dimension_numbers<[1], [0], [0], [1], [0, 0, 1, 1], [], []>} : vector<40x40xbf16>, vector<40x256xbf16>, vector<40x256xf32> -> vector<40x256xf32>
    %c7_200 = arith.constant 7 : index
    %c0_201 = arith.constant 0 : index
    %c0_202 = arith.constant 0 : index
    %374 = vector.load %arg5[%c7_200, %c0_201, %c0_202] : memref<8x40x1xf32, #tpu.memory_space<vmem>>, vector<1x40x1xf32>
    %375 = vector.shape_cast %374 : vector<1x40x1xf32> to vector<40x1xf32>
    %376 = vector.broadcast %375 : vector<40x1xf32> to vector<40x256xf32>
    %377 = arith.addf %373, %376 : vector<40x256xf32>
    %cst_203 = arith.constant 5.000000e-01 : f32
    %378 = vector.broadcast %cst_203 : f32 to vector<40x256xf32>
    %379 = arith.mulf %378, %377 : vector<40x256xf32>
    %380 = math.tanh %379 : vector<40x256xf32>
    %381 = arith.mulf %379, %380 : vector<40x256xf32>
    %382 = arith.addf %379, %381 : vector<40x256xf32>
    %383 = vector.broadcast %4 : vector<40x1xf32> to vector<40x256xf32>
    %384 = arith.mulf %383, %382 : vector<40x256xf32>
    %cst_204 = arith.constant dense<0.000000e+00> : vector<256xf32>
    %385 = vector.multi_reduction <add>, %384, %cst_204 [0] : vector<40x256xf32> to vector<256xf32>
    %386 = vector.shape_cast %385 : vector<256xf32> to vector<1x256xf32>
    %387 = vector.broadcast %5 : vector<1x1xf32> to vector<1x256xf32>
    %388 = arith.addf %386, %387 : vector<1x256xf32>
    %c0_205 = arith.constant 0 : index
    %c512_206 = arith.constant 512 : index
    %389 = vector.load %arg8[%c0_205, %c512_206] : memref<1x1024xf32, #tpu.memory_space<vmem>>, vector<1x256xf32>
    tpu.vector_store %arg8[%c0_205, %c512_206], %388 {strides = array<i32>} : memref<1x1024xf32, #tpu.memory_space<vmem>>, vector<1x256xf32>,
    %c0_207 = arith.constant 0 : index
    %c768 = arith.constant 768 : index
    %390 = vector.load %arg1[%c0_207, %c768] : memref<2x1024xf32, #tpu.memory_space<vmem>>, vector<2x256xf32>
    %391 = vector.extract_strided_slice %390 {offsets = [0, 0], sizes = [1, 256], strides = [1, 1]} : vector<2x256xf32> to vector<1x256xf32>
    %392 = vector.broadcast %1 : vector<40x1xf32> to vector<40x256xf32>
    %393 = vector.broadcast %391 : vector<1x256xf32> to vector<40x256xf32>
    %394 = arith.mulf %392, %393 : vector<40x256xf32>
    %395 = vector.extract_strided_slice %390 {offsets = [1, 0], sizes = [1, 256], strides = [1, 1]} : vector<2x256xf32> to vector<1x256xf32>
    %396 = vector.broadcast %2 : vector<40x1xf32> to vector<40x256xf32>
    %397 = vector.broadcast %395 : vector<1x256xf32> to vector<40x256xf32>
    %398 = arith.mulf %396, %397 : vector<40x256xf32>
    %399 = arith.addf %394, %398 : vector<40x256xf32>
    %400 = vector.broadcast %3 : vector<40x1xf32> to vector<40x256xf32>
    %401 = arith.addf %399, %400 : vector<40x256xf32>
    %cst_208 = arith.constant 5.000000e-01 : f32
    %402 = vector.broadcast %cst_208 : f32 to vector<40x256xf32>
    %403 = arith.mulf %402, %401 : vector<40x256xf32>
    %404 = math.tanh %403 : vector<40x256xf32>
    %405 = arith.mulf %403, %404 : vector<40x256xf32>
    %406 = arith.addf %403, %405 : vector<40x256xf32>
    %c0_209 = arith.constant 0 : index
    %c0_210 = arith.constant 0 : index
    %c0_211 = arith.constant 0 : index
    %407 = vector.load %arg4[%c0_209, %c0_210, %c0_211] : memref<8x40x40xbf16, #tpu.memory_space<vmem>>, vector<1x40x40xbf16>
    %408 = vector.shape_cast %407 : vector<1x40x40xbf16> to vector<40x40xbf16>
    %409 = arith.truncf %406 : vector<40x256xf32> to vector<40x256xbf16>
    %cst_212 = arith.constant dense<0.000000e+00> : vector<40x256xf32>
    %410 = tpu.matmul %408, %409, %cst_212 {dimension_numbers = #tpu.dot_dimension_numbers<[1], [0], [0], [1], [0, 0, 1, 1], [], []>} : vector<40x40xbf16>, vector<40x256xbf16>, vector<40x256xf32> -> vector<40x256xf32>
    %c0_213 = arith.constant 0 : index
    %c0_214 = arith.constant 0 : index
    %c0_215 = arith.constant 0 : index
    %411 = vector.load %arg5[%c0_213, %c0_214, %c0_215] : memref<8x40x1xf32, #tpu.memory_space<vmem>>, vector<1x40x1xf32>
    %412 = vector.shape_cast %411 : vector<1x40x1xf32> to vector<40x1xf32>
    %413 = vector.broadcast %412 : vector<40x1xf32> to vector<40x256xf32>
    %414 = arith.addf %410, %413 : vector<40x256xf32>
    %cst_216 = arith.constant 5.000000e-01 : f32
    %415 = vector.broadcast %cst_216 : f32 to vector<40x256xf32>
    %416 = arith.mulf %415, %414 : vector<40x256xf32>
    %417 = math.tanh %416 : vector<40x256xf32>
    %418 = arith.mulf %416, %417 : vector<40x256xf32>
    %419 = arith.addf %416, %418 : vector<40x256xf32>
    %c1_217 = arith.constant 1 : index
    %c0_218 = arith.constant 0 : index
    %c0_219 = arith.constant 0 : index
    %420 = vector.load %arg4[%c1_217, %c0_218, %c0_219] : memref<8x40x40xbf16, #tpu.memory_space<vmem>>, vector<1x40x40xbf16>
    %421 = vector.shape_cast %420 : vector<1x40x40xbf16> to vector<40x40xbf16>
    %422 = arith.truncf %419 : vector<40x256xf32> to vector<40x256xbf16>
    %cst_220 = arith.constant dense<0.000000e+00> : vector<40x256xf32>
    %423 = tpu.matmul %421, %422, %cst_220 {dimension_numbers = #tpu.dot_dimension_numbers<[1], [0], [0], [1], [0, 0, 1, 1], [], []>} : vector<40x40xbf16>, vector<40x256xbf16>, vector<40x256xf32> -> vector<40x256xf32>
    %c1_221 = arith.constant 1 : index
    %c0_222 = arith.constant 0 : index
    %c0_223 = arith.constant 0 : index
    %424 = vector.load %arg5[%c1_221, %c0_222, %c0_223] : memref<8x40x1xf32, #tpu.memory_space<vmem>>, vector<1x40x1xf32>
    %425 = vector.shape_cast %424 : vector<1x40x1xf32> to vector<40x1xf32>
    %426 = vector.broadcast %425 : vector<40x1xf32> to vector<40x256xf32>
    %427 = arith.addf %423, %426 : vector<40x256xf32>
    %cst_224 = arith.constant 5.000000e-01 : f32
    %428 = vector.broadcast %cst_224 : f32 to vector<40x256xf32>
    %429 = arith.mulf %428, %427 : vector<40x256xf32>
    %430 = math.tanh %429 : vector<40x256xf32>
    %431 = arith.mulf %429, %430 : vector<40x256xf32>
    %432 = arith.addf %429, %431 : vector<40x256xf32>
    %c2_225 = arith.constant 2 : index
    %c0_226 = arith.constant 0 : index
    %c0_227 = arith.constant 0 : index
    %433 = vector.load %arg4[%c2_225, %c0_226, %c0_227] : memref<8x40x40xbf16, #tpu.memory_space<vmem>>, vector<1x40x40xbf16>
    %434 = vector.shape_cast %433 : vector<1x40x40xbf16> to vector<40x40xbf16>
    %435 = arith.truncf %432 : vector<40x256xf32> to vector<40x256xbf16>
    %cst_228 = arith.constant dense<0.000000e+00> : vector<40x256xf32>
    %436 = tpu.matmul %434, %435, %cst_228 {dimension_numbers = #tpu.dot_dimension_numbers<[1], [0], [0], [1], [0, 0, 1, 1], [], []>} : vector<40x40xbf16>, vector<40x256xbf16>, vector<40x256xf32> -> vector<40x256xf32>
    %c2_229 = arith.constant 2 : index
    %c0_230 = arith.constant 0 : index
    %c0_231 = arith.constant 0 : index
    %437 = vector.load %arg5[%c2_229, %c0_230, %c0_231] : memref<8x40x1xf32, #tpu.memory_space<vmem>>, vector<1x40x1xf32>
    %438 = vector.shape_cast %437 : vector<1x40x1xf32> to vector<40x1xf32>
    %439 = vector.broadcast %438 : vector<40x1xf32> to vector<40x256xf32>
    %440 = arith.addf %436, %439 : vector<40x256xf32>
    %cst_232 = arith.constant 5.000000e-01 : f32
    %441 = vector.broadcast %cst_232 : f32 to vector<40x256xf32>
    %442 = arith.mulf %441, %440 : vector<40x256xf32>
    %443 = math.tanh %442 : vector<40x256xf32>
    %444 = arith.mulf %442, %443 : vector<40x256xf32>
    %445 = arith.addf %442, %444 : vector<40x256xf32>
    %c3_233 = arith.constant 3 : index
    %c0_234 = arith.constant 0 : index
    %c0_235 = arith.constant 0 : index
    %446 = vector.load %arg4[%c3_233, %c0_234, %c0_235] : memref<8x40x40xbf16, #tpu.memory_space<vmem>>, vector<1x40x40xbf16>
    %447 = vector.shape_cast %446 : vector<1x40x40xbf16> to vector<40x40xbf16>
    %448 = arith.truncf %445 : vector<40x256xf32> to vector<40x256xbf16>
    %cst_236 = arith.constant dense<0.000000e+00> : vector<40x256xf32>
    %449 = tpu.matmul %447, %448, %cst_236 {dimension_numbers = #tpu.dot_dimension_numbers<[1], [0], [0], [1], [0, 0, 1, 1], [], []>} : vector<40x40xbf16>, vector<40x256xbf16>, vector<40x256xf32> -> vector<40x256xf32>
    %c3_237 = arith.constant 3 : index
    %c0_238 = arith.constant 0 : index
    %c0_239 = arith.constant 0 : index
    %450 = vector.load %arg5[%c3_237, %c0_238, %c0_239] : memref<8x40x1xf32, #tpu.memory_space<vmem>>, vector<1x40x1xf32>
    %451 = vector.shape_cast %450 : vector<1x40x1xf32> to vector<40x1xf32>
    %452 = vector.broadcast %451 : vector<40x1xf32> to vector<40x256xf32>
    %453 = arith.addf %449, %452 : vector<40x256xf32>
    %cst_240 = arith.constant 5.000000e-01 : f32
    %454 = vector.broadcast %cst_240 : f32 to vector<40x256xf32>
    %455 = arith.mulf %454, %453 : vector<40x256xf32>
    %456 = math.tanh %455 : vector<40x256xf32>
    %457 = arith.mulf %455, %456 : vector<40x256xf32>
    %458 = arith.addf %455, %457 : vector<40x256xf32>
    %c4_241 = arith.constant 4 : index
    %c0_242 = arith.constant 0 : index
    %c0_243 = arith.constant 0 : index
    %459 = vector.load %arg4[%c4_241, %c0_242, %c0_243] : memref<8x40x40xbf16, #tpu.memory_space<vmem>>, vector<1x40x40xbf16>
    %460 = vector.shape_cast %459 : vector<1x40x40xbf16> to vector<40x40xbf16>
    %461 = arith.truncf %458 : vector<40x256xf32> to vector<40x256xbf16>
    %cst_244 = arith.constant dense<0.000000e+00> : vector<40x256xf32>
    %462 = tpu.matmul %460, %461, %cst_244 {dimension_numbers = #tpu.dot_dimension_numbers<[1], [0], [0], [1], [0, 0, 1, 1], [], []>} : vector<40x40xbf16>, vector<40x256xbf16>, vector<40x256xf32> -> vector<40x256xf32>
    %c4_245 = arith.constant 4 : index
    %c0_246 = arith.constant 0 : index
    %c0_247 = arith.constant 0 : index
    %463 = vector.load %arg5[%c4_245, %c0_246, %c0_247] : memref<8x40x1xf32, #tpu.memory_space<vmem>>, vector<1x40x1xf32>
    %464 = vector.shape_cast %463 : vector<1x40x1xf32> to vector<40x1xf32>
    %465 = vector.broadcast %464 : vector<40x1xf32> to vector<40x256xf32>
    %466 = arith.addf %462, %465 : vector<40x256xf32>
    %cst_248 = arith.constant 5.000000e-01 : f32
    %467 = vector.broadcast %cst_248 : f32 to vector<40x256xf32>
    %468 = arith.mulf %467, %466 : vector<40x256xf32>
    %469 = math.tanh %468 : vector<40x256xf32>
    %470 = arith.mulf %468, %469 : vector<40x256xf32>
    %471 = arith.addf %468, %470 : vector<40x256xf32>
    %c5_249 = arith.constant 5 : index
    %c0_250 = arith.constant 0 : index
    %c0_251 = arith.constant 0 : index
    %472 = vector.load %arg4[%c5_249, %c0_250, %c0_251] : memref<8x40x40xbf16, #tpu.memory_space<vmem>>, vector<1x40x40xbf16>
    %473 = vector.shape_cast %472 : vector<1x40x40xbf16> to vector<40x40xbf16>
    %474 = arith.truncf %471 : vector<40x256xf32> to vector<40x256xbf16>
    %cst_252 = arith.constant dense<0.000000e+00> : vector<40x256xf32>
    %475 = tpu.matmul %473, %474, %cst_252 {dimension_numbers = #tpu.dot_dimension_numbers<[1], [0], [0], [1], [0, 0, 1, 1], [], []>} : vector<40x40xbf16>, vector<40x256xbf16>, vector<40x256xf32> -> vector<40x256xf32>
    %c5_253 = arith.constant 5 : index
    %c0_254 = arith.constant 0 : index
    %c0_255 = arith.constant 0 : index
    %476 = vector.load %arg5[%c5_253, %c0_254, %c0_255] : memref<8x40x1xf32, #tpu.memory_space<vmem>>, vector<1x40x1xf32>
    %477 = vector.shape_cast %476 : vector<1x40x1xf32> to vector<40x1xf32>
    %478 = vector.broadcast %477 : vector<40x1xf32> to vector<40x256xf32>
    %479 = arith.addf %475, %478 : vector<40x256xf32>
    %cst_256 = arith.constant 5.000000e-01 : f32
    %480 = vector.broadcast %cst_256 : f32 to vector<40x256xf32>
    %481 = arith.mulf %480, %479 : vector<40x256xf32>
    %482 = math.tanh %481 : vector<40x256xf32>
    %483 = arith.mulf %481, %482 : vector<40x256xf32>
    %484 = arith.addf %481, %483 : vector<40x256xf32>
    %c6_257 = arith.constant 6 : index
    %c0_258 = arith.constant 0 : index
    %c0_259 = arith.constant 0 : index
    %485 = vector.load %arg4[%c6_257, %c0_258, %c0_259] : memref<8x40x40xbf16, #tpu.memory_space<vmem>>, vector<1x40x40xbf16>
    %486 = vector.shape_cast %485 : vector<1x40x40xbf16> to vector<40x40xbf16>
    %487 = arith.truncf %484 : vector<40x256xf32> to vector<40x256xbf16>
    %cst_260 = arith.constant dense<0.000000e+00> : vector<40x256xf32>
    %488 = tpu.matmul %486, %487, %cst_260 {dimension_numbers = #tpu.dot_dimension_numbers<[1], [0], [0], [1], [0, 0, 1, 1], [], []>} : vector<40x40xbf16>, vector<40x256xbf16>, vector<40x256xf32> -> vector<40x256xf32>
    %c6_261 = arith.constant 6 : index
    %c0_262 = arith.constant 0 : index
    %c0_263 = arith.constant 0 : index
    %489 = vector.load %arg5[%c6_261, %c0_262, %c0_263] : memref<8x40x1xf32, #tpu.memory_space<vmem>>, vector<1x40x1xf32>
    %490 = vector.shape_cast %489 : vector<1x40x1xf32> to vector<40x1xf32>
    %491 = vector.broadcast %490 : vector<40x1xf32> to vector<40x256xf32>
    %492 = arith.addf %488, %491 : vector<40x256xf32>
    %cst_264 = arith.constant 5.000000e-01 : f32
    %493 = vector.broadcast %cst_264 : f32 to vector<40x256xf32>
    %494 = arith.mulf %493, %492 : vector<40x256xf32>
    %495 = math.tanh %494 : vector<40x256xf32>
    %496 = arith.mulf %494, %495 : vector<40x256xf32>
    %497 = arith.addf %494, %496 : vector<40x256xf32>
    %c7_265 = arith.constant 7 : index
    %c0_266 = arith.constant 0 : index
    %c0_267 = arith.constant 0 : index
    %498 = vector.load %arg4[%c7_265, %c0_266, %c0_267] : memref<8x40x40xbf16, #tpu.memory_space<vmem>>, vector<1x40x40xbf16>
    %499 = vector.shape_cast %498 : vector<1x40x40xbf16> to vector<40x40xbf16>
    %500 = arith.truncf %497 : vector<40x256xf32> to vector<40x256xbf16>
    %cst_268 = arith.constant dense<0.000000e+00> : vector<40x256xf32>
    %501 = tpu.matmul %499, %500, %cst_268 {dimension_numbers = #tpu.dot_dimension_numbers<[1], [0], [0], [1], [0, 0, 1, 1], [], []>} : vector<40x40xbf16>, vector<40x256xbf16>, vector<40x256xf32> -> vector<40x256xf32>
    %c7_269 = arith.constant 7 : index
    %c0_270 = arith.constant 0 : index
    %c0_271 = arith.constant 0 : index
    %502 = vector.load %arg5[%c7_269, %c0_270, %c0_271] : memref<8x40x1xf32, #tpu.memory_space<vmem>>, vector<1x40x1xf32>
    %503 = vector.shape_cast %502 : vector<1x40x1xf32> to vector<40x1xf32>
    %504 = vector.broadcast %503 : vector<40x1xf32> to vector<40x256xf32>
    %505 = arith.addf %501, %504 : vector<40x256xf32>
    %cst_272 = arith.constant 5.000000e-01 : f32
    %506 = vector.broadcast %cst_272 : f32 to vector<40x256xf32>
    %507 = arith.mulf %506, %505 : vector<40x256xf32>
    %508 = math.tanh %507 : vector<40x256xf32>
    %509 = arith.mulf %507, %508 : vector<40x256xf32>
    %510 = arith.addf %507, %509 : vector<40x256xf32>
    %511 = vector.broadcast %4 : vector<40x1xf32> to vector<40x256xf32>
    %512 = arith.mulf %511, %510 : vector<40x256xf32>
    %cst_273 = arith.constant dense<0.000000e+00> : vector<256xf32>
    %513 = vector.multi_reduction <add>, %512, %cst_273 [0] : vector<40x256xf32> to vector<256xf32>
    %514 = vector.shape_cast %513 : vector<256xf32> to vector<1x256xf32>
    %515 = vector.broadcast %5 : vector<1x1xf32> to vector<1x256xf32>
    %516 = arith.addf %514, %515 : vector<1x256xf32>
    %c0_274 = arith.constant 0 : index
    %c768_275 = arith.constant 768 : index
    %517 = vector.load %arg8[%c0_274, %c768_275] : memref<1x1024xf32, #tpu.memory_space<vmem>>, vector<1x256xf32>
    tpu.vector_store %arg8[%c0_274, %c768_275], %516 {strides = array<i32>} : memref<1x1024xf32, #tpu.memory_space<vmem>>, vector<1x256xf32>,
    return
  }
  func.func @transform_0(%arg0: i32) -> (i32, i32) {
    %c0_i32 = arith.constant 0 : i32
    %c0_i32_0 = arith.constant 0 : i32
    return %c0_i32, %arg0 : i32, i32
  }
  func.func @transform_1(%arg0: i32) -> (i32, i32) {
    %c0_i32 = arith.constant 0 : i32
    %c0_i32_0 = arith.constant 0 : i32
    %c0_i32_1 = arith.constant 0 : i32
    return %c0_i32, %c0_i32_0 : i32, i32
  }
  func.func @transform_2(%arg0: i32) -> (i32, i32) {
    %c0_i32 = arith.constant 0 : i32
    %c0_i32_0 = arith.constant 0 : i32
    %c0_i32_1 = arith.constant 0 : i32
    return %c0_i32, %c0_i32_0 : i32, i32
  }
  func.func @transform_3(%arg0: i32) -> (i32, i32, i32) {
    %c0_i32 = arith.constant 0 : i32
    %c0_i32_0 = arith.constant 0 : i32
    %c0_i32_1 = arith.constant 0 : i32
    %c0_i32_2 = arith.constant 0 : i32
    return %c0_i32, %c0_i32_0, %c0_i32_1 : i32, i32, i32
  }
  func.func @transform_4(%arg0: i32) -> (i32, i32, i32) {
    %c0_i32 = arith.constant 0 : i32
    %c0_i32_0 = arith.constant 0 : i32
    %c0_i32_1 = arith.constant 0 : i32
    %c0_i32_2 = arith.constant 0 : i32
    return %c0_i32, %c0_i32_0, %c0_i32_1 : i32, i32, i32
  }
  func.func @transform_5(%arg0: i32) -> (i32, i32) {
    %c0_i32 = arith.constant 0 : i32
    %c0_i32_0 = arith.constant 0 : i32
    %c0_i32_1 = arith.constant 0 : i32
    return %c0_i32, %c0_i32_0 : i32, i32
  }
  func.func @transform_6(%arg0: i32) -> (i32, i32) {
    %c0_i32 = arith.constant 0 : i32
    %c0_i32_0 = arith.constant 0 : i32
    %c0_i32_1 = arith.constant 0 : i32
    return %c0_i32, %c0_i32_0 : i32, i32
  }
  func.func @transform_7(%arg0: i32) -> (i32, i32) {
    %c0_i32 = arith.constant 0 : i32
    %c0_i32_0 = arith.constant 0 : i32
    return %c0_i32, %arg0 : i32, i32
  }
}

</mosaic_0001>

<llo_original>
// kernel: tpu_custom_call.1
$region0: #{tpu_custom_call.1}
  #allocation0 [shape = 'u32[]', space=smem, size = 0x4, offset = 0x4, fixed_abs, tag = 'smem constant byte address 0x4 - core index']
  #allocation1 [shape = 'u32[144,128]{1,0:T(1,128)}', space=vmem, size = 0x12000, scoped, tag = 'internal scratch']
  #allocation2 [shape = 'f32[1,1]{1,0:T(1,128)S(1)}', space=vmem, size = 0x200, scoped, tag = 'scoped memory for tpu_custom_call.1']
  %s0 = inlined_call_operand.vmem [shape: f32[2,4096], index: 0, kind: input, shape index: {}]
  %s1 = inlined_call_operand.vmem [shape: f32[40,2], index: 1, kind: input, shape index: {}]
  %s2 = inlined_call_operand.vmem [shape: f32[40,1], index: 2, kind: input, shape index: {}]
  %s3 = inlined_call_operand.vmem [shape: bf16[8,40,40], index: 3, kind: input, shape index: {}]
  %s4 = inlined_call_operand.vmem [shape: f32[8,40,1], index: 4, kind: input, shape index: {}]
  %s5 = inlined_call_operand.vmem [shape: f32[40,1], index: 5, kind: input, shape index: {}]
  %s6 = inlined_call_operand.<no memory space> [shape: f32[1,1], index: 6, kind: input, shape index: {}]
  %s7 = inlined_call_operand.hbm [shape: f32[1,4096], index: 7, kind: output, shape index: {}]
  %s8 = sld [smem:[#allocation0]]
  $region61: #{tpu_custom_call.1} parent=0
    _
  %s10 = ssub.s32 1, %s8
  %s11 = scalar_select 0, %s10, %s8
  %v12 = vstv %s6
  %13 = vst [vmem:[#allocation2] sm:$0x1] %v12
  $region1: #{tpu_custom_call.1} parent=0
    #allocation3 [shape = 'u8[8192]{0}', space=vmem, size = 0x2000, scoped, tag = 'output window, operand 0']
    #allocation4 [shape = 's32[2]{0}', space=sflag, size = 0x8, scoped, tag = 'scoped memory for tpu_custom_call.1']
    %14 = vsyncpa [#allocation4], 0
    %s15 = scalar_lea.sflag [#allocation4], 1
    %16 = vsyncpa %s15, 0
    loop: start=0, step=1, limit=6
    $region2: #{tpu_custom_call.1} parent=1 // loop_pre_header
      _
    $region3: #{tpu_custom_call.1} parent=1 // loop_header
      %s18 = sphi 0, %s22
      %p19 = scmp.ge.s32.totalorder %s18, 6
      %s28 = sphi 0, %s30
      %s31 = sphi 0, %s28
      %s32 = sphi 0, %s31
      %s48 = sphi 0, %s32
      %s52 = sphi 0, %s52
      %s54 = sphi 0, %s52
      %s55 = sphi 0, %s54
      %s69 = sphi 0, %s55
      %s73 = sphi 0, %s73
      %s75 = sphi 0, %s73
      %s76 = sphi 0, %s75
      %s90 = sphi 0, %s76
      %s94 = sphi 0, %s94
      %s96 = sphi 0, %s94
      %s97 = sphi 0, %s96
      %s111 = sphi 0, %s97
      %s115 = sphi 0, %s115
      %s117 = sphi 0, %s115
      %s118 = sphi 0, %s117
      %s132 = sphi 0, %s118
      %s136 = sphi 0, %s136
      %s138 = sphi 0, %s136
      %s139 = sphi 0, %s138
      %s153 = sphi 0, %s139
      %s157 = sphi 0, %s157
      %s159 = sphi 0, %s157
      %s160 = sphi 0, %s159
      %s174 = sphi 0, %s160
      %s180 = sphi 0, %s182
      %s183 = sphi 0, %s180
      %s184 = sphi 0, %s183
      %s200 = sphi 0, %s184
    $region4: #{tpu_custom_call.1} parent=1 // loop_header_branch
      %21 = sbr.rel (%p19) target = $region8
    $region5: #{tpu_custom_call.1} parent=1 // loop_body
      %s23 = ssub.s32 %s18, 1
      %s24 = ssub.s32 %s18, 2
      %s25 = sadd.s32 %s18, 1
      %s26 = ssub.s32 %s18, %s25
      %p27 = scmp.eq.s32.totalorder %s26, 0
      %s29 = sadd.s32 %s28, 1
      %s30 = scalar_select %p27, %s28, %s29
      %p33 = pneg %p27
      %p34 = scmp.eq.s32.totalorder %s18, 3
      %p35 = por %p33, %p34
      %p36 = scmp.ne.s32.totalorder %s28, %s31
      %p37 = scmp.eq.s32.totalorder %s18, 0
      %p38 = por %p36, %p37
      %p39 = scmp.ne.s32.totalorder %s28, %s31
      %p40 = scmp.eq.s32.totalorder %s23, 3
      %p41 = por %p39, %p40
      %p42 = scmp.ne.s32.totalorder %s31, %s32
      %p43 = scmp.eq.s32.totalorder %s23, 0
      %p44 = por %p42, %p43
      %p45 = scmp.ne.s32.totalorder %s31, %s32
      %p46 = scmp.eq.s32.totalorder %s24, 3
      %p47 = por %p45, %p46
      %p49 = scmp.ne.s32.totalorder %s32, %s48
      %p50 = scmp.eq.s32.totalorder %s24, 0
      %p51 = por %p49, %p50
      %s53 = sadd.s32 %s52, 1
      %p56 = scmp.eq.s32.totalorder %s18, 3
      %p57 = scmp.ne.s32.totalorder %s52, %s54
      %p58 = scmp.eq.s32.totalorder %s18, 0
      %p59 = por %p57, %p58
      %p60 = scmp.ne.s32.totalorder %s52, %s54
      %p61 = scmp.eq.s32.totalorder %s23, 3
      %p62 = por %p60, %p61
      %p63 = scmp.ne.s32.totalorder %s54, %s55
      %p64 = scmp.eq.s32.totalorder %s23, 0
      %p65 = por %p63, %p64
      %p66 = scmp.ne.s32.totalorder %s54, %s55
      %p67 = scmp.eq.s32.totalorder %s24, 3
      %p68 = por %p66, %p67
      %p70 = scmp.ne.s32.totalorder %s55, %s69
      %p71 = scmp.eq.s32.totalorder %s24, 0
      %p72 = por %p70, %p71
      %s74 = sadd.s32 %s73, 1
      %p77 = scmp.eq.s32.totalorder %s18, 3
      %p78 = scmp.ne.s32.totalorder %s73, %s75
      %p79 = scmp.eq.s32.totalorder %s18, 0
      %p80 = por %p78, %p79
      %p81 = scmp.ne.s32.totalorder %s73, %s75
      %p82 = scmp.eq.s32.totalorder %s23, 3
      %p83 = por %p81, %p82
      %p84 = scmp.ne.s32.totalorder %s75, %s76
      %p85 = scmp.eq.s32.totalorder %s23, 0
      %p86 = por %p84, %p85
      %p87 = scmp.ne.s32.totalorder %s75, %s76
      %p88 = scmp.eq.s32.totalorder %s24, 3
      %p89 = por %p87, %p88
      %p91 = scmp.ne.s32.totalorder %s76, %s90
      %p92 = scmp.eq.s32.totalorder %s24, 0
      %p93 = por %p91, %p92
      %s95 = sadd.s32 %s94, 1
      %p98 = scmp.eq.s32.totalorder %s18, 3
      %p99 = scmp.ne.s32.totalorder %s94, %s96
      %p100 = scmp.eq.s32.totalorder %s18, 0
      %p101 = por %p99, %p100
      %p102 = scmp.ne.s32.totalorder %s94, %s96
      %p103 = scmp.eq.s32.totalorder %s23, 3
      %p104 = por %p102, %p103
      %p105 = scmp.ne.s32.totalorder %s96, %s97
      %p106 = scmp.eq.s32.totalorder %s23, 0
      %p107 = por %p105, %p106
      %p108 = scmp.ne.s32.totalorder %s96, %s97
      %p109 = scmp.eq.s32.totalorder %s24, 3
      %p110 = por %p108, %p109
      %p112 = scmp.ne.s32.totalorder %s97, %s111
      %p113 = scmp.eq.s32.totalorder %s24, 0
      %p114 = por %p112, %p113
      %s116 = sadd.s32 %s115, 1
      %p119 = scmp.eq.s32.totalorder %s18, 3
      %p120 = scmp.ne.s32.totalorder %s115, %s117
      %p121 = scmp.eq.s32.totalorder %s18, 0
      %p122 = por %p120, %p121
      %p123 = scmp.ne.s32.totalorder %s115, %s117
      %p124 = scmp.eq.s32.totalorder %s23, 3
      %p125 = por %p123, %p124
      %p126 = scmp.ne.s32.totalorder %s117, %s118
      %p127 = scmp.eq.s32.totalorder %s23, 0
      %p128 = por %p126, %p127
      %p129 = scmp.ne.s32.totalorder %s117, %s118
      %p130 = scmp.eq.s32.totalorder %s24, 3
      %p131 = por %p129, %p130
      %p133 = scmp.ne.s32.totalorder %s118, %s132
      %p134 = scmp.eq.s32.totalorder %s24, 0
      %p135 = por %p133, %p134
      %s137 = sadd.s32 %s136, 1
      %p140 = scmp.eq.s32.totalorder %s18, 3
      %p141 = scmp.ne.s32.totalorder %s136, %s138
      %p142 = scmp.eq.s32.totalorder %s18, 0
      %p143 = por %p141, %p142
      %p144 = scmp.ne.s32.totalorder %s136, %s138
      %p145 = scmp.eq.s32.totalorder %s23, 3
      %p146 = por %p144, %p145
      %p147 = scmp.ne.s32.totalorder %s138, %s139
      %p148 = scmp.eq.s32.totalorder %s23, 0
      %p149 = por %p147, %p148
      %p150 = scmp.ne.s32.totalorder %s138, %s139
      %p151 = scmp.eq.s32.totalorder %s24, 3
      %p152 = por %p150, %p151
      %p154 = scmp.ne.s32.totalorder %s139, %s153
      %p155 = scmp.eq.s32.totalorder %s24, 0
      %p156 = por %p154, %p155
      %s158 = sadd.s32 %s157, 1
      %p161 = scmp.eq.s32.totalorder %s18, 3
      %p162 = scmp.ne.s32.totalorder %s157, %s159
      %p163 = scmp.eq.s32.totalorder %s18, 0
      %p164 = por %p162, %p163
      %p165 = scmp.ne.s32.totalorder %s157, %s159
      %p166 = scmp.eq.s32.totalorder %s23, 3
      %p167 = por %p165, %p166
      %p168 = scmp.ne.s32.totalorder %s159, %s160
      %p169 = scmp.eq.s32.totalorder %s23, 0
      %p170 = por %p168, %p169
      %p171 = scmp.ne.s32.totalorder %s159, %s160
      %p172 = scmp.eq.s32.totalorder %s24, 3
      %p173 = por %p171, %p172
      %p175 = scmp.ne.s32.totalorder %s160, %s174
      %p176 = scmp.eq.s32.totalorder %s24, 0
      %p177 = por %p175, %p176
      %s178 = ssub.s32 %s18, %s25
      %p179 = scmp.eq.s32.totalorder %s178, 0
      %s181 = sadd.s32 %s180, 1
      %s182 = scalar_select %p179, %s180, %s181
      %p185 = pneg %p179
      %p186 = scmp.eq.s32.totalorder %s18, 3
      %p187 = por %p185, %p186
      %p188 = scmp.ne.s32.totalorder %s180, %s183
      %p189 = scmp.eq.s32.totalorder %s18, 0
      %p190 = por %p188, %p189
      %p191 = scmp.ne.s32.totalorder %s180, %s183
      %p192 = scmp.eq.s32.totalorder %s23, 3
      %p193 = por %p191, %p192
      %p194 = scmp.ne.s32.totalorder %s183, %s184
      %p195 = scmp.eq.s32.totalorder %s23, 0
      %p196 = por %p194, %p195
      %p197 = scmp.ne.s32.totalorder %s183, %s184
      %p198 = scmp.eq.s32.totalorder %s24, 3
      %p199 = por %p197, %p198
      %p201 = scmp.ne.s32.totalorder %s184, %s200
      %p202 = scmp.eq.s32.totalorder %s24, 0
      %p203 = por %p201, %p202
      %p204 = scmp.le.s32.totalorder 1, %s18
      %p205 = scmp.lt.s32.totalorder %s18, 5
      %p206 = pnand %p204, %p205
      %p207 = pneg %p206
      // Predicated region
      $region9: #{tpu_custom_call.1} parent=5 // pred_check
        _
      $region10: #{tpu_custom_call.1} parent=5 // pred_check_branch
        %209 = sbr.rel (%p206) target = $region12
      $region11: #{tpu_custom_call.1} parent=5 // pred_region
        %s210 = ssub.s32 %s18, 1
        // Predicated region
        $region13: #{tpu_custom_call.1} parent=11 // pred_check
          %p211 = pneg %p65
        $region14: #{tpu_custom_call.1} parent=11 // pred_check_branch
          %213 = sbr.rel (%p211) target = $region16
        $region15: #{tpu_custom_call.1} parent=11 // pred_region
          _
        $region16: #{tpu_custom_call.1} parent=11 // pred_fallthru
          _
        // Predicated region
        $region17: #{tpu_custom_call.1} parent=11 // pred_check
          %p214 = pneg %p86
        $region18: #{tpu_custom_call.1} parent=11 // pred_check_branch
          %216 = sbr.rel (%p214) target = $region20
        $region19: #{tpu_custom_call.1} parent=11 // pred_region
          _
        $region20: #{tpu_custom_call.1} parent=11 // pred_fallthru
          _
        // Predicated region
        $region21: #{tpu_custom_call.1} parent=11 // pred_check
          %p217 = pneg %p107
        $region22: #{tpu_custom_call.1} parent=11 // pred_check_branch
          %219 = sbr.rel (%p217) target = $region24
        $region23: #{tpu_custom_call.1} parent=11 // pred_region
          _
        $region24: #{tpu_custom_call.1} parent=11 // pred_fallthru
          _
        // Predicated region
        $region25: #{tpu_custom_call.1} parent=11 // pred_check
          %p220 = pneg %p128
        $region26: #{tpu_custom_call.1} parent=11 // pred_check_branch
          %222 = sbr.rel (%p220) target = $region28
        $region27: #{tpu_custom_call.1} parent=11 // pred_region
          _
        $region28: #{tpu_custom_call.1} parent=11 // pred_fallthru
          _
        // Predicated region
        $region29: #{tpu_custom_call.1} parent=11 // pred_check
          %p223 = pneg %p149
        $region30: #{tpu_custom_call.1} parent=11 // pred_check_branch
          %225 = sbr.rel (%p223) target = $region32
        $region31: #{tpu_custom_call.1} parent=11 // pred_region
          _
        $region32: #{tpu_custom_call.1} parent=11 // pred_fallthru
          _
        // Predicated region
        $region33: #{tpu_custom_call.1} parent=11 // pred_check
          %p226 = pneg %p170
        $region34: #{tpu_custom_call.1} parent=11 // pred_check_branch
          %228 = sbr.rel (%p226) target = $region36
        $region35: #{tpu_custom_call.1} parent=11 // pred_region
          _
        $region36: #{tpu_custom_call.1} parent=11 // pred_fallthru
          _
      $region12: #{tpu_custom_call.1} parent=5 // pred_fallthru
        _
      %p229 = scmp.lt.s32.totalorder %s18, 4
      // Predicated region
      $region37: #{tpu_custom_call.1} parent=5 // pred_check
        %p230 = pneg %p229
      $region38: #{tpu_custom_call.1} parent=5 // pred_check_branch
        %232 = sbr.rel (%p230) target = $region40
      $region39: #{tpu_custom_call.1} parent=5 // pred_region
        // Predicated region
        $region41: #{tpu_custom_call.1} parent=39 // pred_check
          %p233 = pneg %p38
        $region42: #{tpu_custom_call.1} parent=39 // pred_check_branch
          %235 = sbr.rel (%p233) target = $region44
        $region43: #{tpu_custom_call.1} parent=39 // pred_region
          %s236 = smul.u32 8, %s18
          %p237 = scmp.lt.s32.totalorder %s236, 31
          %s238 = scalar_select %p237, %s236, 31
          %s239 = smul.addr %s238, 2
          %s240 = scalar_lea.vmem %s0, %s239
          %s241 = smul.u32 8, %s18
        $region44: #{tpu_custom_call.1} parent=39 // pred_fallthru
          _
      $region40: #{tpu_custom_call.1} parent=5 // pred_fallthru
        _
      %p242 = scmp.le.s32.totalorder 1, %s18
      %p243 = scmp.lt.s32.totalorder %s18, 5
      %p244 = pnand %p242, %p243
      %p245 = pneg %p244
      // Predicated region
      $region45: #{tpu_custom_call.1} parent=5 // pred_check
        _
      $region46: #{tpu_custom_call.1} parent=5 // pred_check_branch
        %247 = sbr.rel (%p244) target = $region48
      $region47: #{tpu_custom_call.1} parent=5 // pred_region
        %s248 = ssub.s32 %s18, 1
        %s249 = smul.u32 8, %s23
        %p250 = scmp.lt.s32.totalorder %s249, 31
        %s251 = scalar_select %p250, %s249, 31
        %s252 = smul.addr %s251, 2
        %s253 = scalar_lea.vmem %s0, %s252
        %p254 = pneg %p44
        %p255 = pneg %p41
        %p256 = pneg %p65
        %p257 = pneg %p62
        %p258 = pneg %p86
        %p259 = pneg %p83
        %p260 = pneg %p107
        %p261 = pneg %p104
        %p262 = pneg %p128
        %p263 = pneg %p125
        %p264 = pneg %p149
        %p265 = pneg %p146
        %p266 = pneg %p170
        %p267 = pneg %p167
        %p268 = pneg %p196
        %p269 = pneg %p193
        %s270 = sand.u32 %s183, 1
        %s271 = scalar_lea.sflag [#allocation4], %s270
        %s272 = sand.u32 %s183, 1
        %s273 = smul.addr %s272, 8
        %s274 = scalar_lea.vmem [#allocation3], %s273
        %s275 = smul.u32 8, %s23
        %p276 = scmp.lt.s32.totalorder %s275, 31
        %s277 = scalar_select %p276, %s275, 31
        %s278 = smul.addr %s277, 2
        %s279 = scalar_lea.vmem %s0, %s278
        %s280 = smul.u32 8, %s23
        %s281 = smul.u32 8, %s23
        %v283 = vld [vmem:[%s1] sm:$0xff]
        %v284 = vld [vmem:[%s1 + $0x8] sm:$0xff]
        %v285 = vld [vmem:[%s1 + $0x10] sm:$0xff]
        %v286 = vld [vmem:[%s1 + $0x18] sm:$0xff]
        %v287 = vld [vmem:[%s1 + $0x20] sm:$0xff]
        %v288 = vld [vmem:[%s2] sm:$0xff]
        %v289 = vld [vmem:[%s2 + $0x8] sm:$0xff]
        %v290 = vld [vmem:[%s2 + $0x10] sm:$0xff]
        %v291 = vld [vmem:[%s2 + $0x18] sm:$0xff]
        %v292 = vld [vmem:[%s2 + $0x20] sm:$0xff]
        %v293 = vld [vmem:[%s5] sm:$0xff]
        %v294 = vld [vmem:[%s5 + $0x8] sm:$0xff]
        %v295 = vld [vmem:[%s5 + $0x10] sm:$0xff]
        %v296 = vld [vmem:[%s5 + $0x18] sm:$0xff]
        %v297 = vld [vmem:[%s5 + $0x20] sm:$0xff]
        %v298 = vld [vmem:[#allocation2] sm:$0x1]
        %v299 = vld [vmem:[%s279] sm:$0xf]
        %301 = vset.pattern.permute.xlu0 0
        %302 = vperm.xlu0 %301, %v283
        %v303 = vpop.permute.xlu0 %302
        %306 = vset.pattern.permute.xlu0 0
        %307 = vperm.xlu0 %306, %v284
        %v308 = vpop.permute.xlu0 %307
        %311 = vset.pattern.permute.xlu0 0
        %312 = vperm.xlu0 %311, %v285
        %v313 = vpop.permute.xlu0 %312
        %316 = vset.pattern.permute.xlu0 0
        %317 = vperm.xlu0 %316, %v286
        %v318 = vpop.permute.xlu0 %317
        %321 = vset.pattern.permute.xlu0 0
        %322 = vperm.xlu0 %321, %v287
        %v323 = vpop.permute.xlu0 %322
        %v326 = vlaneseq
        %v327 = vshrl.u32 %v326, 7
        %v328 = vsub.s32 0, %v327
        %v329 = vrot.slane %v299, %v328
        %v330 = vlaneseq
        %v331 = vshrl.u32 %v330, 7
        %v332 = vsub.s32 2, %v331
        %v333 = vrot.slane %v299, %v332
        %v336 = vlaneseq
        %v337 = vshrl.u32 %v336, 7
        %v338 = vsub.s32 0, %v337
        %v339 = vrot.slane %v329, %v338
        %v340 = vlaneseq
        %v341 = vshrl.u32 %v340, 7
        %v342 = vsub.s32 0, %v341
        %v343 = vrot.slane %v333, %v342
        %v344 = vmul.f32 %v303, %v339
        %v345 = vmul.f32 %v303, %v343
        %v346 = vmul.f32 %v308, %v339
        %v347 = vmul.f32 %v308, %v343
        %v348 = vmul.f32 %v313, %v339
        %v349 = vmul.f32 %v313, %v343
        %v350 = vmul.f32 %v318, %v339
        %v351 = vmul.f32 %v318, %v343
        %v352 = vmul.f32 %v323, %v339
        %v353 = vmul.f32 %v323, %v343
        %354 = vset.pattern.permute.xlu0 1
        %355 = vperm.xlu0 %354, %v283
        %v356 = vpop.permute.xlu0 %355
        %358 = vset.pattern.permute.xlu0 1
        %359 = vperm.xlu0 %358, %v284
        %v360 = vpop.permute.xlu0 %359
        %362 = vset.pattern.permute.xlu0 1
        %363 = vperm.xlu0 %362, %v285
        %v364 = vpop.permute.xlu0 %363
        %366 = vset.pattern.permute.xlu0 1
        %367 = vperm.xlu0 %366, %v286
        %v368 = vpop.permute.xlu0 %367
        %370 = vset.pattern.permute.xlu0 1
        %371 = vperm.xlu0 %370, %v287
        %v372 = vpop.permute.xlu0 %371
        %v374 = vlaneseq
        %v375 = vshrl.u32 %v374, 7
        %v376 = vsub.s32 1, %v375
        %v377 = vrot.slane %v299, %v376
        %v378 = vlaneseq
        %v379 = vshrl.u32 %v378, 7
        %v380 = vsub.s32 3, %v379
        %v381 = vrot.slane %v299, %v380
        %v384 = vlaneseq
        %v385 = vshrl.u32 %v384, 7
        %v386 = vsub.s32 1, %v385
        %v387 = vrot.slane %v377, %v386
        %v388 = vlaneseq
        %v389 = vshrl.u32 %v388, 7
        %v390 = vsub.s32 1, %v389
        %v391 = vrot.slane %v381, %v390
        %v392 = vmul.f32 %v356, %v387
        %v393 = vmul.f32 %v356, %v391
        %v394 = vmul.f32 %v360, %v387
        %v395 = vmul.f32 %v360, %v391
        %v396 = vmul.f32 %v364, %v387
        %v397 = vmul.f32 %v364, %v391
        %v398 = vmul.f32 %v368, %v387
        %v399 = vmul.f32 %v368, %v391
        %v400 = vmul.f32 %v372, %v387
        %v401 = vmul.f32 %v372, %v391
        %v402 = vadd.f32 %v344, %v392
        %v403 = vadd.f32 %v345, %v393
        %v404 = vadd.f32 %v346, %v394
        %v405 = vadd.f32 %v347, %v395
        %v406 = vadd.f32 %v348, %v396
        %v407 = vadd.f32 %v349, %v397
        %v408 = vadd.f32 %v350, %v398
        %v409 = vadd.f32 %v351, %v399
        %v410 = vadd.f32 %v352, %v400
        %v411 = vadd.f32 %v353, %v401
        %413 = vset.pattern.permute.xlu0 0
        %414 = vperm.xlu0 %413, %v288
        %v415 = vpop.permute.xlu0 %414
        %418 = vset.pattern.permute.xlu0 0
        %419 = vperm.xlu0 %418, %v289
        %v420 = vpop.permute.xlu0 %419
        %423 = vset.pattern.permute.xlu0 0
        %424 = vperm.xlu0 %423, %v290
        %v425 = vpop.permute.xlu0 %424
        %428 = vset.pattern.permute.xlu0 0
        %429 = vperm.xlu0 %428, %v291
        %v430 = vpop.permute.xlu0 %429
        %433 = vset.pattern.permute.xlu0 0
        %434 = vperm.xlu0 %433, %v292
        %v435 = vpop.permute.xlu0 %434
        %v437 = vadd.f32 %v402, %v415
        %v438 = vadd.f32 %v403, %v415
        %v439 = vadd.f32 %v404, %v420
        %v440 = vadd.f32 %v405, %v420
        %v441 = vadd.f32 %v406, %v425
        %v442 = vadd.f32 %v407, %v425
        %v443 = vadd.f32 %v408, %v430
        %v444 = vadd.f32 %v409, %v430
        %v445 = vadd.f32 %v410, %v435
        %v446 = vadd.f32 %v411, %v435
        %v447 = vmul.f32 %v437, 0.5
        %v448 = vmul.f32 %v438, 0.5
        %v449 = vmul.f32 %v439, 0.5
        %v450 = vmul.f32 %v440, 0.5
        %v451 = vmul.f32 %v441, 0.5
        %v452 = vmul.f32 %v442, 0.5
        %v453 = vmul.f32 %v443, 0.5
        %v454 = vmul.f32 %v444, 0.5
        %v455 = vmul.f32 %v445, 0.5
        %v456 = vmul.f32 %v446, 0.5
        %v457 = vtanh.pop %v447
        %v458 = vtanh.pop %v448
        %v459 = vtanh.pop %v449
        %v460 = vtanh.pop %v450
        %v461 = vtanh.pop %v451
        %v462 = vtanh.pop %v452
        %v463 = vtanh.pop %v453
        %v464 = vtanh.pop %v454
        %v465 = vtanh.pop %v455
        %v466 = vtanh.pop %v456
        %v467 = vmul.f32 %v447, %v457
        %v468 = vmul.f32 %v448, %v458
        %v469 = vmul.f32 %v449, %v459
        %v470 = vmul.f32 %v450, %v460
        %v471 = vmul.f32 %v451, %v461
        %v472 = vmul.f32 %v452, %v462
        %v473 = vmul.f32 %v453, %v463
        %v474 = vmul.f32 %v454, %v464
        %v475 = vmul.f32 %v455, %v465
        %v476 = vmul.f32 %v456, %v466
        %v477 = vadd.f32 %v447, %v467
        %v478 = vadd.f32 %v448, %v468
        %v479 = vadd.f32 %v449, %v469
        %v480 = vadd.f32 %v450, %v470
        %v481 = vadd.f32 %v451, %v471
        %v482 = vadd.f32 %v452, %v472
        %v483 = vadd.f32 %v453, %v473
        %v484 = vadd.f32 %v454, %v474
        %v485 = vadd.f32 %v455, %v475
        %v486 = vadd.f32 %v456, %v476
        %v487 = vld [vmem:[%s3] sm:$0xf]
        %v488 = vld [vmem:[%s3 + $0x4] sm:$0xf]
        %v489 = vld [vmem:[%s3 + $0x8] sm:$0xf]
        %v490 = vld [vmem:[%s3 + $0xc] sm:$0xf]
        %v491 = vld [vmem:[%s3 + $0x10] sm:$0xf]
        %v492 = vpack.c.bf16 %v479, %v477
        %v493 = vpack.c.bf16 %v480, %v478
        %v494 = vpack.c.bf16 %v483, %v481
        %v495 = vpack.c.bf16 %v484, %v482
        %v496 = vpack.c.bf16 %v485, %v485
        %v497 = vpack.c.bf16 %v486, %v486
        %v498 = vld [vmem:[%s4] sm:$0xff]
        %v499 = vld [vmem:[%s4 + $0x8] sm:$0xff]
        %v500 = vld [vmem:[%s4 + $0x10] sm:$0xff]
        %v501 = vld [vmem:[%s4 + $0x18] sm:$0xff]
        %v502 = vld [vmem:[%s4 + $0x20] sm:$0xff]
        %504 = vset.pattern.permute.xlu0 0
        %505 = vperm.xlu0 %504, %v498
        %v506 = vpop.permute.xlu0 %505
        %509 = vset.pattern.permute.xlu0 0
        %510 = vperm.xlu0 %509, %v499
        %v511 = vpop.permute.xlu0 %510
        %514 = vset.pattern.permute.xlu0 0
        %515 = vperm.xlu0 %514, %v500
        %v516 = vpop.permute.xlu0 %515
        %519 = vset.pattern.permute.xlu0 0
        %520 = vperm.xlu0 %519, %v501
        %v521 = vpop.permute.xlu0 %520
        %524 = vset.pattern.permute.xlu0 0
        %525 = vperm.xlu0 %524, %v502
        %v526 = vpop.permute.xlu0 %525
        %v533 = vunpack.c.l.b16 %v487
        %v534 = vunpack.c.l.b16 %v488
        %v535 = vunpack.c.l.b16 %v489
        %v536 = vunpack.c.l.b16 %v490
        %v537 = vunpack.c.l.b16 %v491
        %v538 = vpack.c.b16 %v534, %v533
        %v539 = vpack.c.b16 %v536, %v535
        %v540 = vpack.c.b16 %v537, %v537
        %vm541 = vcmask 326656
        %v543 = vsel %vm541, %v538, 0
        %v546 = vsel %vm541, %v539, 0
        %v549 = vsel %vm541, %v540, 0
        %vm551 = vcmask 1043456
        %v553 = vsel %vm551, %v496, 0
        %v556 = vsel %vm551, %v497, 0
        %558 = vmatprep.subr.bf16.mxu0 0
        %559 = vmatpush1.bf16.msra.mxu0 0
        %560 = vmatprep.subr.bf16.mxu0 0
        %561 = vmatpush1.bf16.msra.mxu0 0
        %562 = vmatprep.subr.bf16.mxu0 0
        %563 = vmatpush1.bf16.msra.mxu0 0
        %564 = vmatprep.subr.bf16.mxu0 0
        %565 = vmatpush1.bf16.msra.mxu0 0
        %566 = vmatprep.subr.bf16.mxu0 0
        %567 = vmatpush1.bf16.msra.mxu0 0
        %568 = vmatprep.subr.bf16.mxu0 %v556
        %569 = vmatpush1.bf16.msra.mxu0 %v553
        %570 = vmatprep.subr.bf16.mxu0 %v495
        %571 = vmatpush1.bf16.msra.mxu0 %v494
        %572 = vmatprep.subr.bf16.mxu0 %v493
        %573 = vmatpush1.bf16.msra.mxu0 %v492
        %574 = vmatprep.subr.bf16.mxu0 0
        %575 = vmatpush2.bf16.msra.mxu0 0
        %576 = vmatprep.subr.bf16.mxu0 0
        %577 = vmatpush2.bf16.msra.mxu0 0
        %578 = vmatprep.subr.bf16.mxu0 0
        %579 = vmatpush2.bf16.msra.mxu0 0
        %580 = vmatprep.subr.bf16.mxu0 0
        %581 = vmatpush2.bf16.msra.mxu0 0
        %582 = vmatprep.subr.bf16.mxu0 0
        %583 = vmatpush2.bf16.msra.mxu0 0
        %584 = vmatprep.subr.bf16.mxu0 0
        %585 = vmatpush2.bf16.msra.mxu0 0
        %586 = vmatprep.subr.bf16.mxu0 0
        %587 = vmatpush2.bf16.msra.mxu0 0
        %588 = vmatprep.subr.bf16.mxu0 0
        %589 = vmatpush2.bf16.msra.mxu0 0
        %590 = vmatprep.mubr.bf16.mxu0 0
        %591 = vmatmul.mubr.bf16.gmra.mxu0 %v543
        %v592 = vpop.f32.mrf.mxu0
        %v593 = vadd.f32 %v506, %v592
        %v594 = vpop.f32.mrf.mxu0
        %v595 = vadd.f32 %v506, %v594
        %v596 = vpop.f32.mrf.mxu0
        %v597 = vadd.f32 %v511, %v596
        %v598 = vpop.f32.mrf.mxu0
        %v599 = vadd.f32 %v511, %v598
        %600 = vmatprep.mubr.bf16.mxu0 0
        %601 = vmatmul.mubr.bf16.gmra.mxu0 %v546
        %v602 = vpop.f32.mrf.mxu0
        %v603 = vadd.f32 %v516, %v602
        %v604 = vpop.f32.mrf.mxu0
        %v605 = vadd.f32 %v516, %v604
        %v606 = vpop.f32.mrf.mxu0
        %v607 = vadd.f32 %v521, %v606
        %v608 = vpop.f32.mrf.mxu0
        %v609 = vadd.f32 %v521, %v608
        %610 = vmatprep.mubr.bf16.mxu0 0
        %611 = vmatmul.mubr.bf16.gmra.mxu0 %v549
        %v612 = vpop.f32.mrf.mxu0
        %v613 = vadd.f32 %v526, %v612
        %v614 = vpop.f32.mrf.mxu0
        %v615 = vadd.f32 %v526, %v614
        %v616 = vpop.f32.mrf.mxu0
        %v617 = vpop.f32.mrf.mxu0
        %618 = vdwg.mxu0
        %v619 = vmul.f32 %v593, 0.5
        %v620 = vmul.f32 %v595, 0.5
        %v621 = vmul.f32 %v597, 0.5
        %v622 = vmul.f32 %v599, 0.5
        %v623 = vmul.f32 %v603, 0.5
        %v624 = vmul.f32 %v605, 0.5
        %v625 = vmul.f32 %v607, 0.5
        %v626 = vmul.f32 %v609, 0.5
        %v627 = vmul.f32 %v613, 0.5
        %v628 = vmul.f32 %v615, 0.5
        %v629 = vtanh.pop %v619
        %v630 = vtanh.pop %v620
        %v631 = vtanh.pop %v621
        %v632 = vtanh.pop %v622
        %v633 = vtanh.pop %v623
        %v634 = vtanh.pop %v624
        %v635 = vtanh.pop %v625
        %v636 = vtanh.pop %v626
        %v637 = vtanh.pop %v627
        %v638 = vtanh.pop %v628
        %v639 = vmul.f32 %v619, %v629
        %v640 = vmul.f32 %v620, %v630
        %v641 = vmul.f32 %v621, %v631
        %v642 = vmul.f32 %v622, %v632
        %v643 = vmul.f32 %v623, %v633
        %v644 = vmul.f32 %v624, %v634
        %v645 = vmul.f32 %v625, %v635
        %v646 = vmul.f32 %v626, %v636
        %v647 = vmul.f32 %v627, %v637
        %v648 = vmul.f32 %v628, %v638
        %v649 = vadd.f32 %v619, %v639
        %v650 = vadd.f32 %v620, %v640
        %v651 = vadd.f32 %v621, %v641
        %v652 = vadd.f32 %v622, %v642
        %v653 = vadd.f32 %v623, %v643
        %v654 = vadd.f32 %v624, %v644
        %v655 = vadd.f32 %v625, %v645
        %v656 = vadd.f32 %v626, %v646
        %v657 = vadd.f32 %v627, %v647
        %v658 = vadd.f32 %v628, %v648
        %s659 = scalar_lea.vmem %s3, 20
        %v660 = vld [vmem:[%s659] sm:$0xf]
        %v661 = vld [vmem:[%s659 + $0x4] sm:$0xf]
        %v662 = vld [vmem:[%s659 + $0x8] sm:$0xf]
        %v663 = vld [vmem:[%s659 + $0xc] sm:$0xf]
        %v664 = vld [vmem:[%s659 + $0x10] sm:$0xf]
        %v665 = vpack.c.bf16 %v651, %v649
        %v666 = vpack.c.bf16 %v652, %v650
        %v667 = vpack.c.bf16 %v655, %v653
        %v668 = vpack.c.bf16 %v656, %v654
        %v669 = vpack.c.bf16 %v657, %v657
        %v670 = vpack.c.bf16 %v658, %v658
        %s671 = scalar_lea.vmem %s4, 40
        %v672 = vld [vmem:[%s671] sm:$0xff]
        %v673 = vld [vmem:[%s671 + $0x8] sm:$0xff]
        %v674 = vld [vmem:[%s671 + $0x10] sm:$0xff]
        %v675 = vld [vmem:[%s671 + $0x18] sm:$0xff]
        %v676 = vld [vmem:[%s671 + $0x20] sm:$0xff]
        %678 = vset.pattern.permute.xlu0 0
        %679 = vperm.xlu0 %678, %v672
        %v680 = vpop.permute.xlu0 %679
        %683 = vset.pattern.permute.xlu0 0
        %684 = vperm.xlu0 %683, %v673
        %v685 = vpop.permute.xlu0 %684
        %688 = vset.pattern.permute.xlu0 0
        %689 = vperm.xlu0 %688, %v674
        %v690 = vpop.permute.xlu0 %689
        %693 = vset.pattern.permute.xlu0 0
        %694 = vperm.xlu0 %693, %v675
        %v695 = vpop.permute.xlu0 %694
        %698 = vset.pattern.permute.xlu0 0
        %699 = vperm.xlu0 %698, %v676
        %v700 = vpop.permute.xlu0 %699
        %v707 = vunpack.c.l.b16 %v660
        %v708 = vunpack.c.l.b16 %v661
        %v709 = vunpack.c.l.b16 %v662
        %v710 = vunpack.c.l.b16 %v663
        %v711 = vunpack.c.l.b16 %v664
        %v712 = vpack.c.b16 %v708, %v707
        %v713 = vpack.c.b16 %v710, %v709
        %v714 = vpack.c.b16 %v711, %v711
        %v716 = vsel %vm541, %v712, 0
        %v719 = vsel %vm541, %v713, 0
        %v722 = vsel %vm541, %v714, 0
        %v725 = vsel %vm551, %v669, 0
        %v728 = vsel %vm551, %v670, 0
        %730 = vmatprep.subr.bf16.mxu0 0
        %731 = vmatpush1.bf16.msra.mxu0 0
        %732 = vmatprep.subr.bf16.mxu0 0
        %733 = vmatpush1.bf16.msra.mxu0 0
        %734 = vmatprep.subr.bf16.mxu0 0
        %735 = vmatpush1.bf16.msra.mxu0 0
        %736 = vmatprep.subr.bf16.mxu0 0
        %737 = vmatpush1.bf16.msra.mxu0 0
        %738 = vmatprep.subr.bf16.mxu0 0
        %739 = vmatpush1.bf16.msra.mxu0 0
        %740 = vmatprep.subr.bf16.mxu0 %v728
        %741 = vmatpush1.bf16.msra.mxu0 %v725
        %742 = vmatprep.subr.bf16.mxu0 %v668
        %743 = vmatpush1.bf16.msra.mxu0 %v667
        %744 = vmatprep.subr.bf16.mxu0 %v666
        %745 = vmatpush1.bf16.msra.mxu0 %v665
        %746 = vmatprep.subr.bf16.mxu0 0
        %747 = vmatpush2.bf16.msra.mxu0 0
        %748 = vmatprep.subr.bf16.mxu0 0
        %749 = vmatpush2.bf16.msra.mxu0 0
        %750 = vmatprep.subr.bf16.mxu0 0
        %751 = vmatpush2.bf16.msra.mxu0 0
        %752 = vmatprep.subr.bf16.mxu0 0
        %753 = vmatpush2.bf16.msra.mxu0 0
        %754 = vmatprep.subr.bf16.mxu0 0
        %755 = vmatpush2.bf16.msra.mxu0 0
        %756 = vmatprep.subr.bf16.mxu0 0
        %757 = vmatpush2.bf16.msra.mxu0 0
        %758 = vmatprep.subr.bf16.mxu0 0
        %759 = vmatpush2.bf16.msra.mxu0 0
        %760 = vmatprep.subr.bf16.mxu0 0
        %761 = vmatpush2.bf16.msra.mxu0 0
        %762 = vmatprep.mubr.bf16.mxu0 0
        %763 = vmatmul.mubr.bf16.gmra.mxu0 %v716
        %v764 = vpop.f32.mrf.mxu0
        %v765 = vadd.f32 %v680, %v764
        %v766 = vpop.f32.mrf.mxu0
        %v767 = vadd.f32 %v680, %v766
        %v768 = vpop.f32.mrf.mxu0
        %v769 = vadd.f32 %v685, %v768
        %v770 = vpop.f32.mrf.mxu0
        %v771 = vadd.f32 %v685, %v770
        %772 = vmatprep.mubr.bf16.mxu0 0
        %773 = vmatmul.mubr.bf16.gmra.mxu0 %v719
        %v774 = vpop.f32.mrf.mxu0
        %v775 = vadd.f32 %v690, %v774
        %v776 = vpop.f32.mrf.mxu0
        %v777 = vadd.f32 %v690, %v776
        %v778 = vpop.f32.mrf.mxu0
        %v779 = vadd.f32 %v695, %v778
        %v780 = vpop.f32.mrf.mxu0
        %v781 = vadd.f32 %v695, %v780
        %782 = vmatprep.mubr.bf16.mxu0 0
        %783 = vmatmul.mubr.bf16.gmra.mxu0 %v722
        %v784 = vpop.f32.mrf.mxu0
        %v785 = vadd.f32 %v700, %v784
        %v786 = vpop.f32.mrf.mxu0
        %v787 = vadd.f32 %v700, %v786
        %v788 = vpop.f32.mrf.mxu0
        %v789 = vpop.f32.mrf.mxu0
        %790 = vdwg.mxu0
        %v791 = vmul.f32 %v765, 0.5
        %v792 = vmul.f32 %v767, 0.5
        %v793 = vmul.f32 %v769, 0.5
        %v794 = vmul.f32 %v771, 0.5
        %v795 = vmul.f32 %v775, 0.5
        %v796 = vmul.f32 %v777, 0.5
        %v797 = vmul.f32 %v779, 0.5
        %v798 = vmul.f32 %v781, 0.5
        %v799 = vmul.f32 %v785, 0.5
        %v800 = vmul.f32 %v787, 0.5
        %v801 = vtanh.pop %v791
        %v802 = vtanh.pop %v792
        %v803 = vtanh.pop %v793
        %v804 = vtanh.pop %v794
        %v805 = vtanh.pop %v795
        %v806 = vtanh.pop %v796
        %v807 = vtanh.pop %v797
        %v808 = vtanh.pop %v798
        %v809 = vtanh.pop %v799
        %v810 = vtanh.pop %v800
        %v811 = vmul.f32 %v791, %v801
        %v812 = vmul.f32 %v792, %v802
        %v813 = vmul.f32 %v793, %v803
        %v814 = vmul.f32 %v794, %v804
        %v815 = vmul.f32 %v795, %v805
        %v816 = vmul.f32 %v796, %v806
        %v817 = vmul.f32 %v797, %v807
        %v818 = vmul.f32 %v798, %v808
        %v819 = vmul.f32 %v799, %v809
        %v820 = vmul.f32 %v800, %v810
        %v821 = vadd.f32 %v791, %v811
        %v822 = vadd.f32 %v792, %v812
        %v823 = vadd.f32 %v793, %v813
        %v824 = vadd.f32 %v794, %v814
        %v825 = vadd.f32 %v795, %v815
        %v826 = vadd.f32 %v796, %v816
        %v827 = vadd.f32 %v797, %v817
        %v828 = vadd.f32 %v798, %v818
        %v829 = vadd.f32 %v799, %v819
        %v830 = vadd.f32 %v800, %v820
        %s831 = scalar_lea.vmem %s3, 40
        %v832 = vld [vmem:[%s831] sm:$0xf]
        %v833 = vld [vmem:[%s831 + $0x4] sm:$0xf]
        %v834 = vld [vmem:[%s831 + $0x8] sm:$0xf]
        %v835 = vld [vmem:[%s831 + $0xc] sm:$0xf]
        %v836 = vld [vmem:[%s831 + $0x10] sm:$0xf]
        %v837 = vpack.c.bf16 %v823, %v821
        %v838 = vpack.c.bf16 %v824, %v822
        %v839 = vpack.c.bf16 %v827, %v825
        %v840 = vpack.c.bf16 %v828, %v826
        %v841 = vpack.c.bf16 %v829, %v829
        %v842 = vpack.c.bf16 %v830, %v830
        %s843 = scalar_lea.vmem %s4, 80
        %v844 = vld [vmem:[%s843] sm:$0xff]
        %v845 = vld [vmem:[%s843 + $0x8] sm:$0xff]
        %v846 = vld [vmem:[%s843 + $0x10] sm:$0xff]
        %v847 = vld [vmem:[%s843 + $0x18] sm:$0xff]
        %v848 = vld [vmem:[%s843 + $0x20] sm:$0xff]
        %850 = vset.pattern.permute.xlu0 0
        %851 = vperm.xlu0 %850, %v844
        %v852 = vpop.permute.xlu0 %851
        %855 = vset.pattern.permute.xlu0 0
        %856 = vperm.xlu0 %855, %v845
        %v857 = vpop.permute.xlu0 %856
        %860 = vset.pattern.permute.xlu0 0
        %861 = vperm.xlu0 %860, %v846
        %v862 = vpop.permute.xlu0 %861
        %865 = vset.pattern.permute.xlu0 0
        %866 = vperm.xlu0 %865, %v847
        %v867 = vpop.permute.xlu0 %866
        %870 = vset.pattern.permute.xlu0 0
        %871 = vperm.xlu0 %870, %v848
        %v872 = vpop.permute.xlu0 %871
        %v879 = vunpack.c.l.b16 %v832
        %v880 = vunpack.c.l.b16 %v833
        %v881 = vunpack.c.l.b16 %v834
        %v882 = vunpack.c.l.b16 %v835
        %v883 = vunpack.c.l.b16 %v836
        %v884 = vpack.c.b16 %v880, %v879
        %v885 = vpack.c.b16 %v882, %v881
        %v886 = vpack.c.b16 %v883, %v883
        %v888 = vsel %vm541, %v884, 0
        %v891 = vsel %vm541, %v885, 0
        %v894 = vsel %vm541, %v886, 0
        %v897 = vsel %vm551, %v841, 0
        %v900 = vsel %vm551, %v842, 0
        %902 = vmatprep.subr.bf16.mxu0 0
        %903 = vmatpush1.bf16.msra.mxu0 0
        %904 = vmatprep.subr.bf16.mxu0 0
        %905 = vmatpush1.bf16.msra.mxu0 0
        %906 = vmatprep.subr.bf16.mxu0 0
        %907 = vmatpush1.bf16.msra.mxu0 0
        %908 = vmatprep.subr.bf16.mxu0 0
        %909 = vmatpush1.bf16.msra.mxu0 0
        %910 = vmatprep.subr.bf16.mxu0 0
        %911 = vmatpush1.bf16.msra.mxu0 0
        %912 = vmatprep.subr.bf16.mxu0 %v900
        %913 = vmatpush1.bf16.msra.mxu0 %v897
        %914 = vmatprep.subr.bf16.mxu0 %v840
        %915 = vmatpush1.bf16.msra.mxu0 %v839
        %916 = vmatprep.subr.bf16.mxu0 %v838
        %917 = vmatpush1.bf16.msra.mxu0 %v837
        %918 = vmatprep.subr.bf16.mxu0 0
        %919 = vmatpush2.bf16.msra.mxu0 0
        %920 = vmatprep.subr.bf16.mxu0 0
        %921 = vmatpush2.bf16.msra.mxu0 0
        %922 = vmatprep.subr.bf16.mxu0 0
        %923 = vmatpush2.bf16.msra.mxu0 0
        %924 = vmatprep.subr.bf16.mxu0 0
        %925 = vmatpush2.bf16.msra.mxu0 0
        %926 = vmatprep.subr.bf16.mxu0 0
        %927 = vmatpush2.bf16.msra.mxu0 0
        %928 = vmatprep.subr.bf16.mxu0 0
        %929 = vmatpush2.bf16.msra.mxu0 0
        %930 = vmatprep.subr.bf16.mxu0 0
        %931 = vmatpush2.bf16.msra.mxu0 0
        %932 = vmatprep.subr.bf16.mxu0 0
        %933 = vmatpush2.bf16.msra.mxu0 0
        %934 = vmatprep.mubr.bf16.mxu0 0
        %935 = vmatmul.mubr.bf16.gmra.mxu0 %v888
        %v936 = vpop.f32.mrf.mxu0
        %v937 = vadd.f32 %v852, %v936
        %v938 = vpop.f32.mrf.mxu0
        %v939 = vadd.f32 %v852, %v938
        %v940 = vpop.f32.mrf.mxu0
        %v941 = vadd.f32 %v857, %v940
        %v942 = vpop.f32.mrf.mxu0
        %v943 = vadd.f32 %v857, %v942
        %944 = vmatprep.mubr.bf16.mxu0 0
        %945 = vmatmul.mubr.bf16.gmra.mxu0 %v891
        %v946 = vpop.f32.mrf.mxu0
        %v947 = vadd.f32 %v862, %v946
        %v948 = vpop.f32.mrf.mxu0
        %v949 = vadd.f32 %v862, %v948
        %v950 = vpop.f32.mrf.mxu0
        %v951 = vadd.f32 %v867, %v950
        %v952 = vpop.f32.mrf.mxu0
        %v953 = vadd.f32 %v867, %v952
        %954 = vmatprep.mubr.bf16.mxu0 0
        %955 = vmatmul.mubr.bf16.gmra.mxu0 %v894
        %v956 = vpop.f32.mrf.mxu0
        %v957 = vadd.f32 %v872, %v956
        %v958 = vpop.f32.mrf.mxu0
        %v959 = vadd.f32 %v872, %v958
        %v960 = vpop.f32.mrf.mxu0
        %v961 = vpop.f32.mrf.mxu0
        %962 = vdwg.mxu0
        %v963 = vmul.f32 %v937, 0.5
        %v964 = vmul.f32 %v939, 0.5
        %v965 = vmul.f32 %v941, 0.5
        %v966 = vmul.f32 %v943, 0.5
        %v967 = vmul.f32 %v947, 0.5
        %v968 = vmul.f32 %v949, 0.5
        %v969 = vmul.f32 %v951, 0.5
        %v970 = vmul.f32 %v953, 0.5
        %v971 = vmul.f32 %v957, 0.5
        %v972 = vmul.f32 %v959, 0.5
        %v973 = vtanh.pop %v963
        %v974 = vtanh.pop %v964
        %v975 = vtanh.pop %v965
        %v976 = vtanh.pop %v966
        %v977 = vtanh.pop %v967
        %v978 = vtanh.pop %v968
        %v979 = vtanh.pop %v969
        %v980 = vtanh.pop %v970
        %v981 = vtanh.pop %v971
        %v982 = vtanh.pop %v972
        %v983 = vmul.f32 %v963, %v973
        %v984 = vmul.f32 %v964, %v974
        %v985 = vmul.f32 %v965, %v975
        %v986 = vmul.f32 %v966, %v976
        %v987 = vmul.f32 %v967, %v977
        %v988 = vmul.f32 %v968, %v978
        %v989 = vmul.f32 %v969, %v979
        %v990 = vmul.f32 %v970, %v980
        %v991 = vmul.f32 %v971, %v981
        %v992 = vmul.f32 %v972, %v982
        %v993 = vadd.f32 %v963, %v983
        %v994 = vadd.f32 %v964, %v984
        %v995 = vadd.f32 %v965, %v985
        %v996 = vadd.f32 %v966, %v986
        %v997 = vadd.f32 %v967, %v987
        %v998 = vadd.f32 %v968, %v988
        %v999 = vadd.f32 %v969, %v989
        %v1000 = vadd.f32 %v970, %v990
        %v1001 = vadd.f32 %v971, %v991
        %v1002 = vadd.f32 %v972, %v992
        %s1003 = scalar_lea.vmem %s3, 60
        %v1004 = vld [vmem:[%s1003] sm:$0xf]
        %v1005 = vld [vmem:[%s1003 + $0x4] sm:$0xf]
        %v1006 = vld [vmem:[%s1003 + $0x8] sm:$0xf]
        %v1007 = vld [vmem:[%s1003 + $0xc] sm:$0xf]
        %v1008 = vld [vmem:[%s1003 + $0x10] sm:$0xf]
        %v1009 = vpack.c.bf16 %v995, %v993
        %v1010 = vpack.c.bf16 %v996, %v994
        %v1011 = vpack.c.bf16 %v999, %v997
        %v1012 = vpack.c.bf16 %v1000, %v998
        %v1013 = vpack.c.bf16 %v1001, %v1001
        %v1014 = vpack.c.bf16 %v1002, %v1002
        %s1015 = scalar_lea.vmem %s4, 120
        %v1016 = vld [vmem:[%s1015] sm:$0xff]
        %v1017 = vld [vmem:[%s1015 + $0x8] sm:$0xff]
        %v1018 = vld [vmem:[%s1015 + $0x10] sm:$0xff]
        %v1019 = vld [vmem:[%s1015 + $0x18] sm:$0xff]
        %v1020 = vld [vmem:[%s1015 + $0x20] sm:$0xff]
        %1022 = vset.pattern.permute.xlu0 0
        %1023 = vperm.xlu0 %1022, %v1016
        %v1024 = vpop.permute.xlu0 %1023
        %1027 = vset.pattern.permute.xlu0 0
        %1028 = vperm.xlu0 %1027, %v1017
        %v1029 = vpop.permute.xlu0 %1028
        %1032 = vset.pattern.permute.xlu0 0
        %1033 = vperm.xlu0 %1032, %v1018
        %v1034 = vpop.permute.xlu0 %1033
        %1037 = vset.pattern.permute.xlu0 0
        %1038 = vperm.xlu0 %1037, %v1019
        %v1039 = vpop.permute.xlu0 %1038
        %1042 = vset.pattern.permute.xlu0 0
        %1043 = vperm.xlu0 %1042, %v1020
        %v1044 = vpop.permute.xlu0 %1043
        %v1051 = vunpack.c.l.b16 %v1004
        %v1052 = vunpack.c.l.b16 %v1005
        %v1053 = vunpack.c.l.b16 %v1006
        %v1054 = vunpack.c.l.b16 %v1007
        %v1055 = vunpack.c.l.b16 %v1008
        %v1056 = vpack.c.b16 %v1052, %v1051
        %v1057 = vpack.c.b16 %v1054, %v1053
        %v1058 = vpack.c.b16 %v1055, %v1055
        %v1060 = vsel %vm541, %v1056, 0
        %v1063 = vsel %vm541, %v1057, 0
        %v1066 = vsel %vm541, %v1058, 0
        %v1069 = vsel %vm551, %v1013, 0
        %v1072 = vsel %vm551, %v1014, 0
        %1074 = vmatprep.subr.bf16.mxu0 0
        %1075 = vmatpush1.bf16.msra.mxu0 0
        %1076 = vmatprep.subr.bf16.mxu0 0
        %1077 = vmatpush1.bf16.msra.mxu0 0
        %1078 = vmatprep.subr.bf16.mxu0 0
        %1079 = vmatpush1.bf16.msra.mxu0 0
        %1080 = vmatprep.subr.bf16.mxu0 0
        %1081 = vmatpush1.bf16.msra.mxu0 0
        %1082 = vmatprep.subr.bf16.mxu0 0
        %1083 = vmatpush1.bf16.msra.mxu0 0
        %1084 = vmatprep.subr.bf16.mxu0 %v1072
        %1085 = vmatpush1.bf16.msra.mxu0 %v1069
        %1086 = vmatprep.subr.bf16.mxu0 %v1012
        %1087 = vmatpush1.bf16.msra.mxu0 %v1011
        %1088 = vmatprep.subr.bf16.mxu0 %v1010
        %1089 = vmatpush1.bf16.msra.mxu0 %v1009
        %1090 = vmatprep.subr.bf16.mxu0 0
        %1091 = vmatpush2.bf16.msra.mxu0 0
        %1092 = vmatprep.subr.bf16.mxu0 0
        %1093 = vmatpush2.bf16.msra.mxu0 0
        %1094 = vmatprep.subr.bf16.mxu0 0
        %1095 = vmatpush2.bf16.msra.mxu0 0
        %1096 = vmatprep.subr.bf16.mxu0 0
        %1097 = vmatpush2.bf16.msra.mxu0 0
        %1098 = vmatprep.subr.bf16.mxu0 0
        %1099 = vmatpush2.bf16.msra.mxu0 0
        %1100 = vmatprep.subr.bf16.mxu0 0
        %1101 = vmatpush2.bf16.msra.mxu0 0
        %1102 = vmatprep.subr.bf16.mxu0 0
        %1103 = vmatpush2.bf16.msra.mxu0 0
        %1104 = vmatprep.subr.bf16.mxu0 0
        %1105 = vmatpush2.bf16.msra.mxu0 0
        %1106 = vmatprep.mubr.bf16.mxu0 0
        %1107 = vmatmul.mubr.bf16.gmra.mxu0 %v1060
        %v1108 = vpop.f32.mrf.mxu0
        %v1109 = vadd.f32 %v1024, %v1108
        %v1110 = vpop.f32.mrf.mxu0
        %v1111 = vadd.f32 %v1024, %v1110
        %v1112 = vpop.f32.mrf.mxu0
        %v1113 = vadd.f32 %v1029, %v1112
        %v1114 = vpop.f32.mrf.mxu0
        %v1115 = vadd.f32 %v1029, %v1114
        %1116 = vmatprep.mubr.bf16.mxu0 0
        %1117 = vmatmul.mubr.bf16.gmra.mxu0 %v1063
        %v1118 = vpop.f32.mrf.mxu0
        %v1119 = vadd.f32 %v1034, %v1118
        %v1120 = vpop.f32.mrf.mxu0
        %v1121 = vadd.f32 %v1034, %v1120
        %v1122 = vpop.f32.mrf.mxu0
        %v1123 = vadd.f32 %v1039, %v1122
        %v1124 = vpop.f32.mrf.mxu0
        %v1125 = vadd.f32 %v1039, %v1124
        %1126 = vmatprep.mubr.bf16.mxu0 0
        %1127 = vmatmul.mubr.bf16.gmra.mxu0 %v1066
        %v1128 = vpop.f32.mrf.mxu0
        %v1129 = vadd.f32 %v1044, %v1128
        %v1130 = vpop.f32.mrf.mxu0
        %v1131 = vadd.f32 %v1044, %v1130
        %v1132 = vpop.f32.mrf.mxu0
        %v1133 = vpop.f32.mrf.mxu0
        %1134 = vdwg.mxu0
        %v1135 = vmul.f32 %v1109, 0.5
        %v1136 = vmul.f32 %v1111, 0.5
        %v1137 = vmul.f32 %v1113, 0.5
        %v1138 = vmul.f32 %v1115, 0.5
        %v1139 = vmul.f32 %v1119, 0.5
        %v1140 = vmul.f32 %v1121, 0.5
        %v1141 = vmul.f32 %v1123, 0.5
        %v1142 = vmul.f32 %v1125, 0.5
        %v1143 = vmul.f32 %v1129, 0.5
        %v1144 = vmul.f32 %v1131, 0.5
        %v1145 = vtanh.pop %v1135
        %v1146 = vtanh.pop %v1136
        %v1147 = vtanh.pop %v1137
        %v1148 = vtanh.pop %v1138
        %v1149 = vtanh.pop %v1139
        %v1150 = vtanh.pop %v1140
        %v1151 = vtanh.pop %v1141
        %v1152 = vtanh.pop %v1142
        %v1153 = vtanh.pop %v1143
        %v1154 = vtanh.pop %v1144
        %v1155 = vmul.f32 %v1135, %v1145
        %v1156 = vmul.f32 %v1136, %v1146
        %v1157 = vmul.f32 %v1137, %v1147
        %v1158 = vmul.f32 %v1138, %v1148
        %v1159 = vmul.f32 %v1139, %v1149
        %v1160 = vmul.f32 %v1140, %v1150
        %v1161 = vmul.f32 %v1141, %v1151
        %v1162 = vmul.f32 %v1142, %v1152
        %v1163 = vmul.f32 %v1143, %v1153
        %v1164 = vmul.f32 %v1144, %v1154
        %v1165 = vadd.f32 %v1135, %v1155
        %v1166 = vadd.f32 %v1136, %v1156
        %v1167 = vadd.f32 %v1137, %v1157
        %v1168 = vadd.f32 %v1138, %v1158
        %v1169 = vadd.f32 %v1139, %v1159
        %v1170 = vadd.f32 %v1140, %v1160
        %v1171 = vadd.f32 %v1141, %v1161
        %v1172 = vadd.f32 %v1142, %v1162
        %v1173 = vadd.f32 %v1143, %v1163
        %v1174 = vadd.f32 %v1144, %v1164
        %s1175 = scalar_lea.vmem %s3, 80
        %v1176 = vld [vmem:[%s1175] sm:$0xf]
        %v1177 = vld [vmem:[%s1175 + $0x4] sm:$0xf]
        %v1178 = vld [vmem:[%s1175 + $0x8] sm:$0xf]
        %v1179 = vld [vmem:[%s1175 + $0xc] sm:$0xf]
        %v1180 = vld [vmem:[%s1175 + $0x10] sm:$0xf]
        %v1181 = vpack.c.bf16 %v1167, %v1165
        %v1182 = vpack.c.bf16 %v1168, %v1166
        %v1183 = vpack.c.bf16 %v1171, %v1169
        %v1184 = vpack.c.bf16 %v1172, %v1170
        %v1185 = vpack.c.bf16 %v1173, %v1173
        %v1186 = vpack.c.bf16 %v1174, %v1174
        %s1187 = scalar_lea.vmem %s4, 160
        %v1188 = vld [vmem:[%s1187] sm:$0xff]
        %v1189 = vld [vmem:[%s1187 + $0x8] sm:$0xff]
        %v1190 = vld [vmem:[%s1187 + $0x10] sm:$0xff]
        %v1191 = vld [vmem:[%s1187 + $0x18] sm:$0xff]
        %v1192 = vld [vmem:[%s1187 + $0x20] sm:$0xff]
        %1194 = vset.pattern.permute.xlu0 0
        %1195 = vperm.xlu0 %1194, %v1188
        %v1196 = vpop.permute.xlu0 %1195
        %1199 = vset.pattern.permute.xlu0 0
        %1200 = vperm.xlu0 %1199, %v1189
        %v1201 = vpop.permute.xlu0 %1200
        %1204 = vset.pattern.permute.xlu0 0
        %1205 = vperm.xlu0 %1204, %v1190
        %v1206 = vpop.permute.xlu0 %1205
        %1209 = vset.pattern.permute.xlu0 0
        %1210 = vperm.xlu0 %1209, %v1191
        %v1211 = vpop.permute.xlu0 %1210
        %1214 = vset.pattern.permute.xlu0 0
        %1215 = vperm.xlu0 %1214, %v1192
        %v1216 = vpop.permute.xlu0 %1215
        %v1223 = vunpack.c.l.b16 %v1176
        %v1224 = vunpack.c.l.b16 %v1177
        %v1225 = vunpack.c.l.b16 %v1178
        %v1226 = vunpack.c.l.b16 %v1179
        %v1227 = vunpack.c.l.b16 %v1180
        %v1228 = vpack.c.b16 %v1224, %v1223
        %v1229 = vpack.c.b16 %v1226, %v1225
        %v1230 = vpack.c.b16 %v1227, %v1227
        %v1232 = vsel %vm541, %v1228, 0
        %v1235 = vsel %vm541, %v1229, 0
        %v1238 = vsel %vm541, %v1230, 0
        %v1241 = vsel %vm551, %v1185, 0
        %v1244 = vsel %vm551, %v1186, 0
        %1246 = vmatprep.subr.bf16.mxu0 0
        %1247 = vmatpush1.bf16.msra.mxu0 0
        %1248 = vmatprep.subr.bf16.mxu0 0
        %1249 = vmatpush1.bf16.msra.mxu0 0
        %1250 = vmatprep.subr.bf16.mxu0 0
        %1251 = vmatpush1.bf16.msra.mxu0 0
        %1252 = vmatprep.subr.bf16.mxu0 0
        %1253 = vmatpush1.bf16.msra.mxu0 0
        %1254 = vmatprep.subr.bf16.mxu0 0
        %1255 = vmatpush1.bf16.msra.mxu0 0
        %1256 = vmatprep.subr.bf16.mxu0 %v1244
        %1257 = vmatpush1.bf16.msra.mxu0 %v1241
        %1258 = vmatprep.subr.bf16.mxu0 %v1184
        %1259 = vmatpush1.bf16.msra.mxu0 %v1183
        %1260 = vmatprep.subr.bf16.mxu0 %v1182
        %1261 = vmatpush1.bf16.msra.mxu0 %v1181
        %1262 = vmatprep.subr.bf16.mxu0 0
        %1263 = vmatpush2.bf16.msra.mxu0 0
        %1264 = vmatprep.subr.bf16.mxu0 0
        %1265 = vmatpush2.bf16.msra.mxu0 0
        %1266 = vmatprep.subr.bf16.mxu0 0
        %1267 = vmatpush2.bf16.msra.mxu0 0
        %1268 = vmatprep.subr.bf16.mxu0 0
        %1269 = vmatpush2.bf16.msra.mxu0 0
        %1270 = vmatprep.subr.bf16.mxu0 0
        %1271 = vmatpush2.bf16.msra.mxu0 0
        %1272 = vmatprep.subr.bf16.mxu0 0
        %1273 = vmatpush2.bf16.msra.mxu0 0
        %1274 = vmatprep.subr.bf16.mxu0 0
        %1275 = vmatpush2.bf16.msra.mxu0 0
        %1276 = vmatprep.subr.bf16.mxu0 0
        %1277 = vmatpush2.bf16.msra.mxu0 0
        %1278 = vmatprep.mubr.bf16.mxu0 0
        %1279 = vmatmul.mubr.bf16.gmra.mxu0 %v1232
        %v1280 = vpop.f32.mrf.mxu0
        %v1281 = vadd.f32 %v1196, %v1280
        %v1282 = vpop.f32.mrf.mxu0
        %v1283 = vadd.f32 %v1196, %v1282
        %v1284 = vpop.f32.mrf.mxu0
        %v1285 = vadd.f32 %v1201, %v1284
        %v1286 = vpop.f32.mrf.mxu0
        %v1287 = vadd.f32 %v1201, %v1286
        %1288 = vmatprep.mubr.bf16.mxu0 0
        %1289 = vmatmul.mubr.bf16.gmra.mxu0 %v1235
        %v1290 = vpop.f32.mrf.mxu0
        %v1291 = vadd.f32 %v1206, %v1290
        %v1292 = vpop.f32.mrf.mxu0
        %v1293 = vadd.f32 %v1206, %v1292
        %v1294 = vpop.f32.mrf.mxu0
        %v1295 = vadd.f32 %v1211, %v1294
        %v1296 = vpop.f32.mrf.mxu0
        %v1297 = vadd.f32 %v1211, %v1296
        %1298 = vmatprep.mubr.bf16.mxu0 0
        %1299 = vmatmul.mubr.bf16.gmra.mxu0 %v1238
        %v1300 = vpop.f32.mrf.mxu0
        %v1301 = vadd.f32 %v1216, %v1300
        %v1302 = vpop.f32.mrf.mxu0
        %v1303 = vadd.f32 %v1216, %v1302
        %v1304 = vpop.f32.mrf.mxu0
        %v1305 = vpop.f32.mrf.mxu0
        %1306 = vdwg.mxu0
        %v1307 = vmul.f32 %v1281, 0.5
        %v1308 = vmul.f32 %v1283, 0.5
        %v1309 = vmul.f32 %v1285, 0.5
        %v1310 = vmul.f32 %v1287, 0.5
        %v1311 = vmul.f32 %v1291, 0.5
        %v1312 = vmul.f32 %v1293, 0.5
        %v1313 = vmul.f32 %v1295, 0.5
        %v1314 = vmul.f32 %v1297, 0.5
        %v1315 = vmul.f32 %v1301, 0.5
        %v1316 = vmul.f32 %v1303, 0.5
        %v1317 = vtanh.pop %v1307
        %v1318 = vtanh.pop %v1308
        %v1319 = vtanh.pop %v1309
        %v1320 = vtanh.pop %v1310
        %v1321 = vtanh.pop %v1311
        %v1322 = vtanh.pop %v1312
        %v1323 = vtanh.pop %v1313
        %v1324 = vtanh.pop %v1314
        %v1325 = vtanh.pop %v1315
        %v1326 = vtanh.pop %v1316
        %v1327 = vmul.f32 %v1307, %v1317
        %v1328 = vmul.f32 %v1308, %v1318
        %v1329 = vmul.f32 %v1309, %v1319
        %v1330 = vmul.f32 %v1310, %v1320
        %v1331 = vmul.f32 %v1311, %v1321
        %v1332 = vmul.f32 %v1312, %v1322
        %v1333 = vmul.f32 %v1313, %v1323
        %v1334 = vmul.f32 %v1314, %v1324
        %v1335 = vmul.f32 %v1315, %v1325
        %v1336 = vmul.f32 %v1316, %v1326
        %v1337 = vadd.f32 %v1307, %v1327
        %v1338 = vadd.f32 %v1308, %v1328
        %v1339 = vadd.f32 %v1309, %v1329
        %v1340 = vadd.f32 %v1310, %v1330
        %v1341 = vadd.f32 %v1311, %v1331
        %v1342 = vadd.f32 %v1312, %v1332
        %v1343 = vadd.f32 %v1313, %v1333
        %v1344 = vadd.f32 %v1314, %v1334
        %v1345 = vadd.f32 %v1315, %v1335
        %v1346 = vadd.f32 %v1316, %v1336
        %s1347 = scalar_lea.vmem %s3, 100
        %v1348 = vld [vmem:[%s1347] sm:$0xf]
        %v1349 = vld [vmem:[%s1347 + $0x4] sm:$0xf]
        %v1350 = vld [vmem:[%s1347 + $0x8] sm:$0xf]
        %v1351 = vld [vmem:[%s1347 + $0xc] sm:$0xf]
        %v1352 = vld [vmem:[%s1347 + $0x10] sm:$0xf]
        %v1353 = vpack.c.bf16 %v1339, %v1337
        %v1354 = vpack.c.bf16 %v1340, %v1338
        %v1355 = vpack.c.bf16 %v1343, %v1341
        %v1356 = vpack.c.bf16 %v1344, %v1342
        %v1357 = vpack.c.bf16 %v1345, %v1345
        %v1358 = vpack.c.bf16 %v1346, %v1346
        %s1359 = scalar_lea.vmem %s4, 200
        %v1360 = vld [vmem:[%s1359] sm:$0xff]
        %v1361 = vld [vmem:[%s1359 + $0x8] sm:$0xff]
        %v1362 = vld [vmem:[%s1359 + $0x10] sm:$0xff]
        %v1363 = vld [vmem:[%s1359 + $0x18] sm:$0xff]
        %v1364 = vld [vmem:[%s1359 + $0x20] sm:$0xff]
        %1366 = vset.pattern.permute.xlu0 0
        %1367 = vperm.xlu0 %1366, %v1360
        %v1368 = vpop.permute.xlu0 %1367
        %1371 = vset.pattern.permute.xlu0 0
        %1372 = vperm.xlu0 %1371, %v1361
        %v1373 = vpop.permute.xlu0 %1372
        %1376 = vset.pattern.permute.xlu0 0
        %1377 = vperm.xlu0 %1376, %v1362
        %v1378 = vpop.permute.xlu0 %1377
        %1381 = vset.pattern.permute.xlu0 0
        %1382 = vperm.xlu0 %1381, %v1363
        %v1383 = vpop.permute.xlu0 %1382
        %1386 = vset.pattern.permute.xlu0 0
        %1387 = vperm.xlu0 %1386, %v1364
        %v1388 = vpop.permute.xlu0 %1387
        %v1395 = vunpack.c.l.b16 %v1348
        %v1396 = vunpack.c.l.b16 %v1349
        %v1397 = vunpack.c.l.b16 %v1350
        %v1398 = vunpack.c.l.b16 %v1351
        %v1399 = vunpack.c.l.b16 %v1352
        %v1400 = vpack.c.b16 %v1396, %v1395
        %v1401 = vpack.c.b16 %v1398, %v1397
        %v1402 = vpack.c.b16 %v1399, %v1399
        %v1404 = vsel %vm541, %v1400, 0
        %v1407 = vsel %vm541, %v1401, 0
        %v1410 = vsel %vm541, %v1402, 0
        %v1413 = vsel %vm551, %v1357, 0
        %v1416 = vsel %vm551, %v1358, 0
        %1418 = vmatprep.subr.bf16.mxu0 0
        %1419 = vmatpush1.bf16.msra.mxu0 0
        %1420 = vmatprep.subr.bf16.mxu0 0
        %1421 = vmatpush1.bf16.msra.mxu0 0
        %1422 = vmatprep.subr.bf16.mxu0 0
        %1423 = vmatpush1.bf16.msra.mxu0 0
        %1424 = vmatprep.subr.bf16.mxu0 0
        %1425 = vmatpush1.bf16.msra.mxu0 0
        %1426 = vmatprep.subr.bf16.mxu0 0
        %1427 = vmatpush1.bf16.msra.mxu0 0
        %1428 = vmatprep.subr.bf16.mxu0 %v1416
        %1429 = vmatpush1.bf16.msra.mxu0 %v1413
        %1430 = vmatprep.subr.bf16.mxu0 %v1356
        %1431 = vmatpush1.bf16.msra.mxu0 %v1355
        %1432 = vmatprep.subr.bf16.mxu0 %v1354
        %1433 = vmatpush1.bf16.msra.mxu0 %v1353
        %1434 = vmatprep.subr.bf16.mxu0 0
        %1435 = vmatpush2.bf16.msra.mxu0 0
        %1436 = vmatprep.subr.bf16.mxu0 0
        %1437 = vmatpush2.bf16.msra.mxu0 0
        %1438 = vmatprep.subr.bf16.mxu0 0
        %1439 = vmatpush2.bf16.msra.mxu0 0
        %1440 = vmatprep.subr.bf16.mxu0 0
        %1441 = vmatpush2.bf16.msra.mxu0 0
        %1442 = vmatprep.subr.bf16.mxu0 0
        %1443 = vmatpush2.bf16.msra.mxu0 0
        %1444 = vmatprep.subr.bf16.mxu0 0
        %1445 = vmatpush2.bf16.msra.mxu0 0
        %1446 = vmatprep.subr.bf16.mxu0 0
        %1447 = vmatpush2.bf16.msra.mxu0 0
        %1448 = vmatprep.subr.bf16.mxu0 0
        %1449 = vmatpush2.bf16.msra.mxu0 0
        %1450 = vmatprep.mubr.bf16.mxu0 0
        %1451 = vmatmul.mubr.bf16.gmra.mxu0 %v1404
        %v1452 = vpop.f32.mrf.mxu0
        %v1453 = vadd.f32 %v1368, %v1452
        %v1454 = vpop.f32.mrf.mxu0
        %v1455 = vadd.f32 %v1368, %v1454
        %v1456 = vpop.f32.mrf.mxu0
        %v1457 = vadd.f32 %v1373, %v1456
        %v1458 = vpop.f32.mrf.mxu0
        %v1459 = vadd.f32 %v1373, %v1458
        %1460 = vmatprep.mubr.bf16.mxu0 0
        %1461 = vmatmul.mubr.bf16.gmra.mxu0 %v1407
        %v1462 = vpop.f32.mrf.mxu0
        %v1463 = vadd.f32 %v1378, %v1462
        %v1464 = vpop.f32.mrf.mxu0
        %v1465 = vadd.f32 %v1378, %v1464
        %v1466 = vpop.f32.mrf.mxu0
        %v1467 = vadd.f32 %v1383, %v1466
        %v1468 = vpop.f32.mrf.mxu0
        %v1469 = vadd.f32 %v1383, %v1468
        %1470 = vmatprep.mubr.bf16.mxu0 0
        %1471 = vmatmul.mubr.bf16.gmra.mxu0 %v1410
        %v1472 = vpop.f32.mrf.mxu0
        %v1473 = vadd.f32 %v1388, %v1472
        %v1474 = vpop.f32.mrf.mxu0
        %v1475 = vadd.f32 %v1388, %v1474
        %v1476 = vpop.f32.mrf.mxu0
        %v1477 = vpop.f32.mrf.mxu0
        %1478 = vdwg.mxu0
        %v1479 = vmul.f32 %v1453, 0.5
        %v1480 = vmul.f32 %v1455, 0.5
        %v1481 = vmul.f32 %v1457, 0.5
        %v1482 = vmul.f32 %v1459, 0.5
        %v1483 = vmul.f32 %v1463, 0.5
        %v1484 = vmul.f32 %v1465, 0.5
        %v1485 = vmul.f32 %v1467, 0.5
        %v1486 = vmul.f32 %v1469, 0.5
        %v1487 = vmul.f32 %v1473, 0.5
        %v1488 = vmul.f32 %v1475, 0.5
        %v1489 = vtanh.pop %v1479
        %v1490 = vtanh.pop %v1480
        %v1491 = vtanh.pop %v1481
        %v1492 = vtanh.pop %v1482
        %v1493 = vtanh.pop %v1483
        %v1494 = vtanh.pop %v1484
        %v1495 = vtanh.pop %v1485
        %v1496 = vtanh.pop %v1486
        %v1497 = vtanh.pop %v1487
        %v1498 = vtanh.pop %v1488
        %v1499 = vmul.f32 %v1479, %v1489
        %v1500 = vmul.f32 %v1480, %v1490
        %v1501 = vmul.f32 %v1481, %v1491
        %v1502 = vmul.f32 %v1482, %v1492
        %v1503 = vmul.f32 %v1483, %v1493
        %v1504 = vmul.f32 %v1484, %v1494
        %v1505 = vmul.f32 %v1485, %v1495
        %v1506 = vmul.f32 %v1486, %v1496
        %v1507 = vmul.f32 %v1487, %v1497
        %v1508 = vmul.f32 %v1488, %v1498
        %v1509 = vadd.f32 %v1479, %v1499
        %v1510 = vadd.f32 %v1480, %v1500
        %v1511 = vadd.f32 %v1481, %v1501
        %v1512 = vadd.f32 %v1482, %v1502
        %v1513 = vadd.f32 %v1483, %v1503
        %v1514 = vadd.f32 %v1484, %v1504
        %v1515 = vadd.f32 %v1485, %v1505
        %v1516 = vadd.f32 %v1486, %v1506
        %v1517 = vadd.f32 %v1487, %v1507
        %v1518 = vadd.f32 %v1488, %v1508
        %s1519 = scalar_lea.vmem %s3, 120
        %v1520 = vld [vmem:[%s1519] sm:$0xf]
        %v1521 = vld [vmem:[%s1519 + $0x4] sm:$0xf]
        %v1522 = vld [vmem:[%s1519 + $0x8] sm:$0xf]
        %v1523 = vld [vmem:[%s1519 + $0xc] sm:$0xf]
        %v1524 = vld [vmem:[%s1519 + $0x10] sm:$0xf]
        %v1525 = vpack.c.bf16 %v1511, %v1509
        %v1526 = vpack.c.bf16 %v1512, %v1510
        %v1527 = vpack.c.bf16 %v1515, %v1513
        %v1528 = vpack.c.bf16 %v1516, %v1514
        %v1529 = vpack.c.bf16 %v1517, %v1517
        %v1530 = vpack.c.bf16 %v1518, %v1518
        %s1531 = scalar_lea.vmem %s4, 240
        %v1532 = vld [vmem:[%s1531] sm:$0xff]
        %v1533 = vld [vmem:[%s1531 + $0x8] sm:$0xff]
        %v1534 = vld [vmem:[%s1531 + $0x10] sm:$0xff]
        %v1535 = vld [vmem:[%s1531 + $0x18] sm:$0xff]
        %v1536 = vld [vmem:[%s1531 + $0x20] sm:$0xff]
        %1538 = vset.pattern.permute.xlu0 0
        %1539 = vperm.xlu0 %1538, %v1532
        %v1540 = vpop.permute.xlu0 %1539
        %1543 = vset.pattern.permute.xlu0 0
        %1544 = vperm.xlu0 %1543, %v1533
        %v1545 = vpop.permute.xlu0 %1544
        %1548 = vset.pattern.permute.xlu0 0
        %1549 = vperm.xlu0 %1548, %v1534
        %v1550 = vpop.permute.xlu0 %1549
        %1553 = vset.pattern.permute.xlu0 0
        %1554 = vperm.xlu0 %1553, %v1535
        %v1555 = vpop.permute.xlu0 %1554
        %1558 = vset.pattern.permute.xlu0 0
        %1559 = vperm.xlu0 %1558, %v1536
        %v1560 = vpop.permute.xlu0 %1559
        %v1567 = vunpack.c.l.b16 %v1520
        %v1568 = vunpack.c.l.b16 %v1521
        %v1569 = vunpack.c.l.b16 %v1522
        %v1570 = vunpack.c.l.b16 %v1523
        %v1571 = vunpack.c.l.b16 %v1524
        %v1572 = vpack.c.b16 %v1568, %v1567
        %v1573 = vpack.c.b16 %v1570, %v1569
        %v1574 = vpack.c.b16 %v1571, %v1571
        %v1576 = vsel %vm541, %v1572, 0
        %v1579 = vsel %vm541, %v1573, 0
        %v1582 = vsel %vm541, %v1574, 0
        %v1585 = vsel %vm551, %v1529, 0
        %v1588 = vsel %vm551, %v1530, 0
        %1590 = vmatprep.subr.bf16.mxu0 0
        %1591 = vmatpush1.bf16.msra.mxu0 0
        %1592 = vmatprep.subr.bf16.mxu0 0
        %1593 = vmatpush1.bf16.msra.mxu0 0
        %1594 = vmatprep.subr.bf16.mxu0 0
        %1595 = vmatpush1.bf16.msra.mxu0 0
        %1596 = vmatprep.subr.bf16.mxu0 0
        %1597 = vmatpush1.bf16.msra.mxu0 0
        %1598 = vmatprep.subr.bf16.mxu0 0
        %1599 = vmatpush1.bf16.msra.mxu0 0
        %1600 = vmatprep.subr.bf16.mxu0 %v1588
        %1601 = vmatpush1.bf16.msra.mxu0 %v1585
        %1602 = vmatprep.subr.bf16.mxu0 %v1528
        %1603 = vmatpush1.bf16.msra.mxu0 %v1527
        %1604 = vmatprep.subr.bf16.mxu0 %v1526
        %1605 = vmatpush1.bf16.msra.mxu0 %v1525
        %1606 = vmatprep.subr.bf16.mxu0 0
        %1607 = vmatpush2.bf16.msra.mxu0 0
        %1608 = vmatprep.subr.bf16.mxu0 0
        %1609 = vmatpush2.bf16.msra.mxu0 0
        %1610 = vmatprep.subr.bf16.mxu0 0
        %1611 = vmatpush2.bf16.msra.mxu0 0
        %1612 = vmatprep.subr.bf16.mxu0 0
        %1613 = vmatpush2.bf16.msra.mxu0 0
        %1614 = vmatprep.subr.bf16.mxu0 0
        %1615 = vmatpush2.bf16.msra.mxu0 0
        %1616 = vmatprep.subr.bf16.mxu0 0
        %1617 = vmatpush2.bf16.msra.mxu0 0
        %1618 = vmatprep.subr.bf16.mxu0 0
        %1619 = vmatpush2.bf16.msra.mxu0 0
        %1620 = vmatprep.subr.bf16.mxu0 0
        %1621 = vmatpush2.bf16.msra.mxu0 0
        %1622 = vmatprep.mubr.bf16.mxu0 0
        %1623 = vmatmul.mubr.bf16.gmra.mxu0 %v1576
        %v1624 = vpop.f32.mrf.mxu0
        %v1625 = vadd.f32 %v1540, %v1624
        %v1626 = vpop.f32.mrf.mxu0
        %v1627 = vadd.f32 %v1540, %v1626
        %v1628 = vpop.f32.mrf.mxu0
        %v1629 = vadd.f32 %v1545, %v1628
        %v1630 = vpop.f32.mrf.mxu0
        %v1631 = vadd.f32 %v1545, %v1630
        %1632 = vmatprep.mubr.bf16.mxu0 0
        %1633 = vmatmul.mubr.bf16.gmra.mxu0 %v1579
        %v1634 = vpop.f32.mrf.mxu0
        %v1635 = vadd.f32 %v1550, %v1634
        %v1636 = vpop.f32.mrf.mxu0
        %v1637 = vadd.f32 %v1550, %v1636
        %v1638 = vpop.f32.mrf.mxu0
        %v1639 = vadd.f32 %v1555, %v1638
        %v1640 = vpop.f32.mrf.mxu0
        %v1641 = vadd.f32 %v1555, %v1640
        %1642 = vmatprep.mubr.bf16.mxu0 0
        %1643 = vmatmul.mubr.bf16.gmra.mxu0 %v1582
        %v1644 = vpop.f32.mrf.mxu0
        %v1645 = vadd.f32 %v1560, %v1644
        %v1646 = vpop.f32.mrf.mxu0
        %v1647 = vadd.f32 %v1560, %v1646
        %v1648 = vpop.f32.mrf.mxu0
        %v1649 = vpop.f32.mrf.mxu0
        %1650 = vdwg.mxu0
        %v1651 = vmul.f32 %v1625, 0.5
        %v1652 = vmul.f32 %v1627, 0.5
        %v1653 = vmul.f32 %v1629, 0.5
        %v1654 = vmul.f32 %v1631, 0.5
        %v1655 = vmul.f32 %v1635, 0.5
        %v1656 = vmul.f32 %v1637, 0.5
        %v1657 = vmul.f32 %v1639, 0.5
        %v1658 = vmul.f32 %v1641, 0.5
        %v1659 = vmul.f32 %v1645, 0.5
        %v1660 = vmul.f32 %v1647, 0.5
        %v1661 = vtanh.pop %v1651
        %v1662 = vtanh.pop %v1652
        %v1663 = vtanh.pop %v1653
        %v1664 = vtanh.pop %v1654
        %v1665 = vtanh.pop %v1655
        %v1666 = vtanh.pop %v1656
        %v1667 = vtanh.pop %v1657
        %v1668 = vtanh.pop %v1658
        %v1669 = vtanh.pop %v1659
        %v1670 = vtanh.pop %v1660
        %v1671 = vmul.f32 %v1651, %v1661
        %v1672 = vmul.f32 %v1652, %v1662
        %v1673 = vmul.f32 %v1653, %v1663
        %v1674 = vmul.f32 %v1654, %v1664
        %v1675 = vmul.f32 %v1655, %v1665
        %v1676 = vmul.f32 %v1656, %v1666
        %v1677 = vmul.f32 %v1657, %v1667
        %v1678 = vmul.f32 %v1658, %v1668
        %v1679 = vmul.f32 %v1659, %v1669
        %v1680 = vmul.f32 %v1660, %v1670
        %v1681 = vadd.f32 %v1651, %v1671
        %v1682 = vadd.f32 %v1652, %v1672
        %v1683 = vadd.f32 %v1653, %v1673
        %v1684 = vadd.f32 %v1654, %v1674
        %v1685 = vadd.f32 %v1655, %v1675
        %v1686 = vadd.f32 %v1656, %v1676
        %v1687 = vadd.f32 %v1657, %v1677
        %v1688 = vadd.f32 %v1658, %v1678
        %v1689 = vadd.f32 %v1659, %v1679
        %v1690 = vadd.f32 %v1660, %v1680
        %s1691 = scalar_lea.vmem %s3, 140
        %v1692 = vld [vmem:[%s1691] sm:$0xf]
        %v1693 = vld [vmem:[%s1691 + $0x4] sm:$0xf]
        %v1694 = vld [vmem:[%s1691 + $0x8] sm:$0xf]
        %v1695 = vld [vmem:[%s1691 + $0xc] sm:$0xf]
        %v1696 = vld [vmem:[%s1691 + $0x10] sm:$0xf]
        %v1697 = vpack.c.bf16 %v1683, %v1681
        %v1698 = vpack.c.bf16 %v1684, %v1682
        %v1699 = vpack.c.bf16 %v1687, %v1685
        %v1700 = vpack.c.bf16 %v1688, %v1686
        %v1701 = vpack.c.bf16 %v1689, %v1689
        %v1702 = vpack.c.bf16 %v1690, %v1690
        %s1703 = scalar_lea.vmem %s4, 280
        %v1704 = vld [vmem:[%s1703] sm:$0xff]
        %v1705 = vld [vmem:[%s1703 + $0x8] sm:$0xff]
        %v1706 = vld [vmem:[%s1703 + $0x10] sm:$0xff]
        %v1707 = vld [vmem:[%s1703 + $0x18] sm:$0xff]
        %v1708 = vld [vmem:[%s1703 + $0x20] sm:$0xff]
        %1710 = vset.pattern.permute.xlu0 0
        %1711 = vperm.xlu0 %1710, %v1704
        %v1712 = vpop.permute.xlu0 %1711
        %1715 = vset.pattern.permute.xlu0 0
        %1716 = vperm.xlu0 %1715, %v1705
        %v1717 = vpop.permute.xlu0 %1716
        %1720 = vset.pattern.permute.xlu0 0
        %1721 = vperm.xlu0 %1720, %v1706
        %v1722 = vpop.permute.xlu0 %1721
        %1725 = vset.pattern.permute.xlu0 0
        %1726 = vperm.xlu0 %1725, %v1707
        %v1727 = vpop.permute.xlu0 %1726
        %1730 = vset.pattern.permute.xlu0 0
        %1731 = vperm.xlu0 %1730, %v1708
        %v1732 = vpop.permute.xlu0 %1731
        %v1739 = vunpack.c.l.b16 %v1692
        %v1740 = vunpack.c.l.b16 %v1693
        %v1741 = vunpack.c.l.b16 %v1694
        %v1742 = vunpack.c.l.b16 %v1695
        %v1743 = vunpack.c.l.b16 %v1696
        %v1744 = vpack.c.b16 %v1740, %v1739
        %v1745 = vpack.c.b16 %v1742, %v1741
        %v1746 = vpack.c.b16 %v1743, %v1743
        %v1748 = vsel %vm541, %v1744, 0
        %v1751 = vsel %vm541, %v1745, 0
        %v1754 = vsel %vm541, %v1746, 0
        %v1757 = vsel %vm551, %v1701, 0
        %v1760 = vsel %vm551, %v1702, 0
        %1762 = vmatprep.subr.bf16.mxu0 0
        %1763 = vmatpush1.bf16.msra.mxu0 0
        %1764 = vmatprep.subr.bf16.mxu0 0
        %1765 = vmatpush1.bf16.msra.mxu0 0
        %1766 = vmatprep.subr.bf16.mxu0 0
        %1767 = vmatpush1.bf16.msra.mxu0 0
        %1768 = vmatprep.subr.bf16.mxu0 0
        %1769 = vmatpush1.bf16.msra.mxu0 0
        %1770 = vmatprep.subr.bf16.mxu0 0
        %1771 = vmatpush1.bf16.msra.mxu0 0
        %1772 = vmatprep.subr.bf16.mxu0 %v1760
        %1773 = vmatpush1.bf16.msra.mxu0 %v1757
        %1774 = vmatprep.subr.bf16.mxu0 %v1700
        %1775 = vmatpush1.bf16.msra.mxu0 %v1699
        %1776 = vmatprep.subr.bf16.mxu0 %v1698
        %1777 = vmatpush1.bf16.msra.mxu0 %v1697
        %1778 = vmatprep.subr.bf16.mxu0 0
        %1779 = vmatpush2.bf16.msra.mxu0 0
        %1780 = vmatprep.subr.bf16.mxu0 0
        %1781 = vmatpush2.bf16.msra.mxu0 0
        %1782 = vmatprep.subr.bf16.mxu0 0
        %1783 = vmatpush2.bf16.msra.mxu0 0
        %1784 = vmatprep.subr.bf16.mxu0 0
        %1785 = vmatpush2.bf16.msra.mxu0 0
        %1786 = vmatprep.subr.bf16.mxu0 0
        %1787 = vmatpush2.bf16.msra.mxu0 0
        %1788 = vmatprep.subr.bf16.mxu0 0
        %1789 = vmatpush2.bf16.msra.mxu0 0
        %1790 = vmatprep.subr.bf16.mxu0 0
        %1791 = vmatpush2.bf16.msra.mxu0 0
        %1792 = vmatprep.subr.bf16.mxu0 0
        %1793 = vmatpush2.bf16.msra.mxu0 0
        %1794 = vmatprep.mubr.bf16.mxu0 0
        %1795 = vmatmul.mubr.bf16.gmra.mxu0 %v1748
        %v1796 = vpop.f32.mrf.mxu0
        %v1797 = vadd.f32 %v1712, %v1796
        %v1798 = vpop.f32.mrf.mxu0
        %v1799 = vadd.f32 %v1712, %v1798
        %v1800 = vpop.f32.mrf.mxu0
        %v1801 = vadd.f32 %v1717, %v1800
        %v1802 = vpop.f32.mrf.mxu0
        %v1803 = vadd.f32 %v1717, %v1802
        %1804 = vmatprep.mubr.bf16.mxu0 0
        %1805 = vmatmul.mubr.bf16.gmra.mxu0 %v1751
        %v1806 = vpop.f32.mrf.mxu0
        %v1807 = vadd.f32 %v1722, %v1806
        %v1808 = vpop.f32.mrf.mxu0
        %v1809 = vadd.f32 %v1722, %v1808
        %v1810 = vpop.f32.mrf.mxu0
        %v1811 = vadd.f32 %v1727, %v1810
        %v1812 = vpop.f32.mrf.mxu0
        %v1813 = vadd.f32 %v1727, %v1812
        %1814 = vmatprep.mubr.bf16.mxu0 0
        %1815 = vmatmul.mubr.bf16.gmra.mxu0 %v1754
        %v1816 = vpop.f32.mrf.mxu0
        %v1817 = vadd.f32 %v1732, %v1816
        %v1818 = vpop.f32.mrf.mxu0
        %v1819 = vadd.f32 %v1732, %v1818
        %v1820 = vpop.f32.mrf.mxu0
        %v1821 = vpop.f32.mrf.mxu0
        %1822 = vdwg.mxu0
        %v1823 = vmul.f32 %v1797, 0.5
        %v1824 = vmul.f32 %v1799, 0.5
        %v1825 = vmul.f32 %v1801, 0.5
        %v1826 = vmul.f32 %v1803, 0.5
        %v1827 = vmul.f32 %v1807, 0.5
        %v1828 = vmul.f32 %v1809, 0.5
        %v1829 = vmul.f32 %v1811, 0.5
        %v1830 = vmul.f32 %v1813, 0.5
        %v1831 = vmul.f32 %v1817, 0.5
        %v1832 = vmul.f32 %v1819, 0.5
        %v1833 = vtanh.pop %v1823
        %v1834 = vtanh.pop %v1824
        %v1835 = vtanh.pop %v1825
        %v1836 = vtanh.pop %v1826
        %v1837 = vtanh.pop %v1827
        %v1838 = vtanh.pop %v1828
        %v1839 = vtanh.pop %v1829
        %v1840 = vtanh.pop %v1830
        %v1841 = vtanh.pop %v1831
        %v1842 = vtanh.pop %v1832
        %v1843 = vmul.f32 %v1823, %v1833
        %v1844 = vmul.f32 %v1824, %v1834
        %v1845 = vmul.f32 %v1825, %v1835
        %v1846 = vmul.f32 %v1826, %v1836
        %v1847 = vmul.f32 %v1827, %v1837
        %v1848 = vmul.f32 %v1828, %v1838
        %v1849 = vmul.f32 %v1829, %v1839
        %v1850 = vmul.f32 %v1830, %v1840
        %v1851 = vmul.f32 %v1831, %v1841
        %v1852 = vmul.f32 %v1832, %v1842
        %v1853 = vadd.f32 %v1823, %v1843
        %v1854 = vadd.f32 %v1824, %v1844
        %v1855 = vadd.f32 %v1825, %v1845
        %v1856 = vadd.f32 %v1826, %v1846
        %v1857 = vadd.f32 %v1827, %v1847
        %v1858 = vadd.f32 %v1828, %v1848
        %v1859 = vadd.f32 %v1829, %v1849
        %v1860 = vadd.f32 %v1830, %v1850
        %v1861 = vadd.f32 %v1831, %v1851
        %v1862 = vadd.f32 %v1832, %v1852
        %1864 = vset.pattern.permute.xlu0 0
        %1865 = vperm.xlu0 %1864, %v293
        %v1866 = vpop.permute.xlu0 %1865
        %1869 = vset.pattern.permute.xlu0 0
        %1870 = vperm.xlu0 %1869, %v294
        %v1871 = vpop.permute.xlu0 %1870
        %1874 = vset.pattern.permute.xlu0 0
        %1875 = vperm.xlu0 %1874, %v295
        %v1876 = vpop.permute.xlu0 %1875
        %1879 = vset.pattern.permute.xlu0 0
        %1880 = vperm.xlu0 %1879, %v296
        %v1881 = vpop.permute.xlu0 %1880
        %1884 = vset.pattern.permute.xlu0 0
        %1885 = vperm.xlu0 %1884, %v297
        %v1886 = vpop.permute.xlu0 %1885
        %v1888 = vmul.f32 %v1866, %v1853
        %v1889 = vmul.f32 %v1866, %v1854
        %v1890 = vmul.f32 %v1871, %v1855
        %v1891 = vmul.f32 %v1871, %v1856
        %v1892 = vmul.f32 %v1876, %v1857
        %v1893 = vmul.f32 %v1876, %v1858
        %v1894 = vmul.f32 %v1881, %v1859
        %v1895 = vmul.f32 %v1881, %v1860
        %v1896 = vmul.f32 %v1886, %v1861
        %v1897 = vmul.f32 %v1886, %v1862
        %v1898 = vadd.f32 %v1888, %v1890
        %v1899 = vadd.f32 %v1898, %v1892
        %v1900 = vadd.f32 %v1899, %v1894
        %v1901 = vadd.f32 %v1900, %v1896
        %v1902 = vrot.slane %v1901, 4
        %v1903 = vadd.f32 %v1901, %v1902
        %v1904 = vrot.slane %v1903, 2
        %v1905 = vadd.f32 %v1903, %v1904
        %v1906 = vrot.slane %v1905, 1
        %v1907 = vadd.f32 %v1905, %v1906
        %v1908 = vadd.f32 %v1889, %v1891
        %v1909 = vadd.f32 %v1908, %v1893
        %v1910 = vadd.f32 %v1909, %v1895
        %v1911 = vadd.f32 %v1910, %v1897
        %v1912 = vrot.slane %v1911, 4
        %v1913 = vadd.f32 %v1911, %v1912
        %v1914 = vrot.slane %v1913, 2
        %v1915 = vadd.f32 %v1913, %v1914
        %v1916 = vrot.slane %v1915, 1
        %v1917 = vadd.f32 %v1915, %v1916
        %1919 = vset.pattern.permute.xlu0 0
        %1920 = vperm.xlu0 %1919, %v298
        %v1921 = vpop.permute.xlu0 %1920
        %v1923 = vlaneseq
        %v1924 = vshrl.u32 %v1923, 7
        %v1925 = vsub.s32 0, %v1924
        %v1926 = vrot.slane %v1921, %v1925
        %v1927 = vadd.f32 %v1907, %v1926
        %v1928 = vadd.f32 %v1917, %v1926
        %v1931 = vcombine.low %v1927, %v1928
        %v1933 = vunpack.c.l.s4 1966171168
        %v1934 = vunpack.c.0.s8 %v1933
        %v1935 = vlaneseq
        %v1936 = vshrl.u32 %v1935, 7
        %v1937 = vsub.s32 %v1934, %v1936
        %v1938 = vrot.slane %v1931, %v1937
        %v1940 = vunpack.c.l.s4 1966171168
        %v1941 = vunpack.c.0.s8 %v1940
        %v1942 = vlaneseq
        %v1943 = vshrl.u32 %v1942, 7
        %v1944 = vsub.s32 %v1941, %v1943
        %v1945 = vrot.slane %v1938, %v1944
        %v1947 = vlaneseq
        %vm1948 = vcmp.ge.s32.totalorder %v1947, 0
        %vm1949 = vcmp.lt.s32.totalorder %v1947, 256
        %vm1950 = vmand %vm1948, %vm1949
        %1951 = vst.msk [vmem:[%s274] sm:$0x3] %vm1950, %v1945
        %v1952 = vld [vmem:[%s279 + $0x4] sm:$0xf]
        %v1954 = vlaneseq
        %v1955 = vshrl.u32 %v1954, 7
        %v1956 = vsub.s32 0, %v1955
        %v1957 = vrot.slane %v1952, %v1956
        %v1958 = vlaneseq
        %v1959 = vshrl.u32 %v1958, 7
        %v1960 = vsub.s32 2, %v1959
        %v1961 = vrot.slane %v1952, %v1960
        %v1964 = vlaneseq
        %v1965 = vshrl.u32 %v1964, 7
        %v1966 = vsub.s32 0, %v1965
        %v1967 = vrot.slane %v1957, %v1966
        %v1968 = vlaneseq
        %v1969 = vshrl.u32 %v1968, 7
        %v1970 = vsub.s32 0, %v1969
        %v1971 = vrot.slane %v1961, %v1970
        %v1972 = vmul.f32 %v303, %v1967
        %v1973 = vmul.f32 %v303, %v1971
        %v1974 = vmul.f32 %v308, %v1967
        %v1975 = vmul.f32 %v308, %v1971
        %v1976 = vmul.f32 %v313, %v1967
        %v1977 = vmul.f32 %v313, %v1971
        %v1978 = vmul.f32 %v318, %v1967
        %v1979 = vmul.f32 %v318, %v1971
        %v1980 = vmul.f32 %v323, %v1967
        %v1981 = vmul.f32 %v323, %v1971
        %v1982 = vlaneseq
        %v1983 = vshrl.u32 %v1982, 7
        %v1984 = vsub.s32 1, %v1983
        %v1985 = vrot.slane %v1952, %v1984
        %v1986 = vlaneseq
        %v1987 = vshrl.u32 %v1986, 7
        %v1988 = vsub.s32 3, %v1987
        %v1989 = vrot.slane %v1952, %v1988
        %v1992 = vlaneseq
        %v1993 = vshrl.u32 %v1992, 7
        %v1994 = vsub.s32 1, %v1993
        %v1995 = vrot.slane %v1985, %v1994
        %v1996 = vlaneseq
        %v1997 = vshrl.u32 %v1996, 7
        %v1998 = vsub.s32 1, %v1997
        %v1999 = vrot.slane %v1989, %v1998
        %v2000 = vmul.f32 %v356, %v1995
        %v2001 = vmul.f32 %v356, %v1999
        %v2002 = vmul.f32 %v360, %v1995
        %v2003 = vmul.f32 %v360, %v1999
        %v2004 = vmul.f32 %v364, %v1995
        %v2005 = vmul.f32 %v364, %v1999
        %v2006 = vmul.f32 %v368, %v1995
        %v2007 = vmul.f32 %v368, %v1999
        %v2008 = vmul.f32 %v372, %v1995
        %v2009 = vmul.f32 %v372, %v1999
        %v2010 = vadd.f32 %v1972, %v2000
        %v2011 = vadd.f32 %v1973, %v2001
        %v2012 = vadd.f32 %v1974, %v2002
        %v2013 = vadd.f32 %v1975, %v2003
        %v2014 = vadd.f32 %v1976, %v2004
        %v2015 = vadd.f32 %v1977, %v2005
        %v2016 = vadd.f32 %v1978, %v2006
        %v2017 = vadd.f32 %v1979, %v2007
        %v2018 = vadd.f32 %v1980, %v2008
        %v2019 = vadd.f32 %v1981, %v2009
        %v2020 = vadd.f32 %v2010, %v415
        %v2021 = vadd.f32 %v2011, %v415
        %v2022 = vadd.f32 %v2012, %v420
        %v2023 = vadd.f32 %v2013, %v420
        %v2024 = vadd.f32 %v2014, %v425
        %v2025 = vadd.f32 %v2015, %v425
        %v2026 = vadd.f32 %v2016, %v430
        %v2027 = vadd.f32 %v2017, %v430
        %v2028 = vadd.f32 %v2018, %v435
        %v2029 = vadd.f32 %v2019, %v435
        %v2030 = vmul.f32 %v2020, 0.5
        %v2031 = vmul.f32 %v2021, 0.5
        %v2032 = vmul.f32 %v2022, 0.5
        %v2033 = vmul.f32 %v2023, 0.5
        %v2034 = vmul.f32 %v2024, 0.5
        %v2035 = vmul.f32 %v2025, 0.5
        %v2036 = vmul.f32 %v2026, 0.5
        %v2037 = vmul.f32 %v2027, 0.5
        %v2038 = vmul.f32 %v2028, 0.5
        %v2039 = vmul.f32 %v2029, 0.5
        %v2040 = vtanh.pop %v2030
        %v2041 = vtanh.pop %v2031
        %v2042 = vtanh.pop %v2032
        %v2043 = vtanh.pop %v2033
        %v2044 = vtanh.pop %v2034
        %v2045 = vtanh.pop %v2035
        %v2046 = vtanh.pop %v2036
        %v2047 = vtanh.pop %v2037
        %v2048 = vtanh.pop %v2038
        %v2049 = vtanh.pop %v2039
        %v2050 = vmul.f32 %v2030, %v2040
        %v2051 = vmul.f32 %v2031, %v2041
        %v2052 = vmul.f32 %v2032, %v2042
        %v2053 = vmul.f32 %v2033, %v2043
        %v2054 = vmul.f32 %v2034, %v2044
        %v2055 = vmul.f32 %v2035, %v2045
        %v2056 = vmul.f32 %v2036, %v2046
        %v2057 = vmul.f32 %v2037, %v2047
        %v2058 = vmul.f32 %v2038, %v2048
        %v2059 = vmul.f32 %v2039, %v2049
        %v2060 = vadd.f32 %v2030, %v2050
        %v2061 = vadd.f32 %v2031, %v2051
        %v2062 = vadd.f32 %v2032, %v2052
        %v2063 = vadd.f32 %v2033, %v2053
        %v2064 = vadd.f32 %v2034, %v2054
        %v2065 = vadd.f32 %v2035, %v2055
        %v2066 = vadd.f32 %v2036, %v2056
        %v2067 = vadd.f32 %v2037, %v2057
        %v2068 = vadd.f32 %v2038, %v2058
        %v2069 = vadd.f32 %v2039, %v2059
        %v2070 = vld [vmem:[%s3] sm:$0xf]
        %v2071 = vld [vmem:[%s3 + $0x4] sm:$0xf]
        %v2072 = vld [vmem:[%s3 + $0x8] sm:$0xf]
        %v2073 = vld [vmem:[%s3 + $0xc] sm:$0xf]
        %v2074 = vld [vmem:[%s3 + $0x10] sm:$0xf]
        %v2075 = vpack.c.bf16 %v2062, %v2060
        %v2076 = vpack.c.bf16 %v2063, %v2061
        %v2077 = vpack.c.bf16 %v2066, %v2064
        %v2078 = vpack.c.bf16 %v2067, %v2065
        %v2079 = vpack.c.bf16 %v2068, %v2068
        %v2080 = vpack.c.bf16 %v2069, %v2069
        %v2081 = vld [vmem:[%s4] sm:$0xff]
        %v2082 = vld [vmem:[%s4 + $0x8] sm:$0xff]
        %v2083 = vld [vmem:[%s4 + $0x10] sm:$0xff]
        %v2084 = vld [vmem:[%s4 + $0x18] sm:$0xff]
        %v2085 = vld [vmem:[%s4 + $0x20] sm:$0xff]
        %2087 = vset.pattern.permute.xlu0 0
        %2088 = vperm.xlu0 %2087, %v2081
        %v2089 = vpop.permute.xlu0 %2088
        %2092 = vset.pattern.permute.xlu0 0
        %2093 = vperm.xlu0 %2092, %v2082
        %v2094 = vpop.permute.xlu0 %2093
        %2097 = vset.pattern.permute.xlu0 0
        %2098 = vperm.xlu0 %2097, %v2083
        %v2099 = vpop.permute.xlu0 %2098
        %2102 = vset.pattern.permute.xlu0 0
        %2103 = vperm.xlu0 %2102, %v2084
        %v2104 = vpop.permute.xlu0 %2103
        %2107 = vset.pattern.permute.xlu0 0
        %2108 = vperm.xlu0 %2107, %v2085
        %v2109 = vpop.permute.xlu0 %2108
        %v2116 = vunpack.c.l.b16 %v2070
        %v2117 = vunpack.c.l.b16 %v2071
        %v2118 = vunpack.c.l.b16 %v2072
        %v2119 = vunpack.c.l.b16 %v2073
        %v2120 = vunpack.c.l.b16 %v2074
        %v2121 = vpack.c.b16 %v2117, %v2116
        %v2122 = vpack.c.b16 %v2119, %v2118
        %v2123 = vpack.c.b16 %v2120, %v2120
        %v2125 = vsel %vm541, %v2121, 0
        %v2128 = vsel %vm541, %v2122, 0
        %v2131 = vsel %vm541, %v2123, 0
        %v2134 = vsel %vm551, %v2079, 0
        %v2137 = vsel %vm551, %v2080, 0
        %2139 = vmatprep.subr.bf16.mxu0 0
        %2140 = vmatpush1.bf16.msra.mxu0 0
        %2141 = vmatprep.subr.bf16.mxu0 0
        %2142 = vmatpush1.bf16.msra.mxu0 0
        %2143 = vmatprep.subr.bf16.mxu0 0
        %2144 = vmatpush1.bf16.msra.mxu0 0
        %2145 = vmatprep.subr.bf16.mxu0 0
        %2146 = vmatpush1.bf16.msra.mxu0 0
        %2147 = vmatprep.subr.bf16.mxu0 0
        %2148 = vmatpush1.bf16.msra.mxu0 0
        %2149 = vmatprep.subr.bf16.mxu0 %v2137
        %2150 = vmatpush1.bf16.msra.mxu0 %v2134
        %2151 = vmatprep.subr.bf16.mxu0 %v2078
        %2152 = vmatpush1.bf16.msra.mxu0 %v2077
        %2153 = vmatprep.subr.bf16.mxu0 %v2076
        %2154 = vmatpush1.bf16.msra.mxu0 %v2075
        %2155 = vmatprep.subr.bf16.mxu0 0
        %2156 = vmatpush2.bf16.msra.mxu0 0
        %2157 = vmatprep.subr.bf16.mxu0 0
        %2158 = vmatpush2.bf16.msra.mxu0 0
        %2159 = vmatprep.subr.bf16.mxu0 0
        %2160 = vmatpush2.bf16.msra.mxu0 0
        %2161 = vmatprep.subr.bf16.mxu0 0
        %2162 = vmatpush2.bf16.msra.mxu0 0
        %2163 = vmatprep.subr.bf16.mxu0 0
        %2164 = vmatpush2.bf16.msra.mxu0 0
        %2165 = vmatprep.subr.bf16.mxu0 0
        %2166 = vmatpush2.bf16.msra.mxu0 0
        %2167 = vmatprep.subr.bf16.mxu0 0
        %2168 = vmatpush2.bf16.msra.mxu0 0
        %2169 = vmatprep.subr.bf16.mxu0 0
        %2170 = vmatpush2.bf16.msra.mxu0 0
        %2171 = vmatprep.mubr.bf16.mxu0 0
        %2172 = vmatmul.mubr.bf16.gmra.mxu0 %v2125
        %v2173 = vpop.f32.mrf.mxu0
        %v2174 = vadd.f32 %v2089, %v2173
        %v2175 = vpop.f32.mrf.mxu0
        %v2176 = vadd.f32 %v2089, %v2175
        %v2177 = vpop.f32.mrf.mxu0
        %v2178 = vadd.f32 %v2094, %v2177
        %v2179 = vpop.f32.mrf.mxu0
        %v2180 = vadd.f32 %v2094, %v2179
        %2181 = vmatprep.mubr.bf16.mxu0 0
        %2182 = vmatmul.mubr.bf16.gmra.mxu0 %v2128
        %v2183 = vpop.f32.mrf.mxu0
        %v2184 = vadd.f32 %v2099, %v2183
        %v2185 = vpop.f32.mrf.mxu0
        %v2186 = vadd.f32 %v2099, %v2185
        %v2187 = vpop.f32.mrf.mxu0
        %v2188 = vadd.f32 %v2104, %v2187
        %v2189 = vpop.f32.mrf.mxu0
        %v2190 = vadd.f32 %v2104, %v2189
        %2191 = vmatprep.mubr.bf16.mxu0 0
        %2192 = vmatmul.mubr.bf16.gmra.mxu0 %v2131
        %v2193 = vpop.f32.mrf.mxu0
        %v2194 = vadd.f32 %v2109, %v2193
        %v2195 = vpop.f32.mrf.mxu0
        %v2196 = vadd.f32 %v2109, %v2195
        %v2197 = vpop.f32.mrf.mxu0
        %v2198 = vpop.f32.mrf.mxu0
        %2199 = vdwg.mxu0
        %v2200 = vmul.f32 %v2174, 0.5
        %v2201 = vmul.f32 %v2176, 0.5
        %v2202 = vmul.f32 %v2178, 0.5
        %v2203 = vmul.f32 %v2180, 0.5
        %v2204 = vmul.f32 %v2184, 0.5
        %v2205 = vmul.f32 %v2186, 0.5
        %v2206 = vmul.f32 %v2188, 0.5
        %v2207 = vmul.f32 %v2190, 0.5
        %v2208 = vmul.f32 %v2194, 0.5
        %v2209 = vmul.f32 %v2196, 0.5
        %v2210 = vtanh.pop %v2200
        %v2211 = vtanh.pop %v2201
        %v2212 = vtanh.pop %v2202
        %v2213 = vtanh.pop %v2203
        %v2214 = vtanh.pop %v2204
        %v2215 = vtanh.pop %v2205
        %v2216 = vtanh.pop %v2206
        %v2217 = vtanh.pop %v2207
        %v2218 = vtanh.pop %v2208
        %v2219 = vtanh.pop %v2209
        %v2220 = vmul.f32 %v2200, %v2210
        %v2221 = vmul.f32 %v2201, %v2211
        %v2222 = vmul.f32 %v2202, %v2212
        %v2223 = vmul.f32 %v2203, %v2213
        %v2224 = vmul.f32 %v2204, %v2214
        %v2225 = vmul.f32 %v2205, %v2215
        %v2226 = vmul.f32 %v2206, %v2216
        %v2227 = vmul.f32 %v2207, %v2217
        %v2228 = vmul.f32 %v2208, %v2218
        %v2229 = vmul.f32 %v2209, %v2219
        %v2230 = vadd.f32 %v2200, %v2220
        %v2231 = vadd.f32 %v2201, %v2221
        %v2232 = vadd.f32 %v2202, %v2222
        %v2233 = vadd.f32 %v2203, %v2223
        %v2234 = vadd.f32 %v2204, %v2224
        %v2235 = vadd.f32 %v2205, %v2225
        %v2236 = vadd.f32 %v2206, %v2226
        %v2237 = vadd.f32 %v2207, %v2227
        %v2238 = vadd.f32 %v2208, %v2228
        %v2239 = vadd.f32 %v2209, %v2229
        %v2240 = vld [vmem:[%s659] sm:$0xf]
        %v2241 = vld [vmem:[%s659 + $0x4] sm:$0xf]
        %v2242 = vld [vmem:[%s659 + $0x8] sm:$0xf]
        %v2243 = vld [vmem:[%s659 + $0xc] sm:$0xf]
        %v2244 = vld [vmem:[%s659 + $0x10] sm:$0xf]
        %v2245 = vpack.c.bf16 %v2232, %v2230
        %v2246 = vpack.c.bf16 %v2233, %v2231
        %v2247 = vpack.c.bf16 %v2236, %v2234
        %v2248 = vpack.c.bf16 %v2237, %v2235
        %v2249 = vpack.c.bf16 %v2238, %v2238
        %v2250 = vpack.c.bf16 %v2239, %v2239
        %v2251 = vld [vmem:[%s671] sm:$0xff]
        %v2252 = vld [vmem:[%s671 + $0x8] sm:$0xff]
        %v2253 = vld [vmem:[%s671 + $0x10] sm:$0xff]
        %v2254 = vld [vmem:[%s671 + $0x18] sm:$0xff]
        %v2255 = vld [vmem:[%s671 + $0x20] sm:$0xff]
        %2257 = vset.pattern.permute.xlu0 0
        %2258 = vperm.xlu0 %2257, %v2251
        %v2259 = vpop.permute.xlu0 %2258
        %2262 = vset.pattern.permute.xlu0 0
        %2263 = vperm.xlu0 %2262, %v2252
        %v2264 = vpop.permute.xlu0 %2263
        %2267 = vset.pattern.permute.xlu0 0
        %2268 = vperm.xlu0 %2267, %v2253
        %v2269 = vpop.permute.xlu0 %2268
        %2272 = vset.pattern.permute.xlu0 0
        %2273 = vperm.xlu0 %2272, %v2254
        %v2274 = vpop.permute.xlu0 %2273
        %2277 = vset.pattern.permute.xlu0 0
        %2278 = vperm.xlu0 %2277, %v2255
        %v2279 = vpop.permute.xlu0 %2278
        %v2286 = vunpack.c.l.b16 %v2240
        %v2287 = vunpack.c.l.b16 %v2241
        %v2288 = vunpack.c.l.b16 %v2242
        %v2289 = vunpack.c.l.b16 %v2243
        %v2290 = vunpack.c.l.b16 %v2244
        %v2291 = vpack.c.b16 %v2287, %v2286
        %v2292 = vpack.c.b16 %v2289, %v2288
        %v2293 = vpack.c.b16 %v2290, %v2290
        %v2295 = vsel %vm541, %v2291, 0
        %v2298 = vsel %vm541, %v2292, 0
        %v2301 = vsel %vm541, %v2293, 0
        %v2304 = vsel %vm551, %v2249, 0
        %v2307 = vsel %vm551, %v2250, 0
        %2309 = vmatprep.subr.bf16.mxu0 0
        %2310 = vmatpush1.bf16.msra.mxu0 0
        %2311 = vmatprep.subr.bf16.mxu0 0
        %2312 = vmatpush1.bf16.msra.mxu0 0
        %2313 = vmatprep.subr.bf16.mxu0 0
        %2314 = vmatpush1.bf16.msra.mxu0 0
        %2315 = vmatprep.subr.bf16.mxu0 0
        %2316 = vmatpush1.bf16.msra.mxu0 0
        %2317 = vmatprep.subr.bf16.mxu0 0
        %2318 = vmatpush1.bf16.msra.mxu0 0
        %2319 = vmatprep.subr.bf16.mxu0 %v2307
        %2320 = vmatpush1.bf16.msra.mxu0 %v2304
        %2321 = vmatprep.subr.bf16.mxu0 %v2248
        %2322 = vmatpush1.bf16.msra.mxu0 %v2247
        %2323 = vmatprep.subr.bf16.mxu0 %v2246
        %2324 = vmatpush1.bf16.msra.mxu0 %v2245
        %2325 = vmatprep.subr.bf16.mxu0 0
        %2326 = vmatpush2.bf16.msra.mxu0 0
        %2327 = vmatprep.subr.bf16.mxu0 0
        %2328 = vmatpush2.bf16.msra.mxu0 0
        %2329 = vmatprep.subr.bf16.mxu0 0
        %2330 = vmatpush2.bf16.msra.mxu0 0
        %2331 = vmatprep.subr.bf16.mxu0 0
        %2332 = vmatpush2.bf16.msra.mxu0 0
        %2333 = vmatprep.subr.bf16.mxu0 0
        %2334 = vmatpush2.bf16.msra.mxu0 0
        %2335 = vmatprep.subr.bf16.mxu0 0
        %2336 = vmatpush2.bf16.msra.mxu0 0
        %2337 = vmatprep.subr.bf16.mxu0 0
        %2338 = vmatpush2.bf16.msra.mxu0 0
        %2339 = vmatprep.subr.bf16.mxu0 0
        %2340 = vmatpush2.bf16.msra.mxu0 0
        %2341 = vmatprep.mubr.bf16.mxu0 0
        %2342 = vmatmul.mubr.bf16.gmra.mxu0 %v2295
        %v2343 = vpop.f32.mrf.mxu0
        %v2344 = vadd.f32 %v2259, %v2343
        %v2345 = vpop.f32.mrf.mxu0
        %v2346 = vadd.f32 %v2259, %v2345
        %v2347 = vpop.f32.mrf.mxu0
        %v2348 = vadd.f32 %v2264, %v2347
        %v2349 = vpop.f32.mrf.mxu0
        %v2350 = vadd.f32 %v2264, %v2349
        %2351 = vmatprep.mubr.bf16.mxu0 0
        %2352 = vmatmul.mubr.bf16.gmra.mxu0 %v2298
        %v2353 = vpop.f32.mrf.mxu0
        %v2354 = vadd.f32 %v2269, %v2353
        %v2355 = vpop.f32.mrf.mxu0
        %v2356 = vadd.f32 %v2269, %v2355
        %v2357 = vpop.f32.mrf.mxu0
        %v2358 = vadd.f32 %v2274, %v2357
        %v2359 = vpop.f32.mrf.mxu0
        %v2360 = vadd.f32 %v2274, %v2359
        %2361 = vmatprep.mubr.bf16.mxu0 0
        %2362 = vmatmul.mubr.bf16.gmra.mxu0 %v2301
        %v2363 = vpop.f32.mrf.mxu0
        %v2364 = vadd.f32 %v2279, %v2363
        %v2365 = vpop.f32.mrf.mxu0
        %v2366 = vadd.f32 %v2279, %v2365
        %v2367 = vpop.f32.mrf.mxu0
        %v2368 = vpop.f32.mrf.mxu0
        %2369 = vdwg.mxu0
        %v2370 = vmul.f32 %v2344, 0.5
        %v2371 = vmul.f32 %v2346, 0.5
        %v2372 = vmul.f32 %v2348, 0.5
        %v2373 = vmul.f32 %v2350, 0.5
        %v2374 = vmul.f32 %v2354, 0.5
        %v2375 = vmul.f32 %v2356, 0.5
        %v2376 = vmul.f32 %v2358, 0.5
        %v2377 = vmul.f32 %v2360, 0.5
        %v2378 = vmul.f32 %v2364, 0.5
        %v2379 = vmul.f32 %v2366, 0.5
        %v2380 = vtanh.pop %v2370
        %v2381 = vtanh.pop %v2371
        %v2382 = vtanh.pop %v2372
        %v2383 = vtanh.pop %v2373
        %v2384 = vtanh.pop %v2374
        %v2385 = vtanh.pop %v2375
        %v2386 = vtanh.pop %v2376
        %v2387 = vtanh.pop %v2377
        %v2388 = vtanh.pop %v2378
        %v2389 = vtanh.pop %v2379
        %v2390 = vmul.f32 %v2370, %v2380
        %v2391 = vmul.f32 %v2371, %v2381
        %v2392 = vmul.f32 %v2372, %v2382
        %v2393 = vmul.f32 %v2373, %v2383
        %v2394 = vmul.f32 %v2374, %v2384
        %v2395 = vmul.f32 %v2375, %v2385
        %v2396 = vmul.f32 %v2376, %v2386
        %v2397 = vmul.f32 %v2377, %v2387
        %v2398 = vmul.f32 %v2378, %v2388
        %v2399 = vmul.f32 %v2379, %v2389
        %v2400 = vadd.f32 %v2370, %v2390
        %v2401 = vadd.f32 %v2371, %v2391
        %v2402 = vadd.f32 %v2372, %v2392
        %v2403 = vadd.f32 %v2373, %v2393
        %v2404 = vadd.f32 %v2374, %v2394
        %v2405 = vadd.f32 %v2375, %v2395
        %v2406 = vadd.f32 %v2376, %v2396
        %v2407 = vadd.f32 %v2377, %v2397
        %v2408 = vadd.f32 %v2378, %v2398
        %v2409 = vadd.f32 %v2379, %v2399
        %v2410 = vld [vmem:[%s831] sm:$0xf]
        %v2411 = vld [vmem:[%s831 + $0x4] sm:$0xf]
        %v2412 = vld [vmem:[%s831 + $0x8] sm:$0xf]
        %v2413 = vld [vmem:[%s831 + $0xc] sm:$0xf]
        %v2414 = vld [vmem:[%s831 + $0x10] sm:$0xf]
        %v2415 = vpack.c.bf16 %v2402, %v2400
        %v2416 = vpack.c.bf16 %v2403, %v2401
        %v2417 = vpack.c.bf16 %v2406, %v2404
        %v2418 = vpack.c.bf16 %v2407, %v2405
        %v2419 = vpack.c.bf16 %v2408, %v2408
        %v2420 = vpack.c.bf16 %v2409, %v2409
        %v2421 = vld [vmem:[%s843] sm:$0xff]
        %v2422 = vld [vmem:[%s843 + $0x8] sm:$0xff]
        %v2423 = vld [vmem:[%s843 + $0x10] sm:$0xff]
        %v2424 = vld [vmem:[%s843 + $0x18] sm:$0xff]
        %v2425 = vld [vmem:[%s843 + $0x20] sm:$0xff]
        %2427 = vset.pattern.permute.xlu0 0
        %2428 = vperm.xlu0 %2427, %v2421
        %v2429 = vpop.permute.xlu0 %2428
        %2432 = vset.pattern.permute.xlu0 0
        %2433 = vperm.xlu0 %2432, %v2422
        %v2434 = vpop.permute.xlu0 %2433
        %2437 = vset.pattern.permute.xlu0 0
        %2438 = vperm.xlu0 %2437, %v2423
        %v2439 = vpop.permute.xlu0 %2438
        %2442 = vset.pattern.permute.xlu0 0
        %2443 = vperm.xlu0 %2442, %v2424
        %v2444 = vpop.permute.xlu0 %2443
        %2447 = vset.pattern.permute.xlu0 0
        %2448 = vperm.xlu0 %2447, %v2425
        %v2449 = vpop.permute.xlu0 %2448
        %v2456 = vunpack.c.l.b16 %v2410
        %v2457 = vunpack.c.l.b16 %v2411
        %v2458 = vunpack.c.l.b16 %v2412
        %v2459 = vunpack.c.l.b16 %v2413
        %v2460 = vunpack.c.l.b16 %v2414
        %v2461 = vpack.c.b16 %v2457, %v2456
        %v2462 = vpack.c.b16 %v2459, %v2458
        %v2463 = vpack.c.b16 %v2460, %v2460
        %v2465 = vsel %vm541, %v2461, 0
        %v2468 = vsel %vm541, %v2462, 0
        %v2471 = vsel %vm541, %v2463, 0
        %v2474 = vsel %vm551, %v2419, 0
        %v2477 = vsel %vm551, %v2420, 0
        %2479 = vmatprep.subr.bf16.mxu0 0
        %2480 = vmatpush1.bf16.msra.mxu0 0
        %2481 = vmatprep.subr.bf16.mxu0 0
        %2482 = vmatpush1.bf16.msra.mxu0 0
        %2483 = vmatprep.subr.bf16.mxu0 0
        %2484 = vmatpush1.bf16.msra.mxu0 0
        %2485 = vmatprep.subr.bf16.mxu0 0
        %2486 = vmatpush1.bf16.msra.mxu0 0
        %2487 = vmatprep.subr.bf16.mxu0 0
        %2488 = vmatpush1.bf16.msra.mxu0 0
        %2489 = vmatprep.subr.bf16.mxu0 %v2477
        %2490 = vmatpush1.bf16.msra.mxu0 %v2474
        %2491 = vmatprep.subr.bf16.mxu0 %v2418
        %2492 = vmatpush1.bf16.msra.mxu0 %v2417
        %2493 = vmatprep.subr.bf16.mxu0 %v2416
        %2494 = vmatpush1.bf16.msra.mxu0 %v2415
        %2495 = vmatprep.subr.bf16.mxu0 0
        %2496 = vmatpush2.bf16.msra.mxu0 0
        %2497 = vmatprep.subr.bf16.mxu0 0
        %2498 = vmatpush2.bf16.msra.mxu0 0
        %2499 = vmatprep.subr.bf16.mxu0 0
        %2500 = vmatpush2.bf16.msra.mxu0 0
        %2501 = vmatprep.subr.bf16.mxu0 0
        %2502 = vmatpush2.bf16.msra.mxu0 0
        %2503 = vmatprep.subr.bf16.mxu0 0
        %2504 = vmatpush2.bf16.msra.mxu0 0
        %2505 = vmatprep.subr.bf16.mxu0 0
        %2506 = vmatpush2.bf16.msra.mxu0 0
        %2507 = vmatprep.subr.bf16.mxu0 0
        %2508 = vmatpush2.bf16.msra.mxu0 0
        %2509 = vmatprep.subr.bf16.mxu0 0
        %2510 = vmatpush2.bf16.msra.mxu0 0
        %2511 = vmatprep.mubr.bf16.mxu0 0
        %2512 = vmatmul.mubr.bf16.gmra.mxu0 %v2465
        %v2513 = vpop.f32.mrf.mxu0
        %v2514 = vadd.f32 %v2429, %v2513
        %v2515 = vpop.f32.mrf.mxu0
        %v2516 = vadd.f32 %v2429, %v2515
        %v2517 = vpop.f32.mrf.mxu0
        %v2518 = vadd.f32 %v2434, %v2517
        %v2519 = vpop.f32.mrf.mxu0
        %v2520 = vadd.f32 %v2434, %v2519
        %2521 = vmatprep.mubr.bf16.mxu0 0
        %2522 = vmatmul.mubr.bf16.gmra.mxu0 %v2468
        %v2523 = vpop.f32.mrf.mxu0
        %v2524 = vadd.f32 %v2439, %v2523
        %v2525 = vpop.f32.mrf.mxu0
        %v2526 = vadd.f32 %v2439, %v2525
        %v2527 = vpop.f32.mrf.mxu0
        %v2528 = vadd.f32 %v2444, %v2527
        %v2529 = vpop.f32.mrf.mxu0
        %v2530 = vadd.f32 %v2444, %v2529
        %2531 = vmatprep.mubr.bf16.mxu0 0
        %2532 = vmatmul.mubr.bf16.gmra.mxu0 %v2471
        %v2533 = vpop.f32.mrf.mxu0
        %v2534 = vadd.f32 %v2449, %v2533
        %v2535 = vpop.f32.mrf.mxu0
        %v2536 = vadd.f32 %v2449, %v2535
        %v2537 = vpop.f32.mrf.mxu0
        %v2538 = vpop.f32.mrf.mxu0
        %2539 = vdwg.mxu0
        %v2540 = vmul.f32 %v2514, 0.5
        %v2541 = vmul.f32 %v2516, 0.5
        %v2542 = vmul.f32 %v2518, 0.5
        %v2543 = vmul.f32 %v2520, 0.5
        %v2544 = vmul.f32 %v2524, 0.5
        %v2545 = vmul.f32 %v2526, 0.5
        %v2546 = vmul.f32 %v2528, 0.5
        %v2547 = vmul.f32 %v2530, 0.5
        %v2548 = vmul.f32 %v2534, 0.5
        %v2549 = vmul.f32 %v2536, 0.5
        %v2550 = vtanh.pop %v2540
        %v2551 = vtanh.pop %v2541
        %v2552 = vtanh.pop %v2542
        %v2553 = vtanh.pop %v2543
        %v2554 = vtanh.pop %v2544
        %v2555 = vtanh.pop %v2545
        %v2556 = vtanh.pop %v2546
        %v2557 = vtanh.pop %v2547
        %v2558 = vtanh.pop %v2548
        %v2559 = vtanh.pop %v2549
        %v2560 = vmul.f32 %v2540, %v2550
        %v2561 = vmul.f32 %v2541, %v2551
        %v2562 = vmul.f32 %v2542, %v2552
        %v2563 = vmul.f32 %v2543, %v2553
        %v2564 = vmul.f32 %v2544, %v2554
        %v2565 = vmul.f32 %v2545, %v2555
        %v2566 = vmul.f32 %v2546, %v2556
        %v2567 = vmul.f32 %v2547, %v2557
        %v2568 = vmul.f32 %v2548, %v2558
        %v2569 = vmul.f32 %v2549, %v2559
        %v2570 = vadd.f32 %v2540, %v2560
        %v2571 = vadd.f32 %v2541, %v2561
        %v2572 = vadd.f32 %v2542, %v2562
        %v2573 = vadd.f32 %v2543, %v2563
        %v2574 = vadd.f32 %v2544, %v2564
        %v2575 = vadd.f32 %v2545, %v2565
        %v2576 = vadd.f32 %v2546, %v2566
        %v2577 = vadd.f32 %v2547, %v2567
        %v2578 = vadd.f32 %v2548, %v2568
        %v2579 = vadd.f32 %v2549, %v2569
        %v2580 = vld [vmem:[%s1003] sm:$0xf]
        %v2581 = vld [vmem:[%s1003 + $0x4] sm:$0xf]
        %v2582 = vld [vmem:[%s1003 + $0x8] sm:$0xf]
        %v2583 = vld [vmem:[%s1003 + $0xc] sm:$0xf]
        %v2584 = vld [vmem:[%s1003 + $0x10] sm:$0xf]
        %v2585 = vpack.c.bf16 %v2572, %v2570
        %v2586 = vpack.c.bf16 %v2573, %v2571
        %v2587 = vpack.c.bf16 %v2576, %v2574
        %v2588 = vpack.c.bf16 %v2577, %v2575
        %v2589 = vpack.c.bf16 %v2578, %v2578
        %v2590 = vpack.c.bf16 %v2579, %v2579
        %v2591 = vld [vmem:[%s1015] sm:$0xff]
        %v2592 = vld [vmem:[%s1015 + $0x8] sm:$0xff]
        %v2593 = vld [vmem:[%s1015 + $0x10] sm:$0xff]
        %v2594 = vld [vmem:[%s1015 + $0x18] sm:$0xff]
        %v2595 = vld [vmem:[%s1015 + $0x20] sm:$0xff]
        %2597 = vset.pattern.permute.xlu0 0
        %2598 = vperm.xlu0 %2597, %v2591
        %v2599 = vpop.permute.xlu0 %2598
        %2602 = vset.pattern.permute.xlu0 0
        %2603 = vperm.xlu0 %2602, %v2592
        %v2604 = vpop.permute.xlu0 %2603
        %2607 = vset.pattern.permute.xlu0 0
        %2608 = vperm.xlu0 %2607, %v2593
        %v2609 = vpop.permute.xlu0 %2608
        %2612 = vset.pattern.permute.xlu0 0
        %2613 = vperm.xlu0 %2612, %v2594
        %v2614 = vpop.permute.xlu0 %2613
        %2617 = vset.pattern.permute.xlu0 0
        %2618 = vperm.xlu0 %2617, %v2595
        %v2619 = vpop.permute.xlu0 %2618
        %v2626 = vunpack.c.l.b16 %v2580
        %v2627 = vunpack.c.l.b16 %v2581
        %v2628 = vunpack.c.l.b16 %v2582
        %v2629 = vunpack.c.l.b16 %v2583
        %v2630 = vunpack.c.l.b16 %v2584
        %v2631 = vpack.c.b16 %v2627, %v2626
        %v2632 = vpack.c.b16 %v2629, %v2628
        %v2633 = vpack.c.b16 %v2630, %v2630
        %v2635 = vsel %vm541, %v2631, 0
        %v2638 = vsel %vm541, %v2632, 0
        %v2641 = vsel %vm541, %v2633, 0
        %v2644 = vsel %vm551, %v2589, 0
        %v2647 = vsel %vm551, %v2590, 0
        %2649 = vmatprep.subr.bf16.mxu0 0
        %2650 = vmatpush1.bf16.msra.mxu0 0
        %2651 = vmatprep.subr.bf16.mxu0 0
        %2652 = vmatpush1.bf16.msra.mxu0 0
        %2653 = vmatprep.subr.bf16.mxu0 0
        %2654 = vmatpush1.bf16.msra.mxu0 0
        %2655 = vmatprep.subr.bf16.mxu0 0
        %2656 = vmatpush1.bf16.msra.mxu0 0
        %2657 = vmatprep.subr.bf16.mxu0 0
        %2658 = vmatpush1.bf16.msra.mxu0 0
        %2659 = vmatprep.subr.bf16.mxu0 %v2647
        %2660 = vmatpush1.bf16.msra.mxu0 %v2644
        %2661 = vmatprep.subr.bf16.mxu0 %v2588
        %2662 = vmatpush1.bf16.msra.mxu0 %v2587
        %2663 = vmatprep.subr.bf16.mxu0 %v2586
        %2664 = vmatpush1.bf16.msra.mxu0 %v2585
        %2665 = vmatprep.subr.bf16.mxu0 0
        %2666 = vmatpush2.bf16.msra.mxu0 0
        %2667 = vmatprep.subr.bf16.mxu0 0
        %2668 = vmatpush2.bf16.msra.mxu0 0
        %2669 = vmatprep.subr.bf16.mxu0 0
        %2670 = vmatpush2.bf16.msra.mxu0 0
        %2671 = vmatprep.subr.bf16.mxu0 0
        %2672 = vmatpush2.bf16.msra.mxu0 0
        %2673 = vmatprep.subr.bf16.mxu0 0
        %2674 = vmatpush2.bf16.msra.mxu0 0
        %2675 = vmatprep.subr.bf16.mxu0 0
        %2676 = vmatpush2.bf16.msra.mxu0 0
        %2677 = vmatprep.subr.bf16.mxu0 0
        %2678 = vmatpush2.bf16.msra.mxu0 0
        %2679 = vmatprep.subr.bf16.mxu0 0
        %2680 = vmatpush2.bf16.msra.mxu0 0
        %2681 = vmatprep.mubr.bf16.mxu0 0
        %2682 = vmatmul.mubr.bf16.gmra.mxu0 %v2635
        %v2683 = vpop.f32.mrf.mxu0
        %v2684 = vadd.f32 %v2599, %v2683
        %v2685 = vpop.f32.mrf.mxu0
        %v2686 = vadd.f32 %v2599, %v2685
        %v2687 = vpop.f32.mrf.mxu0
        %v2688 = vadd.f32 %v2604, %v2687
        %v2689 = vpop.f32.mrf.mxu0
        %v2690 = vadd.f32 %v2604, %v2689
        %2691 = vmatprep.mubr.bf16.mxu0 0
        %2692 = vmatmul.mubr.bf16.gmra.mxu0 %v2638
        %v2693 = vpop.f32.mrf.mxu0
        %v2694 = vadd.f32 %v2609, %v2693
        %v2695 = vpop.f32.mrf.mxu0
        %v2696 = vadd.f32 %v2609, %v2695
        %v2697 = vpop.f32.mrf.mxu0
        %v2698 = vadd.f32 %v2614, %v2697
        %v2699 = vpop.f32.mrf.mxu0
        %v2700 = vadd.f32 %v2614, %v2699
        %2701 = vmatprep.mubr.bf16.mxu0 0
        %2702 = vmatmul.mubr.bf16.gmra.mxu0 %v2641
        %v2703 = vpop.f32.mrf.mxu0
        %v2704 = vadd.f32 %v2619, %v2703
        %v2705 = vpop.f32.mrf.mxu0
        %v2706 = vadd.f32 %v2619, %v2705
        %v2707 = vpop.f32.mrf.mxu0
        %v2708 = vpop.f32.mrf.mxu0
        %2709 = vdwg.mxu0
        %v2710 = vmul.f32 %v2684, 0.5
        %v2711 = vmul.f32 %v2686, 0.5
        %v2712 = vmul.f32 %v2688, 0.5
        %v2713 = vmul.f32 %v2690, 0.5
        %v2714 = vmul.f32 %v2694, 0.5
        %v2715 = vmul.f32 %v2696, 0.5
        %v2716 = vmul.f32 %v2698, 0.5
        %v2717 = vmul.f32 %v2700, 0.5
        %v2718 = vmul.f32 %v2704, 0.5
        %v2719 = vmul.f32 %v2706, 0.5
        %v2720 = vtanh.pop %v2710
        %v2721 = vtanh.pop %v2711
        %v2722 = vtanh.pop %v2712
        %v2723 = vtanh.pop %v2713
        %v2724 = vtanh.pop %v2714
        %v2725 = vtanh.pop %v2715
        %v2726 = vtanh.pop %v2716
        %v2727 = vtanh.pop %v2717
        %v2728 = vtanh.pop %v2718
        %v2729 = vtanh.pop %v2719
        %v2730 = vmul.f32 %v2710, %v2720
        %v2731 = vmul.f32 %v2711, %v2721
        %v2732 = vmul.f32 %v2712, %v2722
        %v2733 = vmul.f32 %v2713, %v2723
        %v2734 = vmul.f32 %v2714, %v2724
        %v2735 = vmul.f32 %v2715, %v2725
        %v2736 = vmul.f32 %v2716, %v2726
        %v2737 = vmul.f32 %v2717, %v2727
        %v2738 = vmul.f32 %v2718, %v2728
        %v2739 = vmul.f32 %v2719, %v2729
        %v2740 = vadd.f32 %v2710, %v2730
        %v2741 = vadd.f32 %v2711, %v2731
        %v2742 = vadd.f32 %v2712, %v2732
        %v2743 = vadd.f32 %v2713, %v2733
        %v2744 = vadd.f32 %v2714, %v2734
        %v2745 = vadd.f32 %v2715, %v2735
        %v2746 = vadd.f32 %v2716, %v2736
        %v2747 = vadd.f32 %v2717, %v2737
        %v2748 = vadd.f32 %v2718, %v2738
        %v2749 = vadd.f32 %v2719, %v2739
        %v2750 = vld [vmem:[%s1175] sm:$0xf]
        %v2751 = vld [vmem:[%s1175 + $0x4] sm:$0xf]
        %v2752 = vld [vmem:[%s1175 + $0x8] sm:$0xf]
        %v2753 = vld [vmem:[%s1175 + $0xc] sm:$0xf]
        %v2754 = vld [vmem:[%s1175 + $0x10] sm:$0xf]
        %v2755 = vpack.c.bf16 %v2742, %v2740
        %v2756 = vpack.c.bf16 %v2743, %v2741
        %v2757 = vpack.c.bf16 %v2746, %v2744
        %v2758 = vpack.c.bf16 %v2747, %v2745
        %v2759 = vpack.c.bf16 %v2748, %v2748
        %v2760 = vpack.c.bf16 %v2749, %v2749
        %v2761 = vld [vmem:[%s1187] sm:$0xff]
        %v2762 = vld [vmem:[%s1187 + $0x8] sm:$0xff]
        %v2763 = vld [vmem:[%s1187 + $0x10] sm:$0xff]
        %v2764 = vld [vmem:[%s1187 + $0x18] sm:$0xff]
        %v2765 = vld [vmem:[%s1187 + $0x20] sm:$0xff]
        %2767 = vset.pattern.permute.xlu0 0
        %2768 = vperm.xlu0 %2767, %v2761
        %v2769 = vpop.permute.xlu0 %2768
        %2772 = vset.pattern.permute.xlu0 0
        %2773 = vperm.xlu0 %2772, %v2762
        %v2774 = vpop.permute.xlu0 %2773
        %2777 = vset.pattern.permute.xlu0 0
        %2778 = vperm.xlu0 %2777, %v2763
        %v2779 = vpop.permute.xlu0 %2778
        %2782 = vset.pattern.permute.xlu0 0
        %2783 = vperm.xlu0 %2782, %v2764
        %v2784 = vpop.permute.xlu0 %2783
        %2787 = vset.pattern.permute.xlu0 0
        %2788 = vperm.xlu0 %2787, %v2765
        %v2789 = vpop.permute.xlu0 %2788
        %v2796 = vunpack.c.l.b16 %v2750
        %v2797 = vunpack.c.l.b16 %v2751
        %v2798 = vunpack.c.l.b16 %v2752
        %v2799 = vunpack.c.l.b16 %v2753
        %v2800 = vunpack.c.l.b16 %v2754
        %v2801 = vpack.c.b16 %v2797, %v2796
        %v2802 = vpack.c.b16 %v2799, %v2798
        %v2803 = vpack.c.b16 %v2800, %v2800
        %v2805 = vsel %vm541, %v2801, 0
        %v2808 = vsel %vm541, %v2802, 0
        %v2811 = vsel %vm541, %v2803, 0
        %v2814 = vsel %vm551, %v2759, 0
        %v2817 = vsel %vm551, %v2760, 0
        %2819 = vmatprep.subr.bf16.mxu0 0
        %2820 = vmatpush1.bf16.msra.mxu0 0
        %2821 = vmatprep.subr.bf16.mxu0 0
        %2822 = vmatpush1.bf16.msra.mxu0 0
        %2823 = vmatprep.subr.bf16.mxu0 0
        %2824 = vmatpush1.bf16.msra.mxu0 0
        %2825 = vmatprep.subr.bf16.mxu0 0
        %2826 = vmatpush1.bf16.msra.mxu0 0
        %2827 = vmatprep.subr.bf16.mxu0 0
        %2828 = vmatpush1.bf16.msra.mxu0 0
        %2829 = vmatprep.subr.bf16.mxu0 %v2817
        %2830 = vmatpush1.bf16.msra.mxu0 %v2814
        %2831 = vmatprep.subr.bf16.mxu0 %v2758
        %2832 = vmatpush1.bf16.msra.mxu0 %v2757
        %2833 = vmatprep.subr.bf16.mxu0 %v2756
        %2834 = vmatpush1.bf16.msra.mxu0 %v2755
        %2835 = vmatprep.subr.bf16.mxu0 0
        %2836 = vmatpush2.bf16.msra.mxu0 0
        %2837 = vmatprep.subr.bf16.mxu0 0
        %2838 = vmatpush2.bf16.msra.mxu0 0
        %2839 = vmatprep.subr.bf16.mxu0 0
        %2840 = vmatpush2.bf16.msra.mxu0 0
        %2841 = vmatprep.subr.bf16.mxu0 0
        %2842 = vmatpush2.bf16.msra.mxu0 0
        %2843 = vmatprep.subr.bf16.mxu0 0
        %2844 = vmatpush2.bf16.msra.mxu0 0
        %2845 = vmatprep.subr.bf16.mxu0 0
        %2846 = vmatpush2.bf16.msra.mxu0 0
        %2847 = vmatprep.subr.bf16.mxu0 0
        %2848 = vmatpush2.bf16.msra.mxu0 0
        %2849 = vmatprep.subr.bf16.mxu0 0
        %2850 = vmatpush2.bf16.msra.mxu0 0
        %2851 = vmatprep.mubr.bf16.mxu0 0
        %2852 = vmatmul.mubr.bf16.gmra.mxu0 %v2805
        %v2853 = vpop.f32.mrf.mxu0
        %v2854 = vadd.f32 %v2769, %v2853
        %v2855 = vpop.f32.mrf.mxu0
        %v2856 = vadd.f32 %v2769, %v2855
        %v2857 = vpop.f32.mrf.mxu0
        %v2858 = vadd.f32 %v2774, %v2857
        %v2859 = vpop.f32.mrf.mxu0
        %v2860 = vadd.f32 %v2774, %v2859
        %2861 = vmatprep.mubr.bf16.mxu0 0
        %2862 = vmatmul.mubr.bf16.gmra.mxu0 %v2808
        %v2863 = vpop.f32.mrf.mxu0
        %v2864 = vadd.f32 %v2779, %v2863
        %v2865 = vpop.f32.mrf.mxu0
        %v2866 = vadd.f32 %v2779, %v2865
        %v2867 = vpop.f32.mrf.mxu0
        %v2868 = vadd.f32 %v2784, %v2867
        %v2869 = vpop.f32.mrf.mxu0
        %v2870 = vadd.f32 %v2784, %v2869
        %2871 = vmatprep.mubr.bf16.mxu0 0
        %2872 = vmatmul.mubr.bf16.gmra.mxu0 %v2811
        %v2873 = vpop.f32.mrf.mxu0
        %v2874 = vadd.f32 %v2789, %v2873
        %v2875 = vpop.f32.mrf.mxu0
        %v2876 = vadd.f32 %v2789, %v2875
        %v2877 = vpop.f32.mrf.mxu0
        %v2878 = vpop.f32.mrf.mxu0
        %2879 = vdwg.mxu0
        %v2880 = vmul.f32 %v2854, 0.5
        %v2881 = vmul.f32 %v2856, 0.5
        %v2882 = vmul.f32 %v2858, 0.5
        %v2883 = vmul.f32 %v2860, 0.5
        %v2884 = vmul.f32 %v2864, 0.5
        %v2885 = vmul.f32 %v2866, 0.5
        %v2886 = vmul.f32 %v2868, 0.5
        %v2887 = vmul.f32 %v2870, 0.5
        %v2888 = vmul.f32 %v2874, 0.5
        %v2889 = vmul.f32 %v2876, 0.5
        %v2890 = vtanh.pop %v2880
        %v2891 = vtanh.pop %v2881
        %v2892 = vtanh.pop %v2882
        %v2893 = vtanh.pop %v2883
        %v2894 = vtanh.pop %v2884
        %v2895 = vtanh.pop %v2885
        %v2896 = vtanh.pop %v2886
        %v2897 = vtanh.pop %v2887
        %v2898 = vtanh.pop %v2888
        %v2899 = vtanh.pop %v2889
        %v2900 = vmul.f32 %v2880, %v2890
        %v2901 = vmul.f32 %v2881, %v2891
        %v2902 = vmul.f32 %v2882, %v2892
        %v2903 = vmul.f32 %v2883, %v2893
        %v2904 = vmul.f32 %v2884, %v2894
        %v2905 = vmul.f32 %v2885, %v2895
        %v2906 = vmul.f32 %v2886, %v2896
        %v2907 = vmul.f32 %v2887, %v2897
        %v2908 = vmul.f32 %v2888, %v2898
        %v2909 = vmul.f32 %v2889, %v2899
        %v2910 = vadd.f32 %v2880, %v2900
        %v2911 = vadd.f32 %v2881, %v2901
        %v2912 = vadd.f32 %v2882, %v2902
        %v2913 = vadd.f32 %v2883, %v2903
        %v2914 = vadd.f32 %v2884, %v2904
        %v2915 = vadd.f32 %v2885, %v2905
        %v2916 = vadd.f32 %v2886, %v2906
        %v2917 = vadd.f32 %v2887, %v2907
        %v2918 = vadd.f32 %v2888, %v2908
        %v2919 = vadd.f32 %v2889, %v2909
        %v2920 = vld [vmem:[%s1347] sm:$0xf]
        %v2921 = vld [vmem:[%s1347 + $0x4] sm:$0xf]
        %v2922 = vld [vmem:[%s1347 + $0x8] sm:$0xf]
        %v2923 = vld [vmem:[%s1347 + $0xc] sm:$0xf]
        %v2924 = vld [vmem:[%s1347 + $0x10] sm:$0xf]
        %v2925 = vpack.c.bf16 %v2912, %v2910
        %v2926 = vpack.c.bf16 %v2913, %v2911
        %v2927 = vpack.c.bf16 %v2916, %v2914
        %v2928 = vpack.c.bf16 %v2917, %v2915
        %v2929 = vpack.c.bf16 %v2918, %v2918
        %v2930 = vpack.c.bf16 %v2919, %v2919
        %v2931 = vld [vmem:[%s1359] sm:$0xff]
        %v2932 = vld [vmem:[%s1359 + $0x8] sm:$0xff]
        %v2933 = vld [vmem:[%s1359 + $0x10] sm:$0xff]
        %v2934 = vld [vmem:[%s1359 + $0x18] sm:$0xff]
        %v2935 = vld [vmem:[%s1359 + $0x20] sm:$0xff]
        %2937 = vset.pattern.permute.xlu0 0
        %2938 = vperm.xlu0 %2937, %v2931
        %v2939 = vpop.permute.xlu0 %2938
        %2942 = vset.pattern.permute.xlu0 0
        %2943 = vperm.xlu0 %2942, %v2932
        %v2944 = vpop.permute.xlu0 %2943
        %2947 = vset.pattern.permute.xlu0 0
        %2948 = vperm.xlu0 %2947, %v2933
        %v2949 = vpop.permute.xlu0 %2948
        %2952 = vset.pattern.permute.xlu0 0
        %2953 = vperm.xlu0 %2952, %v2934
        %v2954 = vpop.permute.xlu0 %2953
        %2957 = vset.pattern.permute.xlu0 0
        %2958 = vperm.xlu0 %2957, %v2935
        %v2959 = vpop.permute.xlu0 %2958
        %v2966 = vunpack.c.l.b16 %v2920
        %v2967 = vunpack.c.l.b16 %v2921
        %v2968 = vunpack.c.l.b16 %v2922
        %v2969 = vunpack.c.l.b16 %v2923
        %v2970 = vunpack.c.l.b16 %v2924
        %v2971 = vpack.c.b16 %v2967, %v2966
        %v2972 = vpack.c.b16 %v2969, %v2968
        %v2973 = vpack.c.b16 %v2970, %v2970
        %v2975 = vsel %vm541, %v2971, 0
        %v2978 = vsel %vm541, %v2972, 0
        %v2981 = vsel %vm541, %v2973, 0
        %v2984 = vsel %vm551, %v2929, 0
        %v2987 = vsel %vm551, %v2930, 0
        %2989 = vmatprep.subr.bf16.mxu0 0
        %2990 = vmatpush1.bf16.msra.mxu0 0
        %2991 = vmatprep.subr.bf16.mxu0 0
        %2992 = vmatpush1.bf16.msra.mxu0 0
        %2993 = vmatprep.subr.bf16.mxu0 0
        %2994 = vmatpush1.bf16.msra.mxu0 0
        %2995 = vmatprep.subr.bf16.mxu0 0
        %2996 = vmatpush1.bf16.msra.mxu0 0
        %2997 = vmatprep.subr.bf16.mxu0 0
        %2998 = vmatpush1.bf16.msra.mxu0 0
        %2999 = vmatprep.subr.bf16.mxu0 %v2987
        %3000 = vmatpush1.bf16.msra.mxu0 %v2984
        %3001 = vmatprep.subr.bf16.mxu0 %v2928
        %3002 = vmatpush1.bf16.msra.mxu0 %v2927
        %3003 = vmatprep.subr.bf16.mxu0 %v2926
        %3004 = vmatpush1.bf16.msra.mxu0 %v2925
        %3005 = vmatprep.subr.bf16.mxu0 0
        %3006 = vmatpush2.bf16.msra.mxu0 0
        %3007 = vmatprep.subr.bf16.mxu0 0
        %3008 = vmatpush2.bf16.msra.mxu0 0
        %3009 = vmatprep.subr.bf16.mxu0 0
        %3010 = vmatpush2.bf16.msra.mxu0 0
        %3011 = vmatprep.subr.bf16.mxu0 0
        %3012 = vmatpush2.bf16.msra.mxu0 0
        %3013 = vmatprep.subr.bf16.mxu0 0
        %3014 = vmatpush2.bf16.msra.mxu0 0
        %3015 = vmatprep.subr.bf16.mxu0 0
        %3016 = vmatpush2.bf16.msra.mxu0 0
        %3017 = vmatprep.subr.bf16.mxu0 0
        %3018 = vmatpush2.bf16.msra.mxu0 0
        %3019 = vmatprep.subr.bf16.mxu0 0
        %3020 = vmatpush2.bf16.msra.mxu0 0
        %3021 = vmatprep.mubr.bf16.mxu0 0
        %3022 = vmatmul.mubr.bf16.gmra.mxu0 %v2975
        %v3023 = vpop.f32.mrf.mxu0
        %v3024 = vadd.f32 %v2939, %v3023
        %v3025 = vpop.f32.mrf.mxu0
        %v3026 = vadd.f32 %v2939, %v3025
        %v3027 = vpop.f32.mrf.mxu0
        %v3028 = vadd.f32 %v2944, %v3027
        %v3029 = vpop.f32.mrf.mxu0
        %v3030 = vadd.f32 %v2944, %v3029
        %3031 = vmatprep.mubr.bf16.mxu0 0
        %3032 = vmatmul.mubr.bf16.gmra.mxu0 %v2978
        %v3033 = vpop.f32.mrf.mxu0
        %v3034 = vadd.f32 %v2949, %v3033
        %v3035 = vpop.f32.mrf.mxu0
        %v3036 = vadd.f32 %v2949, %v3035
        %v3037 = vpop.f32.mrf.mxu0
        %v3038 = vadd.f32 %v2954, %v3037
        %v3039 = vpop.f32.mrf.mxu0
        %v3040 = vadd.f32 %v2954, %v3039
        %3041 = vmatprep.mubr.bf16.mxu0 0
        %3042 = vmatmul.mubr.bf16.gmra.mxu0 %v2981
        %v3043 = vpop.f32.mrf.mxu0
        %v3044 = vadd.f32 %v2959, %v3043
        %v3045 = vpop.f32.mrf.mxu0
        %v3046 = vadd.f32 %v2959, %v3045
        %v3047 = vpop.f32.mrf.mxu0
        %v3048 = vpop.f32.mrf.mxu0
        %3049 = vdwg.mxu0
        %v3050 = vmul.f32 %v3024, 0.5
        %v3051 = vmul.f32 %v3026, 0.5
        %v3052 = vmul.f32 %v3028, 0.5
        %v3053 = vmul.f32 %v3030, 0.5
        %v3054 = vmul.f32 %v3034, 0.5
        %v3055 = vmul.f32 %v3036, 0.5
        %v3056 = vmul.f32 %v3038, 0.5
        %v3057 = vmul.f32 %v3040, 0.5
        %v3058 = vmul.f32 %v3044, 0.5
        %v3059 = vmul.f32 %v3046, 0.5
        %v3060 = vtanh.pop %v3050
        %v3061 = vtanh.pop %v3051
        %v3062 = vtanh.pop %v3052
        %v3063 = vtanh.pop %v3053
        %v3064 = vtanh.pop %v3054
        %v3065 = vtanh.pop %v3055
        %v3066 = vtanh.pop %v3056
        %v3067 = vtanh.pop %v3057
        %v3068 = vtanh.pop %v3058
        %v3069 = vtanh.pop %v3059
        %v3070 = vmul.f32 %v3050, %v3060
        %v3071 = vmul.f32 %v3051, %v3061
        %v3072 = vmul.f32 %v3052, %v3062
        %v3073 = vmul.f32 %v3053, %v3063
        %v3074 = vmul.f32 %v3054, %v3064
        %v3075 = vmul.f32 %v3055, %v3065
        %v3076 = vmul.f32 %v3056, %v3066
        %v3077 = vmul.f32 %v3057, %v3067
        %v3078 = vmul.f32 %v3058, %v3068
        %v3079 = vmul.f32 %v3059, %v3069
        %v3080 = vadd.f32 %v3050, %v3070
        %v3081 = vadd.f32 %v3051, %v3071
        %v3082 = vadd.f32 %v3052, %v3072
        %v3083 = vadd.f32 %v3053, %v3073
        %v3084 = vadd.f32 %v3054, %v3074
        %v3085 = vadd.f32 %v3055, %v3075
        %v3086 = vadd.f32 %v3056, %v3076
        %v3087 = vadd.f32 %v3057, %v3077
        %v3088 = vadd.f32 %v3058, %v3078
        %v3089 = vadd.f32 %v3059, %v3079
        %v3090 = vld [vmem:[%s1519] sm:$0xf]
        %v3091 = vld [vmem:[%s1519 + $0x4] sm:$0xf]
        %v3092 = vld [vmem:[%s1519 + $0x8] sm:$0xf]
        %v3093 = vld [vmem:[%s1519 + $0xc] sm:$0xf]
        %v3094 = vld [vmem:[%s1519 + $0x10] sm:$0xf]
        %v3095 = vpack.c.bf16 %v3082, %v3080
        %v3096 = vpack.c.bf16 %v3083, %v3081
        %v3097 = vpack.c.bf16 %v3086, %v3084
        %v3098 = vpack.c.bf16 %v3087, %v3085
        %v3099 = vpack.c.bf16 %v3088, %v3088
        %v3100 = vpack.c.bf16 %v3089, %v3089
        %v3101 = vld [vmem:[%s1531] sm:$0xff]
        %v3102 = vld [vmem:[%s1531 + $0x8] sm:$0xff]
        %v3103 = vld [vmem:[%s1531 + $0x10] sm:$0xff]
        %v3104 = vld [vmem:[%s1531 + $0x18] sm:$0xff]
        %v3105 = vld [vmem:[%s1531 + $0x20] sm:$0xff]
        %3107 = vset.pattern.permute.xlu0 0
        %3108 = vperm.xlu0 %3107, %v3101
        %v3109 = vpop.permute.xlu0 %3108
        %3112 = vset.pattern.permute.xlu0 0
        %3113 = vperm.xlu0 %3112, %v3102
        %v3114 = vpop.permute.xlu0 %3113
        %3117 = vset.pattern.permute.xlu0 0
        %3118 = vperm.xlu0 %3117, %v3103
        %v3119 = vpop.permute.xlu0 %3118
        %3122 = vset.pattern.permute.xlu0 0
        %3123 = vperm.xlu0 %3122, %v3104
        %v3124 = vpop.permute.xlu0 %3123
        %3127 = vset.pattern.permute.xlu0 0
        %3128 = vperm.xlu0 %3127, %v3105
        %v3129 = vpop.permute.xlu0 %3128
        %v3136 = vunpack.c.l.b16 %v3090
        %v3137 = vunpack.c.l.b16 %v3091
        %v3138 = vunpack.c.l.b16 %v3092
        %v3139 = vunpack.c.l.b16 %v3093
        %v3140 = vunpack.c.l.b16 %v3094
        %v3141 = vpack.c.b16 %v3137, %v3136
        %v3142 = vpack.c.b16 %v3139, %v3138
        %v3143 = vpack.c.b16 %v3140, %v3140
        %v3145 = vsel %vm541, %v3141, 0
        %v3148 = vsel %vm541, %v3142, 0
        %v3151 = vsel %vm541, %v3143, 0
        %v3154 = vsel %vm551, %v3099, 0
        %v3157 = vsel %vm551, %v3100, 0
        %3159 = vmatprep.subr.bf16.mxu0 0
        %3160 = vmatpush1.bf16.msra.mxu0 0
        %3161 = vmatprep.subr.bf16.mxu0 0
        %3162 = vmatpush1.bf16.msra.mxu0 0
        %3163 = vmatprep.subr.bf16.mxu0 0
        %3164 = vmatpush1.bf16.msra.mxu0 0
        %3165 = vmatprep.subr.bf16.mxu0 0
        %3166 = vmatpush1.bf16.msra.mxu0 0
        %3167 = vmatprep.subr.bf16.mxu0 0
        %3168 = vmatpush1.bf16.msra.mxu0 0
        %3169 = vmatprep.subr.bf16.mxu0 %v3157
        %3170 = vmatpush1.bf16.msra.mxu0 %v3154
        %3171 = vmatprep.subr.bf16.mxu0 %v3098
        %3172 = vmatpush1.bf16.msra.mxu0 %v3097
        %3173 = vmatprep.subr.bf16.mxu0 %v3096
        %3174 = vmatpush1.bf16.msra.mxu0 %v3095
        %3175 = vmatprep.subr.bf16.mxu0 0
        %3176 = vmatpush2.bf16.msra.mxu0 0
        %3177 = vmatprep.subr.bf16.mxu0 0
        %3178 = vmatpush2.bf16.msra.mxu0 0
        %3179 = vmatprep.subr.bf16.mxu0 0
        %3180 = vmatpush2.bf16.msra.mxu0 0
        %3181 = vmatprep.subr.bf16.mxu0 0
        %3182 = vmatpush2.bf16.msra.mxu0 0
        %3183 = vmatprep.subr.bf16.mxu0 0
        %3184 = vmatpush2.bf16.msra.mxu0 0
        %3185 = vmatprep.subr.bf16.mxu0 0
        %3186 = vmatpush2.bf16.msra.mxu0 0
        %3187 = vmatprep.subr.bf16.mxu0 0
        %3188 = vmatpush2.bf16.msra.mxu0 0
        %3189 = vmatprep.subr.bf16.mxu0 0
        %3190 = vmatpush2.bf16.msra.mxu0 0
        %3191 = vmatprep.mubr.bf16.mxu0 0
        %3192 = vmatmul.mubr.bf16.gmra.mxu0 %v3145
        %v3193 = vpop.f32.mrf.mxu0
        %v3194 = vadd.f32 %v3109, %v3193
        %v3195 = vpop.f32.mrf.mxu0
        %v3196 = vadd.f32 %v3109, %v3195
        %v3197 = vpop.f32.mrf.mxu0
        %v3198 = vadd.f32 %v3114, %v3197
        %v3199 = vpop.f32.mrf.mxu0
        %v3200 = vadd.f32 %v3114, %v3199
        %3201 = vmatprep.mubr.bf16.mxu0 0
        %3202 = vmatmul.mubr.bf16.gmra.mxu0 %v3148
        %v3203 = vpop.f32.mrf.mxu0
        %v3204 = vadd.f32 %v3119, %v3203
        %v3205 = vpop.f32.mrf.mxu0
        %v3206 = vadd.f32 %v3119, %v3205
        %v3207 = vpop.f32.mrf.mxu0
        %v3208 = vadd.f32 %v3124, %v3207
        %v3209 = vpop.f32.mrf.mxu0
        %v3210 = vadd.f32 %v3124, %v3209
        %3211 = vmatprep.mubr.bf16.mxu0 0
        %3212 = vmatmul.mubr.bf16.gmra.mxu0 %v3151
        %v3213 = vpop.f32.mrf.mxu0
        %v3214 = vadd.f32 %v3129, %v3213
        %v3215 = vpop.f32.mrf.mxu0
        %v3216 = vadd.f32 %v3129, %v3215
        %v3217 = vpop.f32.mrf.mxu0
        %v3218 = vpop.f32.mrf.mxu0
        %3219 = vdwg.mxu0
        %v3220 = vmul.f32 %v3194, 0.5
        %v3221 = vmul.f32 %v3196, 0.5
        %v3222 = vmul.f32 %v3198, 0.5
        %v3223 = vmul.f32 %v3200, 0.5
        %v3224 = vmul.f32 %v3204, 0.5
        %v3225 = vmul.f32 %v3206, 0.5
        %v3226 = vmul.f32 %v3208, 0.5
        %v3227 = vmul.f32 %v3210, 0.5
        %v3228 = vmul.f32 %v3214, 0.5
        %v3229 = vmul.f32 %v3216, 0.5
        %v3230 = vtanh.pop %v3220
        %v3231 = vtanh.pop %v3221
        %v3232 = vtanh.pop %v3222
        %v3233 = vtanh.pop %v3223
        %v3234 = vtanh.pop %v3224
        %v3235 = vtanh.pop %v3225
        %v3236 = vtanh.pop %v3226
        %v3237 = vtanh.pop %v3227
        %v3238 = vtanh.pop %v3228
        %v3239 = vtanh.pop %v3229
        %v3240 = vmul.f32 %v3220, %v3230
        %v3241 = vmul.f32 %v3221, %v3231
        %v3242 = vmul.f32 %v3222, %v3232
        %v3243 = vmul.f32 %v3223, %v3233
        %v3244 = vmul.f32 %v3224, %v3234
        %v3245 = vmul.f32 %v3225, %v3235
        %v3246 = vmul.f32 %v3226, %v3236
        %v3247 = vmul.f32 %v3227, %v3237
        %v3248 = vmul.f32 %v3228, %v3238
        %v3249 = vmul.f32 %v3229, %v3239
        %v3250 = vadd.f32 %v3220, %v3240
        %v3251 = vadd.f32 %v3221, %v3241
        %v3252 = vadd.f32 %v3222, %v3242
        %v3253 = vadd.f32 %v3223, %v3243
        %v3254 = vadd.f32 %v3224, %v3244
        %v3255 = vadd.f32 %v3225, %v3245
        %v3256 = vadd.f32 %v3226, %v3246
        %v3257 = vadd.f32 %v3227, %v3247
        %v3258 = vadd.f32 %v3228, %v3248
        %v3259 = vadd.f32 %v3229, %v3249
        %v3260 = vld [vmem:[%s1691] sm:$0xf]
        %v3261 = vld [vmem:[%s1691 + $0x4] sm:$0xf]
        %v3262 = vld [vmem:[%s1691 + $0x8] sm:$0xf]
        %v3263 = vld [vmem:[%s1691 + $0xc] sm:$0xf]
        %v3264 = vld [vmem:[%s1691 + $0x10] sm:$0xf]
        %v3265 = vpack.c.bf16 %v3252, %v3250
        %v3266 = vpack.c.bf16 %v3253, %v3251
        %v3267 = vpack.c.bf16 %v3256, %v3254
        %v3268 = vpack.c.bf16 %v3257, %v3255
        %v3269 = vpack.c.bf16 %v3258, %v3258
        %v3270 = vpack.c.bf16 %v3259, %v3259
        %v3271 = vld [vmem:[%s1703] sm:$0xff]
        %v3272 = vld [vmem:[%s1703 + $0x8] sm:$0xff]
        %v3273 = vld [vmem:[%s1703 + $0x10] sm:$0xff]
        %v3274 = vld [vmem:[%s1703 + $0x18] sm:$0xff]
        %v3275 = vld [vmem:[%s1703 + $0x20] sm:$0xff]
        %3277 = vset.pattern.permute.xlu0 0
        %3278 = vperm.xlu0 %3277, %v3271
        %v3279 = vpop.permute.xlu0 %3278
        %3282 = vset.pattern.permute.xlu0 0
        %3283 = vperm.xlu0 %3282, %v3272
        %v3284 = vpop.permute.xlu0 %3283
        %3287 = vset.pattern.permute.xlu0 0
        %3288 = vperm.xlu0 %3287, %v3273
        %v3289 = vpop.permute.xlu0 %3288
        %3292 = vset.pattern.permute.xlu0 0
        %3293 = vperm.xlu0 %3292, %v3274
        %v3294 = vpop.permute.xlu0 %3293
        %3297 = vset.pattern.permute.xlu0 0
        %3298 = vperm.xlu0 %3297, %v3275
        %v3299 = vpop.permute.xlu0 %3298
        %v3306 = vunpack.c.l.b16 %v3260
        %v3307 = vunpack.c.l.b16 %v3261
        %v3308 = vunpack.c.l.b16 %v3262
        %v3309 = vunpack.c.l.b16 %v3263
        %v3310 = vunpack.c.l.b16 %v3264
        %v3311 = vpack.c.b16 %v3307, %v3306
        %v3312 = vpack.c.b16 %v3309, %v3308
        %v3313 = vpack.c.b16 %v3310, %v3310
        %v3315 = vsel %vm541, %v3311, 0
        %v3318 = vsel %vm541, %v3312, 0
        %v3321 = vsel %vm541, %v3313, 0
        %v3324 = vsel %vm551, %v3269, 0
        %v3327 = vsel %vm551, %v3270, 0
        %3329 = vmatprep.subr.bf16.mxu0 0
        %3330 = vmatpush1.bf16.msra.mxu0 0
        %3331 = vmatprep.subr.bf16.mxu0 0
        %3332 = vmatpush1.bf16.msra.mxu0 0
        %3333 = vmatprep.subr.bf16.mxu0 0
        %3334 = vmatpush1.bf16.msra.mxu0 0
        %3335 = vmatprep.subr.bf16.mxu0 0
        %3336 = vmatpush1.bf16.msra.mxu0 0
        %3337 = vmatprep.subr.bf16.mxu0 0
        %3338 = vmatpush1.bf16.msra.mxu0 0
        %3339 = vmatprep.subr.bf16.mxu0 %v3327
        %3340 = vmatpush1.bf16.msra.mxu0 %v3324
        %3341 = vmatprep.subr.bf16.mxu0 %v3268
        %3342 = vmatpush1.bf16.msra.mxu0 %v3267
        %3343 = vmatprep.subr.bf16.mxu0 %v3266
        %3344 = vmatpush1.bf16.msra.mxu0 %v3265
        %3345 = vmatprep.subr.bf16.mxu0 0
        %3346 = vmatpush2.bf16.msra.mxu0 0
        %3347 = vmatprep.subr.bf16.mxu0 0
        %3348 = vmatpush2.bf16.msra.mxu0 0
        %3349 = vmatprep.subr.bf16.mxu0 0
        %3350 = vmatpush2.bf16.msra.mxu0 0
        %3351 = vmatprep.subr.bf16.mxu0 0
        %3352 = vmatpush2.bf16.msra.mxu0 0
        %3353 = vmatprep.subr.bf16.mxu0 0
        %3354 = vmatpush2.bf16.msra.mxu0 0
        %3355 = vmatprep.subr.bf16.mxu0 0
        %3356 = vmatpush2.bf16.msra.mxu0 0
        %3357 = vmatprep.subr.bf16.mxu0 0
        %3358 = vmatpush2.bf16.msra.mxu0 0
        %3359 = vmatprep.subr.bf16.mxu0 0
        %3360 = vmatpush2.bf16.msra.mxu0 0
        %3361 = vmatprep.mubr.bf16.mxu0 0
        %3362 = vmatmul.mubr.bf16.gmra.mxu0 %v3315
        %v3363 = vpop.f32.mrf.mxu0
        %v3364 = vadd.f32 %v3279, %v3363
        %v3365 = vpop.f32.mrf.mxu0
        %v3366 = vadd.f32 %v3279, %v3365
        %v3367 = vpop.f32.mrf.mxu0
        %v3368 = vadd.f32 %v3284, %v3367
        %v3369 = vpop.f32.mrf.mxu0
        %v3370 = vadd.f32 %v3284, %v3369
        %3371 = vmatprep.mubr.bf16.mxu0 0
        %3372 = vmatmul.mubr.bf16.gmra.mxu0 %v3318
        %v3373 = vpop.f32.mrf.mxu0
        %v3374 = vadd.f32 %v3289, %v3373
        %v3375 = vpop.f32.mrf.mxu0
        %v3376 = vadd.f32 %v3289, %v3375
        %v3377 = vpop.f32.mrf.mxu0
        %v3378 = vadd.f32 %v3294, %v3377
        %v3379 = vpop.f32.mrf.mxu0
        %v3380 = vadd.f32 %v3294, %v3379
        %3381 = vmatprep.mubr.bf16.mxu0 0
        %3382 = vmatmul.mubr.bf16.gmra.mxu0 %v3321
        %v3383 = vpop.f32.mrf.mxu0
        %v3384 = vadd.f32 %v3299, %v3383
        %v3385 = vpop.f32.mrf.mxu0
        %v3386 = vadd.f32 %v3299, %v3385
        %v3387 = vpop.f32.mrf.mxu0
        %v3388 = vpop.f32.mrf.mxu0
        %3389 = vdwg.mxu0
        %v3390 = vmul.f32 %v3364, 0.5
        %v3391 = vmul.f32 %v3366, 0.5
        %v3392 = vmul.f32 %v3368, 0.5
        %v3393 = vmul.f32 %v3370, 0.5
        %v3394 = vmul.f32 %v3374, 0.5
        %v3395 = vmul.f32 %v3376, 0.5
        %v3396 = vmul.f32 %v3378, 0.5
        %v3397 = vmul.f32 %v3380, 0.5
        %v3398 = vmul.f32 %v3384, 0.5
        %v3399 = vmul.f32 %v3386, 0.5
        %v3400 = vtanh.pop %v3390
        %v3401 = vtanh.pop %v3391
        %v3402 = vtanh.pop %v3392
        %v3403 = vtanh.pop %v3393
        %v3404 = vtanh.pop %v3394
        %v3405 = vtanh.pop %v3395
        %v3406 = vtanh.pop %v3396
        %v3407 = vtanh.pop %v3397
        %v3408 = vtanh.pop %v3398
        %v3409 = vtanh.pop %v3399
        %v3410 = vmul.f32 %v3390, %v3400
        %v3411 = vmul.f32 %v3391, %v3401
        %v3412 = vmul.f32 %v3392, %v3402
        %v3413 = vmul.f32 %v3393, %v3403
        %v3414 = vmul.f32 %v3394, %v3404
        %v3415 = vmul.f32 %v3395, %v3405
        %v3416 = vmul.f32 %v3396, %v3406
        %v3417 = vmul.f32 %v3397, %v3407
        %v3418 = vmul.f32 %v3398, %v3408
        %v3419 = vmul.f32 %v3399, %v3409
        %v3420 = vadd.f32 %v3390, %v3410
        %v3421 = vadd.f32 %v3391, %v3411
        %v3422 = vadd.f32 %v3392, %v3412
        %v3423 = vadd.f32 %v3393, %v3413
        %v3424 = vadd.f32 %v3394, %v3414
        %v3425 = vadd.f32 %v3395, %v3415
        %v3426 = vadd.f32 %v3396, %v3416
        %v3427 = vadd.f32 %v3397, %v3417
        %v3428 = vadd.f32 %v3398, %v3418
        %v3429 = vadd.f32 %v3399, %v3419
        %v3430 = vmul.f32 %v1866, %v3420
        %v3431 = vmul.f32 %v1866, %v3421
        %v3432 = vmul.f32 %v1871, %v3422
        %v3433 = vmul.f32 %v1871, %v3423
        %v3434 = vmul.f32 %v1876, %v3424
        %v3435 = vmul.f32 %v1876, %v3425
        %v3436 = vmul.f32 %v1881, %v3426
        %v3437 = vmul.f32 %v1881, %v3427
        %v3438 = vmul.f32 %v1886, %v3428
        %v3439 = vmul.f32 %v1886, %v3429
        %v3440 = vadd.f32 %v3430, %v3432
        %v3441 = vadd.f32 %v3440, %v3434
        %v3442 = vadd.f32 %v3441, %v3436
        %v3443 = vadd.f32 %v3442, %v3438
        %v3444 = vrot.slane %v3443, 4
        %v3445 = vadd.f32 %v3443, %v3444
        %v3446 = vrot.slane %v3445, 2
        %v3447 = vadd.f32 %v3445, %v3446
        %v3448 = vrot.slane %v3447, 1
        %v3449 = vadd.f32 %v3447, %v3448
        %v3450 = vadd.f32 %v3431, %v3433
        %v3451 = vadd.f32 %v3450, %v3435
        %v3452 = vadd.f32 %v3451, %v3437
        %v3453 = vadd.f32 %v3452, %v3439
        %v3454 = vrot.slane %v3453, 4
        %v3455 = vadd.f32 %v3453, %v3454
        %v3456 = vrot.slane %v3455, 2
        %v3457 = vadd.f32 %v3455, %v3456
        %v3458 = vrot.slane %v3457, 1
        %v3459 = vadd.f32 %v3457, %v3458
        %v3460 = vadd.f32 %v3449, %v1926
        %v3461 = vadd.f32 %v3459, %v1926
        %v3464 = vcombine.low %v3460, %v3461
        %v3466 = vunpack.c.l.s4 1966171168
        %v3467 = vunpack.c.0.s8 %v3466
        %v3468 = vlaneseq
        %v3469 = vshrl.u32 %v3468, 7
        %v3470 = vsub.s32 %v3467, %v3469
        %v3471 = vrot.slane %v3464, %v3470
        %v3473 = vunpack.c.l.s4 1966171168
        %v3474 = vunpack.c.0.s8 %v3473
        %v3475 = vlaneseq
        %v3476 = vshrl.u32 %v3475, 7
        %v3477 = vsub.s32 %v3474, %v3476
        %v3478 = vrot.slane %v3471, %v3477
        %3480 = vst.msk [vmem:[%s274 + $0x2] sm:$0x3] %vm1950, %v3478
        %v3481 = vld [vmem:[%s279 + $0x8] sm:$0xf]
        %v3483 = vlaneseq
        %v3484 = vshrl.u32 %v3483, 7
        %v3485 = vsub.s32 0, %v3484
        %v3486 = vrot.slane %v3481, %v3485
        %v3487 = vlaneseq
        %v3488 = vshrl.u32 %v3487, 7
        %v3489 = vsub.s32 2, %v3488
        %v3490 = vrot.slane %v3481, %v3489
        %v3493 = vlaneseq
        %v3494 = vshrl.u32 %v3493, 7
        %v3495 = vsub.s32 0, %v3494
        %v3496 = vrot.slane %v3486, %v3495
        %v3497 = vlaneseq
        %v3498 = vshrl.u32 %v3497, 7
        %v3499 = vsub.s32 0, %v3498
        %v3500 = vrot.slane %v3490, %v3499
        %v3501 = vmul.f32 %v303, %v3496
        %v3502 = vmul.f32 %v303, %v3500
        %v3503 = vmul.f32 %v308, %v3496
        %v3504 = vmul.f32 %v308, %v3500
        %v3505 = vmul.f32 %v313, %v3496
        %v3506 = vmul.f32 %v313, %v3500
        %v3507 = vmul.f32 %v318, %v3496
        %v3508 = vmul.f32 %v318, %v3500
        %v3509 = vmul.f32 %v323, %v3496
        %v3510 = vmul.f32 %v323, %v3500
        %v3511 = vlaneseq
        %v3512 = vshrl.u32 %v3511, 7
        %v3513 = vsub.s32 1, %v3512
        %v3514 = vrot.slane %v3481, %v3513
        %v3515 = vlaneseq
        %v3516 = vshrl.u32 %v3515, 7
        %v3517 = vsub.s32 3, %v3516
        %v3518 = vrot.slane %v3481, %v3517
        %v3521 = vlaneseq
        %v3522 = vshrl.u32 %v3521, 7
        %v3523 = vsub.s32 1, %v3522
        %v3524 = vrot.slane %v3514, %v3523
        %v3525 = vlaneseq
        %v3526 = vshrl.u32 %v3525, 7
        %v3527 = vsub.s32 1, %v3526
        %v3528 = vrot.slane %v3518, %v3527
        %v3529 = vmul.f32 %v356, %v3524
        %v3530 = vmul.f32 %v356, %v3528
        %v3531 = vmul.f32 %v360, %v3524
        %v3532 = vmul.f32 %v360, %v3528
        %v3533 = vmul.f32 %v364, %v3524
        %v3534 = vmul.f32 %v364, %v3528
        %v3535 = vmul.f32 %v368, %v3524
        %v3536 = vmul.f32 %v368, %v3528
        %v3537 = vmul.f32 %v372, %v3524
        %v3538 = vmul.f32 %v372, %v3528
        %v3539 = vadd.f32 %v3501, %v3529
        %v3540 = vadd.f32 %v3502, %v3530
        %v3541 = vadd.f32 %v3503, %v3531
        %v3542 = vadd.f32 %v3504, %v3532
        %v3543 = vadd.f32 %v3505, %v3533
        %v3544 = vadd.f32 %v3506, %v3534
        %v3545 = vadd.f32 %v3507, %v3535
        %v3546 = vadd.f32 %v3508, %v3536
        %v3547 = vadd.f32 %v3509, %v3537
        %v3548 = vadd.f32 %v3510, %v3538
        %v3549 = vadd.f32 %v3539, %v415
        %v3550 = vadd.f32 %v3540, %v415
        %v3551 = vadd.f32 %v3541, %v420
        %v3552 = vadd.f32 %v3542, %v420
        %v3553 = vadd.f32 %v3543, %v425
        %v3554 = vadd.f32 %v3544, %v425
        %v3555 = vadd.f32 %v3545, %v430
        %v3556 = vadd.f32 %v3546, %v430
        %v3557 = vadd.f32 %v3547, %v435
        %v3558 = vadd.f32 %v3548, %v435
        %v3559 = vmul.f32 %v3549, 0.5
        %v3560 = vmul.f32 %v3550, 0.5
        %v3561 = vmul.f32 %v3551, 0.5
        %v3562 = vmul.f32 %v3552, 0.5
        %v3563 = vmul.f32 %v3553, 0.5
        %v3564 = vmul.f32 %v3554, 0.5
        %v3565 = vmul.f32 %v3555, 0.5
        %v3566 = vmul.f32 %v3556, 0.5
        %v3567 = vmul.f32 %v3557, 0.5
        %v3568 = vmul.f32 %v3558, 0.5
        %v3569 = vtanh.pop %v3559
        %v3570 = vtanh.pop %v3560
        %v3571 = vtanh.pop %v3561
        %v3572 = vtanh.pop %v3562
        %v3573 = vtanh.pop %v3563
        %v3574 = vtanh.pop %v3564
        %v3575 = vtanh.pop %v3565
        %v3576 = vtanh.pop %v3566
        %v3577 = vtanh.pop %v3567
        %v3578 = vtanh.pop %v3568
        %v3579 = vmul.f32 %v3559, %v3569
        %v3580 = vmul.f32 %v3560, %v3570
        %v3581 = vmul.f32 %v3561, %v3571
        %v3582 = vmul.f32 %v3562, %v3572
        %v3583 = vmul.f32 %v3563, %v3573
        %v3584 = vmul.f32 %v3564, %v3574
        %v3585 = vmul.f32 %v3565, %v3575
        %v3586 = vmul.f32 %v3566, %v3576
        %v3587 = vmul.f32 %v3567, %v3577
        %v3588 = vmul.f32 %v3568, %v3578
        %v3589 = vadd.f32 %v3559, %v3579
        %v3590 = vadd.f32 %v3560, %v3580
        %v3591 = vadd.f32 %v3561, %v3581
        %v3592 = vadd.f32 %v3562, %v3582
        %v3593 = vadd.f32 %v3563, %v3583
        %v3594 = vadd.f32 %v3564, %v3584
        %v3595 = vadd.f32 %v3565, %v3585
        %v3596 = vadd.f32 %v3566, %v3586
        %v3597 = vadd.f32 %v3567, %v3587
        %v3598 = vadd.f32 %v3568, %v3588
        %v3599 = vld [vmem:[%s3] sm:$0xf]
        %v3600 = vld [vmem:[%s3 + $0x4] sm:$0xf]
        %v3601 = vld [vmem:[%s3 + $0x8] sm:$0xf]
        %v3602 = vld [vmem:[%s3 + $0xc] sm:$0xf]
        %v3603 = vld [vmem:[%s3 + $0x10] sm:$0xf]
        %v3604 = vpack.c.bf16 %v3591, %v3589
        %v3605 = vpack.c.bf16 %v3592, %v3590
        %v3606 = vpack.c.bf16 %v3595, %v3593
        %v3607 = vpack.c.bf16 %v3596, %v3594
        %v3608 = vpack.c.bf16 %v3597, %v3597
        %v3609 = vpack.c.bf16 %v3598, %v3598
        %v3610 = vld [vmem:[%s4] sm:$0xff]
        %v3611 = vld [vmem:[%s4 + $0x8] sm:$0xff]
        %v3612 = vld [vmem:[%s4 + $0x10] sm:$0xff]
        %v3613 = vld [vmem:[%s4 + $0x18] sm:$0xff]
        %v3614 = vld [vmem:[%s4 + $0x20] sm:$0xff]
        %3616 = vset.pattern.permute.xlu0 0
        %3617 = vperm.xlu0 %3616, %v3610
        %v3618 = vpop.permute.xlu0 %3617
        %3621 = vset.pattern.permute.xlu0 0
        %3622 = vperm.xlu0 %3621, %v3611
        %v3623 = vpop.permute.xlu0 %3622
        %3626 = vset.pattern.permute.xlu0 0
        %3627 = vperm.xlu0 %3626, %v3612
        %v3628 = vpop.permute.xlu0 %3627
        %3631 = vset.pattern.permute.xlu0 0
        %3632 = vperm.xlu0 %3631, %v3613
        %v3633 = vpop.permute.xlu0 %3632
        %3636 = vset.pattern.permute.xlu0 0
        %3637 = vperm.xlu0 %3636, %v3614
        %v3638 = vpop.permute.xlu0 %3637
        %v3645 = vunpack.c.l.b16 %v3599
        %v3646 = vunpack.c.l.b16 %v3600
        %v3647 = vunpack.c.l.b16 %v3601
        %v3648 = vunpack.c.l.b16 %v3602
        %v3649 = vunpack.c.l.b16 %v3603
        %v3650 = vpack.c.b16 %v3646, %v3645
        %v3651 = vpack.c.b16 %v3648, %v3647
        %v3652 = vpack.c.b16 %v3649, %v3649
        %v3654 = vsel %vm541, %v3650, 0
        %v3657 = vsel %vm541, %v3651, 0
        %v3660 = vsel %vm541, %v3652, 0
        %v3663 = vsel %vm551, %v3608, 0
        %v3666 = vsel %vm551, %v3609, 0
        %3668 = vmatprep.subr.bf16.mxu0 0
        %3669 = vmatpush1.bf16.msra.mxu0 0
        %3670 = vmatprep.subr.bf16.mxu0 0
        %3671 = vmatpush1.bf16.msra.mxu0 0
        %3672 = vmatprep.subr.bf16.mxu0 0
        %3673 = vmatpush1.bf16.msra.mxu0 0
        %3674 = vmatprep.subr.bf16.mxu0 0
        %3675 = vmatpush1.bf16.msra.mxu0 0
        %3676 = vmatprep.subr.bf16.mxu0 0
        %3677 = vmatpush1.bf16.msra.mxu0 0
        %3678 = vmatprep.subr.bf16.mxu0 %v3666
        %3679 = vmatpush1.bf16.msra.mxu0 %v3663
        %3680 = vmatprep.subr.bf16.mxu0 %v3607
        %3681 = vmatpush1.bf16.msra.mxu0 %v3606
        %3682 = vmatprep.subr.bf16.mxu0 %v3605
        %3683 = vmatpush1.bf16.msra.mxu0 %v3604
        %3684 = vmatprep.subr.bf16.mxu0 0
        %3685 = vmatpush2.bf16.msra.mxu0 0
        %3686 = vmatprep.subr.bf16.mxu0 0
        %3687 = vmatpush2.bf16.msra.mxu0 0
        %3688 = vmatprep.subr.bf16.mxu0 0
        %3689 = vmatpush2.bf16.msra.mxu0 0
        %3690 = vmatprep.subr.bf16.mxu0 0
        %3691 = vmatpush2.bf16.msra.mxu0 0
        %3692 = vmatprep.subr.bf16.mxu0 0
        %3693 = vmatpush2.bf16.msra.mxu0 0
        %3694 = vmatprep.subr.bf16.mxu0 0
        %3695 = vmatpush2.bf16.msra.mxu0 0
        %3696 = vmatprep.subr.bf16.mxu0 0
        %3697 = vmatpush2.bf16.msra.mxu0 0
        %3698 = vmatprep.subr.bf16.mxu0 0
        %3699 = vmatpush2.bf16.msra.mxu0 0
        %3700 = vmatprep.mubr.bf16.mxu0 0
        %3701 = vmatmul.mubr.bf16.gmra.mxu0 %v3654
        %v3702 = vpop.f32.mrf.mxu0
        %v3703 = vadd.f32 %v3618, %v3702
        %v3704 = vpop.f32.mrf.mxu0
        %v3705 = vadd.f32 %v3618, %v3704
        %v3706 = vpop.f32.mrf.mxu0
        %v3707 = vadd.f32 %v3623, %v3706
        %v3708 = vpop.f32.mrf.mxu0
        %v3709 = vadd.f32 %v3623, %v3708
        %3710 = vmatprep.mubr.bf16.mxu0 0
        %3711 = vmatmul.mubr.bf16.gmra.mxu0 %v3657
        %v3712 = vpop.f32.mrf.mxu0
        %v3713 = vadd.f32 %v3628, %v3712
        %v3714 = vpop.f32.mrf.mxu0
        %v3715 = vadd.f32 %v3628, %v3714
        %v3716 = vpop.f32.mrf.mxu0
        %v3717 = vadd.f32 %v3633, %v3716
        %v3718 = vpop.f32.mrf.mxu0
        %v3719 = vadd.f32 %v3633, %v3718
        %3720 = vmatprep.mubr.bf16.mxu0 0
        %3721 = vmatmul.mubr.bf16.gmra.mxu0 %v3660
        %v3722 = vpop.f32.mrf.mxu0
        %v3723 = vadd.f32 %v3638, %v3722
        %v3724 = vpop.f32.mrf.mxu0
        %v3725 = vadd.f32 %v3638, %v3724
        %v3726 = vpop.f32.mrf.mxu0
        %v3727 = vpop.f32.mrf.mxu0
        %3728 = vdwg.mxu0
        %v3729 = vmul.f32 %v3703, 0.5
        %v3730 = vmul.f32 %v3705, 0.5
        %v3731 = vmul.f32 %v3707, 0.5
        %v3732 = vmul.f32 %v3709, 0.5
        %v3733 = vmul.f32 %v3713, 0.5
        %v3734 = vmul.f32 %v3715, 0.5
        %v3735 = vmul.f32 %v3717, 0.5
        %v3736 = vmul.f32 %v3719, 0.5
        %v3737 = vmul.f32 %v3723, 0.5
        %v3738 = vmul.f32 %v3725, 0.5
        %v3739 = vtanh.pop %v3729
        %v3740 = vtanh.pop %v3730
        %v3741 = vtanh.pop %v3731
        %v3742 = vtanh.pop %v3732
        %v3743 = vtanh.pop %v3733
        %v3744 = vtanh.pop %v3734
        %v3745 = vtanh.pop %v3735
        %v3746 = vtanh.pop %v3736
        %v3747 = vtanh.pop %v3737
        %v3748 = vtanh.pop %v3738
        %v3749 = vmul.f32 %v3729, %v3739
        %v3750 = vmul.f32 %v3730, %v3740
        %v3751 = vmul.f32 %v3731, %v3741
        %v3752 = vmul.f32 %v3732, %v3742
        %v3753 = vmul.f32 %v3733, %v3743
        %v3754 = vmul.f32 %v3734, %v3744
        %v3755 = vmul.f32 %v3735, %v3745
        %v3756 = vmul.f32 %v3736, %v3746
        %v3757 = vmul.f32 %v3737, %v3747
        %v3758 = vmul.f32 %v3738, %v3748
        %v3759 = vadd.f32 %v3729, %v3749
        %v3760 = vadd.f32 %v3730, %v3750
        %v3761 = vadd.f32 %v3731, %v3751
        %v3762 = vadd.f32 %v3732, %v3752
        %v3763 = vadd.f32 %v3733, %v3753
        %v3764 = vadd.f32 %v3734, %v3754
        %v3765 = vadd.f32 %v3735, %v3755
        %v3766 = vadd.f32 %v3736, %v3756
        %v3767 = vadd.f32 %v3737, %v3757
        %v3768 = vadd.f32 %v3738, %v3758
        %v3769 = vld [vmem:[%s659] sm:$0xf]
        %v3770 = vld [vmem:[%s659 + $0x4] sm:$0xf]
        %v3771 = vld [vmem:[%s659 + $0x8] sm:$0xf]
        %v3772 = vld [vmem:[%s659 + $0xc] sm:$0xf]
        %v3773 = vld [vmem:[%s659 + $0x10] sm:$0xf]
        %v3774 = vpack.c.bf16 %v3761, %v3759
        %v3775 = vpack.c.bf16 %v3762, %v3760
        %v3776 = vpack.c.bf16 %v3765, %v3763
        %v3777 = vpack.c.bf16 %v3766, %v3764
        %v3778 = vpack.c.bf16 %v3767, %v3767
        %v3779 = vpack.c.bf16 %v3768, %v3768
        %v3780 = vld [vmem:[%s671] sm:$0xff]
        %v3781 = vld [vmem:[%s671 + $0x8] sm:$0xff]
        %v3782 = vld [vmem:[%s671 + $0x10] sm:$0xff]
        %v3783 = vld [vmem:[%s671 + $0x18] sm:$0xff]
        %v3784 = vld [vmem:[%s671 + $0x20] sm:$0xff]
        %3786 = vset.pattern.permute.xlu0 0
        %3787 = vperm.xlu0 %3786, %v3780
        %v3788 = vpop.permute.xlu0 %3787
        %3791 = vset.pattern.permute.xlu0 0
        %3792 = vperm.xlu0 %3791, %v3781
        %v3793 = vpop.permute.xlu0 %3792
        %3796 = vset.pattern.permute.xlu0 0
        %3797 = vperm.xlu0 %3796, %v3782
        %v3798 = vpop.permute.xlu0 %3797
        %3801 = vset.pattern.permute.xlu0 0
        %3802 = vperm.xlu0 %3801, %v3783
        %v3803 = vpop.permute.xlu0 %3802
        %3806 = vset.pattern.permute.xlu0 0
        %3807 = vperm.xlu0 %3806, %v3784
        %v3808 = vpop.permute.xlu0 %3807
        %v3815 = vunpack.c.l.b16 %v3769
        %v3816 = vunpack.c.l.b16 %v3770
        %v3817 = vunpack.c.l.b16 %v3771
        %v3818 = vunpack.c.l.b16 %v3772
        %v3819 = vunpack.c.l.b16 %v3773
        %v3820 = vpack.c.b16 %v3816, %v3815
        %v3821 = vpack.c.b16 %v3818, %v3817
        %v3822 = vpack.c.b16 %v3819, %v3819
        %v3824 = vsel %vm541, %v3820, 0
        %v3827 = vsel %vm541, %v3821, 0
        %v3830 = vsel %vm541, %v3822, 0
        %v3833 = vsel %vm551, %v3778, 0
        %v3836 = vsel %vm551, %v3779, 0
        %3838 = vmatprep.subr.bf16.mxu0 0
        %3839 = vmatpush1.bf16.msra.mxu0 0
        %3840 = vmatprep.subr.bf16.mxu0 0
        %3841 = vmatpush1.bf16.msra.mxu0 0
        %3842 = vmatprep.subr.bf16.mxu0 0
        %3843 = vmatpush1.bf16.msra.mxu0 0
        %3844 = vmatprep.subr.bf16.mxu0 0
        %3845 = vmatpush1.bf16.msra.mxu0 0
        %3846 = vmatprep.subr.bf16.mxu0 0
        %3847 = vmatpush1.bf16.msra.mxu0 0
        %3848 = vmatprep.subr.bf16.mxu0 %v3836
        %3849 = vmatpush1.bf16.msra.mxu0 %v3833
        %3850 = vmatprep.subr.bf16.mxu0 %v3777
        %3851 = vmatpush1.bf16.msra.mxu0 %v3776
        %3852 = vmatprep.subr.bf16.mxu0 %v3775
        %3853 = vmatpush1.bf16.msra.mxu0 %v3774
        %3854 = vmatprep.subr.bf16.mxu0 0
        %3855 = vmatpush2.bf16.msra.mxu0 0
        %3856 = vmatprep.subr.bf16.mxu0 0
        %3857 = vmatpush2.bf16.msra.mxu0 0
        %3858 = vmatprep.subr.bf16.mxu0 0
        %3859 = vmatpush2.bf16.msra.mxu0 0
        %3860 = vmatprep.subr.bf16.mxu0 0
        %3861 = vmatpush2.bf16.msra.mxu0 0
        %3862 = vmatprep.subr.bf16.mxu0 0
        %3863 = vmatpush2.bf16.msra.mxu0 0
        %3864 = vmatprep.subr.bf16.mxu0 0
        %3865 = vmatpush2.bf16.msra.mxu0 0
        %3866 = vmatprep.subr.bf16.mxu0 0
        %3867 = vmatpush2.bf16.msra.mxu0 0
        %3868 = vmatprep.subr.bf16.mxu0 0
        %3869 = vmatpush2.bf16.msra.mxu0 0
        %3870 = vmatprep.mubr.bf16.mxu0 0
        %3871 = vmatmul.mubr.bf16.gmra.mxu0 %v3824
        %v3872 = vpop.f32.mrf.mxu0
        %v3873 = vadd.f32 %v3788, %v3872
        %v3874 = vpop.f32.mrf.mxu0
        %v3875 = vadd.f32 %v3788, %v3874
        %v3876 = vpop.f32.mrf.mxu0
        %v3877 = vadd.f32 %v3793, %v3876
        %v3878 = vpop.f32.mrf.mxu0
        %v3879 = vadd.f32 %v3793, %v3878
        %3880 = vmatprep.mubr.bf16.mxu0 0
        %3881 = vmatmul.mubr.bf16.gmra.mxu0 %v3827
        %v3882 = vpop.f32.mrf.mxu0
        %v3883 = vadd.f32 %v3798, %v3882
        %v3884 = vpop.f32.mrf.mxu0
        %v3885 = vadd.f32 %v3798, %v3884
        %v3886 = vpop.f32.mrf.mxu0
        %v3887 = vadd.f32 %v3803, %v3886
        %v3888 = vpop.f32.mrf.mxu0
        %v3889 = vadd.f32 %v3803, %v3888
        %3890 = vmatprep.mubr.bf16.mxu0 0
        %3891 = vmatmul.mubr.bf16.gmra.mxu0 %v3830
        %v3892 = vpop.f32.mrf.mxu0
        %v3893 = vadd.f32 %v3808, %v3892
        %v3894 = vpop.f32.mrf.mxu0
        %v3895 = vadd.f32 %v3808, %v3894
        %v3896 = vpop.f32.mrf.mxu0
        %v3897 = vpop.f32.mrf.mxu0
        %3898 = vdwg.mxu0
        %v3899 = vmul.f32 %v3873, 0.5
        %v3900 = vmul.f32 %v3875, 0.5
        %v3901 = vmul.f32 %v3877, 0.5
        %v3902 = vmul.f32 %v3879, 0.5
        %v3903 = vmul.f32 %v3883, 0.5
        %v3904 = vmul.f32 %v3885, 0.5
        %v3905 = vmul.f32 %v3887, 0.5
        %v3906 = vmul.f32 %v3889, 0.5
        %v3907 = vmul.f32 %v3893, 0.5
        %v3908 = vmul.f32 %v3895, 0.5
        %v3909 = vtanh.pop %v3899
        %v3910 = vtanh.pop %v3900
        %v3911 = vtanh.pop %v3901
        %v3912 = vtanh.pop %v3902
        %v3913 = vtanh.pop %v3903
        %v3914 = vtanh.pop %v3904
        %v3915 = vtanh.pop %v3905
        %v3916 = vtanh.pop %v3906
        %v3917 = vtanh.pop %v3907
        %v3918 = vtanh.pop %v3908
        %v3919 = vmul.f32 %v3899, %v3909
        %v3920 = vmul.f32 %v3900, %v3910
        %v3921 = vmul.f32 %v3901, %v3911
        %v3922 = vmul.f32 %v3902, %v3912
        %v3923 = vmul.f32 %v3903, %v3913
        %v3924 = vmul.f32 %v3904, %v3914
        %v3925 = vmul.f32 %v3905, %v3915
        %v3926 = vmul.f32 %v3906, %v3916
        %v3927 = vmul.f32 %v3907, %v3917
        %v3928 = vmul.f32 %v3908, %v3918
        %v3929 = vadd.f32 %v3899, %v3919
        %v3930 = vadd.f32 %v3900, %v3920
        %v3931 = vadd.f32 %v3901, %v3921
        %v3932 = vadd.f32 %v3902, %v3922
        %v3933 = vadd.f32 %v3903, %v3923
        %v3934 = vadd.f32 %v3904, %v3924
        %v3935 = vadd.f32 %v3905, %v3925
        %v3936 = vadd.f32 %v3906, %v3926
        %v3937 = vadd.f32 %v3907, %v3927
        %v3938 = vadd.f32 %v3908, %v3928
        %v3939 = vld [vmem:[%s831] sm:$0xf]
        %v3940 = vld [vmem:[%s831 + $0x4] sm:$0xf]
        %v3941 = vld [vmem:[%s831 + $0x8] sm:$0xf]
        %v3942 = vld [vmem:[%s831 + $0xc] sm:$0xf]
        %v3943 = vld [vmem:[%s831 + $0x10] sm:$0xf]
        %v3944 = vpack.c.bf16 %v3931, %v3929
        %v3945 = vpack.c.bf16 %v3932, %v3930
        %v3946 = vpack.c.bf16 %v3935, %v3933
        %v3947 = vpack.c.bf16 %v3936, %v3934
        %v3948 = vpack.c.bf16 %v3937, %v3937
        %v3949 = vpack.c.bf16 %v3938, %v3938
        %v3950 = vld [vmem:[%s843] sm:$0xff]
        %v3951 = vld [vmem:[%s843 + $0x8] sm:$0xff]
        %v3952 = vld [vmem:[%s843 + $0x10] sm:$0xff]
        %v3953 = vld [vmem:[%s843 + $0x18] sm:$0xff]
        %v3954 = vld [vmem:[%s843 + $0x20] sm:$0xff]
        %3956 = vset.pattern.permute.xlu0 0
        %3957 = vperm.xlu0 %3956, %v3950
        %v3958 = vpop.permute.xlu0 %3957
        %3961 = vset.pattern.permute.xlu0 0
        %3962 = vperm.xlu0 %3961, %v3951
        %v3963 = vpop.permute.xlu0 %3962
        %3966 = vset.pattern.permute.xlu0 0
        %3967 = vperm.xlu0 %3966, %v3952
        %v3968 = vpop.permute.xlu0 %3967
        %3971 = vset.pattern.permute.xlu0 0
        %3972 = vperm.xlu0 %3971, %v3953
        %v3973 = vpop.permute.xlu0 %3972
        %3976 = vset.pattern.permute.xlu0 0
        %3977 = vperm.xlu0 %3976, %v3954
        %v3978 = vpop.permute.xlu0 %3977
        %v3985 = vunpack.c.l.b16 %v3939
        %v3986 = vunpack.c.l.b16 %v3940
        %v3987 = vunpack.c.l.b16 %v3941
        %v3988 = vunpack.c.l.b16 %v3942
        %v3989 = vunpack.c.l.b16 %v3943
        %v3990 = vpack.c.b16 %v3986, %v3985
        %v3991 = vpack.c.b16 %v3988, %v3987
        %v3992 = vpack.c.b16 %v3989, %v3989
        %v3994 = vsel %vm541, %v3990, 0
        %v3997 = vsel %vm541, %v3991, 0
        %v4000 = vsel %vm541, %v3992, 0
        %v4003 = vsel %vm551, %v3948, 0
        %v4006 = vsel %vm551, %v3949, 0
        %4008 = vmatprep.subr.bf16.mxu0 0
        %4009 = vmatpush1.bf16.msra.mxu0 0
        %4010 = vmatprep.subr.bf16.mxu0 0
        %4011 = vmatpush1.bf16.msra.mxu0 0
        %4012 = vmatprep.subr.bf16.mxu0 0
        %4013 = vmatpush1.bf16.msra.mxu0 0
        %4014 = vmatprep.subr.bf16.mxu0 0
        %4015 = vmatpush1.bf16.msra.mxu0 0
        %4016 = vmatprep.subr.bf16.mxu0 0
        %4017 = vmatpush1.bf16.msra.mxu0 0
        %4018 = vmatprep.subr.bf16.mxu0 %v4006
        %4019 = vmatpush1.bf16.msra.mxu0 %v4003
        %4020 = vmatprep.subr.bf16.mxu0 %v3947
        %4021 = vmatpush1.bf16.msra.mxu0 %v3946
        %4022 = vmatprep.subr.bf16.mxu0 %v3945
        %4023 = vmatpush1.bf16.msra.mxu0 %v3944
        %4024 = vmatprep.subr.bf16.mxu0 0
        %4025 = vmatpush2.bf16.msra.mxu0 0
        %4026 = vmatprep.subr.bf16.mxu0 0
        %4027 = vmatpush2.bf16.msra.mxu0 0
        %4028 = vmatprep.subr.bf16.mxu0 0
        %4029 = vmatpush2.bf16.msra.mxu0 0
        %4030 = vmatprep.subr.bf16.mxu0 0
        %4031 = vmatpush2.bf16.msra.mxu0 0
        %4032 = vmatprep.subr.bf16.mxu0 0
        %4033 = vmatpush2.bf16.msra.mxu0 0
        %4034 = vmatprep.subr.bf16.mxu0 0
        %4035 = vmatpush2.bf16.msra.mxu0 0
        %4036 = vmatprep.subr.bf16.mxu0 0
        %4037 = vmatpush2.bf16.msra.mxu0 0
        %4038 = vmatprep.subr.bf16.mxu0 0
        %4039 = vmatpush2.bf16.msra.mxu0 0
        %4040 = vmatprep.mubr.bf16.mxu0 0
        %4041 = vmatmul.mubr.bf16.gmra.mxu0 %v3994
        %v4042 = vpop.f32.mrf.mxu0
        %v4043 = vadd.f32 %v3958, %v4042
        %v4044 = vpop.f32.mrf.mxu0
        %v4045 = vadd.f32 %v3958, %v4044
        %v4046 = vpop.f32.mrf.mxu0
        %v4047 = vadd.f32 %v3963, %v4046
        %v4048 = vpop.f32.mrf.mxu0
        %v4049 = vadd.f32 %v3963, %v4048
        %4050 = vmatprep.mubr.bf16.mxu0 0
        %4051 = vmatmul.mubr.bf16.gmra.mxu0 %v3997
        %v4052 = vpop.f32.mrf.mxu0
        %v4053 = vadd.f32 %v3968, %v4052
        %v4054 = vpop.f32.mrf.mxu0
        %v4055 = vadd.f32 %v3968, %v4054
        %v4056 = vpop.f32.mrf.mxu0
        %v4057 = vadd.f32 %v3973, %v4056
        %v4058 = vpop.f32.mrf.mxu0
        %v4059 = vadd.f32 %v3973, %v4058
        %4060 = vmatprep.mubr.bf16.mxu0 0
        %4061 = vmatmul.mubr.bf16.gmra.mxu0 %v4000
        %v4062 = vpop.f32.mrf.mxu0
        %v4063 = vadd.f32 %v3978, %v4062
        %v4064 = vpop.f32.mrf.mxu0
        %v4065 = vadd.f32 %v3978, %v4064
        %v4066 = vpop.f32.mrf.mxu0
        %v4067 = vpop.f32.mrf.mxu0
        %4068 = vdwg.mxu0
        %v4069 = vmul.f32 %v4043, 0.5
        %v4070 = vmul.f32 %v4045, 0.5
        %v4071 = vmul.f32 %v4047, 0.5
        %v4072 = vmul.f32 %v4049, 0.5
        %v4073 = vmul.f32 %v4053, 0.5
        %v4074 = vmul.f32 %v4055, 0.5
        %v4075 = vmul.f32 %v4057, 0.5
        %v4076 = vmul.f32 %v4059, 0.5
        %v4077 = vmul.f32 %v4063, 0.5
        %v4078 = vmul.f32 %v4065, 0.5
        %v4079 = vtanh.pop %v4069
        %v4080 = vtanh.pop %v4070
        %v4081 = vtanh.pop %v4071
        %v4082 = vtanh.pop %v4072
        %v4083 = vtanh.pop %v4073
        %v4084 = vtanh.pop %v4074
        %v4085 = vtanh.pop %v4075
        %v4086 = vtanh.pop %v4076
        %v4087 = vtanh.pop %v4077
        %v4088 = vtanh.pop %v4078
        %v4089 = vmul.f32 %v4069, %v4079
        %v4090 = vmul.f32 %v4070, %v4080
        %v4091 = vmul.f32 %v4071, %v4081
        %v4092 = vmul.f32 %v4072, %v4082
        %v4093 = vmul.f32 %v4073, %v4083
        %v4094 = vmul.f32 %v4074, %v4084
        %v4095 = vmul.f32 %v4075, %v4085
        %v4096 = vmul.f32 %v4076, %v4086
        %v4097 = vmul.f32 %v4077, %v4087
        %v4098 = vmul.f32 %v4078, %v4088
        %v4099 = vadd.f32 %v4069, %v4089
        %v4100 = vadd.f32 %v4070, %v4090
        %v4101 = vadd.f32 %v4071, %v4091
        %v4102 = vadd.f32 %v4072, %v4092
        %v4103 = vadd.f32 %v4073, %v4093
        %v4104 = vadd.f32 %v4074, %v4094
        %v4105 = vadd.f32 %v4075, %v4095
        %v4106 = vadd.f32 %v4076, %v4096
        %v4107 = vadd.f32 %v4077, %v4097
        %v4108 = vadd.f32 %v4078, %v4098
        %v4109 = vld [vmem:[%s1003] sm:$0xf]
        %v4110 = vld [vmem:[%s1003 + $0x4] sm:$0xf]
        %v4111 = vld [vmem:[%s1003 + $0x8] sm:$0xf]
        %v4112 = vld [vmem:[%s1003 + $0xc] sm:$0xf]
        %v4113 = vld [vmem:[%s1003 + $0x10] sm:$0xf]
        %v4114 = vpack.c.bf16 %v4101, %v4099
        %v4115 = vpack.c.bf16 %v4102, %v4100
        %v4116 = vpack.c.bf16 %v4105, %v4103
        %v4117 = vpack.c.bf16 %v4106, %v4104
        %v4118 = vpack.c.bf16 %v4107, %v4107
        %v4119 = vpack.c.bf16 %v4108, %v4108
        %v4120 = vld [vmem:[%s1015] sm:$0xff]
        %v4121 = vld [vmem:[%s1015 + $0x8] sm:$0xff]
        %v4122 = vld [vmem:[%s1015 + $0x10] sm:$0xff]
        %v4123 = vld [vmem:[%s1015 + $0x18] sm:$0xff]
        %v4124 = vld [vmem:[%s1015 + $0x20] sm:$0xff]
        %4126 = vset.pattern.permute.xlu0 0
        %4127 = vperm.xlu0 %4126, %v4120
        %v4128 = vpop.permute.xlu0 %4127
        %4131 = vset.pattern.permute.xlu0 0
        %4132 = vperm.xlu0 %4131, %v4121
        %v4133 = vpop.permute.xlu0 %4132
        %4136 = vset.pattern.permute.xlu0 0
        %4137 = vperm.xlu0 %4136, %v4122
        %v4138 = vpop.permute.xlu0 %4137
        %4141 = vset.pattern.permute.xlu0 0
        %4142 = vperm.xlu0 %4141, %v4123
        %v4143 = vpop.permute.xlu0 %4142
        %4146 = vset.pattern.permute.xlu0 0
        %4147 = vperm.xlu0 %4146, %v4124
        %v4148 = vpop.permute.xlu0 %4147
        %v4155 = vunpack.c.l.b16 %v4109
        %v4156 = vunpack.c.l.b16 %v4110
        %v4157 = vunpack.c.l.b16 %v4111
        %v4158 = vunpack.c.l.b16 %v4112
        %v4159 = vunpack.c.l.b16 %v4113
        %v4160 = vpack.c.b16 %v4156, %v4155
        %v4161 = vpack.c.b16 %v4158, %v4157
        %v4162 = vpack.c.b16 %v4159, %v4159
        %v4164 = vsel %vm541, %v4160, 0
        %v4167 = vsel %vm541, %v4161, 0
        %v4170 = vsel %vm541, %v4162, 0
        %v4173 = vsel %vm551, %v4118, 0
        %v4176 = vsel %vm551, %v4119, 0
        %4178 = vmatprep.subr.bf16.mxu0 0
        %4179 = vmatpush1.bf16.msra.mxu0 0
        %4180 = vmatprep.subr.bf16.mxu0 0
        %4181 = vmatpush1.bf16.msra.mxu0 0
        %4182 = vmatprep.subr.bf16.mxu0 0
        %4183 = vmatpush1.bf16.msra.mxu0 0
        %4184 = vmatprep.subr.bf16.mxu0 0
        %4185 = vmatpush1.bf16.msra.mxu0 0
        %4186 = vmatprep.subr.bf16.mxu0 0
        %4187 = vmatpush1.bf16.msra.mxu0 0
        %4188 = vmatprep.subr.bf16.mxu0 %v4176
        %4189 = vmatpush1.bf16.msra.mxu0 %v4173
        %4190 = vmatprep.subr.bf16.mxu0 %v4117
        %4191 = vmatpush1.bf16.msra.mxu0 %v4116
        %4192 = vmatprep.subr.bf16.mxu0 %v4115
        %4193 = vmatpush1.bf16.msra.mxu0 %v4114
        %4194 = vmatprep.subr.bf16.mxu0 0
        %4195 = vmatpush2.bf16.msra.mxu0 0
        %4196 = vmatprep.subr.bf16.mxu0 0
        %4197 = vmatpush2.bf16.msra.mxu0 0
        %4198 = vmatprep.subr.bf16.mxu0 0
        %4199 = vmatpush2.bf16.msra.mxu0 0
        %4200 = vmatprep.subr.bf16.mxu0 0
        %4201 = vmatpush2.bf16.msra.mxu0 0
        %4202 = vmatprep.subr.bf16.mxu0 0
        %4203 = vmatpush2.bf16.msra.mxu0 0
        %4204 = vmatprep.subr.bf16.mxu0 0
        %4205 = vmatpush2.bf16.msra.mxu0 0
        %4206 = vmatprep.subr.bf16.mxu0 0
        %4207 = vmatpush2.bf16.msra.mxu0 0
        %4208 = vmatprep.subr.bf16.mxu0 0
        %4209 = vmatpush2.bf16.msra.mxu0 0
        %4210 = vmatprep.mubr.bf16.mxu0 0
        %4211 = vmatmul.mubr.bf16.gmra.mxu0 %v4164
        %v4212 = vpop.f32.mrf.mxu0
        %v4213 = vadd.f32 %v4128, %v4212
        %v4214 = vpop.f32.mrf.mxu0
        %v4215 = vadd.f32 %v4128, %v4214
        %v4216 = vpop.f32.mrf.mxu0
        %v4217 = vadd.f32 %v4133, %v4216
        %v4218 = vpop.f32.mrf.mxu0
        %v4219 = vadd.f32 %v4133, %v4218
        %4220 = vmatprep.mubr.bf16.mxu0 0
        %4221 = vmatmul.mubr.bf16.gmra.mxu0 %v4167
        %v4222 = vpop.f32.mrf.mxu0
        %v4223 = vadd.f32 %v4138, %v4222
        %v4224 = vpop.f32.mrf.mxu0
        %v4225 = vadd.f32 %v4138, %v4224
        %v4226 = vpop.f32.mrf.mxu0
        %v4227 = vadd.f32 %v4143, %v4226
        %v4228 = vpop.f32.mrf.mxu0
        %v4229 = vadd.f32 %v4143, %v4228
        %4230 = vmatprep.mubr.bf16.mxu0 0
        %4231 = vmatmul.mubr.bf16.gmra.mxu0 %v4170
        %v4232 = vpop.f32.mrf.mxu0
        %v4233 = vadd.f32 %v4148, %v4232
        %v4234 = vpop.f32.mrf.mxu0
        %v4235 = vadd.f32 %v4148, %v4234
        %v4236 = vpop.f32.mrf.mxu0
        %v4237 = vpop.f32.mrf.mxu0
        %4238 = vdwg.mxu0
        %v4239 = vmul.f32 %v4213, 0.5
        %v4240 = vmul.f32 %v4215, 0.5
        %v4241 = vmul.f32 %v4217, 0.5
        %v4242 = vmul.f32 %v4219, 0.5
        %v4243 = vmul.f32 %v4223, 0.5
        %v4244 = vmul.f32 %v4225, 0.5
        %v4245 = vmul.f32 %v4227, 0.5
        %v4246 = vmul.f32 %v4229, 0.5
        %v4247 = vmul.f32 %v4233, 0.5
        %v4248 = vmul.f32 %v4235, 0.5
        %v4249 = vtanh.pop %v4239
        %v4250 = vtanh.pop %v4240
        %v4251 = vtanh.pop %v4241
        %v4252 = vtanh.pop %v4242
        %v4253 = vtanh.pop %v4243
        %v4254 = vtanh.pop %v4244
        %v4255 = vtanh.pop %v4245
        %v4256 = vtanh.pop %v4246
        %v4257 = vtanh.pop %v4247
        %v4258 = vtanh.pop %v4248
        %v4259 = vmul.f32 %v4239, %v4249
        %v4260 = vmul.f32 %v4240, %v4250
        %v4261 = vmul.f32 %v4241, %v4251
        %v4262 = vmul.f32 %v4242, %v4252
        %v4263 = vmul.f32 %v4243, %v4253
        %v4264 = vmul.f32 %v4244, %v4254
        %v4265 = vmul.f32 %v4245, %v4255
        %v4266 = vmul.f32 %v4246, %v4256
        %v4267 = vmul.f32 %v4247, %v4257
        %v4268 = vmul.f32 %v4248, %v4258
        %v4269 = vadd.f32 %v4239, %v4259
        %v4270 = vadd.f32 %v4240, %v4260
        %v4271 = vadd.f32 %v4241, %v4261
        %v4272 = vadd.f32 %v4242, %v4262
        %v4273 = vadd.f32 %v4243, %v4263
        %v4274 = vadd.f32 %v4244, %v4264
        %v4275 = vadd.f32 %v4245, %v4265
        %v4276 = vadd.f32 %v4246, %v4266
        %v4277 = vadd.f32 %v4247, %v4267
        %v4278 = vadd.f32 %v4248, %v4268
        %v4279 = vld [vmem:[%s1175] sm:$0xf]
        %v4280 = vld [vmem:[%s1175 + $0x4] sm:$0xf]
        %v4281 = vld [vmem:[%s1175 + $0x8] sm:$0xf]
        %v4282 = vld [vmem:[%s1175 + $0xc] sm:$0xf]
        %v4283 = vld [vmem:[%s1175 + $0x10] sm:$0xf]
        %v4284 = vpack.c.bf16 %v4271, %v4269
        %v4285 = vpack.c.bf16 %v4272, %v4270
        %v4286 = vpack.c.bf16 %v4275, %v4273
        %v4287 = vpack.c.bf16 %v4276, %v4274
        %v4288 = vpack.c.bf16 %v4277, %v4277
        %v4289 = vpack.c.bf16 %v4278, %v4278
        %v4290 = vld [vmem:[%s1187] sm:$0xff]
        %v4291 = vld [vmem:[%s1187 + $0x8] sm:$0xff]
        %v4292 = vld [vmem:[%s1187 + $0x10] sm:$0xff]
        %v4293 = vld [vmem:[%s1187 + $0x18] sm:$0xff]
        %v4294 = vld [vmem:[%s1187 + $0x20] sm:$0xff]
        %4296 = vset.pattern.permute.xlu0 0
        %4297 = vperm.xlu0 %4296, %v4290
        %v4298 = vpop.permute.xlu0 %4297
        %4301 = vset.pattern.permute.xlu0 0
        %4302 = vperm.xlu0 %4301, %v4291
        %v4303 = vpop.permute.xlu0 %4302
        %4306 = vset.pattern.permute.xlu0 0
        %4307 = vperm.xlu0 %4306, %v4292
        %v4308 = vpop.permute.xlu0 %4307
        %4311 = vset.pattern.permute.xlu0 0
        %4312 = vperm.xlu0 %4311, %v4293
        %v4313 = vpop.permute.xlu0 %4312
        %4316 = vset.pattern.permute.xlu0 0
        %4317 = vperm.xlu0 %4316, %v4294
        %v4318 = vpop.permute.xlu0 %4317
        %v4325 = vunpack.c.l.b16 %v4279
        %v4326 = vunpack.c.l.b16 %v4280
        %v4327 = vunpack.c.l.b16 %v4281
        %v4328 = vunpack.c.l.b16 %v4282
        %v4329 = vunpack.c.l.b16 %v4283
        %v4330 = vpack.c.b16 %v4326, %v4325
        %v4331 = vpack.c.b16 %v4328, %v4327
        %v4332 = vpack.c.b16 %v4329, %v4329
        %v4334 = vsel %vm541, %v4330, 0
        %v4337 = vsel %vm541, %v4331, 0
        %v4340 = vsel %vm541, %v4332, 0
        %v4343 = vsel %vm551, %v4288, 0
        %v4346 = vsel %vm551, %v4289, 0
        %4348 = vmatprep.subr.bf16.mxu0 0
        %4349 = vmatpush1.bf16.msra.mxu0 0
        %4350 = vmatprep.subr.bf16.mxu0 0
        %4351 = vmatpush1.bf16.msra.mxu0 0
        %4352 = vmatprep.subr.bf16.mxu0 0
        %4353 = vmatpush1.bf16.msra.mxu0 0
        %4354 = vmatprep.subr.bf16.mxu0 0
        %4355 = vmatpush1.bf16.msra.mxu0 0
        %4356 = vmatprep.subr.bf16.mxu0 0
        %4357 = vmatpush1.bf16.msra.mxu0 0
        %4358 = vmatprep.subr.bf16.mxu0 %v4346
        %4359 = vmatpush1.bf16.msra.mxu0 %v4343
        %4360 = vmatprep.subr.bf16.mxu0 %v4287
        %4361 = vmatpush1.bf16.msra.mxu0 %v4286
        %4362 = vmatprep.subr.bf16.mxu0 %v4285
        %4363 = vmatpush1.bf16.msra.mxu0 %v4284
        %4364 = vmatprep.subr.bf16.mxu0 0
        %4365 = vmatpush2.bf16.msra.mxu0 0
        %4366 = vmatprep.subr.bf16.mxu0 0
        %4367 = vmatpush2.bf16.msra.mxu0 0
        %4368 = vmatprep.subr.bf16.mxu0 0
        %4369 = vmatpush2.bf16.msra.mxu0 0
        %4370 = vmatprep.subr.bf16.mxu0 0
        %4371 = vmatpush2.bf16.msra.mxu0 0
        %4372 = vmatprep.subr.bf16.mxu0 0
        %4373 = vmatpush2.bf16.msra.mxu0 0
        %4374 = vmatprep.subr.bf16.mxu0 0
        %4375 = vmatpush2.bf16.msra.mxu0 0
        %4376 = vmatprep.subr.bf16.mxu0 0
        %4377 = vmatpush2.bf16.msra.mxu0 0
        %4378 = vmatprep.subr.bf16.mxu0 0
        %4379 = vmatpush2.bf16.msra.mxu0 0
        %4380 = vmatprep.mubr.bf16.mxu0 0
        %4381 = vmatmul.mubr.bf16.gmra.mxu0 %v4334
        %v4382 = vpop.f32.mrf.mxu0
        %v4383 = vadd.f32 %v4298, %v4382
        %v4384 = vpop.f32.mrf.mxu0
        %v4385 = vadd.f32 %v4298, %v4384
        %v4386 = vpop.f32.mrf.mxu0
        %v4387 = vadd.f32 %v4303, %v4386
        %v4388 = vpop.f32.mrf.mxu0
        %v4389 = vadd.f32 %v4303, %v4388
        %4390 = vmatprep.mubr.bf16.mxu0 0
        %4391 = vmatmul.mubr.bf16.gmra.mxu0 %v4337
        %v4392 = vpop.f32.mrf.mxu0
        %v4393 = vadd.f32 %v4308, %v4392
        %v4394 = vpop.f32.mrf.mxu0
        %v4395 = vadd.f32 %v4308, %v4394
        %v4396 = vpop.f32.mrf.mxu0
        %v4397 = vadd.f32 %v4313, %v4396
        %v4398 = vpop.f32.mrf.mxu0
        %v4399 = vadd.f32 %v4313, %v4398
        %4400 = vmatprep.mubr.bf16.mxu0 0
        %4401 = vmatmul.mubr.bf16.gmra.mxu0 %v4340
        %v4402 = vpop.f32.mrf.mxu0
        %v4403 = vadd.f32 %v4318, %v4402
        %v4404 = vpop.f32.mrf.mxu0
        %v4405 = vadd.f32 %v4318, %v4404
        %v4406 = vpop.f32.mrf.mxu0
        %v4407 = vpop.f32.mrf.mxu0
        %4408 = vdwg.mxu0
        %v4409 = vmul.f32 %v4383, 0.5
        %v4410 = vmul.f32 %v4385, 0.5
        %v4411 = vmul.f32 %v4387, 0.5
        %v4412 = vmul.f32 %v4389, 0.5
        %v4413 = vmul.f32 %v4393, 0.5
        %v4414 = vmul.f32 %v4395, 0.5
        %v4415 = vmul.f32 %v4397, 0.5
        %v4416 = vmul.f32 %v4399, 0.5
        %v4417 = vmul.f32 %v4403, 0.5
        %v4418 = vmul.f32 %v4405, 0.5
        %v4419 = vtanh.pop %v4409
        %v4420 = vtanh.pop %v4410
        %v4421 = vtanh.pop %v4411
        %v4422 = vtanh.pop %v4412
        %v4423 = vtanh.pop %v4413
        %v4424 = vtanh.pop %v4414
        %v4425 = vtanh.pop %v4415
        %v4426 = vtanh.pop %v4416
        %v4427 = vtanh.pop %v4417
        %v4428 = vtanh.pop %v4418
        %v4429 = vmul.f32 %v4409, %v4419
        %v4430 = vmul.f32 %v4410, %v4420
        %v4431 = vmul.f32 %v4411, %v4421
        %v4432 = vmul.f32 %v4412, %v4422
        %v4433 = vmul.f32 %v4413, %v4423
        %v4434 = vmul.f32 %v4414, %v4424
        %v4435 = vmul.f32 %v4415, %v4425
        %v4436 = vmul.f32 %v4416, %v4426
        %v4437 = vmul.f32 %v4417, %v4427
        %v4438 = vmul.f32 %v4418, %v4428
        %v4439 = vadd.f32 %v4409, %v4429
        %v4440 = vadd.f32 %v4410, %v4430
        %v4441 = vadd.f32 %v4411, %v4431
        %v4442 = vadd.f32 %v4412, %v4432
        %v4443 = vadd.f32 %v4413, %v4433
        %v4444 = vadd.f32 %v4414, %v4434
        %v4445 = vadd.f32 %v4415, %v4435
        %v4446 = vadd.f32 %v4416, %v4436
        %v4447 = vadd.f32 %v4417, %v4437
        %v4448 = vadd.f32 %v4418, %v4438
        %v4449 = vld [vmem:[%s1347] sm:$0xf]
        %v4450 = vld [vmem:[%s1347 + $0x4] sm:$0xf]
        %v4451 = vld [vmem:[%s1347 + $0x8] sm:$0xf]
        %v4452 = vld [vmem:[%s1347 + $0xc] sm:$0xf]
        %v4453 = vld [vmem:[%s1347 + $0x10] sm:$0xf]
        %v4454 = vpack.c.bf16 %v4441, %v4439
        %v4455 = vpack.c.bf16 %v4442, %v4440
        %v4456 = vpack.c.bf16 %v4445, %v4443
        %v4457 = vpack.c.bf16 %v4446, %v4444
        %v4458 = vpack.c.bf16 %v4447, %v4447
        %v4459 = vpack.c.bf16 %v4448, %v4448
        %v4460 = vld [vmem:[%s1359] sm:$0xff]
        %v4461 = vld [vmem:[%s1359 + $0x8] sm:$0xff]
        %v4462 = vld [vmem:[%s1359 + $0x10] sm:$0xff]
        %v4463 = vld [vmem:[%s1359 + $0x18] sm:$0xff]
        %v4464 = vld [vmem:[%s1359 + $0x20] sm:$0xff]
        %4466 = vset.pattern.permute.xlu0 0
        %4467 = vperm.xlu0 %4466, %v4460
        %v4468 = vpop.permute.xlu0 %4467
        %4471 = vset.pattern.permute.xlu0 0
        %4472 = vperm.xlu0 %4471, %v4461
        %v4473 = vpop.permute.xlu0 %4472
        %4476 = vset.pattern.permute.xlu0 0
        %4477 = vperm.xlu0 %4476, %v4462
        %v4478 = vpop.permute.xlu0 %4477
        %4481 = vset.pattern.permute.xlu0 0
        %4482 = vperm.xlu0 %4481, %v4463
        %v4483 = vpop.permute.xlu0 %4482
        %4486 = vset.pattern.permute.xlu0 0
        %4487 = vperm.xlu0 %4486, %v4464
        %v4488 = vpop.permute.xlu0 %4487
        %v4495 = vunpack.c.l.b16 %v4449
        %v4496 = vunpack.c.l.b16 %v4450
        %v4497 = vunpack.c.l.b16 %v4451
        %v4498 = vunpack.c.l.b16 %v4452
        %v4499 = vunpack.c.l.b16 %v4453
        %v4500 = vpack.c.b16 %v4496, %v4495
        %v4501 = vpack.c.b16 %v4498, %v4497
        %v4502 = vpack.c.b16 %v4499, %v4499
        %v4504 = vsel %vm541, %v4500, 0
        %v4507 = vsel %vm541, %v4501, 0
        %v4510 = vsel %vm541, %v4502, 0
        %v4513 = vsel %vm551, %v4458, 0
        %v4516 = vsel %vm551, %v4459, 0
        %4518 = vmatprep.subr.bf16.mxu0 0
        %4519 = vmatpush1.bf16.msra.mxu0 0
        %4520 = vmatprep.subr.bf16.mxu0 0
        %4521 = vmatpush1.bf16.msra.mxu0 0
        %4522 = vmatprep.subr.bf16.mxu0 0
        %4523 = vmatpush1.bf16.msra.mxu0 0
        %4524 = vmatprep.subr.bf16.mxu0 0
        %4525 = vmatpush1.bf16.msra.mxu0 0
        %4526 = vmatprep.subr.bf16.mxu0 0
        %4527 = vmatpush1.bf16.msra.mxu0 0
        %4528 = vmatprep.subr.bf16.mxu0 %v4516
        %4529 = vmatpush1.bf16.msra.mxu0 %v4513
        %4530 = vmatprep.subr.bf16.mxu0 %v4457
        %4531 = vmatpush1.bf16.msra.mxu0 %v4456
        %4532 = vmatprep.subr.bf16.mxu0 %v4455
        %4533 = vmatpush1.bf16.msra.mxu0 %v4454
        %4534 = vmatprep.subr.bf16.mxu0 0
        %4535 = vmatpush2.bf16.msra.mxu0 0
        %4536 = vmatprep.subr.bf16.mxu0 0
        %4537 = vmatpush2.bf16.msra.mxu0 0
        %4538 = vmatprep.subr.bf16.mxu0 0
        %4539 = vmatpush2.bf16.msra.mxu0 0
        %4540 = vmatprep.subr.bf16.mxu0 0
        %4541 = vmatpush2.bf16.msra.mxu0 0
        %4542 = vmatprep.subr.bf16.mxu0 0
        %4543 = vmatpush2.bf16.msra.mxu0 0
        %4544 = vmatprep.subr.bf16.mxu0 0
        %4545 = vmatpush2.bf16.msra.mxu0 0
        %4546 = vmatprep.subr.bf16.mxu0 0
        %4547 = vmatpush2.bf16.msra.mxu0 0
        %4548 = vmatprep.subr.bf16.mxu0 0
        %4549 = vmatpush2.bf16.msra.mxu0 0
        %4550 = vmatprep.mubr.bf16.mxu0 0
        %4551 = vmatmul.mubr.bf16.gmra.mxu0 %v4504
        %v4552 = vpop.f32.mrf.mxu0
        %v4553 = vadd.f32 %v4468, %v4552
        %v4554 = vpop.f32.mrf.mxu0
        %v4555 = vadd.f32 %v4468, %v4554
        %v4556 = vpop.f32.mrf.mxu0
        %v4557 = vadd.f32 %v4473, %v4556
        %v4558 = vpop.f32.mrf.mxu0
        %v4559 = vadd.f32 %v4473, %v4558
        %4560 = vmatprep.mubr.bf16.mxu0 0
        %4561 = vmatmul.mubr.bf16.gmra.mxu0 %v4507
        %v4562 = vpop.f32.mrf.mxu0
        %v4563 = vadd.f32 %v4478, %v4562
        %v4564 = vpop.f32.mrf.mxu0
        %v4565 = vadd.f32 %v4478, %v4564
        %v4566 = vpop.f32.mrf.mxu0
        %v4567 = vadd.f32 %v4483, %v4566
        %v4568 = vpop.f32.mrf.mxu0
        %v4569 = vadd.f32 %v4483, %v4568
        %4570 = vmatprep.mubr.bf16.mxu0 0
        %4571 = vmatmul.mubr.bf16.gmra.mxu0 %v4510
        %v4572 = vpop.f32.mrf.mxu0
        %v4573 = vadd.f32 %v4488, %v4572
        %v4574 = vpop.f32.mrf.mxu0
        %v4575 = vadd.f32 %v4488, %v4574
        %v4576 = vpop.f32.mrf.mxu0
        %v4577 = vpop.f32.mrf.mxu0
        %4578 = vdwg.mxu0
        %v4579 = vmul.f32 %v4553, 0.5
        %v4580 = vmul.f32 %v4555, 0.5
        %v4581 = vmul.f32 %v4557, 0.5
        %v4582 = vmul.f32 %v4559, 0.5
        %v4583 = vmul.f32 %v4563, 0.5
        %v4584 = vmul.f32 %v4565, 0.5
        %v4585 = vmul.f32 %v4567, 0.5
        %v4586 = vmul.f32 %v4569, 0.5
        %v4587 = vmul.f32 %v4573, 0.5
        %v4588 = vmul.f32 %v4575, 0.5
        %v4589 = vtanh.pop %v4579
        %v4590 = vtanh.pop %v4580
        %v4591 = vtanh.pop %v4581
        %v4592 = vtanh.pop %v4582
        %v4593 = vtanh.pop %v4583
        %v4594 = vtanh.pop %v4584
        %v4595 = vtanh.pop %v4585
        %v4596 = vtanh.pop %v4586
        %v4597 = vtanh.pop %v4587
        %v4598 = vtanh.pop %v4588
        %v4599 = vmul.f32 %v4579, %v4589
        %v4600 = vmul.f32 %v4580, %v4590
        %v4601 = vmul.f32 %v4581, %v4591
        %v4602 = vmul.f32 %v4582, %v4592
        %v4603 = vmul.f32 %v4583, %v4593
        %v4604 = vmul.f32 %v4584, %v4594
        %v4605 = vmul.f32 %v4585, %v4595
        %v4606 = vmul.f32 %v4586, %v4596
        %v4607 = vmul.f32 %v4587, %v4597
        %v4608 = vmul.f32 %v4588, %v4598
        %v4609 = vadd.f32 %v4579, %v4599
        %v4610 = vadd.f32 %v4580, %v4600
        %v4611 = vadd.f32 %v4581, %v4601
        %v4612 = vadd.f32 %v4582, %v4602
        %v4613 = vadd.f32 %v4583, %v4603
        %v4614 = vadd.f32 %v4584, %v4604
        %v4615 = vadd.f32 %v4585, %v4605
        %v4616 = vadd.f32 %v4586, %v4606
        %v4617 = vadd.f32 %v4587, %v4607
        %v4618 = vadd.f32 %v4588, %v4608
        %v4619 = vld [vmem:[%s1519] sm:$0xf]
        %v4620 = vld [vmem:[%s1519 + $0x4] sm:$0xf]
        %v4621 = vld [vmem:[%s1519 + $0x8] sm:$0xf]
        %v4622 = vld [vmem:[%s1519 + $0xc] sm:$0xf]
        %v4623 = vld [vmem:[%s1519 + $0x10] sm:$0xf]
        %v4624 = vpack.c.bf16 %v4611, %v4609
        %v4625 = vpack.c.bf16 %v4612, %v4610
        %v4626 = vpack.c.bf16 %v4615, %v4613
        %v4627 = vpack.c.bf16 %v4616, %v4614
        %v4628 = vpack.c.bf16 %v4617, %v4617
        %v4629 = vpack.c.bf16 %v4618, %v4618
        %v4630 = vld [vmem:[%s1531] sm:$0xff]
        %v4631 = vld [vmem:[%s1531 + $0x8] sm:$0xff]
        %v4632 = vld [vmem:[%s1531 + $0x10] sm:$0xff]
        %v4633 = vld [vmem:[%s1531 + $0x18] sm:$0xff]
        %v4634 = vld [vmem:[%s1531 + $0x20] sm:$0xff]
        %4636 = vset.pattern.permute.xlu0 0
        %4637 = vperm.xlu0 %4636, %v4630
        %v4638 = vpop.permute.xlu0 %4637
        %4641 = vset.pattern.permute.xlu0 0
        %4642 = vperm.xlu0 %4641, %v4631
        %v4643 = vpop.permute.xlu0 %4642
        %4646 = vset.pattern.permute.xlu0 0
        %4647 = vperm.xlu0 %4646, %v4632
        %v4648 = vpop.permute.xlu0 %4647
        %4651 = vset.pattern.permute.xlu0 0
        %4652 = vperm.xlu0 %4651, %v4633
        %v4653 = vpop.permute.xlu0 %4652
        %4656 = vset.pattern.permute.xlu0 0
        %4657 = vperm.xlu0 %4656, %v4634
        %v4658 = vpop.permute.xlu0 %4657
        %v4665 = vunpack.c.l.b16 %v4619
        %v4666 = vunpack.c.l.b16 %v4620
        %v4667 = vunpack.c.l.b16 %v4621
        %v4668 = vunpack.c.l.b16 %v4622
        %v4669 = vunpack.c.l.b16 %v4623
        %v4670 = vpack.c.b16 %v4666, %v4665
        %v4671 = vpack.c.b16 %v4668, %v4667
        %v4672 = vpack.c.b16 %v4669, %v4669
        %v4674 = vsel %vm541, %v4670, 0
        %v4677 = vsel %vm541, %v4671, 0
        %v4680 = vsel %vm541, %v4672, 0
        %v4683 = vsel %vm551, %v4628, 0
        %v4686 = vsel %vm551, %v4629, 0
        %4688 = vmatprep.subr.bf16.mxu0 0
        %4689 = vmatpush1.bf16.msra.mxu0 0
        %4690 = vmatprep.subr.bf16.mxu0 0
        %4691 = vmatpush1.bf16.msra.mxu0 0
        %4692 = vmatprep.subr.bf16.mxu0 0
        %4693 = vmatpush1.bf16.msra.mxu0 0
        %4694 = vmatprep.subr.bf16.mxu0 0
        %4695 = vmatpush1.bf16.msra.mxu0 0
        %4696 = vmatprep.subr.bf16.mxu0 0
        %4697 = vmatpush1.bf16.msra.mxu0 0
        %4698 = vmatprep.subr.bf16.mxu0 %v4686
        %4699 = vmatpush1.bf16.msra.mxu0 %v4683
        %4700 = vmatprep.subr.bf16.mxu0 %v4627
        %4701 = vmatpush1.bf16.msra.mxu0 %v4626
        %4702 = vmatprep.subr.bf16.mxu0 %v4625
        %4703 = vmatpush1.bf16.msra.mxu0 %v4624
        %4704 = vmatprep.subr.bf16.mxu0 0
        %4705 = vmatpush2.bf16.msra.mxu0 0
        %4706 = vmatprep.subr.bf16.mxu0 0
        %4707 = vmatpush2.bf16.msra.mxu0 0
        %4708 = vmatprep.subr.bf16.mxu0 0
        %4709 = vmatpush2.bf16.msra.mxu0 0
        %4710 = vmatprep.subr.bf16.mxu0 0
        %4711 = vmatpush2.bf16.msra.mxu0 0
        %4712 = vmatprep.subr.bf16.mxu0 0
        %4713 = vmatpush2.bf16.msra.mxu0 0
        %4714 = vmatprep.subr.bf16.mxu0 0
        %4715 = vmatpush2.bf16.msra.mxu0 0
        %4716 = vmatprep.subr.bf16.mxu0 0
        %4717 = vmatpush2.bf16.msra.mxu0 0
        %4718 = vmatprep.subr.bf16.mxu0 0
        %4719 = vmatpush2.bf16.msra.mxu0 0
        %4720 = vmatprep.mubr.bf16.mxu0 0
        %4721 = vmatmul.mubr.bf16.gmra.mxu0 %v4674
        %v4722 = vpop.f32.mrf.mxu0
        %v4723 = vadd.f32 %v4638, %v4722
        %v4724 = vpop.f32.mrf.mxu0
        %v4725 = vadd.f32 %v4638, %v4724
        %v4726 = vpop.f32.mrf.mxu0
        %v4727 = vadd.f32 %v4643, %v4726
        %v4728 = vpop.f32.mrf.mxu0
        %v4729 = vadd.f32 %v4643, %v4728
        %4730 = vmatprep.mubr.bf16.mxu0 0
        %4731 = vmatmul.mubr.bf16.gmra.mxu0 %v4677
        %v4732 = vpop.f32.mrf.mxu0
        %v4733 = vadd.f32 %v4648, %v4732
        %v4734 = vpop.f32.mrf.mxu0
        %v4735 = vadd.f32 %v4648, %v4734
        %v4736 = vpop.f32.mrf.mxu0
        %v4737 = vadd.f32 %v4653, %v4736
        %v4738 = vpop.f32.mrf.mxu0
        %v4739 = vadd.f32 %v4653, %v4738
        %4740 = vmatprep.mubr.bf16.mxu0 0
        %4741 = vmatmul.mubr.bf16.gmra.mxu0 %v4680
        %v4742 = vpop.f32.mrf.mxu0
        %v4743 = vadd.f32 %v4658, %v4742
        %v4744 = vpop.f32.mrf.mxu0
        %v4745 = vadd.f32 %v4658, %v4744
        %v4746 = vpop.f32.mrf.mxu0
        %v4747 = vpop.f32.mrf.mxu0
        %4748 = vdwg.mxu0
        %v4749 = vmul.f32 %v4723, 0.5
        %v4750 = vmul.f32 %v4725, 0.5
        %v4751 = vmul.f32 %v4727, 0.5
        %v4752 = vmul.f32 %v4729, 0.5
        %v4753 = vmul.f32 %v4733, 0.5
        %v4754 = vmul.f32 %v4735, 0.5
        %v4755 = vmul.f32 %v4737, 0.5
        %v4756 = vmul.f32 %v4739, 0.5
        %v4757 = vmul.f32 %v4743, 0.5
        %v4758 = vmul.f32 %v4745, 0.5
        %v4759 = vtanh.pop %v4749
        %v4760 = vtanh.pop %v4750
        %v4761 = vtanh.pop %v4751
        %v4762 = vtanh.pop %v4752
        %v4763 = vtanh.pop %v4753
        %v4764 = vtanh.pop %v4754
        %v4765 = vtanh.pop %v4755
        %v4766 = vtanh.pop %v4756
        %v4767 = vtanh.pop %v4757
        %v4768 = vtanh.pop %v4758
        %v4769 = vmul.f32 %v4749, %v4759
        %v4770 = vmul.f32 %v4750, %v4760
        %v4771 = vmul.f32 %v4751, %v4761
        %v4772 = vmul.f32 %v4752, %v4762
        %v4773 = vmul.f32 %v4753, %v4763
        %v4774 = vmul.f32 %v4754, %v4764
        %v4775 = vmul.f32 %v4755, %v4765
        %v4776 = vmul.f32 %v4756, %v4766
        %v4777 = vmul.f32 %v4757, %v4767
        %v4778 = vmul.f32 %v4758, %v4768
        %v4779 = vadd.f32 %v4749, %v4769
        %v4780 = vadd.f32 %v4750, %v4770
        %v4781 = vadd.f32 %v4751, %v4771
        %v4782 = vadd.f32 %v4752, %v4772
        %v4783 = vadd.f32 %v4753, %v4773
        %v4784 = vadd.f32 %v4754, %v4774
        %v4785 = vadd.f32 %v4755, %v4775
        %v4786 = vadd.f32 %v4756, %v4776
        %v4787 = vadd.f32 %v4757, %v4777
        %v4788 = vadd.f32 %v4758, %v4778
        %v4789 = vld [vmem:[%s1691] sm:$0xf]
        %v4790 = vld [vmem:[%s1691 + $0x4] sm:$0xf]
        %v4791 = vld [vmem:[%s1691 + $0x8] sm:$0xf]
        %v4792 = vld [vmem:[%s1691 + $0xc] sm:$0xf]
        %v4793 = vld [vmem:[%s1691 + $0x10] sm:$0xf]
        %v4794 = vpack.c.bf16 %v4781, %v4779
        %v4795 = vpack.c.bf16 %v4782, %v4780
        %v4796 = vpack.c.bf16 %v4785, %v4783
        %v4797 = vpack.c.bf16 %v4786, %v4784
        %v4798 = vpack.c.bf16 %v4787, %v4787
        %v4799 = vpack.c.bf16 %v4788, %v4788
        %v4800 = vld [vmem:[%s1703] sm:$0xff]
        %v4801 = vld [vmem:[%s1703 + $0x8] sm:$0xff]
        %v4802 = vld [vmem:[%s1703 + $0x10] sm:$0xff]
        %v4803 = vld [vmem:[%s1703 + $0x18] sm:$0xff]
        %v4804 = vld [vmem:[%s1703 + $0x20] sm:$0xff]
        %4806 = vset.pattern.permute.xlu0 0
        %4807 = vperm.xlu0 %4806, %v4800
        %v4808 = vpop.permute.xlu0 %4807
        %4811 = vset.pattern.permute.xlu0 0
        %4812 = vperm.xlu0 %4811, %v4801
        %v4813 = vpop.permute.xlu0 %4812
        %4816 = vset.pattern.permute.xlu0 0
        %4817 = vperm.xlu0 %4816, %v4802
        %v4818 = vpop.permute.xlu0 %4817
        %4821 = vset.pattern.permute.xlu0 0
        %4822 = vperm.xlu0 %4821, %v4803
        %v4823 = vpop.permute.xlu0 %4822
        %4826 = vset.pattern.permute.xlu0 0
        %4827 = vperm.xlu0 %4826, %v4804
        %v4828 = vpop.permute.xlu0 %4827
        %v4835 = vunpack.c.l.b16 %v4789
        %v4836 = vunpack.c.l.b16 %v4790
        %v4837 = vunpack.c.l.b16 %v4791
        %v4838 = vunpack.c.l.b16 %v4792
        %v4839 = vunpack.c.l.b16 %v4793
        %v4840 = vpack.c.b16 %v4836, %v4835
        %v4841 = vpack.c.b16 %v4838, %v4837
        %v4842 = vpack.c.b16 %v4839, %v4839
        %v4844 = vsel %vm541, %v4840, 0
        %v4847 = vsel %vm541, %v4841, 0
        %v4850 = vsel %vm541, %v4842, 0
        %v4853 = vsel %vm551, %v4798, 0
        %v4856 = vsel %vm551, %v4799, 0
        %4858 = vmatprep.subr.bf16.mxu0 0
        %4859 = vmatpush1.bf16.msra.mxu0 0
        %4860 = vmatprep.subr.bf16.mxu0 0
        %4861 = vmatpush1.bf16.msra.mxu0 0
        %4862 = vmatprep.subr.bf16.mxu0 0
        %4863 = vmatpush1.bf16.msra.mxu0 0
        %4864 = vmatprep.subr.bf16.mxu0 0
        %4865 = vmatpush1.bf16.msra.mxu0 0
        %4866 = vmatprep.subr.bf16.mxu0 0
        %4867 = vmatpush1.bf16.msra.mxu0 0
        %4868 = vmatprep.subr.bf16.mxu0 %v4856
        %4869 = vmatpush1.bf16.msra.mxu0 %v4853
        %4870 = vmatprep.subr.bf16.mxu0 %v4797
        %4871 = vmatpush1.bf16.msra.mxu0 %v4796
        %4872 = vmatprep.subr.bf16.mxu0 %v4795
        %4873 = vmatpush1.bf16.msra.mxu0 %v4794
        %4874 = vmatprep.subr.bf16.mxu0 0
        %4875 = vmatpush2.bf16.msra.mxu0 0
        %4876 = vmatprep.subr.bf16.mxu0 0
        %4877 = vmatpush2.bf16.msra.mxu0 0
        %4878 = vmatprep.subr.bf16.mxu0 0
        %4879 = vmatpush2.bf16.msra.mxu0 0
        %4880 = vmatprep.subr.bf16.mxu0 0
        %4881 = vmatpush2.bf16.msra.mxu0 0
        %4882 = vmatprep.subr.bf16.mxu0 0
        %4883 = vmatpush2.bf16.msra.mxu0 0
        %4884 = vmatprep.subr.bf16.mxu0 0
        %4885 = vmatpush2.bf16.msra.mxu0 0
        %4886 = vmatprep.subr.bf16.mxu0 0
        %4887 = vmatpush2.bf16.msra.mxu0 0
        %4888 = vmatprep.subr.bf16.mxu0 0
        %4889 = vmatpush2.bf16.msra.mxu0 0
        %4890 = vmatprep.mubr.bf16.mxu0 0
        %4891 = vmatmul.mubr.bf16.gmra.mxu0 %v4844
        %v4892 = vpop.f32.mrf.mxu0
        %v4893 = vadd.f32 %v4808, %v4892
        %v4894 = vpop.f32.mrf.mxu0
        %v4895 = vadd.f32 %v4808, %v4894
        %v4896 = vpop.f32.mrf.mxu0
        %v4897 = vadd.f32 %v4813, %v4896
        %v4898 = vpop.f32.mrf.mxu0
        %v4899 = vadd.f32 %v4813, %v4898
        %4900 = vmatprep.mubr.bf16.mxu0 0
        %4901 = vmatmul.mubr.bf16.gmra.mxu0 %v4847
        %v4902 = vpop.f32.mrf.mxu0
        %v4903 = vadd.f32 %v4818, %v4902
        %v4904 = vpop.f32.mrf.mxu0
        %v4905 = vadd.f32 %v4818, %v4904
        %v4906 = vpop.f32.mrf.mxu0
        %v4907 = vadd.f32 %v4823, %v4906
        %v4908 = vpop.f32.mrf.mxu0
        %v4909 = vadd.f32 %v4823, %v4908
        %4910 = vmatprep.mubr.bf16.mxu0 0
        %4911 = vmatmul.mubr.bf16.gmra.mxu0 %v4850
        %v4912 = vpop.f32.mrf.mxu0
        %v4913 = vadd.f32 %v4828, %v4912
        %v4914 = vpop.f32.mrf.mxu0
        %v4915 = vadd.f32 %v4828, %v4914
        %v4916 = vpop.f32.mrf.mxu0
        %v4917 = vpop.f32.mrf.mxu0
        %4918 = vdwg.mxu0
        %v4919 = vmul.f32 %v4893, 0.5
        %v4920 = vmul.f32 %v4895, 0.5
        %v4921 = vmul.f32 %v4897, 0.5
        %v4922 = vmul.f32 %v4899, 0.5
        %v4923 = vmul.f32 %v4903, 0.5
        %v4924 = vmul.f32 %v4905, 0.5
        %v4925 = vmul.f32 %v4907, 0.5
        %v4926 = vmul.f32 %v4909, 0.5
        %v4927 = vmul.f32 %v4913, 0.5
        %v4928 = vmul.f32 %v4915, 0.5
        %v4929 = vtanh.pop %v4919
        %v4930 = vtanh.pop %v4920
        %v4931 = vtanh.pop %v4921
        %v4932 = vtanh.pop %v4922
        %v4933 = vtanh.pop %v4923
        %v4934 = vtanh.pop %v4924
        %v4935 = vtanh.pop %v4925
        %v4936 = vtanh.pop %v4926
        %v4937 = vtanh.pop %v4927
        %v4938 = vtanh.pop %v4928
        %v4939 = vmul.f32 %v4919, %v4929
        %v4940 = vmul.f32 %v4920, %v4930
        %v4941 = vmul.f32 %v4921, %v4931
        %v4942 = vmul.f32 %v4922, %v4932
        %v4943 = vmul.f32 %v4923, %v4933
        %v4944 = vmul.f32 %v4924, %v4934
        %v4945 = vmul.f32 %v4925, %v4935
        %v4946 = vmul.f32 %v4926, %v4936
        %v4947 = vmul.f32 %v4927, %v4937
        %v4948 = vmul.f32 %v4928, %v4938
        %v4949 = vadd.f32 %v4919, %v4939
        %v4950 = vadd.f32 %v4920, %v4940
        %v4951 = vadd.f32 %v4921, %v4941
        %v4952 = vadd.f32 %v4922, %v4942
        %v4953 = vadd.f32 %v4923, %v4943
        %v4954 = vadd.f32 %v4924, %v4944
        %v4955 = vadd.f32 %v4925, %v4945
        %v4956 = vadd.f32 %v4926, %v4946
        %v4957 = vadd.f32 %v4927, %v4947
        %v4958 = vadd.f32 %v4928, %v4948
        %v4959 = vmul.f32 %v1866, %v4949
        %v4960 = vmul.f32 %v1866, %v4950
        %v4961 = vmul.f32 %v1871, %v4951
        %v4962 = vmul.f32 %v1871, %v4952
        %v4963 = vmul.f32 %v1876, %v4953
        %v4964 = vmul.f32 %v1876, %v4954
        %v4965 = vmul.f32 %v1881, %v4955
        %v4966 = vmul.f32 %v1881, %v4956
        %v4967 = vmul.f32 %v1886, %v4957
        %v4968 = vmul.f32 %v1886, %v4958
        %v4969 = vadd.f32 %v4959, %v4961
        %v4970 = vadd.f32 %v4969, %v4963
        %v4971 = vadd.f32 %v4970, %v4965
        %v4972 = vadd.f32 %v4971, %v4967
        %v4973 = vrot.slane %v4972, 4
        %v4974 = vadd.f32 %v4972, %v4973
        %v4975 = vrot.slane %v4974, 2
        %v4976 = vadd.f32 %v4974, %v4975
        %v4977 = vrot.slane %v4976, 1
        %v4978 = vadd.f32 %v4976, %v4977
        %v4979 = vadd.f32 %v4960, %v4962
        %v4980 = vadd.f32 %v4979, %v4964
        %v4981 = vadd.f32 %v4980, %v4966
        %v4982 = vadd.f32 %v4981, %v4968
        %v4983 = vrot.slane %v4982, 4
        %v4984 = vadd.f32 %v4982, %v4983
        %v4985 = vrot.slane %v4984, 2
        %v4986 = vadd.f32 %v4984, %v4985
        %v4987 = vrot.slane %v4986, 1
        %v4988 = vadd.f32 %v4986, %v4987
        %v4989 = vadd.f32 %v4978, %v1926
        %v4990 = vadd.f32 %v4988, %v1926
        %v4993 = vcombine.low %v4989, %v4990
        %v4995 = vunpack.c.l.s4 1966171168
        %v4996 = vunpack.c.0.s8 %v4995
        %v4997 = vlaneseq
        %v4998 = vshrl.u32 %v4997, 7
        %v4999 = vsub.s32 %v4996, %v4998
        %v5000 = vrot.slane %v4993, %v4999
        %v5002 = vunpack.c.l.s4 1966171168
        %v5003 = vunpack.c.0.s8 %v5002
        %v5004 = vlaneseq
        %v5005 = vshrl.u32 %v5004, 7
        %v5006 = vsub.s32 %v5003, %v5005
        %v5007 = vrot.slane %v5000, %v5006
        %5009 = vst.msk [vmem:[%s274 + $0x4] sm:$0x3] %vm1950, %v5007
        %v5010 = vld [vmem:[%s279 + $0xc] sm:$0xf]
        %v5012 = vlaneseq
        %v5013 = vshrl.u32 %v5012, 7
        %v5014 = vsub.s32 0, %v5013
        %v5015 = vrot.slane %v5010, %v5014
        %v5016 = vlaneseq
        %v5017 = vshrl.u32 %v5016, 7
        %v5018 = vsub.s32 2, %v5017
        %v5019 = vrot.slane %v5010, %v5018
        %v5022 = vlaneseq
        %v5023 = vshrl.u32 %v5022, 7
        %v5024 = vsub.s32 0, %v5023
        %v5025 = vrot.slane %v5015, %v5024
        %v5026 = vlaneseq
        %v5027 = vshrl.u32 %v5026, 7
        %v5028 = vsub.s32 0, %v5027
        %v5029 = vrot.slane %v5019, %v5028
        %v5030 = vmul.f32 %v303, %v5025
        %v5031 = vmul.f32 %v303, %v5029
        %v5032 = vmul.f32 %v308, %v5025
        %v5033 = vmul.f32 %v308, %v5029
        %v5034 = vmul.f32 %v313, %v5025
        %v5035 = vmul.f32 %v313, %v5029
        %v5036 = vmul.f32 %v318, %v5025
        %v5037 = vmul.f32 %v318, %v5029
        %v5038 = vmul.f32 %v323, %v5025
        %v5039 = vmul.f32 %v323, %v5029
        %v5040 = vlaneseq
        %v5041 = vshrl.u32 %v5040, 7
        %v5042 = vsub.s32 1, %v5041
        %v5043 = vrot.slane %v5010, %v5042
        %v5044 = vlaneseq
        %v5045 = vshrl.u32 %v5044, 7
        %v5046 = vsub.s32 3, %v5045
        %v5047 = vrot.slane %v5010, %v5046
        %v5050 = vlaneseq
        %v5051 = vshrl.u32 %v5050, 7
        %v5052 = vsub.s32 1, %v5051
        %v5053 = vrot.slane %v5043, %v5052
        %v5054 = vlaneseq
        %v5055 = vshrl.u32 %v5054, 7
        %v5056 = vsub.s32 1, %v5055
        %v5057 = vrot.slane %v5047, %v5056
        %v5058 = vmul.f32 %v356, %v5053
        %v5059 = vmul.f32 %v356, %v5057
        %v5060 = vmul.f32 %v360, %v5053
        %v5061 = vmul.f32 %v360, %v5057
        %v5062 = vmul.f32 %v364, %v5053
        %v5063 = vmul.f32 %v364, %v5057
        %v5064 = vmul.f32 %v368, %v5053
        %v5065 = vmul.f32 %v368, %v5057
        %v5066 = vmul.f32 %v372, %v5053
        %v5067 = vmul.f32 %v372, %v5057
        %v5068 = vadd.f32 %v5030, %v5058
        %v5069 = vadd.f32 %v5031, %v5059
        %v5070 = vadd.f32 %v5032, %v5060
        %v5071 = vadd.f32 %v5033, %v5061
        %v5072 = vadd.f32 %v5034, %v5062
        %v5073 = vadd.f32 %v5035, %v5063
        %v5074 = vadd.f32 %v5036, %v5064
        %v5075 = vadd.f32 %v5037, %v5065
        %v5076 = vadd.f32 %v5038, %v5066
        %v5077 = vadd.f32 %v5039, %v5067
        %v5078 = vadd.f32 %v5068, %v415
        %v5079 = vadd.f32 %v5069, %v415
        %v5080 = vadd.f32 %v5070, %v420
        %v5081 = vadd.f32 %v5071, %v420
        %v5082 = vadd.f32 %v5072, %v425
        %v5083 = vadd.f32 %v5073, %v425
        %v5084 = vadd.f32 %v5074, %v430
        %v5085 = vadd.f32 %v5075, %v430
        %v5086 = vadd.f32 %v5076, %v435
        %v5087 = vadd.f32 %v5077, %v435
        %v5088 = vmul.f32 %v5078, 0.5
        %v5089 = vmul.f32 %v5079, 0.5
        %v5090 = vmul.f32 %v5080, 0.5
        %v5091 = vmul.f32 %v5081, 0.5
        %v5092 = vmul.f32 %v5082, 0.5
        %v5093 = vmul.f32 %v5083, 0.5
        %v5094 = vmul.f32 %v5084, 0.5
        %v5095 = vmul.f32 %v5085, 0.5
        %v5096 = vmul.f32 %v5086, 0.5
        %v5097 = vmul.f32 %v5087, 0.5
        %v5098 = vtanh.pop %v5088
        %v5099 = vtanh.pop %v5089
        %v5100 = vtanh.pop %v5090
        %v5101 = vtanh.pop %v5091
        %v5102 = vtanh.pop %v5092
        %v5103 = vtanh.pop %v5093
        %v5104 = vtanh.pop %v5094
        %v5105 = vtanh.pop %v5095
        %v5106 = vtanh.pop %v5096
        %v5107 = vtanh.pop %v5097
        %v5108 = vmul.f32 %v5088, %v5098
        %v5109 = vmul.f32 %v5089, %v5099
        %v5110 = vmul.f32 %v5090, %v5100
        %v5111 = vmul.f32 %v5091, %v5101
        %v5112 = vmul.f32 %v5092, %v5102
        %v5113 = vmul.f32 %v5093, %v5103
        %v5114 = vmul.f32 %v5094, %v5104
        %v5115 = vmul.f32 %v5095, %v5105
        %v5116 = vmul.f32 %v5096, %v5106
        %v5117 = vmul.f32 %v5097, %v5107
        %v5118 = vadd.f32 %v5088, %v5108
        %v5119 = vadd.f32 %v5089, %v5109
        %v5120 = vadd.f32 %v5090, %v5110
        %v5121 = vadd.f32 %v5091, %v5111
        %v5122 = vadd.f32 %v5092, %v5112
        %v5123 = vadd.f32 %v5093, %v5113
        %v5124 = vadd.f32 %v5094, %v5114
        %v5125 = vadd.f32 %v5095, %v5115
        %v5126 = vadd.f32 %v5096, %v5116
        %v5127 = vadd.f32 %v5097, %v5117
        %v5128 = vld [vmem:[%s3] sm:$0xf]
        %v5129 = vld [vmem:[%s3 + $0x4] sm:$0xf]
        %v5130 = vld [vmem:[%s3 + $0x8] sm:$0xf]
        %v5131 = vld [vmem:[%s3 + $0xc] sm:$0xf]
        %v5132 = vld [vmem:[%s3 + $0x10] sm:$0xf]
        %v5133 = vpack.c.bf16 %v5120, %v5118
        %v5134 = vpack.c.bf16 %v5121, %v5119
        %v5135 = vpack.c.bf16 %v5124, %v5122
        %v5136 = vpack.c.bf16 %v5125, %v5123
        %v5137 = vpack.c.bf16 %v5126, %v5126
        %v5138 = vpack.c.bf16 %v5127, %v5127
        %v5139 = vld [vmem:[%s4] sm:$0xff]
        %v5140 = vld [vmem:[%s4 + $0x8] sm:$0xff]
        %v5141 = vld [vmem:[%s4 + $0x10] sm:$0xff]
        %v5142 = vld [vmem:[%s4 + $0x18] sm:$0xff]
        %v5143 = vld [vmem:[%s4 + $0x20] sm:$0xff]
        %5145 = vset.pattern.permute.xlu0 0
        %5146 = vperm.xlu0 %5145, %v5139
        %v5147 = vpop.permute.xlu0 %5146
        %5150 = vset.pattern.permute.xlu0 0
        %5151 = vperm.xlu0 %5150, %v5140
        %v5152 = vpop.permute.xlu0 %5151
        %5155 = vset.pattern.permute.xlu0 0
        %5156 = vperm.xlu0 %5155, %v5141
        %v5157 = vpop.permute.xlu0 %5156
        %5160 = vset.pattern.permute.xlu0 0
        %5161 = vperm.xlu0 %5160, %v5142
        %v5162 = vpop.permute.xlu0 %5161
        %5165 = vset.pattern.permute.xlu0 0
        %5166 = vperm.xlu0 %5165, %v5143
        %v5167 = vpop.permute.xlu0 %5166
        %v5174 = vunpack.c.l.b16 %v5128
        %v5175 = vunpack.c.l.b16 %v5129
        %v5176 = vunpack.c.l.b16 %v5130
        %v5177 = vunpack.c.l.b16 %v5131
        %v5178 = vunpack.c.l.b16 %v5132
        %v5179 = vpack.c.b16 %v5175, %v5174
        %v5180 = vpack.c.b16 %v5177, %v5176
        %v5181 = vpack.c.b16 %v5178, %v5178
        %v5183 = vsel %vm541, %v5179, 0
        %v5186 = vsel %vm541, %v5180, 0
        %v5189 = vsel %vm541, %v5181, 0
        %v5192 = vsel %vm551, %v5137, 0
        %v5195 = vsel %vm551, %v5138, 0
        %5197 = vmatprep.subr.bf16.mxu0 0
        %5198 = vmatpush1.bf16.msra.mxu0 0
        %5199 = vmatprep.subr.bf16.mxu0 0
        %5200 = vmatpush1.bf16.msra.mxu0 0
        %5201 = vmatprep.subr.bf16.mxu0 0
        %5202 = vmatpush1.bf16.msra.mxu0 0
        %5203 = vmatprep.subr.bf16.mxu0 0
        %5204 = vmatpush1.bf16.msra.mxu0 0
        %5205 = vmatprep.subr.bf16.mxu0 0
        %5206 = vmatpush1.bf16.msra.mxu0 0
        %5207 = vmatprep.subr.bf16.mxu0 %v5195
        %5208 = vmatpush1.bf16.msra.mxu0 %v5192
        %5209 = vmatprep.subr.bf16.mxu0 %v5136
        %5210 = vmatpush1.bf16.msra.mxu0 %v5135
        %5211 = vmatprep.subr.bf16.mxu0 %v5134
        %5212 = vmatpush1.bf16.msra.mxu0 %v5133
        %5213 = vmatprep.subr.bf16.mxu0 0
        %5214 = vmatpush2.bf16.msra.mxu0 0
        %5215 = vmatprep.subr.bf16.mxu0 0
        %5216 = vmatpush2.bf16.msra.mxu0 0
        %5217 = vmatprep.subr.bf16.mxu0 0
        %5218 = vmatpush2.bf16.msra.mxu0 0
        %5219 = vmatprep.subr.bf16.mxu0 0
        %5220 = vmatpush2.bf16.msra.mxu0 0
        %5221 = vmatprep.subr.bf16.mxu0 0
        %5222 = vmatpush2.bf16.msra.mxu0 0
        %5223 = vmatprep.subr.bf16.mxu0 0
        %5224 = vmatpush2.bf16.msra.mxu0 0
        %5225 = vmatprep.subr.bf16.mxu0 0
        %5226 = vmatpush2.bf16.msra.mxu0 0
        %5227 = vmatprep.subr.bf16.mxu0 0
        %5228 = vmatpush2.bf16.msra.mxu0 0
        %5229 = vmatprep.mubr.bf16.mxu0 0
        %5230 = vmatmul.mubr.bf16.gmra.mxu0 %v5183
        %v5231 = vpop.f32.mrf.mxu0
        %v5232 = vadd.f32 %v5147, %v5231
        %v5233 = vpop.f32.mrf.mxu0
        %v5234 = vadd.f32 %v5147, %v5233
        %v5235 = vpop.f32.mrf.mxu0
        %v5236 = vadd.f32 %v5152, %v5235
        %v5237 = vpop.f32.mrf.mxu0
        %v5238 = vadd.f32 %v5152, %v5237
        %5239 = vmatprep.mubr.bf16.mxu0 0
        %5240 = vmatmul.mubr.bf16.gmra.mxu0 %v5186
        %v5241 = vpop.f32.mrf.mxu0
        %v5242 = vadd.f32 %v5157, %v5241
        %v5243 = vpop.f32.mrf.mxu0
        %v5244 = vadd.f32 %v5157, %v5243
        %v5245 = vpop.f32.mrf.mxu0
        %v5246 = vadd.f32 %v5162, %v5245
        %v5247 = vpop.f32.mrf.mxu0
        %v5248 = vadd.f32 %v5162, %v5247
        %5249 = vmatprep.mubr.bf16.mxu0 0
        %5250 = vmatmul.mubr.bf16.gmra.mxu0 %v5189
        %v5251 = vpop.f32.mrf.mxu0
        %v5252 = vadd.f32 %v5167, %v5251
        %v5253 = vpop.f32.mrf.mxu0
        %v5254 = vadd.f32 %v5167, %v5253
        %v5255 = vpop.f32.mrf.mxu0
        %v5256 = vpop.f32.mrf.mxu0
        %5257 = vdwg.mxu0
        %v5258 = vmul.f32 %v5232, 0.5
        %v5259 = vmul.f32 %v5234, 0.5
        %v5260 = vmul.f32 %v5236, 0.5
        %v5261 = vmul.f32 %v5238, 0.5
        %v5262 = vmul.f32 %v5242, 0.5
        %v5263 = vmul.f32 %v5244, 0.5
        %v5264 = vmul.f32 %v5246, 0.5
        %v5265 = vmul.f32 %v5248, 0.5
        %v5266 = vmul.f32 %v5252, 0.5
        %v5267 = vmul.f32 %v5254, 0.5
        %v5268 = vtanh.pop %v5258
        %v5269 = vtanh.pop %v5259
        %v5270 = vtanh.pop %v5260
        %v5271 = vtanh.pop %v5261
        %v5272 = vtanh.pop %v5262
        %v5273 = vtanh.pop %v5263
        %v5274 = vtanh.pop %v5264
        %v5275 = vtanh.pop %v5265
        %v5276 = vtanh.pop %v5266
        %v5277 = vtanh.pop %v5267
        %v5278 = vmul.f32 %v5258, %v5268
        %v5279 = vmul.f32 %v5259, %v5269
        %v5280 = vmul.f32 %v5260, %v5270
        %v5281 = vmul.f32 %v5261, %v5271
        %v5282 = vmul.f32 %v5262, %v5272
        %v5283 = vmul.f32 %v5263, %v5273
        %v5284 = vmul.f32 %v5264, %v5274
        %v5285 = vmul.f32 %v5265, %v5275
        %v5286 = vmul.f32 %v5266, %v5276
        %v5287 = vmul.f32 %v5267, %v5277
        %v5288 = vadd.f32 %v5258, %v5278
        %v5289 = vadd.f32 %v5259, %v5279
        %v5290 = vadd.f32 %v5260, %v5280
        %v5291 = vadd.f32 %v5261, %v5281
        %v5292 = vadd.f32 %v5262, %v5282
        %v5293 = vadd.f32 %v5263, %v5283
        %v5294 = vadd.f32 %v5264, %v5284
        %v5295 = vadd.f32 %v5265, %v5285
        %v5296 = vadd.f32 %v5266, %v5286
        %v5297 = vadd.f32 %v5267, %v5287
        %v5298 = vld [vmem:[%s659] sm:$0xf]
        %v5299 = vld [vmem:[%s659 + $0x4] sm:$0xf]
        %v5300 = vld [vmem:[%s659 + $0x8] sm:$0xf]
        %v5301 = vld [vmem:[%s659 + $0xc] sm:$0xf]
        %v5302 = vld [vmem:[%s659 + $0x10] sm:$0xf]
        %v5303 = vpack.c.bf16 %v5290, %v5288
        %v5304 = vpack.c.bf16 %v5291, %v5289
        %v5305 = vpack.c.bf16 %v5294, %v5292
        %v5306 = vpack.c.bf16 %v5295, %v5293
        %v5307 = vpack.c.bf16 %v5296, %v5296
        %v5308 = vpack.c.bf16 %v5297, %v5297
        %v5309 = vld [vmem:[%s671] sm:$0xff]
        %v5310 = vld [vmem:[%s671 + $0x8] sm:$0xff]
        %v5311 = vld [vmem:[%s671 + $0x10] sm:$0xff]
        %v5312 = vld [vmem:[%s671 + $0x18] sm:$0xff]
        %v5313 = vld [vmem:[%s671 + $0x20] sm:$0xff]
        %5315 = vset.pattern.permute.xlu0 0
        %5316 = vperm.xlu0 %5315, %v5309
        %v5317 = vpop.permute.xlu0 %5316
        %5320 = vset.pattern.permute.xlu0 0
        %5321 = vperm.xlu0 %5320, %v5310
        %v5322 = vpop.permute.xlu0 %5321
        %5325 = vset.pattern.permute.xlu0 0
        %5326 = vperm.xlu0 %5325, %v5311
        %v5327 = vpop.permute.xlu0 %5326
        %5330 = vset.pattern.permute.xlu0 0
        %5331 = vperm.xlu0 %5330, %v5312
        %v5332 = vpop.permute.xlu0 %5331
        %5335 = vset.pattern.permute.xlu0 0
        %5336 = vperm.xlu0 %5335, %v5313
        %v5337 = vpop.permute.xlu0 %5336
        %v5344 = vunpack.c.l.b16 %v5298
        %v5345 = vunpack.c.l.b16 %v5299
        %v5346 = vunpack.c.l.b16 %v5300
        %v5347 = vunpack.c.l.b16 %v5301
        %v5348 = vunpack.c.l.b16 %v5302
        %v5349 = vpack.c.b16 %v5345, %v5344
        %v5350 = vpack.c.b16 %v5347, %v5346
        %v5351 = vpack.c.b16 %v5348, %v5348
        %v5353 = vsel %vm541, %v5349, 0
        %v5356 = vsel %vm541, %v5350, 0
        %v5359 = vsel %vm541, %v5351, 0
        %v5362 = vsel %vm551, %v5307, 0
        %v5365 = vsel %vm551, %v5308, 0
        %5367 = vmatprep.subr.bf16.mxu0 0
        %5368 = vmatpush1.bf16.msra.mxu0 0
        %5369 = vmatprep.subr.bf16.mxu0 0
        %5370 = vmatpush1.bf16.msra.mxu0 0
        %5371 = vmatprep.subr.bf16.mxu0 0
        %5372 = vmatpush1.bf16.msra.mxu0 0
        %5373 = vmatprep.subr.bf16.mxu0 0
        %5374 = vmatpush1.bf16.msra.mxu0 0
        %5375 = vmatprep.subr.bf16.mxu0 0
        %5376 = vmatpush1.bf16.msra.mxu0 0
        %5377 = vmatprep.subr.bf16.mxu0 %v5365
        %5378 = vmatpush1.bf16.msra.mxu0 %v5362
        %5379 = vmatprep.subr.bf16.mxu0 %v5306
        %5380 = vmatpush1.bf16.msra.mxu0 %v5305
        %5381 = vmatprep.subr.bf16.mxu0 %v5304
        %5382 = vmatpush1.bf16.msra.mxu0 %v5303
        %5383 = vmatprep.subr.bf16.mxu0 0
        %5384 = vmatpush2.bf16.msra.mxu0 0
        %5385 = vmatprep.subr.bf16.mxu0 0
        %5386 = vmatpush2.bf16.msra.mxu0 0
        %5387 = vmatprep.subr.bf16.mxu0 0
        %5388 = vmatpush2.bf16.msra.mxu0 0
        %5389 = vmatprep.subr.bf16.mxu0 0
        %5390 = vmatpush2.bf16.msra.mxu0 0
        %5391 = vmatprep.subr.bf16.mxu0 0
        %5392 = vmatpush2.bf16.msra.mxu0 0
        %5393 = vmatprep.subr.bf16.mxu0 0
        %5394 = vmatpush2.bf16.msra.mxu0 0
        %5395 = vmatprep.subr.bf16.mxu0 0
        %5396 = vmatpush2.bf16.msra.mxu0 0
        %5397 = vmatprep.subr.bf16.mxu0 0
        %5398 = vmatpush2.bf16.msra.mxu0 0
        %5399 = vmatprep.mubr.bf16.mxu0 0
        %5400 = vmatmul.mubr.bf16.gmra.mxu0 %v5353
        %v5401 = vpop.f32.mrf.mxu0
        %v5402 = vadd.f32 %v5317, %v5401
        %v5403 = vpop.f32.mrf.mxu0
        %v5404 = vadd.f32 %v5317, %v5403
        %v5405 = vpop.f32.mrf.mxu0
        %v5406 = vadd.f32 %v5322, %v5405
        %v5407 = vpop.f32.mrf.mxu0
        %v5408 = vadd.f32 %v5322, %v5407
        %5409 = vmatprep.mubr.bf16.mxu0 0
        %5410 = vmatmul.mubr.bf16.gmra.mxu0 %v5356
        %v5411 = vpop.f32.mrf.mxu0
        %v5412 = vadd.f32 %v5327, %v5411
        %v5413 = vpop.f32.mrf.mxu0
        %v5414 = vadd.f32 %v5327, %v5413
        %v5415 = vpop.f32.mrf.mxu0
        %v5416 = vadd.f32 %v5332, %v5415
        %v5417 = vpop.f32.mrf.mxu0
        %v5418 = vadd.f32 %v5332, %v5417
        %5419 = vmatprep.mubr.bf16.mxu0 0
        %5420 = vmatmul.mubr.bf16.gmra.mxu0 %v5359
        %v5421 = vpop.f32.mrf.mxu0
        %v5422 = vadd.f32 %v5337, %v5421
        %v5423 = vpop.f32.mrf.mxu0
        %v5424 = vadd.f32 %v5337, %v5423
        %v5425 = vpop.f32.mrf.mxu0
        %v5426 = vpop.f32.mrf.mxu0
        %5427 = vdwg.mxu0
        %v5428 = vmul.f32 %v5402, 0.5
        %v5429 = vmul.f32 %v5404, 0.5
        %v5430 = vmul.f32 %v5406, 0.5
        %v5431 = vmul.f32 %v5408, 0.5
        %v5432 = vmul.f32 %v5412, 0.5
        %v5433 = vmul.f32 %v5414, 0.5
        %v5434 = vmul.f32 %v5416, 0.5
        %v5435 = vmul.f32 %v5418, 0.5
        %v5436 = vmul.f32 %v5422, 0.5
        %v5437 = vmul.f32 %v5424, 0.5
        %v5438 = vtanh.pop %v5428
        %v5439 = vtanh.pop %v5429
        %v5440 = vtanh.pop %v5430
        %v5441 = vtanh.pop %v5431
        %v5442 = vtanh.pop %v5432
        %v5443 = vtanh.pop %v5433
        %v5444 = vtanh.pop %v5434
        %v5445 = vtanh.pop %v5435
        %v5446 = vtanh.pop %v5436
        %v5447 = vtanh.pop %v5437
        %v5448 = vmul.f32 %v5428, %v5438
        %v5449 = vmul.f32 %v5429, %v5439
        %v5450 = vmul.f32 %v5430, %v5440
        %v5451 = vmul.f32 %v5431, %v5441
        %v5452 = vmul.f32 %v5432, %v5442
        %v5453 = vmul.f32 %v5433, %v5443
        %v5454 = vmul.f32 %v5434, %v5444
        %v5455 = vmul.f32 %v5435, %v5445
        %v5456 = vmul.f32 %v5436, %v5446
        %v5457 = vmul.f32 %v5437, %v5447
        %v5458 = vadd.f32 %v5428, %v5448
        %v5459 = vadd.f32 %v5429, %v5449
        %v5460 = vadd.f32 %v5430, %v5450
        %v5461 = vadd.f32 %v5431, %v5451
        %v5462 = vadd.f32 %v5432, %v5452
        %v5463 = vadd.f32 %v5433, %v5453
        %v5464 = vadd.f32 %v5434, %v5454
        %v5465 = vadd.f32 %v5435, %v5455
        %v5466 = vadd.f32 %v5436, %v5456
        %v5467 = vadd.f32 %v5437, %v5457
        %v5468 = vld [vmem:[%s831] sm:$0xf]
        %v5469 = vld [vmem:[%s831 + $0x4] sm:$0xf]
        %v5470 = vld [vmem:[%s831 + $0x8] sm:$0xf]
        %v5471 = vld [vmem:[%s831 + $0xc] sm:$0xf]
        %v5472 = vld [vmem:[%s831 + $0x10] sm:$0xf]
        %v5473 = vpack.c.bf16 %v5460, %v5458
        %v5474 = vpack.c.bf16 %v5461, %v5459
        %v5475 = vpack.c.bf16 %v5464, %v5462
        %v5476 = vpack.c.bf16 %v5465, %v5463
        %v5477 = vpack.c.bf16 %v5466, %v5466
        %v5478 = vpack.c.bf16 %v5467, %v5467
        %v5479 = vld [vmem:[%s843] sm:$0xff]
        %v5480 = vld [vmem:[%s843 + $0x8] sm:$0xff]
        %v5481 = vld [vmem:[%s843 + $0x10] sm:$0xff]
        %v5482 = vld [vmem:[%s843 + $0x18] sm:$0xff]
        %v5483 = vld [vmem:[%s843 + $0x20] sm:$0xff]
        %5485 = vset.pattern.permute.xlu0 0
        %5486 = vperm.xlu0 %5485, %v5479
        %v5487 = vpop.permute.xlu0 %5486
        %5490 = vset.pattern.permute.xlu0 0
        %5491 = vperm.xlu0 %5490, %v5480
        %v5492 = vpop.permute.xlu0 %5491
        %5495 = vset.pattern.permute.xlu0 0
        %5496 = vperm.xlu0 %5495, %v5481
        %v5497 = vpop.permute.xlu0 %5496
        %5500 = vset.pattern.permute.xlu0 0
        %5501 = vperm.xlu0 %5500, %v5482
        %v5502 = vpop.permute.xlu0 %5501
        %5505 = vset.pattern.permute.xlu0 0
        %5506 = vperm.xlu0 %5505, %v5483
        %v5507 = vpop.permute.xlu0 %5506
        %v5514 = vunpack.c.l.b16 %v5468
        %v5515 = vunpack.c.l.b16 %v5469
        %v5516 = vunpack.c.l.b16 %v5470
        %v5517 = vunpack.c.l.b16 %v5471
        %v5518 = vunpack.c.l.b16 %v5472
        %v5519 = vpack.c.b16 %v5515, %v5514
        %v5520 = vpack.c.b16 %v5517, %v5516
        %v5521 = vpack.c.b16 %v5518, %v5518
        %v5523 = vsel %vm541, %v5519, 0
        %v5526 = vsel %vm541, %v5520, 0
        %v5529 = vsel %vm541, %v5521, 0
        %v5532 = vsel %vm551, %v5477, 0
        %v5535 = vsel %vm551, %v5478, 0
        %5537 = vmatprep.subr.bf16.mxu0 0
        %5538 = vmatpush1.bf16.msra.mxu0 0
        %5539 = vmatprep.subr.bf16.mxu0 0
        %5540 = vmatpush1.bf16.msra.mxu0 0
        %5541 = vmatprep.subr.bf16.mxu0 0
        %5542 = vmatpush1.bf16.msra.mxu0 0
        %5543 = vmatprep.subr.bf16.mxu0 0
        %5544 = vmatpush1.bf16.msra.mxu0 0
        %5545 = vmatprep.subr.bf16.mxu0 0
        %5546 = vmatpush1.bf16.msra.mxu0 0
        %5547 = vmatprep.subr.bf16.mxu0 %v5535
        %5548 = vmatpush1.bf16.msra.mxu0 %v5532
        %5549 = vmatprep.subr.bf16.mxu0 %v5476
        %5550 = vmatpush1.bf16.msra.mxu0 %v5475
        %5551 = vmatprep.subr.bf16.mxu0 %v5474
        %5552 = vmatpush1.bf16.msra.mxu0 %v5473
        %5553 = vmatprep.subr.bf16.mxu0 0
        %5554 = vmatpush2.bf16.msra.mxu0 0
        %5555 = vmatprep.subr.bf16.mxu0 0
        %5556 = vmatpush2.bf16.msra.mxu0 0
        %5557 = vmatprep.subr.bf16.mxu0 0
        %5558 = vmatpush2.bf16.msra.mxu0 0
        %5559 = vmatprep.subr.bf16.mxu0 0
        %5560 = vmatpush2.bf16.msra.mxu0 0
        %5561 = vmatprep.subr.bf16.mxu0 0
        %5562 = vmatpush2.bf16.msra.mxu0 0
        %5563 = vmatprep.subr.bf16.mxu0 0
        %5564 = vmatpush2.bf16.msra.mxu0 0
        %5565 = vmatprep.subr.bf16.mxu0 0
        %5566 = vmatpush2.bf16.msra.mxu0 0
        %5567 = vmatprep.subr.bf16.mxu0 0
        %5568 = vmatpush2.bf16.msra.mxu0 0
        %5569 = vmatprep.mubr.bf16.mxu0 0
        %5570 = vmatmul.mubr.bf16.gmra.mxu0 %v5523
        %v5571 = vpop.f32.mrf.mxu0
        %v5572 = vadd.f32 %v5487, %v5571
        %v5573 = vpop.f32.mrf.mxu0
        %v5574 = vadd.f32 %v5487, %v5573
        %v5575 = vpop.f32.mrf.mxu0
        %v5576 = vadd.f32 %v5492, %v5575
        %v5577 = vpop.f32.mrf.mxu0
        %v5578 = vadd.f32 %v5492, %v5577
        %5579 = vmatprep.mubr.bf16.mxu0 0
        %5580 = vmatmul.mubr.bf16.gmra.mxu0 %v5526
        %v5581 = vpop.f32.mrf.mxu0
        %v5582 = vadd.f32 %v5497, %v5581
        %v5583 = vpop.f32.mrf.mxu0
        %v5584 = vadd.f32 %v5497, %v5583
        %v5585 = vpop.f32.mrf.mxu0
        %v5586 = vadd.f32 %v5502, %v5585
        %v5587 = vpop.f32.mrf.mxu0
        %v5588 = vadd.f32 %v5502, %v5587
        %5589 = vmatprep.mubr.bf16.mxu0 0
        %5590 = vmatmul.mubr.bf16.gmra.mxu0 %v5529
        %v5591 = vpop.f32.mrf.mxu0
        %v5592 = vadd.f32 %v5507, %v5591
        %v5593 = vpop.f32.mrf.mxu0
        %v5594 = vadd.f32 %v5507, %v5593
        %v5595 = vpop.f32.mrf.mxu0
        %v5596 = vpop.f32.mrf.mxu0
        %5597 = vdwg.mxu0
        %v5598 = vmul.f32 %v5572, 0.5
        %v5599 = vmul.f32 %v5574, 0.5
        %v5600 = vmul.f32 %v5576, 0.5
        %v5601 = vmul.f32 %v5578, 0.5
        %v5602 = vmul.f32 %v5582, 0.5
        %v5603 = vmul.f32 %v5584, 0.5
        %v5604 = vmul.f32 %v5586, 0.5
        %v5605 = vmul.f32 %v5588, 0.5
        %v5606 = vmul.f32 %v5592, 0.5
        %v5607 = vmul.f32 %v5594, 0.5
        %v5608 = vtanh.pop %v5598
        %v5609 = vtanh.pop %v5599
        %v5610 = vtanh.pop %v5600
        %v5611 = vtanh.pop %v5601
        %v5612 = vtanh.pop %v5602
        %v5613 = vtanh.pop %v5603
        %v5614 = vtanh.pop %v5604
        %v5615 = vtanh.pop %v5605
        %v5616 = vtanh.pop %v5606
        %v5617 = vtanh.pop %v5607
        %v5618 = vmul.f32 %v5598, %v5608
        %v5619 = vmul.f32 %v5599, %v5609
        %v5620 = vmul.f32 %v5600, %v5610
        %v5621 = vmul.f32 %v5601, %v5611
        %v5622 = vmul.f32 %v5602, %v5612
        %v5623 = vmul.f32 %v5603, %v5613
        %v5624 = vmul.f32 %v5604, %v5614
        %v5625 = vmul.f32 %v5605, %v5615
        %v5626 = vmul.f32 %v5606, %v5616
        %v5627 = vmul.f32 %v5607, %v5617
        %v5628 = vadd.f32 %v5598, %v5618
        %v5629 = vadd.f32 %v5599, %v5619
        %v5630 = vadd.f32 %v5600, %v5620
        %v5631 = vadd.f32 %v5601, %v5621
        %v5632 = vadd.f32 %v5602, %v5622
        %v5633 = vadd.f32 %v5603, %v5623
        %v5634 = vadd.f32 %v5604, %v5624
        %v5635 = vadd.f32 %v5605, %v5625
        %v5636 = vadd.f32 %v5606, %v5626
        %v5637 = vadd.f32 %v5607, %v5627
        %v5638 = vld [vmem:[%s1003] sm:$0xf]
        %v5639 = vld [vmem:[%s1003 + $0x4] sm:$0xf]
        %v5640 = vld [vmem:[%s1003 + $0x8] sm:$0xf]
        %v5641 = vld [vmem:[%s1003 + $0xc] sm:$0xf]
        %v5642 = vld [vmem:[%s1003 + $0x10] sm:$0xf]
        %v5643 = vpack.c.bf16 %v5630, %v5628
        %v5644 = vpack.c.bf16 %v5631, %v5629
        %v5645 = vpack.c.bf16 %v5634, %v5632
        %v5646 = vpack.c.bf16 %v5635, %v5633
        %v5647 = vpack.c.bf16 %v5636, %v5636
        %v5648 = vpack.c.bf16 %v5637, %v5637
        %v5649 = vld [vmem:[%s1015] sm:$0xff]
        %v5650 = vld [vmem:[%s1015 + $0x8] sm:$0xff]
        %v5651 = vld [vmem:[%s1015 + $0x10] sm:$0xff]
        %v5652 = vld [vmem:[%s1015 + $0x18] sm:$0xff]
        %v5653 = vld [vmem:[%s1015 + $0x20] sm:$0xff]
        %5655 = vset.pattern.permute.xlu0 0
        %5656 = vperm.xlu0 %5655, %v5649
        %v5657 = vpop.permute.xlu0 %5656
        %5660 = vset.pattern.permute.xlu0 0
        %5661 = vperm.xlu0 %5660, %v5650
        %v5662 = vpop.permute.xlu0 %5661
        %5665 = vset.pattern.permute.xlu0 0
        %5666 = vperm.xlu0 %5665, %v5651
        %v5667 = vpop.permute.xlu0 %5666
        %5670 = vset.pattern.permute.xlu0 0
        %5671 = vperm.xlu0 %5670, %v5652
        %v5672 = vpop.permute.xlu0 %5671
        %5675 = vset.pattern.permute.xlu0 0
        %5676 = vperm.xlu0 %5675, %v5653
        %v5677 = vpop.permute.xlu0 %5676
        %v5684 = vunpack.c.l.b16 %v5638
        %v5685 = vunpack.c.l.b16 %v5639
        %v5686 = vunpack.c.l.b16 %v5640
        %v5687 = vunpack.c.l.b16 %v5641
        %v5688 = vunpack.c.l.b16 %v5642
        %v5689 = vpack.c.b16 %v5685, %v5684
        %v5690 = vpack.c.b16 %v5687, %v5686
        %v5691 = vpack.c.b16 %v5688, %v5688
        %v5693 = vsel %vm541, %v5689, 0
        %v5696 = vsel %vm541, %v5690, 0
        %v5699 = vsel %vm541, %v5691, 0
        %v5702 = vsel %vm551, %v5647, 0
        %v5705 = vsel %vm551, %v5648, 0
        %5707 = vmatprep.subr.bf16.mxu0 0
        %5708 = vmatpush1.bf16.msra.mxu0 0
        %5709 = vmatprep.subr.bf16.mxu0 0
        %5710 = vmatpush1.bf16.msra.mxu0 0
        %5711 = vmatprep.subr.bf16.mxu0 0
        %5712 = vmatpush1.bf16.msra.mxu0 0
        %5713 = vmatprep.subr.bf16.mxu0 0
        %5714 = vmatpush1.bf16.msra.mxu0 0
        %5715 = vmatprep.subr.bf16.mxu0 0
        %5716 = vmatpush1.bf16.msra.mxu0 0
        %5717 = vmatprep.subr.bf16.mxu0 %v5705
        %5718 = vmatpush1.bf16.msra.mxu0 %v5702
        %5719 = vmatprep.subr.bf16.mxu0 %v5646
        %5720 = vmatpush1.bf16.msra.mxu0 %v5645
        %5721 = vmatprep.subr.bf16.mxu0 %v5644
        %5722 = vmatpush1.bf16.msra.mxu0 %v5643
        %5723 = vmatprep.subr.bf16.mxu0 0
        %5724 = vmatpush2.bf16.msra.mxu0 0
        %5725 = vmatprep.subr.bf16.mxu0 0
        %5726 = vmatpush2.bf16.msra.mxu0 0
        %5727 = vmatprep.subr.bf16.mxu0 0
        %5728 = vmatpush2.bf16.msra.mxu0 0
        %5729 = vmatprep.subr.bf16.mxu0 0
        %5730 = vmatpush2.bf16.msra.mxu0 0
        %5731 = vmatprep.subr.bf16.mxu0 0
        %5732 = vmatpush2.bf16.msra.mxu0 0
        %5733 = vmatprep.subr.bf16.mxu0 0
        %5734 = vmatpush2.bf16.msra.mxu0 0
        %5735 = vmatprep.subr.bf16.mxu0 0
        %5736 = vmatpush2.bf16.msra.mxu0 0
        %5737 = vmatprep.subr.bf16.mxu0 0
        %5738 = vmatpush2.bf16.msra.mxu0 0
        %5739 = vmatprep.mubr.bf16.mxu0 0
        %5740 = vmatmul.mubr.bf16.gmra.mxu0 %v5693
        %v5741 = vpop.f32.mrf.mxu0
        %v5742 = vadd.f32 %v5657, %v5741
        %v5743 = vpop.f32.mrf.mxu0
        %v5744 = vadd.f32 %v5657, %v5743
        %v5745 = vpop.f32.mrf.mxu0
        %v5746 = vadd.f32 %v5662, %v5745
        %v5747 = vpop.f32.mrf.mxu0
        %v5748 = vadd.f32 %v5662, %v5747
        %5749 = vmatprep.mubr.bf16.mxu0 0
        %5750 = vmatmul.mubr.bf16.gmra.mxu0 %v5696
        %v5751 = vpop.f32.mrf.mxu0
        %v5752 = vadd.f32 %v5667, %v5751
        %v5753 = vpop.f32.mrf.mxu0
        %v5754 = vadd.f32 %v5667, %v5753
        %v5755 = vpop.f32.mrf.mxu0
        %v5756 = vadd.f32 %v5672, %v5755
        %v5757 = vpop.f32.mrf.mxu0
        %v5758 = vadd.f32 %v5672, %v5757
        %5759 = vmatprep.mubr.bf16.mxu0 0
        %5760 = vmatmul.mubr.bf16.gmra.mxu0 %v5699
        %v5761 = vpop.f32.mrf.mxu0
        %v5762 = vadd.f32 %v5677, %v5761
        %v5763 = vpop.f32.mrf.mxu0
        %v5764 = vadd.f32 %v5677, %v5763
        %v5765 = vpop.f32.mrf.mxu0
        %v5766 = vpop.f32.mrf.mxu0
        %5767 = vdwg.mxu0
        %v5768 = vmul.f32 %v5742, 0.5
        %v5769 = vmul.f32 %v5744, 0.5
        %v5770 = vmul.f32 %v5746, 0.5
        %v5771 = vmul.f32 %v5748, 0.5
        %v5772 = vmul.f32 %v5752, 0.5
        %v5773 = vmul.f32 %v5754, 0.5
        %v5774 = vmul.f32 %v5756, 0.5
        %v5775 = vmul.f32 %v5758, 0.5
        %v5776 = vmul.f32 %v5762, 0.5
        %v5777 = vmul.f32 %v5764, 0.5
        %v5778 = vtanh.pop %v5768
        %v5779 = vtanh.pop %v5769
        %v5780 = vtanh.pop %v5770
        %v5781 = vtanh.pop %v5771
        %v5782 = vtanh.pop %v5772
        %v5783 = vtanh.pop %v5773
        %v5784 = vtanh.pop %v5774
        %v5785 = vtanh.pop %v5775
        %v5786 = vtanh.pop %v5776
        %v5787 = vtanh.pop %v5777
        %v5788 = vmul.f32 %v5768, %v5778
        %v5789 = vmul.f32 %v5769, %v5779
        %v5790 = vmul.f32 %v5770, %v5780
        %v5791 = vmul.f32 %v5771, %v5781
        %v5792 = vmul.f32 %v5772, %v5782
        %v5793 = vmul.f32 %v5773, %v5783
        %v5794 = vmul.f32 %v5774, %v5784
        %v5795 = vmul.f32 %v5775, %v5785
        %v5796 = vmul.f32 %v5776, %v5786
        %v5797 = vmul.f32 %v5777, %v5787
        %v5798 = vadd.f32 %v5768, %v5788
        %v5799 = vadd.f32 %v5769, %v5789
        %v5800 = vadd.f32 %v5770, %v5790
        %v5801 = vadd.f32 %v5771, %v5791
        %v5802 = vadd.f32 %v5772, %v5792
        %v5803 = vadd.f32 %v5773, %v5793
        %v5804 = vadd.f32 %v5774, %v5794
        %v5805 = vadd.f32 %v5775, %v5795
        %v5806 = vadd.f32 %v5776, %v5796
        %v5807 = vadd.f32 %v5777, %v5797
        %v5808 = vld [vmem:[%s1175] sm:$0xf]
        %v5809 = vld [vmem:[%s1175 + $0x4] sm:$0xf]
        %v5810 = vld [vmem:[%s1175 + $0x8] sm:$0xf]
        %v5811 = vld [vmem:[%s1175 + $0xc] sm:$0xf]
        %v5812 = vld [vmem:[%s1175 + $0x10] sm:$0xf]
        %v5813 = vpack.c.bf16 %v5800, %v5798
        %v5814 = vpack.c.bf16 %v5801, %v5799
        %v5815 = vpack.c.bf16 %v5804, %v5802
        %v5816 = vpack.c.bf16 %v5805, %v5803
        %v5817 = vpack.c.bf16 %v5806, %v5806
        %v5818 = vpack.c.bf16 %v5807, %v5807
        %v5819 = vld [vmem:[%s1187] sm:$0xff]
        %v5820 = vld [vmem:[%s1187 + $0x8] sm:$0xff]
        %v5821 = vld [vmem:[%s1187 + $0x10] sm:$0xff]
        %v5822 = vld [vmem:[%s1187 + $0x18] sm:$0xff]
        %v5823 = vld [vmem:[%s1187 + $0x20] sm:$0xff]
        %5825 = vset.pattern.permute.xlu0 0
        %5826 = vperm.xlu0 %5825, %v5819
        %v5827 = vpop.permute.xlu0 %5826
        %5830 = vset.pattern.permute.xlu0 0
        %5831 = vperm.xlu0 %5830, %v5820
        %v5832 = vpop.permute.xlu0 %5831
        %5835 = vset.pattern.permute.xlu0 0
        %5836 = vperm.xlu0 %5835, %v5821
        %v5837 = vpop.permute.xlu0 %5836
        %5840 = vset.pattern.permute.xlu0 0
        %5841 = vperm.xlu0 %5840, %v5822
        %v5842 = vpop.permute.xlu0 %5841
        %5845 = vset.pattern.permute.xlu0 0
        %5846 = vperm.xlu0 %5845, %v5823
        %v5847 = vpop.permute.xlu0 %5846
        %v5854 = vunpack.c.l.b16 %v5808
        %v5855 = vunpack.c.l.b16 %v5809
        %v5856 = vunpack.c.l.b16 %v5810
        %v5857 = vunpack.c.l.b16 %v5811
        %v5858 = vunpack.c.l.b16 %v5812
        %v5859 = vpack.c.b16 %v5855, %v5854
        %v5860 = vpack.c.b16 %v5857, %v5856
        %v5861 = vpack.c.b16 %v5858, %v5858
        %v5863 = vsel %vm541, %v5859, 0
        %v5866 = vsel %vm541, %v5860, 0
        %v5869 = vsel %vm541, %v5861, 0
        %v5872 = vsel %vm551, %v5817, 0
        %v5875 = vsel %vm551, %v5818, 0
        %5877 = vmatprep.subr.bf16.mxu0 0
        %5878 = vmatpush1.bf16.msra.mxu0 0
        %5879 = vmatprep.subr.bf16.mxu0 0
        %5880 = vmatpush1.bf16.msra.mxu0 0
        %5881 = vmatprep.subr.bf16.mxu0 0
        %5882 = vmatpush1.bf16.msra.mxu0 0
        %5883 = vmatprep.subr.bf16.mxu0 0
        %5884 = vmatpush1.bf16.msra.mxu0 0
        %5885 = vmatprep.subr.bf16.mxu0 0
        %5886 = vmatpush1.bf16.msra.mxu0 0
        %5887 = vmatprep.subr.bf16.mxu0 %v5875
        %5888 = vmatpush1.bf16.msra.mxu0 %v5872
        %5889 = vmatprep.subr.bf16.mxu0 %v5816
        %5890 = vmatpush1.bf16.msra.mxu0 %v5815
        %5891 = vmatprep.subr.bf16.mxu0 %v5814
        %5892 = vmatpush1.bf16.msra.mxu0 %v5813
        %5893 = vmatprep.subr.bf16.mxu0 0
        %5894 = vmatpush2.bf16.msra.mxu0 0
        %5895 = vmatprep.subr.bf16.mxu0 0
        %5896 = vmatpush2.bf16.msra.mxu0 0
        %5897 = vmatprep.subr.bf16.mxu0 0
        %5898 = vmatpush2.bf16.msra.mxu0 0
        %5899 = vmatprep.subr.bf16.mxu0 0
        %5900 = vmatpush2.bf16.msra.mxu0 0
        %5901 = vmatprep.subr.bf16.mxu0 0
        %5902 = vmatpush2.bf16.msra.mxu0 0
        %5903 = vmatprep.subr.bf16.mxu0 0
        %5904 = vmatpush2.bf16.msra.mxu0 0
        %5905 = vmatprep.subr.bf16.mxu0 0
        %5906 = vmatpush2.bf16.msra.mxu0 0
        %5907 = vmatprep.subr.bf16.mxu0 0
        %5908 = vmatpush2.bf16.msra.mxu0 0
        %5909 = vmatprep.mubr.bf16.mxu0 0
        %5910 = vmatmul.mubr.bf16.gmra.mxu0 %v5863
        %v5911 = vpop.f32.mrf.mxu0
        %v5912 = vadd.f32 %v5827, %v5911
        %v5913 = vpop.f32.mrf.mxu0
        %v5914 = vadd.f32 %v5827, %v5913
        %v5915 = vpop.f32.mrf.mxu0
        %v5916 = vadd.f32 %v5832, %v5915
        %v5917 = vpop.f32.mrf.mxu0
        %v5918 = vadd.f32 %v5832, %v5917
        %5919 = vmatprep.mubr.bf16.mxu0 0
        %5920 = vmatmul.mubr.bf16.gmra.mxu0 %v5866
        %v5921 = vpop.f32.mrf.mxu0
        %v5922 = vadd.f32 %v5837, %v5921
        %v5923 = vpop.f32.mrf.mxu0
        %v5924 = vadd.f32 %v5837, %v5923
        %v5925 = vpop.f32.mrf.mxu0
        %v5926 = vadd.f32 %v5842, %v5925
        %v5927 = vpop.f32.mrf.mxu0
        %v5928 = vadd.f32 %v5842, %v5927
        %5929 = vmatprep.mubr.bf16.mxu0 0
        %5930 = vmatmul.mubr.bf16.gmra.mxu0 %v5869
        %v5931 = vpop.f32.mrf.mxu0
        %v5932 = vadd.f32 %v5847, %v5931
        %v5933 = vpop.f32.mrf.mxu0
        %v5934 = vadd.f32 %v5847, %v5933
        %v5935 = vpop.f32.mrf.mxu0
        %v5936 = vpop.f32.mrf.mxu0
        %5937 = vdwg.mxu0
        %v5938 = vmul.f32 %v5912, 0.5
        %v5939 = vmul.f32 %v5914, 0.5
        %v5940 = vmul.f32 %v5916, 0.5
        %v5941 = vmul.f32 %v5918, 0.5
        %v5942 = vmul.f32 %v5922, 0.5
        %v5943 = vmul.f32 %v5924, 0.5
        %v5944 = vmul.f32 %v5926, 0.5
        %v5945 = vmul.f32 %v5928, 0.5
        %v5946 = vmul.f32 %v5932, 0.5
        %v5947 = vmul.f32 %v5934, 0.5
        %v5948 = vtanh.pop %v5938
        %v5949 = vtanh.pop %v5939
        %v5950 = vtanh.pop %v5940
        %v5951 = vtanh.pop %v5941
        %v5952 = vtanh.pop %v5942
        %v5953 = vtanh.pop %v5943
        %v5954 = vtanh.pop %v5944
        %v5955 = vtanh.pop %v5945
        %v5956 = vtanh.pop %v5946
        %v5957 = vtanh.pop %v5947
        %v5958 = vmul.f32 %v5938, %v5948
        %v5959 = vmul.f32 %v5939, %v5949
        %v5960 = vmul.f32 %v5940, %v5950
        %v5961 = vmul.f32 %v5941, %v5951
        %v5962 = vmul.f32 %v5942, %v5952
        %v5963 = vmul.f32 %v5943, %v5953
        %v5964 = vmul.f32 %v5944, %v5954
        %v5965 = vmul.f32 %v5945, %v5955
        %v5966 = vmul.f32 %v5946, %v5956
        %v5967 = vmul.f32 %v5947, %v5957
        %v5968 = vadd.f32 %v5938, %v5958
        %v5969 = vadd.f32 %v5939, %v5959
        %v5970 = vadd.f32 %v5940, %v5960
        %v5971 = vadd.f32 %v5941, %v5961
        %v5972 = vadd.f32 %v5942, %v5962
        %v5973 = vadd.f32 %v5943, %v5963
        %v5974 = vadd.f32 %v5944, %v5964
        %v5975 = vadd.f32 %v5945, %v5965
        %v5976 = vadd.f32 %v5946, %v5966
        %v5977 = vadd.f32 %v5947, %v5967
        %v5978 = vld [vmem:[%s1347] sm:$0xf]
        %v5979 = vld [vmem:[%s1347 + $0x4] sm:$0xf]
        %v5980 = vld [vmem:[%s1347 + $0x8] sm:$0xf]
        %v5981 = vld [vmem:[%s1347 + $0xc] sm:$0xf]
        %v5982 = vld [vmem:[%s1347 + $0x10] sm:$0xf]
        %v5983 = vpack.c.bf16 %v5970, %v5968
        %v5984 = vpack.c.bf16 %v5971, %v5969
        %v5985 = vpack.c.bf16 %v5974, %v5972
        %v5986 = vpack.c.bf16 %v5975, %v5973
        %v5987 = vpack.c.bf16 %v5976, %v5976
        %v5988 = vpack.c.bf16 %v5977, %v5977
        %v5989 = vld [vmem:[%s1359] sm:$0xff]
        %v5990 = vld [vmem:[%s1359 + $0x8] sm:$0xff]
        %v5991 = vld [vmem:[%s1359 + $0x10] sm:$0xff]
        %v5992 = vld [vmem:[%s1359 + $0x18] sm:$0xff]
        %v5993 = vld [vmem:[%s1359 + $0x20] sm:$0xff]
        %5995 = vset.pattern.permute.xlu0 0
        %5996 = vperm.xlu0 %5995, %v5989
        %v5997 = vpop.permute.xlu0 %5996
        %6000 = vset.pattern.permute.xlu0 0
        %6001 = vperm.xlu0 %6000, %v5990
        %v6002 = vpop.permute.xlu0 %6001
        %6005 = vset.pattern.permute.xlu0 0
        %6006 = vperm.xlu0 %6005, %v5991
        %v6007 = vpop.permute.xlu0 %6006
        %6010 = vset.pattern.permute.xlu0 0
        %6011 = vperm.xlu0 %6010, %v5992
        %v6012 = vpop.permute.xlu0 %6011
        %6015 = vset.pattern.permute.xlu0 0
        %6016 = vperm.xlu0 %6015, %v5993
        %v6017 = vpop.permute.xlu0 %6016
        %v6024 = vunpack.c.l.b16 %v5978
        %v6025 = vunpack.c.l.b16 %v5979
        %v6026 = vunpack.c.l.b16 %v5980
        %v6027 = vunpack.c.l.b16 %v5981
        %v6028 = vunpack.c.l.b16 %v5982
        %v6029 = vpack.c.b16 %v6025, %v6024
        %v6030 = vpack.c.b16 %v6027, %v6026
        %v6031 = vpack.c.b16 %v6028, %v6028
        %v6033 = vsel %vm541, %v6029, 0
        %v6036 = vsel %vm541, %v6030, 0
        %v6039 = vsel %vm541, %v6031, 0
        %v6042 = vsel %vm551, %v5987, 0
        %v6045 = vsel %vm551, %v5988, 0
        %6047 = vmatprep.subr.bf16.mxu0 0
        %6048 = vmatpush1.bf16.msra.mxu0 0
        %6049 = vmatprep.subr.bf16.mxu0 0
        %6050 = vmatpush1.bf16.msra.mxu0 0
        %6051 = vmatprep.subr.bf16.mxu0 0
        %6052 = vmatpush1.bf16.msra.mxu0 0
        %6053 = vmatprep.subr.bf16.mxu0 0
        %6054 = vmatpush1.bf16.msra.mxu0 0
        %6055 = vmatprep.subr.bf16.mxu0 0
        %6056 = vmatpush1.bf16.msra.mxu0 0
        %6057 = vmatprep.subr.bf16.mxu0 %v6045
        %6058 = vmatpush1.bf16.msra.mxu0 %v6042
        %6059 = vmatprep.subr.bf16.mxu0 %v5986
        %6060 = vmatpush1.bf16.msra.mxu0 %v5985
        %6061 = vmatprep.subr.bf16.mxu0 %v5984
        %6062 = vmatpush1.bf16.msra.mxu0 %v5983
        %6063 = vmatprep.subr.bf16.mxu0 0
        %6064 = vmatpush2.bf16.msra.mxu0 0
        %6065 = vmatprep.subr.bf16.mxu0 0
        %6066 = vmatpush2.bf16.msra.mxu0 0
        %6067 = vmatprep.subr.bf16.mxu0 0
        %6068 = vmatpush2.bf16.msra.mxu0 0
        %6069 = vmatprep.subr.bf16.mxu0 0
        %6070 = vmatpush2.bf16.msra.mxu0 0
        %6071 = vmatprep.subr.bf16.mxu0 0
        %6072 = vmatpush2.bf16.msra.mxu0 0
        %6073 = vmatprep.subr.bf16.mxu0 0
        %6074 = vmatpush2.bf16.msra.mxu0 0
        %6075 = vmatprep.subr.bf16.mxu0 0
        %6076 = vmatpush2.bf16.msra.mxu0 0
        %6077 = vmatprep.subr.bf16.mxu0 0
        %6078 = vmatpush2.bf16.msra.mxu0 0
        %6079 = vmatprep.mubr.bf16.mxu0 0
        %6080 = vmatmul.mubr.bf16.gmra.mxu0 %v6033
        %v6081 = vpop.f32.mrf.mxu0
        %v6082 = vadd.f32 %v5997, %v6081
        %v6083 = vpop.f32.mrf.mxu0
        %v6084 = vadd.f32 %v5997, %v6083
        %v6085 = vpop.f32.mrf.mxu0
        %v6086 = vadd.f32 %v6002, %v6085
        %v6087 = vpop.f32.mrf.mxu0
        %v6088 = vadd.f32 %v6002, %v6087
        %6089 = vmatprep.mubr.bf16.mxu0 0
        %6090 = vmatmul.mubr.bf16.gmra.mxu0 %v6036
        %v6091 = vpop.f32.mrf.mxu0
        %v6092 = vadd.f32 %v6007, %v6091
        %v6093 = vpop.f32.mrf.mxu0
        %v6094 = vadd.f32 %v6007, %v6093
        %v6095 = vpop.f32.mrf.mxu0
        %v6096 = vadd.f32 %v6012, %v6095
        %v6097 = vpop.f32.mrf.mxu0
        %v6098 = vadd.f32 %v6012, %v6097
        %6099 = vmatprep.mubr.bf16.mxu0 0
        %6100 = vmatmul.mubr.bf16.gmra.mxu0 %v6039
        %v6101 = vpop.f32.mrf.mxu0
        %v6102 = vadd.f32 %v6017, %v6101
        %v6103 = vpop.f32.mrf.mxu0
        %v6104 = vadd.f32 %v6017, %v6103
        %v6105 = vpop.f32.mrf.mxu0
        %v6106 = vpop.f32.mrf.mxu0
        %6107 = vdwg.mxu0
        %v6108 = vmul.f32 %v6082, 0.5
        %v6109 = vmul.f32 %v6084, 0.5
        %v6110 = vmul.f32 %v6086, 0.5
        %v6111 = vmul.f32 %v6088, 0.5
        %v6112 = vmul.f32 %v6092, 0.5
        %v6113 = vmul.f32 %v6094, 0.5
        %v6114 = vmul.f32 %v6096, 0.5
        %v6115 = vmul.f32 %v6098, 0.5
        %v6116 = vmul.f32 %v6102, 0.5
        %v6117 = vmul.f32 %v6104, 0.5
        %v6118 = vtanh.pop %v6108
        %v6119 = vtanh.pop %v6109
        %v6120 = vtanh.pop %v6110
        %v6121 = vtanh.pop %v6111
        %v6122 = vtanh.pop %v6112
        %v6123 = vtanh.pop %v6113
        %v6124 = vtanh.pop %v6114
        %v6125 = vtanh.pop %v6115
        %v6126 = vtanh.pop %v6116
        %v6127 = vtanh.pop %v6117
        %v6128 = vmul.f32 %v6108, %v6118
        %v6129 = vmul.f32 %v6109, %v6119
        %v6130 = vmul.f32 %v6110, %v6120
        %v6131 = vmul.f32 %v6111, %v6121
        %v6132 = vmul.f32 %v6112, %v6122
        %v6133 = vmul.f32 %v6113, %v6123
        %v6134 = vmul.f32 %v6114, %v6124
        %v6135 = vmul.f32 %v6115, %v6125
        %v6136 = vmul.f32 %v6116, %v6126
        %v6137 = vmul.f32 %v6117, %v6127
        %v6138 = vadd.f32 %v6108, %v6128
        %v6139 = vadd.f32 %v6109, %v6129
        %v6140 = vadd.f32 %v6110, %v6130
        %v6141 = vadd.f32 %v6111, %v6131
        %v6142 = vadd.f32 %v6112, %v6132
        %v6143 = vadd.f32 %v6113, %v6133
        %v6144 = vadd.f32 %v6114, %v6134
        %v6145 = vadd.f32 %v6115, %v6135
        %v6146 = vadd.f32 %v6116, %v6136
        %v6147 = vadd.f32 %v6117, %v6137
        %v6148 = vld [vmem:[%s1519] sm:$0xf]
        %v6149 = vld [vmem:[%s1519 + $0x4] sm:$0xf]
        %v6150 = vld [vmem:[%s1519 + $0x8] sm:$0xf]
        %v6151 = vld [vmem:[%s1519 + $0xc] sm:$0xf]
        %v6152 = vld [vmem:[%s1519 + $0x10] sm:$0xf]
        %v6153 = vpack.c.bf16 %v6140, %v6138
        %v6154 = vpack.c.bf16 %v6141, %v6139
        %v6155 = vpack.c.bf16 %v6144, %v6142
        %v6156 = vpack.c.bf16 %v6145, %v6143
        %v6157 = vpack.c.bf16 %v6146, %v6146
        %v6158 = vpack.c.bf16 %v6147, %v6147
        %v6159 = vld [vmem:[%s1531] sm:$0xff]
        %v6160 = vld [vmem:[%s1531 + $0x8] sm:$0xff]
        %v6161 = vld [vmem:[%s1531 + $0x10] sm:$0xff]
        %v6162 = vld [vmem:[%s1531 + $0x18] sm:$0xff]
        %v6163 = vld [vmem:[%s1531 + $0x20] sm:$0xff]
        %6165 = vset.pattern.permute.xlu0 0
        %6166 = vperm.xlu0 %6165, %v6159
        %v6167 = vpop.permute.xlu0 %6166
        %6170 = vset.pattern.permute.xlu0 0
        %6171 = vperm.xlu0 %6170, %v6160
        %v6172 = vpop.permute.xlu0 %6171
        %6175 = vset.pattern.permute.xlu0 0
        %6176 = vperm.xlu0 %6175, %v6161
        %v6177 = vpop.permute.xlu0 %6176
        %6180 = vset.pattern.permute.xlu0 0
        %6181 = vperm.xlu0 %6180, %v6162
        %v6182 = vpop.permute.xlu0 %6181
        %6185 = vset.pattern.permute.xlu0 0
        %6186 = vperm.xlu0 %6185, %v6163
        %v6187 = vpop.permute.xlu0 %6186
        %v6194 = vunpack.c.l.b16 %v6148
        %v6195 = vunpack.c.l.b16 %v6149
        %v6196 = vunpack.c.l.b16 %v6150
        %v6197 = vunpack.c.l.b16 %v6151
        %v6198 = vunpack.c.l.b16 %v6152
        %v6199 = vpack.c.b16 %v6195, %v6194
        %v6200 = vpack.c.b16 %v6197, %v6196
        %v6201 = vpack.c.b16 %v6198, %v6198
        %v6203 = vsel %vm541, %v6199, 0
        %v6206 = vsel %vm541, %v6200, 0
        %v6209 = vsel %vm541, %v6201, 0
        %v6212 = vsel %vm551, %v6157, 0
        %v6215 = vsel %vm551, %v6158, 0
        %6217 = vmatprep.subr.bf16.mxu0 0
        %6218 = vmatpush1.bf16.msra.mxu0 0
        %6219 = vmatprep.subr.bf16.mxu0 0
        %6220 = vmatpush1.bf16.msra.mxu0 0
        %6221 = vmatprep.subr.bf16.mxu0 0
        %6222 = vmatpush1.bf16.msra.mxu0 0
        %6223 = vmatprep.subr.bf16.mxu0 0
        %6224 = vmatpush1.bf16.msra.mxu0 0
        %6225 = vmatprep.subr.bf16.mxu0 0
        %6226 = vmatpush1.bf16.msra.mxu0 0
        %6227 = vmatprep.subr.bf16.mxu0 %v6215
        %6228 = vmatpush1.bf16.msra.mxu0 %v6212
        %6229 = vmatprep.subr.bf16.mxu0 %v6156
        %6230 = vmatpush1.bf16.msra.mxu0 %v6155
        %6231 = vmatprep.subr.bf16.mxu0 %v6154
        %6232 = vmatpush1.bf16.msra.mxu0 %v6153
        %6233 = vmatprep.subr.bf16.mxu0 0
        %6234 = vmatpush2.bf16.msra.mxu0 0
        %6235 = vmatprep.subr.bf16.mxu0 0
        %6236 = vmatpush2.bf16.msra.mxu0 0
        %6237 = vmatprep.subr.bf16.mxu0 0
        %6238 = vmatpush2.bf16.msra.mxu0 0
        %6239 = vmatprep.subr.bf16.mxu0 0
        %6240 = vmatpush2.bf16.msra.mxu0 0
        %6241 = vmatprep.subr.bf16.mxu0 0
        %6242 = vmatpush2.bf16.msra.mxu0 0
        %6243 = vmatprep.subr.bf16.mxu0 0
        %6244 = vmatpush2.bf16.msra.mxu0 0
        %6245 = vmatprep.subr.bf16.mxu0 0
        %6246 = vmatpush2.bf16.msra.mxu0 0
        %6247 = vmatprep.subr.bf16.mxu0 0
        %6248 = vmatpush2.bf16.msra.mxu0 0
        %6249 = vmatprep.mubr.bf16.mxu0 0
        %6250 = vmatmul.mubr.bf16.gmra.mxu0 %v6203
        %v6251 = vpop.f32.mrf.mxu0
        %v6252 = vadd.f32 %v6167, %v6251
        %v6253 = vpop.f32.mrf.mxu0
        %v6254 = vadd.f32 %v6167, %v6253
        %v6255 = vpop.f32.mrf.mxu0
        %v6256 = vadd.f32 %v6172, %v6255
        %v6257 = vpop.f32.mrf.mxu0
        %v6258 = vadd.f32 %v6172, %v6257
        %6259 = vmatprep.mubr.bf16.mxu0 0
        %6260 = vmatmul.mubr.bf16.gmra.mxu0 %v6206
        %v6261 = vpop.f32.mrf.mxu0
        %v6262 = vadd.f32 %v6177, %v6261
        %v6263 = vpop.f32.mrf.mxu0
        %v6264 = vadd.f32 %v6177, %v6263
        %v6265 = vpop.f32.mrf.mxu0
        %v6266 = vadd.f32 %v6182, %v6265
        %v6267 = vpop.f32.mrf.mxu0
        %v6268 = vadd.f32 %v6182, %v6267
        %6269 = vmatprep.mubr.bf16.mxu0 0
        %6270 = vmatmul.mubr.bf16.gmra.mxu0 %v6209
        %v6271 = vpop.f32.mrf.mxu0
        %v6272 = vadd.f32 %v6187, %v6271
        %v6273 = vpop.f32.mrf.mxu0
        %v6274 = vadd.f32 %v6187, %v6273
        %v6275 = vpop.f32.mrf.mxu0
        %v6276 = vpop.f32.mrf.mxu0
        %6277 = vdwg.mxu0
        %v6278 = vmul.f32 %v6252, 0.5
        %v6279 = vmul.f32 %v6254, 0.5
        %v6280 = vmul.f32 %v6256, 0.5
        %v6281 = vmul.f32 %v6258, 0.5
        %v6282 = vmul.f32 %v6262, 0.5
        %v6283 = vmul.f32 %v6264, 0.5
        %v6284 = vmul.f32 %v6266, 0.5
        %v6285 = vmul.f32 %v6268, 0.5
        %v6286 = vmul.f32 %v6272, 0.5
        %v6287 = vmul.f32 %v6274, 0.5
        %v6288 = vtanh.pop %v6278
        %v6289 = vtanh.pop %v6279
        %v6290 = vtanh.pop %v6280
        %v6291 = vtanh.pop %v6281
        %v6292 = vtanh.pop %v6282
        %v6293 = vtanh.pop %v6283
        %v6294 = vtanh.pop %v6284
        %v6295 = vtanh.pop %v6285
        %v6296 = vtanh.pop %v6286
        %v6297 = vtanh.pop %v6287
        %v6298 = vmul.f32 %v6278, %v6288
        %v6299 = vmul.f32 %v6279, %v6289
        %v6300 = vmul.f32 %v6280, %v6290
        %v6301 = vmul.f32 %v6281, %v6291
        %v6302 = vmul.f32 %v6282, %v6292
        %v6303 = vmul.f32 %v6283, %v6293
        %v6304 = vmul.f32 %v6284, %v6294
        %v6305 = vmul.f32 %v6285, %v6295
        %v6306 = vmul.f32 %v6286, %v6296
        %v6307 = vmul.f32 %v6287, %v6297
        %v6308 = vadd.f32 %v6278, %v6298
        %v6309 = vadd.f32 %v6279, %v6299
        %v6310 = vadd.f32 %v6280, %v6300
        %v6311 = vadd.f32 %v6281, %v6301
        %v6312 = vadd.f32 %v6282, %v6302
        %v6313 = vadd.f32 %v6283, %v6303
        %v6314 = vadd.f32 %v6284, %v6304
        %v6315 = vadd.f32 %v6285, %v6305
        %v6316 = vadd.f32 %v6286, %v6306
        %v6317 = vadd.f32 %v6287, %v6307
        %v6318 = vld [vmem:[%s1691] sm:$0xf]
        %v6319 = vld [vmem:[%s1691 + $0x4] sm:$0xf]
        %v6320 = vld [vmem:[%s1691 + $0x8] sm:$0xf]
        %v6321 = vld [vmem:[%s1691 + $0xc] sm:$0xf]
        %v6322 = vld [vmem:[%s1691 + $0x10] sm:$0xf]
        %v6323 = vpack.c.bf16 %v6310, %v6308
        %v6324 = vpack.c.bf16 %v6311, %v6309
        %v6325 = vpack.c.bf16 %v6314, %v6312
        %v6326 = vpack.c.bf16 %v6315, %v6313
        %v6327 = vpack.c.bf16 %v6316, %v6316
        %v6328 = vpack.c.bf16 %v6317, %v6317
        %v6329 = vld [vmem:[%s1703] sm:$0xff]
        %v6330 = vld [vmem:[%s1703 + $0x8] sm:$0xff]
        %v6331 = vld [vmem:[%s1703 + $0x10] sm:$0xff]
        %v6332 = vld [vmem:[%s1703 + $0x18] sm:$0xff]
        %v6333 = vld [vmem:[%s1703 + $0x20] sm:$0xff]
        %6335 = vset.pattern.permute.xlu0 0
        %6336 = vperm.xlu0 %6335, %v6329
        %v6337 = vpop.permute.xlu0 %6336
        %6340 = vset.pattern.permute.xlu0 0
        %6341 = vperm.xlu0 %6340, %v6330
        %v6342 = vpop.permute.xlu0 %6341
        %6345 = vset.pattern.permute.xlu0 0
        %6346 = vperm.xlu0 %6345, %v6331
        %v6347 = vpop.permute.xlu0 %6346
        %6350 = vset.pattern.permute.xlu0 0
        %6351 = vperm.xlu0 %6350, %v6332
        %v6352 = vpop.permute.xlu0 %6351
        %6355 = vset.pattern.permute.xlu0 0
        %6356 = vperm.xlu0 %6355, %v6333
        %v6357 = vpop.permute.xlu0 %6356
        %v6364 = vunpack.c.l.b16 %v6318
        %v6365 = vunpack.c.l.b16 %v6319
        %v6366 = vunpack.c.l.b16 %v6320
        %v6367 = vunpack.c.l.b16 %v6321
        %v6368 = vunpack.c.l.b16 %v6322
        %v6369 = vpack.c.b16 %v6365, %v6364
        %v6370 = vpack.c.b16 %v6367, %v6366
        %v6371 = vpack.c.b16 %v6368, %v6368
        %v6373 = vsel %vm541, %v6369, 0
        %v6376 = vsel %vm541, %v6370, 0
        %v6379 = vsel %vm541, %v6371, 0
        %v6382 = vsel %vm551, %v6327, 0
        %v6385 = vsel %vm551, %v6328, 0
        %6387 = vmatprep.subr.bf16.mxu0 0
        %6388 = vmatpush1.bf16.msra.mxu0 0
        %6389 = vmatprep.subr.bf16.mxu0 0
        %6390 = vmatpush1.bf16.msra.mxu0 0
        %6391 = vmatprep.subr.bf16.mxu0 0
        %6392 = vmatpush1.bf16.msra.mxu0 0
        %6393 = vmatprep.subr.bf16.mxu0 0
        %6394 = vmatpush1.bf16.msra.mxu0 0
        %6395 = vmatprep.subr.bf16.mxu0 0
        %6396 = vmatpush1.bf16.msra.mxu0 0
        %6397 = vmatprep.subr.bf16.mxu0 %v6385
        %6398 = vmatpush1.bf16.msra.mxu0 %v6382
        %6399 = vmatprep.subr.bf16.mxu0 %v6326
        %6400 = vmatpush1.bf16.msra.mxu0 %v6325
        %6401 = vmatprep.subr.bf16.mxu0 %v6324
        %6402 = vmatpush1.bf16.msra.mxu0 %v6323
        %6403 = vmatprep.subr.bf16.mxu0 0
        %6404 = vmatpush2.bf16.msra.mxu0 0
        %6405 = vmatprep.subr.bf16.mxu0 0
        %6406 = vmatpush2.bf16.msra.mxu0 0
        %6407 = vmatprep.subr.bf16.mxu0 0
        %6408 = vmatpush2.bf16.msra.mxu0 0
        %6409 = vmatprep.subr.bf16.mxu0 0
        %6410 = vmatpush2.bf16.msra.mxu0 0
        %6411 = vmatprep.subr.bf16.mxu0 0
        %6412 = vmatpush2.bf16.msra.mxu0 0
        %6413 = vmatprep.subr.bf16.mxu0 0
        %6414 = vmatpush2.bf16.msra.mxu0 0
        %6415 = vmatprep.subr.bf16.mxu0 0
        %6416 = vmatpush2.bf16.msra.mxu0 0
        %6417 = vmatprep.subr.bf16.mxu0 0
        %6418 = vmatpush2.bf16.msra.mxu0 0
        %6419 = vmatprep.mubr.bf16.mxu0 0
        %6420 = vmatmul.mubr.bf16.gmra.mxu0 %v6373
        %v6421 = vpop.f32.mrf.mxu0
        %v6422 = vadd.f32 %v6337, %v6421
        %v6423 = vpop.f32.mrf.mxu0
        %v6424 = vadd.f32 %v6337, %v6423
        %v6425 = vpop.f32.mrf.mxu0
        %v6426 = vadd.f32 %v6342, %v6425
        %v6427 = vpop.f32.mrf.mxu0
        %v6428 = vadd.f32 %v6342, %v6427
        %6429 = vmatprep.mubr.bf16.mxu0 0
        %6430 = vmatmul.mubr.bf16.gmra.mxu0 %v6376
        %v6431 = vpop.f32.mrf.mxu0
        %v6432 = vadd.f32 %v6347, %v6431
        %v6433 = vpop.f32.mrf.mxu0
        %v6434 = vadd.f32 %v6347, %v6433
        %v6435 = vpop.f32.mrf.mxu0
        %v6436 = vadd.f32 %v6352, %v6435
        %v6437 = vpop.f32.mrf.mxu0
        %v6438 = vadd.f32 %v6352, %v6437
        %6439 = vmatprep.mubr.bf16.mxu0 0
        %6440 = vmatmul.mubr.bf16.gmra.mxu0 %v6379
        %v6441 = vpop.f32.mrf.mxu0
        %v6442 = vadd.f32 %v6357, %v6441
        %v6443 = vpop.f32.mrf.mxu0
        %v6444 = vadd.f32 %v6357, %v6443
        %v6445 = vpop.f32.mrf.mxu0
        %v6446 = vpop.f32.mrf.mxu0
        %6447 = vdwg.mxu0
        %v6448 = vmul.f32 %v6422, 0.5
        %v6449 = vmul.f32 %v6424, 0.5
        %v6450 = vmul.f32 %v6426, 0.5
        %v6451 = vmul.f32 %v6428, 0.5
        %v6452 = vmul.f32 %v6432, 0.5
        %v6453 = vmul.f32 %v6434, 0.5
        %v6454 = vmul.f32 %v6436, 0.5
        %v6455 = vmul.f32 %v6438, 0.5
        %v6456 = vmul.f32 %v6442, 0.5
        %v6457 = vmul.f32 %v6444, 0.5
        %v6458 = vtanh.pop %v6448
        %v6459 = vtanh.pop %v6449
        %v6460 = vtanh.pop %v6450
        %v6461 = vtanh.pop %v6451
        %v6462 = vtanh.pop %v6452
        %v6463 = vtanh.pop %v6453
        %v6464 = vtanh.pop %v6454
        %v6465 = vtanh.pop %v6455
        %v6466 = vtanh.pop %v6456
        %v6467 = vtanh.pop %v6457
        %v6468 = vmul.f32 %v6448, %v6458
        %v6469 = vmul.f32 %v6449, %v6459
        %v6470 = vmul.f32 %v6450, %v6460
        %v6471 = vmul.f32 %v6451, %v6461
        %v6472 = vmul.f32 %v6452, %v6462
        %v6473 = vmul.f32 %v6453, %v6463
        %v6474 = vmul.f32 %v6454, %v6464
        %v6475 = vmul.f32 %v6455, %v6465
        %v6476 = vmul.f32 %v6456, %v6466
        %v6477 = vmul.f32 %v6457, %v6467
        %v6478 = vadd.f32 %v6448, %v6468
        %v6479 = vadd.f32 %v6449, %v6469
        %v6480 = vadd.f32 %v6450, %v6470
        %v6481 = vadd.f32 %v6451, %v6471
        %v6482 = vadd.f32 %v6452, %v6472
        %v6483 = vadd.f32 %v6453, %v6473
        %v6484 = vadd.f32 %v6454, %v6474
        %v6485 = vadd.f32 %v6455, %v6475
        %v6486 = vadd.f32 %v6456, %v6476
        %v6487 = vadd.f32 %v6457, %v6477
        %v6488 = vmul.f32 %v1866, %v6478
        %v6489 = vmul.f32 %v1866, %v6479
        %v6490 = vmul.f32 %v1871, %v6480
        %v6491 = vmul.f32 %v1871, %v6481
        %v6492 = vmul.f32 %v1876, %v6482
        %v6493 = vmul.f32 %v1876, %v6483
        %v6494 = vmul.f32 %v1881, %v6484
        %v6495 = vmul.f32 %v1881, %v6485
        %v6496 = vmul.f32 %v1886, %v6486
        %v6497 = vmul.f32 %v1886, %v6487
        %v6498 = vadd.f32 %v6488, %v6490
        %v6499 = vadd.f32 %v6498, %v6492
        %v6500 = vadd.f32 %v6499, %v6494
        %v6501 = vadd.f32 %v6500, %v6496
        %v6502 = vrot.slane %v6501, 4
        %v6503 = vadd.f32 %v6501, %v6502
        %v6504 = vrot.slane %v6503, 2
        %v6505 = vadd.f32 %v6503, %v6504
        %v6506 = vrot.slane %v6505, 1
        %v6507 = vadd.f32 %v6505, %v6506
        %v6508 = vadd.f32 %v6489, %v6491
        %v6509 = vadd.f32 %v6508, %v6493
        %v6510 = vadd.f32 %v6509, %v6495
        %v6511 = vadd.f32 %v6510, %v6497
        %v6512 = vrot.slane %v6511, 4
        %v6513 = vadd.f32 %v6511, %v6512
        %v6514 = vrot.slane %v6513, 2
        %v6515 = vadd.f32 %v6513, %v6514
        %v6516 = vrot.slane %v6515, 1
        %v6517 = vadd.f32 %v6515, %v6516
        %v6518 = vadd.f32 %v6507, %v1926
        %v6519 = vadd.f32 %v6517, %v1926
        %v6522 = vcombine.low %v6518, %v6519
        %v6524 = vunpack.c.l.s4 1966171168
        %v6525 = vunpack.c.0.s8 %v6524
        %v6526 = vlaneseq
        %v6527 = vshrl.u32 %v6526, 7
        %v6528 = vsub.s32 %v6525, %v6527
        %v6529 = vrot.slane %v6522, %v6528
        %v6531 = vunpack.c.l.s4 1966171168
        %v6532 = vunpack.c.0.s8 %v6531
        %v6533 = vlaneseq
        %v6534 = vshrl.u32 %v6533, 7
        %v6535 = vsub.s32 %v6532, %v6534
        %v6536 = vrot.slane %v6529, %v6535
        %6538 = vst.msk [vmem:[%s274 + $0x6] sm:$0x3] %vm1950, %v6536
        %s6539 = sand.u32 %s183, 1
        %s6540 = scalar_lea.sflag [#allocation4], %s6539
        %s6541 = sand.u32 %s183, 1
        %s6542 = smul.addr %s6541, 8
        %s6543 = scalar_lea.vmem [#allocation3], %s6542
        // Predicated region
        $region49: #{tpu_custom_call.1} parent=47 // pred_check
          %p6544 = pneg %p193
        $region50: #{tpu_custom_call.1} parent=47 // pred_check_branch
          %6546 = sbr.rel (%p6544) target = $region52
        $region51: #{tpu_custom_call.1} parent=47 // pred_region
          %s6547 = smul.u32 8, %s23
          %s6549 = ssub.s32 128, 128
          %6550 = vsyncadd %s6540, %s6549
          %s6551 = smul.addr %s6547, 16
          %s6552 = scalar_lea.hbm %s7, %s6551
          %s6554 = sshll.u32 %s6543, 4
          %s6555 = int_to_ptr.vmem [resolvable:$true] %s6554
          %6557 = dma.vmem_to_hbm [thread:$0]  %s6555, 128, %s6552, %s6540
        $region52: #{tpu_custom_call.1} parent=47 // pred_fallthru
          _
      $region48: #{tpu_custom_call.1} parent=5 // pred_fallthru
        _
      %p6558 = scmp.le.s32.totalorder 2, %s18
      // Predicated region
      $region53: #{tpu_custom_call.1} parent=5 // pred_check
        %p6559 = pneg %p6558
      $region54: #{tpu_custom_call.1} parent=5 // pred_check_branch
        %6561 = sbr.rel (%p6559) target = $region56
      $region55: #{tpu_custom_call.1} parent=5 // pred_region
        %s6562 = ssub.s32 %s18, 2
        // Predicated region
        $region57: #{tpu_custom_call.1} parent=55 // pred_check
          %p6563 = pneg %p199
        $region58: #{tpu_custom_call.1} parent=55 // pred_check_branch
          %6565 = sbr.rel (%p6563) target = $region60
        $region59: #{tpu_custom_call.1} parent=55 // pred_region
          %s6566 = sand.u32 %s184, 1
          %s6567 = scalar_lea.sflag [#allocation4], %s6566
          %s6568 = sand.u32 %s184, 1
          %s6569 = smul.addr %s6568, 8
          %s6570 = scalar_lea.vmem [#allocation3], %s6569
          %6571 = dma.done %s6567, 128
        $region60: #{tpu_custom_call.1} parent=55 // pred_fallthru
          _
      $region56: #{tpu_custom_call.1} parent=5 // pred_fallthru
        _
    $region6: #{tpu_custom_call.1} parent=1 // loop_footer
      %s22 = sadd.s32 1, %s18
    $region7: #{tpu_custom_call.1} parent=1 // loop_footer_branch
      %17 = sbr.rel target = $region3
    $region8: #{tpu_custom_call.1} parent=1 // loop_exit
      _
    %6572 = vsyncpa [#allocation4], 1
    %s6573 = scalar_lea.sflag [#allocation4], 1
    %6574 = vsyncpa %s6573, 1

</llo_original>
